<compile_context>
chip_gen: v7x
topology: tpu7x:2x2x1
jax: 0.10.0
libtpu: 0.0.40
codegen_flags: <defaults>
</compile_context>

<pallas_src>
import functools

import jax
import jax.numpy as jnp
from jax.experimental import pallas as pl
from jax.experimental.pallas import tpu as pltpu


def _round_up(v, m):
    return (v + m - 1) // m * m


def _pick_row_tile(m, cap=256):
    """Largest divisor of m <= cap; keeps >=2 grid steps when m >= 32 (v7x megacore)."""
    best = 1
    for d in range(1, min(m, cap) + 1):
        if m % d:
            continue
        if m >= 32 and d == m:
            continue
        best = d
    return best


# ----------------------------------------------------------------------------
# Pallas kernels
# ----------------------------------------------------------------------------
def _conv1_kernel(r0_ref, r1_ref, r2_ref, w_ref, s_ref, o_ref, *, width):
    # 3x3 conv on a 1-channel input, one output row per grid step, done on the VPU
    # (a K=9 matmul leaves the MXU almost empty).  rX: (W+2, 1) f32 padded halo
    # rows, w: (9, Coutp) f32 (BN scale folded), s: (1, Coutp) f32 shift.
    rows = (r0_ref, r1_ref, r2_ref)
    acc = jnp.zeros((width, w_ref.shape[1]), jnp.float32)
    for dy in range(3):
        for dx in range(3):
            tap = rows[dy][dx:dx + width, :]                      # (width, 1) f32
            acc = acc + tap * w_ref[3 * dy + dx:3 * dy + dx + 1, :]
    o_ref[...] = jnp.maximum(acc + s_ref[...], 0.0).astype(o_ref.dtype)


def _conv3x3_kernel(r0_ref, r1_ref, r2_ref, w_ref, s_ref, o_ref, *, width):
    # Tap-streaming 3x3 conv + folded-BN shift + ReLU for one output row of one
    # image.  rX: (W+2, Cinp) bf16 halo rows of the padded activation; the
    # (width, 9*Cinp) matmul LHS is assembled in VMEM (no im2col in HBM).
    taps = []
    for r_ref in (r0_ref, r1_ref, r2_ref):
        for dx in range(3):
            taps.append(r_ref[dx:dx + width, :])
    lhs = jnp.concatenate(taps, axis=-1)                          # (width, 9*Cinp) bf16
    acc = jnp.dot(lhs, w_ref[...], preferred_element_type=jnp.float32)
    o_ref[...] = jnp.maximum(acc + s_ref[...], 0.0).astype(o_ref.dtype)


def _maxpool_kernel(x_ref, o_ref, *, c):
    # x: (TR, 2, Wo, 2*C) -- vertical 2x2 tap pair on dim 1, horizontal pair
    # interleaved on the lane dim as [w_even | w_odd] blocks of C lanes each.
    x = x_ref[...]
    v = jnp.maximum(x[:, 0], x[:, 1])                             # (TR, Wo, 2*C)
    o_ref[...] = jnp.maximum(v[..., :c], v[..., c:])


def _fc_head_kernel(x_ref, w1_ref, s1_ref, w2_ref, s2_ref, w3_ref, s3_ref, o_ref):
    # fc1+BN+ReLU -> fc2+BN+ReLU -> fc3 fused; intermediates stay in vregs/VMEM.
    h = jnp.dot(x_ref[...], w1_ref[...], preferred_element_type=jnp.float32)
    h = jnp.maximum(h + s1_ref[...], 0.0).astype(jnp.bfloat16)
    h = jnp.dot(h, w2_ref[...], preferred_element_type=jnp.float32)
    h = jnp.maximum(h + s2_ref[...], 0.0).astype(jnp.bfloat16)
    h = jnp.dot(h, w3_ref[...], preferred_element_type=jnp.float32)
    o_ref[...] = (h + s3_ref[...]).astype(o_ref.dtype)


# ----------------------------------------------------------------------------
# Kernel wrappers
# ----------------------------------------------------------------------------
def conv1_bn_relu(x_nhwc, wk, shift):
    """First conv (Cin=1) + BN + ReLU.  x: (N,28,28,1) f32 -> (N,28,28,128) bf16."""
    n, h, w, _ = x_nhwc.shape
    coutp = wk.shape[1]
    xp = jnp.pad(x_nhwc, ((0, 0), (1, 1), (1, 1), (0, 0)))
    wp = w + 2

    def row_spec(dy):
        return pl.BlockSpec((None, None, wp, 1), lambda ni, yi, d=dy: (ni, yi + d, 0, 0))

    return pl.pallas_call(
        functools.partial(_conv1_kernel, width=w),
        out_shape=jax.ShapeDtypeStruct((n, h, w, coutp), jnp.bfloat16),
        grid=(n, h),
        in_specs=[row_spec(0), row_spec(1), row_spec(2),
                  pl.BlockSpec((9, coutp), lambda ni, yi: (0, 0)),
                  pl.BlockSpec((1, coutp), lambda ni, yi: (0, 0))],
        out_specs=pl.BlockSpec((None, None, w, coutp), lambda ni, yi: (ni, yi, 0, 0)),
        compiler_params=pltpu.CompilerParams(
            dimension_semantics=("parallel", "parallel")),
    )(xp, xp, xp, wk, shift)


def conv_bn_relu(x, wk, shift):
    """Tap-streaming 3x3 conv (stride 1, pad 1) + folded BN + ReLU.
    x: (N,H,W,Cinp) bf16 channel-padded NHWC -> (N,H,W,Coutp) bf16."""
    n, h, w, cinp = x.shape
    coutp = wk.shape[1]
    xp = jnp.pad(x, ((0, 0), (1, 1), (1, 1), (0, 0)))
    # TODO(synk): write the spatial halo directly from the previous kernel (or mask
    # border taps in-kernel) to drop this one XLA pad copy per conv layer.
    wp = w + 2

    def row_spec(dy):
        return pl.BlockSpec((None, None, wp, cinp),
                            lambda ni, yi, d=dy: (ni, yi + d, 0, 0))

    return pl.pallas_call(
        functools.partial(_conv3x3_kernel, width=w),
        out_shape=jax.ShapeDtypeStruct((n, h, w, coutp), jnp.bfloat16),
        grid=(n, h),
        in_specs=[row_spec(0), row_spec(1), row_spec(2),
                  pl.BlockSpec((9 * cinp, coutp), lambda ni, yi: (0, 0)),
                  pl.BlockSpec((1, coutp), lambda ni, yi: (0, 0))],
        out_specs=pl.BlockSpec((None, None, w, coutp), lambda ni, yi: (ni, yi, 0, 0)),
        compiler_params=pltpu.CompilerParams(
            dimension_semantics=("parallel", "parallel")),
    )(xp, xp, xp, wk, shift)


def maxpool2x2(x):
    """2x2 / stride-2 max pool (floor mode).  x: (N,H,W,C) bf16, C multiple of 128."""
    n, h, w, c = x.shape
    ho, wo = h // 2, w // 2
    if h % 2 or w % 2:
        x = x[:, :2 * ho, :2 * wo, :]   # floor mode; tiny copy only for the 7x7 map
    t = x.reshape(n * ho, 2, wo, 2 * c)  # free bitcast: x[n,2i+a,2j+b,c] -> t[r,a,j,b*C+c]
    r = n * ho
    tr = _pick_row_tile(r)
    out = pl.pallas_call(
        functools.partial(_maxpool_kernel, c=c),
        out_shape=jax.ShapeDtypeStruct((r, wo, c), x.dtype),
        grid=(r // tr,),
        in_specs=[pl.BlockSpec((tr, 2, wo, 2 * c), lambda i: (i, 0, 0, 0))],
        out_specs=pl.BlockSpec((tr, wo, c), lambda i: (i, 0, 0)),
        compiler_params=pltpu.CompilerParams(dimension_semantics=("parallel",)),
    )(t)
    return out.reshape(n, ho, wo, c)
# TODO(synk): fuse the pool into the preceding conv's epilogue (row-pair grid steps)
# and, further, fuse whole conv+conv+pool blocks into one pallas_call with
# VMEM-resident activations; kept as separate kernels to stay within plain
# BlockSpec indexing (the in-kernel spatial regroup needs halo-window DMAs).


def fc_head(feats, fc_params, num_classes=10):
    """Fused fc1+BN+ReLU -> fc2+BN+ReLU -> fc3.  feats: (N, 2304) bf16 -> (N, 10) f32."""
    w1p, s1p, w2p, s2p, w3p, s3p = fc_params
    m, k1 = feats.shape
    f1p, f2, f3p = w1p.shape[1], w2p.shape[1], w3p.shape[1]
    tm = _pick_row_tile(m, cap=256)
    out = pl.pallas_call(
        _fc_head_kernel,
        out_shape=jax.ShapeDtypeStruct((m, f3p), jnp.float32),
        grid=(m // tm,),
        in_specs=[
            pl.BlockSpec((tm, k1), lambda i: (i, 0)),
            pl.BlockSpec((k1, f1p), lambda i: (0, 0)),
            pl.BlockSpec((1, f1p), lambda i: (0, 0)),
            pl.BlockSpec((f1p, f2), lambda i: (0, 0)),
            pl.BlockSpec((1, f2), lambda i: (0, 0)),
            pl.BlockSpec((f2, f3p), lambda i: (0, 0)),
            pl.BlockSpec((1, f3p), lambda i: (0, 0)),
        ],
        out_specs=pl.BlockSpec((tm, f3p), lambda i: (i, 0)),
        compiler_params=pltpu.CompilerParams(dimension_semantics=("parallel",)),
    )(feats, w1p, s1p, w2p, s2p, w3p, s3p)
    return out[:, :num_classes]


# ----------------------------------------------------------------------------
# One-time parameter preprocessing (hoisted out of the jitted forward)
# ----------------------------------------------------------------------------
def _fold_bn(bias, gamma, beta, mean, var, eps=1e-5):
    inv = gamma / jnp.sqrt(var + eps)
    return inv, beta + (bias - mean) * inv          # scale, shift


def _prep_conv1(w, b, bn, cout_pad):
    cout = w.shape[0]
    scale, shift = _fold_bn(b, *bn)
    wk = jnp.transpose(w[:, 0], (1, 2, 0)).reshape(9, cout) * scale[None, :]
    wk = jnp.pad(wk, ((0, 0), (0, cout_pad - cout))).astype(jnp.float32)
    sh = jnp.pad(shift, (0, cout_pad - cout)).reshape(1, cout_pad).astype(jnp.float32)
    return wk, sh


def _prep_conv(w, b, bn, cin_pad, cout_pad):
    """(Cout,Cin,3,3) conv + BN -> (9*cin_pad, cout_pad) bf16 tap-major matmul weight
    (BN scale folded, zero rows for carried channel padding) and (1,cout_pad) shift."""
    cout, cin = w.shape[0], w.shape[1]
    scale, shift = _fold_bn(b, *bn)
    wt = jnp.transpose(w, (2, 3, 1, 0)) * scale[None, None, None, :]   # (3,3,Cin,Cout)
    wt = jnp.pad(wt, ((0, 0), (0, 0), (0, cin_pad - cin), (0, cout_pad - cout)))
    wk = wt.reshape(9 * cin_pad, cout_pad).astype(jnp.bfloat16)
    sh = jnp.pad(shift, (0, cout_pad - cout)).reshape(1, cout_pad).astype(jnp.float32)
    return wk, sh


def _prep_fc(params):
    (w1, b1), bn1 = params["fc1"], params["bnf1"]
    (w2, b2), bn2 = params["fc2"], params["bnf2"]
    (w3, b3) = params["fc3"]
    f1, k1 = w1.shape            # (156, 2304)
    f2 = w2.shape[0]             # 128
    f3 = w3.shape[0]             # 10
    f1p = _round_up(f1, 128)     # 256
    f3p = _round_up(f3, 128)     # 128
    s1_scale, s1_shift = _fold_bn(b1, *bn1)
    s2_scale, s2_shift = _fold_bn(b2, *bn2)
    # Permute fc1 columns from PyTorch NCHW-flatten order (c,h,w) to NHWC (h,w,c)
    # so the activation flatten needs no transpose.
    w1_nhwc = jnp.transpose(w1.reshape(f1, 256, 3, 3), (0, 2, 3, 1)).reshape(f1, k1)
    w1p = jnp.pad(w1_nhwc.T * s1_scale[None, :], ((0, 0), (0, f1p - f1))).astype(jnp.bfloat16)
    s1p = jnp.pad(s1_shift, (0, f1p - f1)).reshape(1, f1p).astype(jnp.float32)
    w2p = jnp.pad(w2.T * s2_scale[None, :], ((0, f1p - f1), (0, 0))).astype(jnp.bfloat16)
    s2p = s2_shift.reshape(1, f2).astype(jnp.float32)
    w3p = jnp.pad(w3.T, ((0, 0), (0, f3p - f3))).astype(jnp.bfloat16)
    s3p = jnp.pad(b3, (0, f3p - f3)).reshape(1, f3p).astype(jnp.float32)
    return w1p, s1p, w2p, s2p, w3p, s3p


def prepare_params(params):
    """One-time prep: BN fold, layout permutes, 128-lane channel padding, bf16 casts."""
    return {
        "conv1": _prep_conv1(*params["conv1"], params["bn1"], 128),
        "conv2": _prep_conv(*params["conv2"], params["bn2"], 128, 128),
        "conv3": _prep_conv(*params["conv3"], params["bn3"], 128, 128),
        "conv4": _prep_conv(*params["conv4"], params["bn4"], 128, 128),
        "conv5": _prep_conv(*params["conv5"], params["bn5"], 128, 256),
        "fc": _prep_fc(params),
    }


# ----------------------------------------------------------------------------
# Parameter init (matches the PyTorch module's shapes) and forward pass
# ----------------------------------------------------------------------------
def init_params(key):
    channels = [32, 64, 128, 256]
    ks = list(jax.random.split(key, 8))

    def conv_p(k, cin, cout):
        k1, k2 = jax.random.split(k)
        bound = (cin * 9) ** -0.5
        w = jax.random.uniform(k1, (cout, cin, 3, 3), jnp.float32, -bound, bound)
        b = jax.random.uniform(k2, (cout,), jnp.float32, -bound, bound)
        return (w, b)

    def lin_p(k, fin, fout):
        k1, k2 = jax.random.split(k)
        bound = fin ** -0.5
        w = jax.random.uniform(k1, (fout, fin), jnp.float32, -bound, bound)
        b = jax.random.uniform(k2, (fout,), jnp.float32, -bound, bound)
        return (w, b)

    def bn_p(c):  # gamma, beta, running_mean, running_var (fresh BN, eval mode)
        return (jnp.ones((c,), jnp.float32), jnp.zeros((c,), jnp.float32),
                jnp.zeros((c,), jnp.float32), jnp.ones((c,), jnp.float32))

    return {
        "conv1": conv_p(ks[0], 1, channels[0]),           "bn1": bn_p(channels[0]),
        "conv2": conv_p(ks[1], channels[0], channels[1]), "bn2": bn_p(channels[1]),
        "conv3": conv_p(ks[2], channels[1], channels[2]), "bn3": bn_p(channels[2]),
        "conv4": conv_p(ks[3], channels[2], channels[2]), "bn4": bn_p(channels[2]),
        "conv5": conv_p(ks[4], channels[2], channels[3]), "bn5": bn_p(channels[3]),
        "fc1": lin_p(ks[5], channels[3] * 3 * 3, 156),    "bnf1": bn_p(156),
        "fc2": lin_p(ks[6], 156, 128),                    "bnf2": bn_p(128),
        "fc3": lin_p(ks[7], 128, 10),
    }


def my_model_forward(prep, img_nchw):
    """MyModel forward (eval: BN running stats, Dropout identity).  img: (N,1,28,28)."""
    x = jnp.transpose(img_nchw, (0, 2, 3, 1)).astype(jnp.float32)   # NCHW -> NHWC
    # block1
    x = conv1_bn_relu(x, *prep["conv1"])        # (N,28,28,128) bf16 (real C=32)
    x = conv_bn_relu(x, *prep["conv2"])         # (N,28,28,128)      (real C=64)
    x = maxpool2x2(x)                           # 28 -> 14
    # block2
    x = conv_bn_relu(x, *prep["conv3"])         # (N,14,14,128)
    x = conv_bn_relu(x, *prep["conv4"])         # (N,14,14,128)
    x = maxpool2x2(x)                           # 14 -> 7
    # block3
    x = conv_bn_relu(x, *prep["conv5"])         # (N,7,7,256)
    x = maxpool2x2(x)                           # 7 -> 3
    # ff_network: flatten in NHWC order (fc1 weight columns were permuted to match);
    # Dropout is identity in eval mode.
    feats = x.reshape(x.shape[0], -1)           # (N, 3*3*256), free bitcast reshape
    return fc_head(feats, prep["fc"])


if __name__ == "__main__":
    key = jax.random.PRNGKey(0)
    pkey, xkey = jax.random.split(key)
    params = init_params(pkey)
    prep = prepare_params(params)               # one-time weight prep, outside jit
    # 28x28 single-channel input is required by the 256*3*3 flatten in ff_network.
    img = jax.random.normal(xkey, (2, 1, 28, 28), jnp.float32)
    out = jax.jit(my_model_forward)(prep, img)
    out = jax.block_until_ready(out)
    assert out.shape == (2, 10)
    assert bool(jnp.all(jnp.isfinite(out)))
    print("KERNEL_OK")
</pallas_src>

<mosaic_0001>
module attributes {stable_mosaic.version = 11 : i64} {
  func.func @_conv1_kernel(%arg0: i32, %arg1: i32, %arg2: memref<1x1x30x1xf32, #tpu.memory_space<vmem>>, %arg3: memref<1x1x30x1xf32, #tpu.memory_space<vmem>>, %arg4: memref<1x1x30x1xf32, #tpu.memory_space<vmem>>, %arg5: memref<9x128xf32, #tpu.memory_space<vmem>>, %arg6: memref<1x128xf32, #tpu.memory_space<vmem>>, %arg7: memref<1x1x28x128xbf16, #tpu.memory_space<vmem>>) attributes {dimension_semantics = [#tpu.dimension_semantics<parallel>, #tpu.dimension_semantics<parallel>], iteration_bounds = array<i64: 2, 28>, scalar_prefetch = 0 : i64, scratch_operands = 0 : i64, tpu.core_type = #tpu.core_type<tc>, window_params = [{transform_indices = @transform_0, window_bounds = array<i64: 1, 1, 30, 1>}, {transform_indices = @transform_1, window_bounds = array<i64: 1, 1, 30, 1>}, {transform_indices = @transform_2, window_bounds = array<i64: 1, 1, 30, 1>}, {pipeline_mode = #tpu.pipeline_mode<synchronous>, transform_indices = @transform_3, window_bounds = array<i64: 9, 128>}, {pipeline_mode = #tpu.pipeline_mode<synchronous>, transform_indices = @transform_4, window_bounds = array<i64: 1, 128>}, {transform_indices = @transform_5, window_bounds = array<i64: 1, 1, 28, 128>}]} {
    %cst = arith.constant 0.000000e+00 : f32
    %0 = vector.broadcast %cst : f32 to vector<28x128xf32>
    %c0 = arith.constant 0 : index
    %c0_0 = arith.constant 0 : index
    %c0_1 = arith.constant 0 : index
    %c0_2 = arith.constant 0 : index
    %1 = vector.load %arg2[%c0, %c0_0, %c0_1, %c0_2] : memref<1x1x30x1xf32, #tpu.memory_space<vmem>>, vector<1x1x28x1xf32>
    %2 = vector.shape_cast %1 : vector<1x1x28x1xf32> to vector<28x1xf32>
    %c0_3 = arith.constant 0 : index
    %c0_4 = arith.constant 0 : index
    %3 = vector.load %arg5[%c0_3, %c0_4] : memref<9x128xf32, #tpu.memory_space<vmem>>, vector<1x128xf32>
    %4 = vector.broadcast %2 : vector<28x1xf32> to vector<28x128xf32>
    %5 = vector.broadcast %3 : vector<1x128xf32> to vector<28x128xf32>
    %6 = arith.mulf %4, %5 : vector<28x128xf32>
    %7 = arith.addf %0, %6 : vector<28x128xf32>
    %c0_5 = arith.constant 0 : index
    %c0_6 = arith.constant 0 : index
    %c1 = arith.constant 1 : index
    %c0_7 = arith.constant 0 : index
    %8 = vector.load %arg2[%c0_5, %c0_6, %c1, %c0_7] : memref<1x1x30x1xf32, #tpu.memory_space<vmem>>, vector<1x1x28x1xf32>
    %9 = vector.shape_cast %8 : vector<1x1x28x1xf32> to vector<28x1xf32>
    %c1_8 = arith.constant 1 : index
    %c0_9 = arith.constant 0 : index
    %10 = vector.load %arg5[%c1_8, %c0_9] : memref<9x128xf32, #tpu.memory_space<vmem>>, vector<1x128xf32>
    %11 = vector.broadcast %9 : vector<28x1xf32> to vector<28x128xf32>
    %12 = vector.broadcast %10 : vector<1x128xf32> to vector<28x128xf32>
    %13 = arith.mulf %11, %12 : vector<28x128xf32>
    %14 = arith.addf %7, %13 : vector<28x128xf32>
    %c0_10 = arith.constant 0 : index
    %c0_11 = arith.constant 0 : index
    %c2 = arith.constant 2 : index
    %c0_12 = arith.constant 0 : index
    %15 = vector.load %arg2[%c0_10, %c0_11, %c2, %c0_12] : memref<1x1x30x1xf32, #tpu.memory_space<vmem>>, vector<1x1x28x1xf32>
    %16 = vector.shape_cast %15 : vector<1x1x28x1xf32> to vector<28x1xf32>
    %c2_13 = arith.constant 2 : index
    %c0_14 = arith.constant 0 : index
    %17 = vector.load %arg5[%c2_13, %c0_14] : memref<9x128xf32, #tpu.memory_space<vmem>>, vector<1x128xf32>
    %18 = vector.broadcast %16 : vector<28x1xf32> to vector<28x128xf32>
    %19 = vector.broadcast %17 : vector<1x128xf32> to vector<28x128xf32>
    %20 = arith.mulf %18, %19 : vector<28x128xf32>
    %21 = arith.addf %14, %20 : vector<28x128xf32>
    %c0_15 = arith.constant 0 : index
    %c0_16 = arith.constant 0 : index
    %c0_17 = arith.constant 0 : index
    %c0_18 = arith.constant 0 : index
    %22 = vector.load %arg3[%c0_15, %c0_16, %c0_17, %c0_18] : memref<1x1x30x1xf32, #tpu.memory_space<vmem>>, vector<1x1x28x1xf32>
    %23 = vector.shape_cast %22 : vector<1x1x28x1xf32> to vector<28x1xf32>
    %c3 = arith.constant 3 : index
    %c0_19 = arith.constant 0 : index
    %24 = vector.load %arg5[%c3, %c0_19] : memref<9x128xf32, #tpu.memory_space<vmem>>, vector<1x128xf32>
    %25 = vector.broadcast %23 : vector<28x1xf32> to vector<28x128xf32>
    %26 = vector.broadcast %24 : vector<1x128xf32> to vector<28x128xf32>
    %27 = arith.mulf %25, %26 : vector<28x128xf32>
    %28 = arith.addf %21, %27 : vector<28x128xf32>
    %c0_20 = arith.constant 0 : index
    %c0_21 = arith.constant 0 : index
    %c1_22 = arith.constant 1 : index
    %c0_23 = arith.constant 0 : index
    %29 = vector.load %arg3[%c0_20, %c0_21, %c1_22, %c0_23] : memref<1x1x30x1xf32, #tpu.memory_space<vmem>>, vector<1x1x28x1xf32>
    %30 = vector.shape_cast %29 : vector<1x1x28x1xf32> to vector<28x1xf32>
    %c4 = arith.constant 4 : index
    %c0_24 = arith.constant 0 : index
    %31 = vector.load %arg5[%c4, %c0_24] : memref<9x128xf32, #tpu.memory_space<vmem>>, vector<1x128xf32>
    %32 = vector.broadcast %30 : vector<28x1xf32> to vector<28x128xf32>
    %33 = vector.broadcast %31 : vector<1x128xf32> to vector<28x128xf32>
    %34 = arith.mulf %32, %33 : vector<28x128xf32>
    %35 = arith.addf %28, %34 : vector<28x128xf32>
    %c0_25 = arith.constant 0 : index
    %c0_26 = arith.constant 0 : index
    %c2_27 = arith.constant 2 : index
    %c0_28 = arith.constant 0 : index
    %36 = vector.load %arg3[%c0_25, %c0_26, %c2_27, %c0_28] : memref<1x1x30x1xf32, #tpu.memory_space<vmem>>, vector<1x1x28x1xf32>
    %37 = vector.shape_cast %36 : vector<1x1x28x1xf32> to vector<28x1xf32>
    %c5 = arith.constant 5 : index
    %c0_29 = arith.constant 0 : index
    %38 = vector.load %arg5[%c5, %c0_29] : memref<9x128xf32, #tpu.memory_space<vmem>>, vector<1x128xf32>
    %39 = vector.broadcast %37 : vector<28x1xf32> to vector<28x128xf32>
    %40 = vector.broadcast %38 : vector<1x128xf32> to vector<28x128xf32>
    %41 = arith.mulf %39, %40 : vector<28x128xf32>
    %42 = arith.addf %35, %41 : vector<28x128xf32>
    %c0_30 = arith.constant 0 : index
    %c0_31 = arith.constant 0 : index
    %c0_32 = arith.constant 0 : index
    %c0_33 = arith.constant 0 : index
    %43 = vector.load %arg4[%c0_30, %c0_31, %c0_32, %c0_33] : memref<1x1x30x1xf32, #tpu.memory_space<vmem>>, vector<1x1x28x1xf32>
    %44 = vector.shape_cast %43 : vector<1x1x28x1xf32> to vector<28x1xf32>
    %c6 = arith.constant 6 : index
    %c0_34 = arith.constant 0 : index
    %45 = vector.load %arg5[%c6, %c0_34] : memref<9x128xf32, #tpu.memory_space<vmem>>, vector<1x128xf32>
    %46 = vector.broadcast %44 : vector<28x1xf32> to vector<28x128xf32>
    %47 = vector.broadcast %45 : vector<1x128xf32> to vector<28x128xf32>
    %48 = arith.mulf %46, %47 : vector<28x128xf32>
    %49 = arith.addf %42, %48 : vector<28x128xf32>
    %c0_35 = arith.constant 0 : index
    %c0_36 = arith.constant 0 : index
    %c1_37 = arith.constant 1 : index
    %c0_38 = arith.constant 0 : index
    %50 = vector.load %arg4[%c0_35, %c0_36, %c1_37, %c0_38] : memref<1x1x30x1xf32, #tpu.memory_space<vmem>>, vector<1x1x28x1xf32>
    %51 = vector.shape_cast %50 : vector<1x1x28x1xf32> to vector<28x1xf32>
    %c7 = arith.constant 7 : index
    %c0_39 = arith.constant 0 : index
    %52 = vector.load %arg5[%c7, %c0_39] : memref<9x128xf32, #tpu.memory_space<vmem>>, vector<1x128xf32>
    %53 = vector.broadcast %51 : vector<28x1xf32> to vector<28x128xf32>
    %54 = vector.broadcast %52 : vector<1x128xf32> to vector<28x128xf32>
    %55 = arith.mulf %53, %54 : vector<28x128xf32>
    %56 = arith.addf %49, %55 : vector<28x128xf32>
    %c0_40 = arith.constant 0 : index
    %c0_41 = arith.constant 0 : index
    %c2_42 = arith.constant 2 : index
    %c0_43 = arith.constant 0 : index
    %57 = vector.load %arg4[%c0_40, %c0_41, %c2_42, %c0_43] : memref<1x1x30x1xf32, #tpu.memory_space<vmem>>, vector<1x1x28x1xf32>
    %58 = vector.shape_cast %57 : vector<1x1x28x1xf32> to vector<28x1xf32>
    %c8 = arith.constant 8 : index
    %c0_44 = arith.constant 0 : index
    %59 = vector.load %arg5[%c8, %c0_44] : memref<9x128xf32, #tpu.memory_space<vmem>>, vector<1x128xf32>
    %60 = vector.broadcast %58 : vector<28x1xf32> to vector<28x128xf32>
    %61 = vector.broadcast %59 : vector<1x128xf32> to vector<28x128xf32>
    %62 = arith.mulf %60, %61 : vector<28x128xf32>
    %63 = arith.addf %56, %62 : vector<28x128xf32>
    %c0_45 = arith.constant 0 : index
    %c0_46 = arith.constant 0 : index
    %64 = vector.load %arg6[%c0_45, %c0_46] : memref<1x128xf32, #tpu.memory_space<vmem>>, vector<1x128xf32>
    %65 = vector.broadcast %64 : vector<1x128xf32> to vector<28x128xf32>
    %66 = arith.addf %63, %65 : vector<28x128xf32>
    %cst_47 = arith.constant 0.000000e+00 : f32
    %67 = vector.broadcast %cst_47 : f32 to vector<28x128xf32>
    %68 = arith.maximumf %66, %67 : vector<28x128xf32>
    %69 = arith.truncf %68 : vector<28x128xf32> to vector<28x128xbf16>
    %c0_48 = arith.constant 0 : index
    %c0_49 = arith.constant 0 : index
    %c0_50 = arith.constant 0 : index
    %c0_51 = arith.constant 0 : index
    %70 = vector.load %arg7[%c0_48, %c0_49, %c0_50, %c0_51] : memref<1x1x28x128xbf16, #tpu.memory_space<vmem>>, vector<1x1x28x128xbf16>
    %71 = vector.shape_cast %70 : vector<1x1x28x128xbf16> to vector<28x128xbf16>
    %72 = vector.shape_cast %69 : vector<28x128xbf16> to vector<1x1x28x128xbf16>
    tpu.vector_store %arg7[%c0_48, %c0_49, %c0_50, %c0_51], %72 {strides = array<i32>} : memref<1x1x28x128xbf16, #tpu.memory_space<vmem>>, vector<1x1x28x128xbf16>,
    return
  }
  func.func @transform_0(%arg0: i32, %arg1: i32) -> (i32, i32, i32, i32) {
    %c0_i32 = arith.constant 0 : i32
    %0 = arith.addi %arg1, %c0_i32 : i32
    %c0_i32_0 = arith.constant 0 : i32
    %c0_i32_1 = arith.constant 0 : i32
    %c0_i32_2 = arith.constant 0 : i32
    return %arg0, %0, %c0_i32_0, %c0_i32_1 : i32, i32, i32, i32
  }
  func.func @transform_1(%arg0: i32, %arg1: i32) -> (i32, i32, i32, i32) {
    %c1_i32 = arith.constant 1 : i32
    %0 = arith.addi %arg1, %c1_i32 : i32
    %c0_i32 = arith.constant 0 : i32
    %c0_i32_0 = arith.constant 0 : i32
    %c0_i32_1 = arith.constant 0 : i32
    return %arg0, %0, %c0_i32, %c0_i32_0 : i32, i32, i32, i32
  }
  func.func @transform_2(%arg0: i32, %arg1: i32) -> (i32, i32, i32, i32) {
    %c2_i32 = arith.constant 2 : i32
    %0 = arith.addi %arg1, %c2_i32 : i32
    %c0_i32 = arith.constant 0 : i32
    %c0_i32_0 = arith.constant 0 : i32
    %c0_i32_1 = arith.constant 0 : i32
    return %arg0, %0, %c0_i32, %c0_i32_0 : i32, i32, i32, i32
  }
  func.func @transform_3(%arg0: i32, %arg1: i32) -> (i32, i32) {
    %c0_i32 = arith.constant 0 : i32
    %c0_i32_0 = arith.constant 0 : i32
    %c0_i32_1 = arith.constant 0 : i32
    return %c0_i32, %c0_i32_0 : i32, i32
  }
  func.func @transform_4(%arg0: i32, %arg1: i32) -> (i32, i32) {
    %c0_i32 = arith.constant 0 : i32
    %c0_i32_0 = arith.constant 0 : i32
    %c0_i32_1 = arith.constant 0 : i32
    return %c0_i32, %c0_i32_0 : i32, i32
  }
  func.func @transform_5(%arg0: i32, %arg1: i32) -> (i32, i32, i32, i32) {
    %c0_i32 = arith.constant 0 : i32
    %c0_i32_0 = arith.constant 0 : i32
    %c0_i32_1 = arith.constant 0 : i32
    return %arg0, %arg1, %c0_i32, %c0_i32_0 : i32, i32, i32, i32
  }
}

module attributes {stable_mosaic.version = 11 : i64} {
  func.func @_conv3x3_kernel(%arg0: i32, %arg1: i32, %arg2: memref<1x1x30x128xbf16, #tpu.memory_space<vmem>>, %arg3: memref<1x1x30x128xbf16, #tpu.memory_space<vmem>>, %arg4: memref<1x1x30x128xbf16, #tpu.memory_space<vmem>>, %arg5: memref<1152x128xbf16, #tpu.memory_space<vmem>>, %arg6: memref<1x128xf32, #tpu.memory_space<vmem>>, %arg7: memref<1x1x28x128xbf16, #tpu.memory_space<vmem>>) attributes {dimension_semantics = [#tpu.dimension_semantics<parallel>, #tpu.dimension_semantics<parallel>], iteration_bounds = array<i64: 2, 28>, scalar_prefetch = 0 : i64, scratch_operands = 0 : i64, tpu.core_type = #tpu.core_type<tc>, window_params = [{transform_indices = @transform_0, window_bounds = array<i64: 1, 1, 30, 128>}, {transform_indices = @transform_1, window_bounds = array<i64: 1, 1, 30, 128>}, {transform_indices = @transform_2, window_bounds = array<i64: 1, 1, 30, 128>}, {pipeline_mode = #tpu.pipeline_mode<synchronous>, transform_indices = @transform_3, window_bounds = array<i64: 1152, 128>}, {pipeline_mode = #tpu.pipeline_mode<synchronous>, transform_indices = @transform_4, window_bounds = array<i64: 1, 128>}, {transform_indices = @transform_5, window_bounds = array<i64: 1, 1, 28, 128>}]} {
    %c0 = arith.constant 0 : index
    %c0_0 = arith.constant 0 : index
    %c0_1 = arith.constant 0 : index
    %c0_2 = arith.constant 0 : index
    %0 = vector.load %arg2[%c0, %c0_0, %c0_1, %c0_2] : memref<1x1x30x128xbf16, #tpu.memory_space<vmem>>, vector<1x1x28x128xbf16>
    %1 = vector.shape_cast %0 : vector<1x1x28x128xbf16> to vector<28x128xbf16>
    %c0_3 = arith.constant 0 : index
    %c0_4 = arith.constant 0 : index
    %c1 = arith.constant 1 : index
    %c0_5 = arith.constant 0 : index
    %2 = vector.load %arg2[%c0_3, %c0_4, %c1, %c0_5] : memref<1x1x30x128xbf16, #tpu.memory_space<vmem>>, vector<1x1x28x128xbf16>
    %3 = vector.shape_cast %2 : vector<1x1x28x128xbf16> to vector<28x128xbf16>
    %c0_6 = arith.constant 0 : index
    %c0_7 = arith.constant 0 : index
    %c2 = arith.constant 2 : index
    %c0_8 = arith.constant 0 : index
    %4 = vector.load %arg2[%c0_6, %c0_7, %c2, %c0_8] : memref<1x1x30x128xbf16, #tpu.memory_space<vmem>>, vector<1x1x28x128xbf16>
    %5 = vector.shape_cast %4 : vector<1x1x28x128xbf16> to vector<28x128xbf16>
    %c0_9 = arith.constant 0 : index
    %c0_10 = arith.constant 0 : index
    %c0_11 = arith.constant 0 : index
    %c0_12 = arith.constant 0 : index
    %6 = vector.load %arg3[%c0_9, %c0_10, %c0_11, %c0_12] : memref<1x1x30x128xbf16, #tpu.memory_space<vmem>>, vector<1x1x28x128xbf16>
    %7 = vector.shape_cast %6 : vector<1x1x28x128xbf16> to vector<28x128xbf16>
    %c0_13 = arith.constant 0 : index
    %c0_14 = arith.constant 0 : index
    %c1_15 = arith.constant 1 : index
    %c0_16 = arith.constant 0 : index
    %8 = vector.load %arg3[%c0_13, %c0_14, %c1_15, %c0_16] : memref<1x1x30x128xbf16, #tpu.memory_space<vmem>>, vector<1x1x28x128xbf16>
    %9 = vector.shape_cast %8 : vector<1x1x28x128xbf16> to vector<28x128xbf16>
    %c0_17 = arith.constant 0 : index
    %c0_18 = arith.constant 0 : index
    %c2_19 = arith.constant 2 : index
    %c0_20 = arith.constant 0 : index
    %10 = vector.load %arg3[%c0_17, %c0_18, %c2_19, %c0_20] : memref<1x1x30x128xbf16, #tpu.memory_space<vmem>>, vector<1x1x28x128xbf16>
    %11 = vector.shape_cast %10 : vector<1x1x28x128xbf16> to vector<28x128xbf16>
    %c0_21 = arith.constant 0 : index
    %c0_22 = arith.constant 0 : index
    %c0_23 = arith.constant 0 : index
    %c0_24 = arith.constant 0 : index
    %12 = vector.load %arg4[%c0_21, %c0_22, %c0_23, %c0_24] : memref<1x1x30x128xbf16, #tpu.memory_space<vmem>>, vector<1x1x28x128xbf16>
    %13 = vector.shape_cast %12 : vector<1x1x28x128xbf16> to vector<28x128xbf16>
    %c0_25 = arith.constant 0 : index
    %c0_26 = arith.constant 0 : index
    %c1_27 = arith.constant 1 : index
    %c0_28 = arith.constant 0 : index
    %14 = vector.load %arg4[%c0_25, %c0_26, %c1_27, %c0_28] : memref<1x1x30x128xbf16, #tpu.memory_space<vmem>>, vector<1x1x28x128xbf16>
    %15 = vector.shape_cast %14 : vector<1x1x28x128xbf16> to vector<28x128xbf16>
    %c0_29 = arith.constant 0 : index
    %c0_30 = arith.constant 0 : index
    %c2_31 = arith.constant 2 : index
    %c0_32 = arith.constant 0 : index
    %16 = vector.load %arg4[%c0_29, %c0_30, %c2_31, %c0_32] : memref<1x1x30x128xbf16, #tpu.memory_space<vmem>>, vector<1x1x28x128xbf16>
    %17 = vector.shape_cast %16 : vector<1x1x28x128xbf16> to vector<28x128xbf16>
    %18 = tpu.concatenate %1, %3, %5, %7, %9, %11, %13, %15, %17 in 1 : vector<28x128xbf16>, vector<28x128xbf16>, vector<28x128xbf16>, vector<28x128xbf16>, vector<28x128xbf16>, vector<28x128xbf16>, vector<28x128xbf16>, vector<28x128xbf16>, vector<28x128xbf16> -> vector<28x1152xbf16>
    %c0_33 = arith.constant 0 : index
    %c0_34 = arith.constant 0 : index
    %19 = vector.load %arg5[%c0_33, %c0_34] : memref<1152x128xbf16, #tpu.memory_space<vmem>>, vector<1152x128xbf16>
    %cst = arith.constant dense<0.000000e+00> : vector<28x128xf32>
    %20 = tpu.matmul %18, %19, %cst {dimension_numbers = #tpu.dot_dimension_numbers<[1], [0], [0], [1], [0, 0, 1, 1], [], []>} : vector<28x1152xbf16>, vector<1152x128xbf16>, vector<28x128xf32> -> vector<28x128xf32>
    %c0_35 = arith.constant 0 : index
    %c0_36 = arith.constant 0 : index
    %21 = vector.load %arg6[%c0_35, %c0_36] : memref<1x128xf32, #tpu.memory_space<vmem>>, vector<1x128xf32>
    %22 = vector.broadcast %21 : vector<1x128xf32> to vector<28x128xf32>
    %23 = arith.addf %20, %22 : vector<28x128xf32>
    %cst_37 = arith.constant 0.000000e+00 : f32
    %24 = vector.broadcast %cst_37 : f32 to vector<28x128xf32>
    %25 = arith.maximumf %23, %24 : vector<28x128xf32>
    %26 = arith.truncf %25 : vector<28x128xf32> to vector<28x128xbf16>
    %c0_38 = arith.constant 0 : index
    %c0_39 = arith.constant 0 : index
    %c0_40 = arith.constant 0 : index
    %c0_41 = arith.constant 0 : index
    %27 = vector.load %arg7[%c0_38, %c0_39, %c0_40, %c0_41] : memref<1x1x28x128xbf16, #tpu.memory_space<vmem>>, vector<1x1x28x128xbf16>
    %28 = vector.shape_cast %27 : vector<1x1x28x128xbf16> to vector<28x128xbf16>
    %29 = vector.shape_cast %26 : vector<28x128xbf16> to vector<1x1x28x128xbf16>
    tpu.vector_store %arg7[%c0_38, %c0_39, %c0_40, %c0_41], %29 {strides = array<i32>} : memref<1x1x28x128xbf16, #tpu.memory_space<vmem>>, vector<1x1x28x128xbf16>,
    return
  }
  func.func @transform_0(%arg0: i32, %arg1: i32) -> (i32, i32, i32, i32) {
    %c0_i32 = arith.constant 0 : i32
    %0 = arith.addi %arg1, %c0_i32 : i32
    %c0_i32_0 = arith.constant 0 : i32
    %c0_i32_1 = arith.constant 0 : i32
    %c0_i32_2 = arith.constant 0 : i32
    return %arg0, %0, %c0_i32_0, %c0_i32_1 : i32, i32, i32, i32
  }
  func.func @transform_1(%arg0: i32, %arg1: i32) -> (i32, i32, i32, i32) {
    %c1_i32 = arith.constant 1 : i32
    %0 = arith.addi %arg1, %c1_i32 : i32
    %c0_i32 = arith.constant 0 : i32
    %c0_i32_0 = arith.constant 0 : i32
    %c0_i32_1 = arith.constant 0 : i32
    return %arg0, %0, %c0_i32, %c0_i32_0 : i32, i32, i32, i32
  }
  func.func @transform_2(%arg0: i32, %arg1: i32) -> (i32, i32, i32, i32) {
    %c2_i32 = arith.constant 2 : i32
    %0 = arith.addi %arg1, %c2_i32 : i32
    %c0_i32 = arith.constant 0 : i32
    %c0_i32_0 = arith.constant 0 : i32
    %c0_i32_1 = arith.constant 0 : i32
    return %arg0, %0, %c0_i32, %c0_i32_0 : i32, i32, i32, i32
  }
  func.func @transform_3(%arg0: i32, %arg1: i32) -> (i32, i32) {
    %c0_i32 = arith.constant 0 : i32
    %c0_i32_0 = arith.constant 0 : i32
    %c0_i32_1 = arith.constant 0 : i32
    return %c0_i32, %c0_i32_0 : i32, i32
  }
  func.func @transform_4(%arg0: i32, %arg1: i32) -> (i32, i32) {
    %c0_i32 = arith.constant 0 : i32
    %c0_i32_0 = arith.constant 0 : i32
    %c0_i32_1 = arith.constant 0 : i32
    return %c0_i32, %c0_i32_0 : i32, i32
  }
  func.func @transform_5(%arg0: i32, %arg1: i32) -> (i32, i32, i32, i32) {
    %c0_i32 = arith.constant 0 : i32
    %c0_i32_0 = arith.constant 0 : i32
    %c0_i32_1 = arith.constant 0 : i32
    return %arg0, %arg1, %c0_i32, %c0_i32_0 : i32, i32, i32, i32
  }
}

module attributes {stable_mosaic.version = 11 : i64} {
  func.func @_maxpool_kernel(%arg0: i32, %arg1: memref<28x2x14x256xbf16, #tpu.memory_space<vmem>>, %arg2: memref<28x14x128xbf16, #tpu.memory_space<vmem>>) attributes {dimension_semantics = [#tpu.dimension_semantics<parallel>], iteration_bounds = array<i64: 1>, scalar_prefetch = 0 : i64, scratch_operands = 0 : i64, tpu.core_type = #tpu.core_type<tc>, window_params = [{transform_indices = @transform_0, window_bounds = array<i64: 28, 2, 14, 256>}, {transform_indices = @transform_1, window_bounds = array<i64: 28, 14, 128>}]} {
    %c0 = arith.constant 0 : index
    %c0_0 = arith.constant 0 : index
    %c0_1 = arith.constant 0 : index
    %c0_2 = arith.constant 0 : index
    %0 = vector.load %arg1[%c0, %c0_0, %c0_1, %c0_2] : memref<28x2x14x256xbf16, #tpu.memory_space<vmem>>, vector<28x2x14x256xbf16>
    %1 = vector.extract_strided_slice %0 {offsets = [0, 0, 0, 0], sizes = [28, 1, 14, 256], strides = [1, 1, 1, 1]} : vector<28x2x14x256xbf16> to vector<28x1x14x256xbf16>
    %2 = vector.shape_cast %1 : vector<28x1x14x256xbf16> to vector<28x14x256xbf16>
    %3 = vector.extract_strided_slice %0 {offsets = [0, 1, 0, 0], sizes = [28, 1, 14, 256], strides = [1, 1, 1, 1]} : vector<28x2x14x256xbf16> to vector<28x1x14x256xbf16>
    %4 = vector.shape_cast %3 : vector<28x1x14x256xbf16> to vector<28x14x256xbf16>
    %5 = arith.maximumf %2, %4 : vector<28x14x256xbf16>
    %6 = vector.extract_strided_slice %5 {offsets = [0, 0, 0], sizes = [28, 14, 128], strides = [1, 1, 1]} : vector<28x14x256xbf16> to vector<28x14x128xbf16>
    %7 = vector.extract_strided_slice %5 {offsets = [0, 0, 128], sizes = [28, 14, 128], strides = [1, 1, 1]} : vector<28x14x256xbf16> to vector<28x14x128xbf16>
    %8 = arith.maximumf %6, %7 : vector<28x14x128xbf16>
    %c0_3 = arith.constant 0 : index
    %c0_4 = arith.constant 0 : index
    %c0_5 = arith.constant 0 : index
    %9 = vector.load %arg2[%c0_3, %c0_4, %c0_5] : memref<28x14x128xbf16, #tpu.memory_space<vmem>>, vector<28x14x128xbf16>
    tpu.vector_store %arg2[%c0_3, %c0_4, %c0_5], %8 {strides = array<i32>} : memref<28x14x128xbf16, #tpu.memory_space<vmem>>, vector<28x14x128xbf16>,
    return
  }
  func.func @transform_0(%arg0: i32) -> (i32, i32, i32, i32) {
    %c0_i32 = arith.constant 0 : i32
    %c0_i32_0 = arith.constant 0 : i32
    %c0_i32_1 = arith.constant 0 : i32
    %c0_i32_2 = arith.constant 0 : i32
    return %arg0, %c0_i32, %c0_i32_0, %c0_i32_1 : i32, i32, i32, i32
  }
  func.func @transform_1(%arg0: i32) -> (i32, i32, i32) {
    %c0_i32 = arith.constant 0 : i32
    %c0_i32_0 = arith.constant 0 : i32
    %c0_i32_1 = arith.constant 0 : i32
    return %arg0, %c0_i32, %c0_i32_0 : i32, i32, i32
  }
}

module attributes {stable_mosaic.version = 11 : i64} {
  func.func @_conv3x3_kernel(%arg0: i32, %arg1: i32, %arg2: memref<1x1x16x128xbf16, #tpu.memory_space<vmem>>, %arg3: memref<1x1x16x128xbf16, #tpu.memory_space<vmem>>, %arg4: memref<1x1x16x128xbf16, #tpu.memory_space<vmem>>, %arg5: memref<1152x128xbf16, #tpu.memory_space<vmem>>, %arg6: memref<1x128xf32, #tpu.memory_space<vmem>>, %arg7: memref<1x1x14x128xbf16, #tpu.memory_space<vmem>>) attributes {dimension_semantics = [#tpu.dimension_semantics<parallel>, #tpu.dimension_semantics<parallel>], iteration_bounds = array<i64: 2, 14>, scalar_prefetch = 0 : i64, scratch_operands = 0 : i64, tpu.core_type = #tpu.core_type<tc>, window_params = [{transform_indices = @transform_0, window_bounds = array<i64: 1, 1, 16, 128>}, {transform_indices = @transform_1, window_bounds = array<i64: 1, 1, 16, 128>}, {transform_indices = @transform_2, window_bounds = array<i64: 1, 1, 16, 128>}, {pipeline_mode = #tpu.pipeline_mode<synchronous>, transform_indices = @transform_3, window_bounds = array<i64: 1152, 128>}, {pipeline_mode = #tpu.pipeline_mode<synchronous>, transform_indices = @transform_4, window_bounds = array<i64: 1, 128>}, {transform_indices = @transform_5, window_bounds = array<i64: 1, 1, 14, 128>}]} {
    %c0 = arith.constant 0 : index
    %c0_0 = arith.constant 0 : index
    %c0_1 = arith.constant 0 : index
    %c0_2 = arith.constant 0 : index
    %0 = vector.load %arg2[%c0, %c0_0, %c0_1, %c0_2] : memref<1x1x16x128xbf16, #tpu.memory_space<vmem>>, vector<1x1x14x128xbf16>
    %1 = vector.shape_cast %0 : vector<1x1x14x128xbf16> to vector<14x128xbf16>
    %c0_3 = arith.constant 0 : index
    %c0_4 = arith.constant 0 : index
    %c1 = arith.constant 1 : index
    %c0_5 = arith.constant 0 : index
    %2 = vector.load %arg2[%c0_3, %c0_4, %c1, %c0_5] : memref<1x1x16x128xbf16, #tpu.memory_space<vmem>>, vector<1x1x14x128xbf16>
    %3 = vector.shape_cast %2 : vector<1x1x14x128xbf16> to vector<14x128xbf16>
    %c0_6 = arith.constant 0 : index
    %c0_7 = arith.constant 0 : index
    %c2 = arith.constant 2 : index
    %c0_8 = arith.constant 0 : index
    %4 = vector.load %arg2[%c0_6, %c0_7, %c2, %c0_8] : memref<1x1x16x128xbf16, #tpu.memory_space<vmem>>, vector<1x1x14x128xbf16>
    %5 = vector.shape_cast %4 : vector<1x1x14x128xbf16> to vector<14x128xbf16>
    %c0_9 = arith.constant 0 : index
    %c0_10 = arith.constant 0 : index
    %c0_11 = arith.constant 0 : index
    %c0_12 = arith.constant 0 : index
    %6 = vector.load %arg3[%c0_9, %c0_10, %c0_11, %c0_12] : memref<1x1x16x128xbf16, #tpu.memory_space<vmem>>, vector<1x1x14x128xbf16>
    %7 = vector.shape_cast %6 : vector<1x1x14x128xbf16> to vector<14x128xbf16>
    %c0_13 = arith.constant 0 : index
    %c0_14 = arith.constant 0 : index
    %c1_15 = arith.constant 1 : index
    %c0_16 = arith.constant 0 : index
    %8 = vector.load %arg3[%c0_13, %c0_14, %c1_15, %c0_16] : memref<1x1x16x128xbf16, #tpu.memory_space<vmem>>, vector<1x1x14x128xbf16>
    %9 = vector.shape_cast %8 : vector<1x1x14x128xbf16> to vector<14x128xbf16>
    %c0_17 = arith.constant 0 : index
    %c0_18 = arith.constant 0 : index
    %c2_19 = arith.constant 2 : index
    %c0_20 = arith.constant 0 : index
    %10 = vector.load %arg3[%c0_17, %c0_18, %c2_19, %c0_20] : memref<1x1x16x128xbf16, #tpu.memory_space<vmem>>, vector<1x1x14x128xbf16>
    %11 = vector.shape_cast %10 : vector<1x1x14x128xbf16> to vector<14x128xbf16>
    %c0_21 = arith.constant 0 : index
    %c0_22 = arith.constant 0 : index
    %c0_23 = arith.constant 0 : index
    %c0_24 = arith.constant 0 : index
    %12 = vector.load %arg4[%c0_21, %c0_22, %c0_23, %c0_24] : memref<1x1x16x128xbf16, #tpu.memory_space<vmem>>, vector<1x1x14x128xbf16>
    %13 = vector.shape_cast %12 : vector<1x1x14x128xbf16> to vector<14x128xbf16>
    %c0_25 = arith.constant 0 : index
    %c0_26 = arith.constant 0 : index
    %c1_27 = arith.constant 1 : index
    %c0_28 = arith.constant 0 : index
    %14 = vector.load %arg4[%c0_25, %c0_26, %c1_27, %c0_28] : memref<1x1x16x128xbf16, #tpu.memory_space<vmem>>, vector<1x1x14x128xbf16>
    %15 = vector.shape_cast %14 : vector<1x1x14x128xbf16> to vector<14x128xbf16>
    %c0_29 = arith.constant 0 : index
    %c0_30 = arith.constant 0 : index
    %c2_31 = arith.constant 2 : index
    %c0_32 = arith.constant 0 : index
    %16 = vector.load %arg4[%c0_29, %c0_30, %c2_31, %c0_32] : memref<1x1x16x128xbf16, #tpu.memory_space<vmem>>, vector<1x1x14x128xbf16>
    %17 = vector.shape_cast %16 : vector<1x1x14x128xbf16> to vector<14x128xbf16>
    %18 = tpu.concatenate %1, %3, %5, %7, %9, %11, %13, %15, %17 in 1 : vector<14x128xbf16>, vector<14x128xbf16>, vector<14x128xbf16>, vector<14x128xbf16>, vector<14x128xbf16>, vector<14x128xbf16>, vector<14x128xbf16>, vector<14x128xbf16>, vector<14x128xbf16> -> vector<14x1152xbf16>
    %c0_33 = arith.constant 0 : index
    %c0_34 = arith.constant 0 : index
    %19 = vector.load %arg5[%c0_33, %c0_34] : memref<1152x128xbf16, #tpu.memory_space<vmem>>, vector<1152x128xbf16>
    %cst = arith.constant dense<0.000000e+00> : vector<14x128xf32>
    %20 = tpu.matmul %18, %19, %cst {dimension_numbers = #tpu.dot_dimension_numbers<[1], [0], [0], [1], [0, 0, 1, 1], [], []>} : vector<14x1152xbf16>, vector<1152x128xbf16>, vector<14x128xf32> -> vector<14x128xf32>
    %c0_35 = arith.constant 0 : index
    %c0_36 = arith.constant 0 : index
    %21 = vector.load %arg6[%c0_35, %c0_36] : memref<1x128xf32, #tpu.memory_space<vmem>>, vector<1x128xf32>
    %22 = vector.broadcast %21 : vector<1x128xf32> to vector<14x128xf32>
    %23 = arith.addf %20, %22 : vector<14x128xf32>
    %cst_37 = arith.constant 0.000000e+00 : f32
    %24 = vector.broadcast %cst_37 : f32 to vector<14x128xf32>
    %25 = arith.maximumf %23, %24 : vector<14x128xf32>
    %26 = arith.truncf %25 : vector<14x128xf32> to vector<14x128xbf16>
    %c0_38 = arith.constant 0 : index
    %c0_39 = arith.constant 0 : index
    %c0_40 = arith.constant 0 : index
    %c0_41 = arith.constant 0 : index
    %27 = vector.load %arg7[%c0_38, %c0_39, %c0_40, %c0_41] : memref<1x1x14x128xbf16, #tpu.memory_space<vmem>>, vector<1x1x14x128xbf16>
    %28 = vector.shape_cast %27 : vector<1x1x14x128xbf16> to vector<14x128xbf16>
    %29 = vector.shape_cast %26 : vector<14x128xbf16> to vector<1x1x14x128xbf16>
    tpu.vector_store %arg7[%c0_38, %c0_39, %c0_40, %c0_41], %29 {strides = array<i32>} : memref<1x1x14x128xbf16, #tpu.memory_space<vmem>>, vector<1x1x14x128xbf16>,
    return
  }
  func.func @transform_0(%arg0: i32, %arg1: i32) -> (i32, i32, i32, i32) {
    %c0_i32 = arith.constant 0 : i32
    %0 = arith.addi %arg1, %c0_i32 : i32
    %c0_i32_0 = arith.constant 0 : i32
    %c0_i32_1 = arith.constant 0 : i32
    %c0_i32_2 = arith.constant 0 : i32
    return %arg0, %0, %c0_i32_0, %c0_i32_1 : i32, i32, i32, i32
  }
  func.func @transform_1(%arg0: i32, %arg1: i32) -> (i32, i32, i32, i32) {
    %c1_i32 = arith.constant 1 : i32
    %0 = arith.addi %arg1, %c1_i32 : i32
    %c0_i32 = arith.constant 0 : i32
    %c0_i32_0 = arith.constant 0 : i32
    %c0_i32_1 = arith.constant 0 : i32
    return %arg0, %0, %c0_i32, %c0_i32_0 : i32, i32, i32, i32
  }
  func.func @transform_2(%arg0: i32, %arg1: i32) -> (i32, i32, i32, i32) {
    %c2_i32 = arith.constant 2 : i32
    %0 = arith.addi %arg1, %c2_i32 : i32
    %c0_i32 = arith.constant 0 : i32
    %c0_i32_0 = arith.constant 0 : i32
    %c0_i32_1 = arith.constant 0 : i32
    return %arg0, %0, %c0_i32, %c0_i32_0 : i32, i32, i32, i32
  }
  func.func @transform_3(%arg0: i32, %arg1: i32) -> (i32, i32) {
    %c0_i32 = arith.constant 0 : i32
    %c0_i32_0 = arith.constant 0 : i32
    %c0_i32_1 = arith.constant 0 : i32
    return %c0_i32, %c0_i32_0 : i32, i32
  }
  func.func @transform_4(%arg0: i32, %arg1: i32) -> (i32, i32) {
    %c0_i32 = arith.constant 0 : i32
    %c0_i32_0 = arith.constant 0 : i32
    %c0_i32_1 = arith.constant 0 : i32
    return %c0_i32, %c0_i32_0 : i32, i32
  }
  func.func @transform_5(%arg0: i32, %arg1: i32) -> (i32, i32, i32, i32) {
    %c0_i32 = arith.constant 0 : i32
    %c0_i32_0 = arith.constant 0 : i32
    %c0_i32_1 = arith.constant 0 : i32
    return %arg0, %arg1, %c0_i32, %c0_i32_0 : i32, i32, i32, i32
  }
}

module attributes {stable_mosaic.version = 11 : i64} {
  func.func @_maxpool_kernel(%arg0: i32, %arg1: memref<14x2x7x256xbf16, #tpu.memory_space<vmem>>, %arg2: memref<14x7x128xbf16, #tpu.memory_space<vmem>>) attributes {dimension_semantics = [#tpu.dimension_semantics<parallel>], iteration_bounds = array<i64: 1>, scalar_prefetch = 0 : i64, scratch_operands = 0 : i64, tpu.core_type = #tpu.core_type<tc>, window_params = [{transform_indices = @transform_0, window_bounds = array<i64: 14, 2, 7, 256>}, {transform_indices = @transform_1, window_bounds = array<i64: 14, 7, 128>}]} {
    %c0 = arith.constant 0 : index
    %c0_0 = arith.constant 0 : index
    %c0_1 = arith.constant 0 : index
    %c0_2 = arith.constant 0 : index
    %0 = vector.load %arg1[%c0, %c0_0, %c0_1, %c0_2] : memref<14x2x7x256xbf16, #tpu.memory_space<vmem>>, vector<14x2x7x256xbf16>
    %1 = vector.extract_strided_slice %0 {offsets = [0, 0, 0, 0], sizes = [14, 1, 7, 256], strides = [1, 1, 1, 1]} : vector<14x2x7x256xbf16> to vector<14x1x7x256xbf16>
    %2 = vector.shape_cast %1 : vector<14x1x7x256xbf16> to vector<14x7x256xbf16>
    %3 = vector.extract_strided_slice %0 {offsets = [0, 1, 0, 0], sizes = [14, 1, 7, 256], strides = [1, 1, 1, 1]} : vector<14x2x7x256xbf16> to vector<14x1x7x256xbf16>
    %4 = vector.shape_cast %3 : vector<14x1x7x256xbf16> to vector<14x7x256xbf16>
    %5 = arith.maximumf %2, %4 : vector<14x7x256xbf16>
    %6 = vector.extract_strided_slice %5 {offsets = [0, 0, 0], sizes = [14, 7, 128], strides = [1, 1, 1]} : vector<14x7x256xbf16> to vector<14x7x128xbf16>
    %7 = vector.extract_strided_slice %5 {offsets = [0, 0, 128], sizes = [14, 7, 128], strides = [1, 1, 1]} : vector<14x7x256xbf16> to vector<14x7x128xbf16>
    %8 = arith.maximumf %6, %7 : vector<14x7x128xbf16>
    %c0_3 = arith.constant 0 : index
    %c0_4 = arith.constant 0 : index
    %c0_5 = arith.constant 0 : index
    %9 = vector.load %arg2[%c0_3, %c0_4, %c0_5] : memref<14x7x128xbf16, #tpu.memory_space<vmem>>, vector<14x7x128xbf16>
    tpu.vector_store %arg2[%c0_3, %c0_4, %c0_5], %8 {strides = array<i32>} : memref<14x7x128xbf16, #tpu.memory_space<vmem>>, vector<14x7x128xbf16>,
    return
  }
  func.func @transform_0(%arg0: i32) -> (i32, i32, i32, i32) {
    %c0_i32 = arith.constant 0 : i32
    %c0_i32_0 = arith.constant 0 : i32
    %c0_i32_1 = arith.constant 0 : i32
    %c0_i32_2 = arith.constant 0 : i32
    return %arg0, %c0_i32, %c0_i32_0, %c0_i32_1 : i32, i32, i32, i32
  }
  func.func @transform_1(%arg0: i32) -> (i32, i32, i32) {
    %c0_i32 = arith.constant 0 : i32
    %c0_i32_0 = arith.constant 0 : i32
    %c0_i32_1 = arith.constant 0 : i32
    return %arg0, %c0_i32, %c0_i32_0 : i32, i32, i32
  }
}

module attributes {stable_mosaic.version = 11 : i64} {
  func.func @_conv3x3_kernel(%arg0: i32, %arg1: i32, %arg2: memref<1x1x9x128xbf16, #tpu.memory_space<vmem>>, %arg3: memref<1x1x9x128xbf16, #tpu.memory_space<vmem>>, %arg4: memref<1x1x9x128xbf16, #tpu.memory_space<vmem>>, %arg5: memref<1152x256xbf16, #tpu.memory_space<vmem>>, %arg6: memref<1x256xf32, #tpu.memory_space<vmem>>, %arg7: memref<1x1x7x256xbf16, #tpu.memory_space<vmem>>) attributes {dimension_semantics = [#tpu.dimension_semantics<parallel>, #tpu.dimension_semantics<parallel>], iteration_bounds = array<i64: 2, 7>, scalar_prefetch = 0 : i64, scratch_operands = 0 : i64, tpu.core_type = #tpu.core_type<tc>, window_params = [{transform_indices = @transform_0, window_bounds = array<i64: 1, 1, 9, 128>}, {transform_indices = @transform_1, window_bounds = array<i64: 1, 1, 9, 128>}, {transform_indices = @transform_2, window_bounds = array<i64: 1, 1, 9, 128>}, {pipeline_mode = #tpu.pipeline_mode<synchronous>, transform_indices = @transform_3, window_bounds = array<i64: 1152, 256>}, {pipeline_mode = #tpu.pipeline_mode<synchronous>, transform_indices = @transform_4, window_bounds = array<i64: 1, 256>}, {transform_indices = @transform_5, window_bounds = array<i64: 1, 1, 7, 256>}]} {
    %c0 = arith.constant 0 : index
    %c0_0 = arith.constant 0 : index
    %c0_1 = arith.constant 0 : index
    %c0_2 = arith.constant 0 : index
    %0 = vector.load %arg2[%c0, %c0_0, %c0_1, %c0_2] : memref<1x1x9x128xbf16, #tpu.memory_space<vmem>>, vector<1x1x7x128xbf16>
    %1 = vector.shape_cast %0 : vector<1x1x7x128xbf16> to vector<7x128xbf16>
    %c0_3 = arith.constant 0 : index
    %c0_4 = arith.constant 0 : index
    %c1 = arith.constant 1 : index
    %c0_5 = arith.constant 0 : index
    %2 = vector.load %arg2[%c0_3, %c0_4, %c1, %c0_5] : memref<1x1x9x128xbf16, #tpu.memory_space<vmem>>, vector<1x1x7x128xbf16>
    %3 = vector.shape_cast %2 : vector<1x1x7x128xbf16> to vector<7x128xbf16>
    %c0_6 = arith.constant 0 : index
    %c0_7 = arith.constant 0 : index
    %c2 = arith.constant 2 : index
    %c0_8 = arith.constant 0 : index
    %4 = vector.load %arg2[%c0_6, %c0_7, %c2, %c0_8] : memref<1x1x9x128xbf16, #tpu.memory_space<vmem>>, vector<1x1x7x128xbf16>
    %5 = vector.shape_cast %4 : vector<1x1x7x128xbf16> to vector<7x128xbf16>
    %c0_9 = arith.constant 0 : index
    %c0_10 = arith.constant 0 : index
    %c0_11 = arith.constant 0 : index
    %c0_12 = arith.constant 0 : index
    %6 = vector.load %arg3[%c0_9, %c0_10, %c0_11, %c0_12] : memref<1x1x9x128xbf16, #tpu.memory_space<vmem>>, vector<1x1x7x128xbf16>
    %7 = vector.shape_cast %6 : vector<1x1x7x128xbf16> to vector<7x128xbf16>
    %c0_13 = arith.constant 0 : index
    %c0_14 = arith.constant 0 : index
    %c1_15 = arith.constant 1 : index
    %c0_16 = arith.constant 0 : index
    %8 = vector.load %arg3[%c0_13, %c0_14, %c1_15, %c0_16] : memref<1x1x9x128xbf16, #tpu.memory_space<vmem>>, vector<1x1x7x128xbf16>
    %9 = vector.shape_cast %8 : vector<1x1x7x128xbf16> to vector<7x128xbf16>
    %c0_17 = arith.constant 0 : index
    %c0_18 = arith.constant 0 : index
    %c2_19 = arith.constant 2 : index
    %c0_20 = arith.constant 0 : index
    %10 = vector.load %arg3[%c0_17, %c0_18, %c2_19, %c0_20] : memref<1x1x9x128xbf16, #tpu.memory_space<vmem>>, vector<1x1x7x128xbf16>
    %11 = vector.shape_cast %10 : vector<1x1x7x128xbf16> to vector<7x128xbf16>
    %c0_21 = arith.constant 0 : index
    %c0_22 = arith.constant 0 : index
    %c0_23 = arith.constant 0 : index
    %c0_24 = arith.constant 0 : index
    %12 = vector.load %arg4[%c0_21, %c0_22, %c0_23, %c0_24] : memref<1x1x9x128xbf16, #tpu.memory_space<vmem>>, vector<1x1x7x128xbf16>
    %13 = vector.shape_cast %12 : vector<1x1x7x128xbf16> to vector<7x128xbf16>
    %c0_25 = arith.constant 0 : index
    %c0_26 = arith.constant 0 : index
    %c1_27 = arith.constant 1 : index
    %c0_28 = arith.constant 0 : index
    %14 = vector.load %arg4[%c0_25, %c0_26, %c1_27, %c0_28] : memref<1x1x9x128xbf16, #tpu.memory_space<vmem>>, vector<1x1x7x128xbf16>
    %15 = vector.shape_cast %14 : vector<1x1x7x128xbf16> to vector<7x128xbf16>
    %c0_29 = arith.constant 0 : index
    %c0_30 = arith.constant 0 : index
    %c2_31 = arith.constant 2 : index
    %c0_32 = arith.constant 0 : index
    %16 = vector.load %arg4[%c0_29, %c0_30, %c2_31, %c0_32] : memref<1x1x9x128xbf16, #tpu.memory_space<vmem>>, vector<1x1x7x128xbf16>
    %17 = vector.shape_cast %16 : vector<1x1x7x128xbf16> to vector<7x128xbf16>
    %18 = tpu.concatenate %1, %3, %5, %7, %9, %11, %13, %15, %17 in 1 : vector<7x128xbf16>, vector<7x128xbf16>, vector<7x128xbf16>, vector<7x128xbf16>, vector<7x128xbf16>, vector<7x128xbf16>, vector<7x128xbf16>, vector<7x128xbf16>, vector<7x128xbf16> -> vector<7x1152xbf16>
    %c0_33 = arith.constant 0 : index
    %c0_34 = arith.constant 0 : index
    %19 = vector.load %arg5[%c0_33, %c0_34] : memref<1152x256xbf16, #tpu.memory_space<vmem>>, vector<1152x256xbf16>
    %cst = arith.constant dense<0.000000e+00> : vector<7x256xf32>
    %20 = tpu.matmul %18, %19, %cst {dimension_numbers = #tpu.dot_dimension_numbers<[1], [0], [0], [1], [0, 0, 1, 1], [], []>} : vector<7x1152xbf16>, vector<1152x256xbf16>, vector<7x256xf32> -> vector<7x256xf32>
    %c0_35 = arith.constant 0 : index
    %c0_36 = arith.constant 0 : index
    %21 = vector.load %arg6[%c0_35, %c0_36] : memref<1x256xf32, #tpu.memory_space<vmem>>, vector<1x256xf32>
    %22 = vector.broadcast %21 : vector<1x256xf32> to vector<7x256xf32>
    %23 = arith.addf %20, %22 : vector<7x256xf32>
    %cst_37 = arith.constant 0.000000e+00 : f32
    %24 = vector.broadcast %cst_37 : f32 to vector<7x256xf32>
    %25 = arith.maximumf %23, %24 : vector<7x256xf32>
    %26 = arith.truncf %25 : vector<7x256xf32> to vector<7x256xbf16>
    %c0_38 = arith.constant 0 : index
    %c0_39 = arith.constant 0 : index
    %c0_40 = arith.constant 0 : index
    %c0_41 = arith.constant 0 : index
    %27 = vector.load %arg7[%c0_38, %c0_39, %c0_40, %c0_41] : memref<1x1x7x256xbf16, #tpu.memory_space<vmem>>, vector<1x1x7x256xbf16>
    %28 = vector.shape_cast %27 : vector<1x1x7x256xbf16> to vector<7x256xbf16>
    %29 = vector.shape_cast %26 : vector<7x256xbf16> to vector<1x1x7x256xbf16>
    tpu.vector_store %arg7[%c0_38, %c0_39, %c0_40, %c0_41], %29 {strides = array<i32>} : memref<1x1x7x256xbf16, #tpu.memory_space<vmem>>, vector<1x1x7x256xbf16>,
    return
  }
  func.func @transform_0(%arg0: i32, %arg1: i32) -> (i32, i32, i32, i32) {
    %c0_i32 = arith.constant 0 : i32
    %0 = arith.addi %arg1, %c0_i32 : i32
    %c0_i32_0 = arith.constant 0 : i32
    %c0_i32_1 = arith.constant 0 : i32
    %c0_i32_2 = arith.constant 0 : i32
    return %arg0, %0, %c0_i32_0, %c0_i32_1 : i32, i32, i32, i32
  }
  func.func @transform_1(%arg0: i32, %arg1: i32) -> (i32, i32, i32, i32) {
    %c1_i32 = arith.constant 1 : i32
    %0 = arith.addi %arg1, %c1_i32 : i32
    %c0_i32 = arith.constant 0 : i32
    %c0_i32_0 = arith.constant 0 : i32
    %c0_i32_1 = arith.constant 0 : i32
    return %arg0, %0, %c0_i32, %c0_i32_0 : i32, i32, i32, i32
  }
  func.func @transform_2(%arg0: i32, %arg1: i32) -> (i32, i32, i32, i32) {
    %c2_i32 = arith.constant 2 : i32
    %0 = arith.addi %arg1, %c2_i32 : i32
    %c0_i32 = arith.constant 0 : i32
    %c0_i32_0 = arith.constant 0 : i32
    %c0_i32_1 = arith.constant 0 : i32
    return %arg0, %0, %c0_i32, %c0_i32_0 : i32, i32, i32, i32
  }
  func.func @transform_3(%arg0: i32, %arg1: i32) -> (i32, i32) {
    %c0_i32 = arith.constant 0 : i32
    %c0_i32_0 = arith.constant 0 : i32
    %c0_i32_1 = arith.constant 0 : i32
    return %c0_i32, %c0_i32_0 : i32, i32
  }
  func.func @transform_4(%arg0: i32, %arg1: i32) -> (i32, i32) {
    %c0_i32 = arith.constant 0 : i32
    %c0_i32_0 = arith.constant 0 : i32
    %c0_i32_1 = arith.constant 0 : i32
    return %c0_i32, %c0_i32_0 : i32, i32
  }
  func.func @transform_5(%arg0: i32, %arg1: i32) -> (i32, i32, i32, i32) {
    %c0_i32 = arith.constant 0 : i32
    %c0_i32_0 = arith.constant 0 : i32
    %c0_i32_1 = arith.constant 0 : i32
    return %arg0, %arg1, %c0_i32, %c0_i32_0 : i32, i32, i32, i32
  }
}

module attributes {stable_mosaic.version = 11 : i64} {
  func.func @_maxpool_kernel(%arg0: i32, %arg1: memref<6x2x3x512xbf16, #tpu.memory_space<vmem>>, %arg2: memref<6x3x256xbf16, #tpu.memory_space<vmem>>) attributes {dimension_semantics = [#tpu.dimension_semantics<parallel>], iteration_bounds = array<i64: 1>, scalar_prefetch = 0 : i64, scratch_operands = 0 : i64, tpu.core_type = #tpu.core_type<tc>, window_params = [{transform_indices = @transform_0, window_bounds = array<i64: 6, 2, 3, 512>}, {transform_indices = @transform_1, window_bounds = array<i64: 6, 3, 256>}]} {
    %c0 = arith.constant 0 : index
    %c0_0 = arith.constant 0 : index
    %c0_1 = arith.constant 0 : index
    %c0_2 = arith.constant 0 : index
    %0 = vector.load %arg1[%c0, %c0_0, %c0_1, %c0_2] : memref<6x2x3x512xbf16, #tpu.memory_space<vmem>>, vector<6x2x3x512xbf16>
    %1 = vector.extract_strided_slice %0 {offsets = [0, 0, 0, 0], sizes = [6, 1, 3, 512], strides = [1, 1, 1, 1]} : vector<6x2x3x512xbf16> to vector<6x1x3x512xbf16>
    %2 = vector.shape_cast %1 : vector<6x1x3x512xbf16> to vector<6x3x512xbf16>
    %3 = vector.extract_strided_slice %0 {offsets = [0, 1, 0, 0], sizes = [6, 1, 3, 512], strides = [1, 1, 1, 1]} : vector<6x2x3x512xbf16> to vector<6x1x3x512xbf16>
    %4 = vector.shape_cast %3 : vector<6x1x3x512xbf16> to vector<6x3x512xbf16>
    %5 = arith.maximumf %2, %4 : vector<6x3x512xbf16>
    %6 = vector.extract_strided_slice %5 {offsets = [0, 0, 0], sizes = [6, 3, 256], strides = [1, 1, 1]} : vector<6x3x512xbf16> to vector<6x3x256xbf16>
    %7 = vector.extract_strided_slice %5 {offsets = [0, 0, 256], sizes = [6, 3, 256], strides = [1, 1, 1]} : vector<6x3x512xbf16> to vector<6x3x256xbf16>
    %8 = arith.maximumf %6, %7 : vector<6x3x256xbf16>
    %c0_3 = arith.constant 0 : index
    %c0_4 = arith.constant 0 : index
    %c0_5 = arith.constant 0 : index
    %9 = vector.load %arg2[%c0_3, %c0_4, %c0_5] : memref<6x3x256xbf16, #tpu.memory_space<vmem>>, vector<6x3x256xbf16>
    tpu.vector_store %arg2[%c0_3, %c0_4, %c0_5], %8 {strides = array<i32>} : memref<6x3x256xbf16, #tpu.memory_space<vmem>>, vector<6x3x256xbf16>,
    return
  }
  func.func @transform_0(%arg0: i32) -> (i32, i32, i32, i32) {
    %c0_i32 = arith.constant 0 : i32
    %c0_i32_0 = arith.constant 0 : i32
    %c0_i32_1 = arith.constant 0 : i32
    %c0_i32_2 = arith.constant 0 : i32
    return %arg0, %c0_i32, %c0_i32_0, %c0_i32_1 : i32, i32, i32, i32
  }
  func.func @transform_1(%arg0: i32) -> (i32, i32, i32) {
    %c0_i32 = arith.constant 0 : i32
    %c0_i32_0 = arith.constant 0 : i32
    %c0_i32_1 = arith.constant 0 : i32
    return %arg0, %c0_i32, %c0_i32_0 : i32, i32, i32
  }
}

module attributes {stable_mosaic.version = 11 : i64} {
  func.func @_fc_head_kernel(%arg0: i32, %arg1: memref<2x2304xbf16, #tpu.memory_space<vmem>>, %arg2: memref<2304x256xbf16, #tpu.memory_space<vmem>>, %arg3: memref<1x256xf32, #tpu.memory_space<vmem>>, %arg4: memref<256x128xbf16, #tpu.memory_space<vmem>>, %arg5: memref<1x128xf32, #tpu.memory_space<vmem>>, %arg6: memref<128x128xbf16, #tpu.memory_space<vmem>>, %arg7: memref<1x128xf32, #tpu.memory_space<vmem>>, %arg8: memref<2x128xf32, #tpu.memory_space<vmem>>) attributes {dimension_semantics = [#tpu.dimension_semantics<parallel>], iteration_bounds = array<i64: 1>, scalar_prefetch = 0 : i64, scratch_operands = 0 : i64, tpu.core_type = #tpu.core_type<tc>, window_params = [{transform_indices = @transform_0, window_bounds = array<i64: 2, 2304>}, {pipeline_mode = #tpu.pipeline_mode<synchronous>, transform_indices = @transform_1, window_bounds = array<i64: 2304, 256>}, {pipeline_mode = #tpu.pipeline_mode<synchronous>, transform_indices = @transform_2, window_bounds = array<i64: 1, 256>}, {pipeline_mode = #tpu.pipeline_mode<synchronous>, transform_indices = @transform_3, window_bounds = array<i64: 256, 128>}, {pipeline_mode = #tpu.pipeline_mode<synchronous>, transform_indices = @transform_4, window_bounds = array<i64: 1, 128>}, {pipeline_mode = #tpu.pipeline_mode<synchronous>, transform_indices = @transform_5, window_bounds = array<i64: 128, 128>}, {pipeline_mode = #tpu.pipeline_mode<synchronous>, transform_indices = @transform_6, window_bounds = array<i64: 1, 128>}, {transform_indices = @transform_7, window_bounds = array<i64: 2, 128>}]} {
    %c0 = arith.constant 0 : index
    %c0_0 = arith.constant 0 : index
    %0 = vector.load %arg1[%c0, %c0_0] : memref<2x2304xbf16, #tpu.memory_space<vmem>>, vector<2x2304xbf16>
    %c0_1 = arith.constant 0 : index
    %c0_2 = arith.constant 0 : index
    %1 = vector.load %arg2[%c0_1, %c0_2] : memref<2304x256xbf16, #tpu.memory_space<vmem>>, vector<2304x256xbf16>
    %cst = arith.constant dense<0.000000e+00> : vector<2x256xf32>
    %2 = tpu.matmul %0, %1, %cst {dimension_numbers = #tpu.dot_dimension_numbers<[1], [0], [0], [1], [0, 0, 1, 1], [], []>} : vector<2x2304xbf16>, vector<2304x256xbf16>, vector<2x256xf32> -> vector<2x256xf32>
    %c0_3 = arith.constant 0 : index
    %c0_4 = arith.constant 0 : index
    %3 = vector.load %arg3[%c0_3, %c0_4] : memref<1x256xf32, #tpu.memory_space<vmem>>, vector<1x256xf32>
    %4 = vector.broadcast %3 : vector<1x256xf32> to vector<2x256xf32>
    %5 = arith.addf %2, %4 : vector<2x256xf32>
    %cst_5 = arith.constant 0.000000e+00 : f32
    %6 = vector.broadcast %cst_5 : f32 to vector<2x256xf32>
    %7 = arith.maximumf %5, %6 : vector<2x256xf32>
    %8 = arith.truncf %7 : vector<2x256xf32> to vector<2x256xbf16>
    %c0_6 = arith.constant 0 : index
    %c0_7 = arith.constant 0 : index
    %9 = vector.load %arg4[%c0_6, %c0_7] : memref<256x128xbf16, #tpu.memory_space<vmem>>, vector<256x128xbf16>
    %cst_8 = arith.constant dense<0.000000e+00> : vector<2x128xf32>
    %10 = tpu.matmul %8, %9, %cst_8 {dimension_numbers = #tpu.dot_dimension_numbers<[1], [0], [0], [1], [0, 0, 1, 1], [], []>} : vector<2x256xbf16>, vector<256x128xbf16>, vector<2x128xf32> -> vector<2x128xf32>
    %c0_9 = arith.constant 0 : index
    %c0_10 = arith.constant 0 : index
    %11 = vector.load %arg5[%c0_9, %c0_10] : memref<1x128xf32, #tpu.memory_space<vmem>>, vector<1x128xf32>
    %12 = vector.broadcast %11 : vector<1x128xf32> to vector<2x128xf32>
    %13 = arith.addf %10, %12 : vector<2x128xf32>
    %cst_11 = arith.constant 0.000000e+00 : f32
    %14 = vector.broadcast %cst_11 : f32 to vector<2x128xf32>
    %15 = arith.maximumf %13, %14 : vector<2x128xf32>
    %16 = arith.truncf %15 : vector<2x128xf32> to vector<2x128xbf16>
    %c0_12 = arith.constant 0 : index
    %c0_13 = arith.constant 0 : index
    %17 = vector.load %arg6[%c0_12, %c0_13] : memref<128x128xbf16, #tpu.memory_space<vmem>>, vector<128x128xbf16>
    %cst_14 = arith.constant dense<0.000000e+00> : vector<2x128xf32>
    %18 = tpu.matmul %16, %17, %cst_14 {dimension_numbers = #tpu.dot_dimension_numbers<[1], [0], [0], [1], [0, 0, 1, 1], [], []>} : vector<2x128xbf16>, vector<128x128xbf16>, vector<2x128xf32> -> vector<2x128xf32>
    %c0_15 = arith.constant 0 : index
    %c0_16 = arith.constant 0 : index
    %19 = vector.load %arg7[%c0_15, %c0_16] : memref<1x128xf32, #tpu.memory_space<vmem>>, vector<1x128xf32>
    %20 = vector.broadcast %19 : vector<1x128xf32> to vector<2x128xf32>
    %21 = arith.addf %18, %20 : vector<2x128xf32>
    %c0_17 = arith.constant 0 : index
    %c0_18 = arith.constant 0 : index
    %22 = vector.load %arg8[%c0_17, %c0_18] : memref<2x128xf32, #tpu.memory_space<vmem>>, vector<2x128xf32>
    tpu.vector_store %arg8[%c0_17, %c0_18], %21 {strides = array<i32>} : memref<2x128xf32, #tpu.memory_space<vmem>>, vector<2x128xf32>,
    return
  }
  func.func @transform_0(%arg0: i32) -> (i32, i32) {
    %c0_i32 = arith.constant 0 : i32
    %c0_i32_0 = arith.constant 0 : i32
    return %arg0, %c0_i32 : i32, i32
  }
  func.func @transform_1(%arg0: i32) -> (i32, i32) {
    %c0_i32 = arith.constant 0 : i32
    %c0_i32_0 = arith.constant 0 : i32
    %c0_i32_1 = arith.constant 0 : i32
    return %c0_i32, %c0_i32_0 : i32, i32
  }
  func.func @transform_2(%arg0: i32) -> (i32, i32) {
    %c0_i32 = arith.constant 0 : i32
    %c0_i32_0 = arith.constant 0 : i32
    %c0_i32_1 = arith.constant 0 : i32
    return %c0_i32, %c0_i32_0 : i32, i32
  }
  func.func @transform_3(%arg0: i32) -> (i32, i32) {
    %c0_i32 = arith.constant 0 : i32
    %c0_i32_0 = arith.constant 0 : i32
    %c0_i32_1 = arith.constant 0 : i32
    return %c0_i32, %c0_i32_0 : i32, i32
  }
  func.func @transform_4(%arg0: i32) -> (i32, i32) {
    %c0_i32 = arith.constant 0 : i32
    %c0_i32_0 = arith.constant 0 : i32
    %c0_i32_1 = arith.constant 0 : i32
    return %c0_i32, %c0_i32_0 : i32, i32
  }
  func.func @transform_5(%arg0: i32) -> (i32, i32) {
    %c0_i32 = arith.constant 0 : i32
    %c0_i32_0 = arith.constant 0 : i32
    %c0_i32_1 = arith.constant 0 : i32
    return %c0_i32, %c0_i32_0 : i32, i32
  }
  func.func @transform_6(%arg0: i32) -> (i32, i32) {
    %c0_i32 = arith.constant 0 : i32
    %c0_i32_0 = arith.constant 0 : i32
    %c0_i32_1 = arith.constant 0 : i32
    return %c0_i32, %c0_i32_0 : i32, i32
  }
  func.func @transform_7(%arg0: i32) -> (i32, i32) {
    %c0_i32 = arith.constant 0 : i32
    %c0_i32_0 = arith.constant 0 : i32
    return %arg0, %c0_i32 : i32, i32
  }
}

</mosaic_0001>

<llo_original>
// kernel: my_model_forward.9
$region0: #{my_model_forward.9}
  #allocation0 [shape = 'u32[]', space=smem, size = 0x4, offset = 0x4, fixed_abs, tag = 'smem constant byte address 0x4 - core index']
  #allocation1 [shape = 'u32[144,128]{1,0:T(1,128)}', space=vmem, size = 0x12000, scoped, tag = 'internal scratch']
  %s0 = inlined_call_operand.vmem [shape: f32[2,30,30,1], index: 0, kind: input, shape index: {}, may-alias: {0,1,2}]
  %s1 = inlined_call_operand.vmem [shape: f32[2,30,30,1], index: 1, kind: input, shape index: {}, may-alias: {0,1,2}]
  %s2 = inlined_call_operand.vmem [shape: f32[2,30,30,1], index: 2, kind: input, shape index: {}, may-alias: {0,1,2}]
  %s3 = inlined_call_operand.vmem [shape: f32[9,128], index: 3, kind: input, shape index: {}]
  %s4 = inlined_call_operand.vmem [shape: f32[1,128], index: 4, kind: input, shape index: {}]
  %s5 = inlined_call_operand.vmem [shape: bf16[2,28,28,128], index: 5, kind: output, shape index: {}]
  %s6 = sld [smem:[#allocation0]]
  $region53: #{my_model_forward.9} parent=0
    _
  %s8 = ssub.s32 1, %s6
  %s9 = scalar_select 0, %s8, %s6
  loop: start=0, step=1, limit=58
  $region2: #{my_model_forward.9} parent=0 // loop_pre_header
    _
  $region3: #{my_model_forward.9} parent=0 // loop_header
    %s11 = sphi 0, %s15
    %p12 = scmp.ge.s32.totalorder %s11, 58
    %s18 = sphi 0, %s30
    %s19 = sphi 0, %s26
    %s20 = sphi 0, %s18
    %s21 = sphi 0, %s19
    %s22 = sphi 0, %s20
    %s23 = sphi 0, %s21
    %s35 = sphi 0, %s37
    %s38 = sphi 0, %s35
    %s39 = sphi 0, %s38
    %s55 = sphi 0, %s39
    %s65 = sphi 0, %s67
    %s68 = sphi 0, %s65
    %s69 = sphi 0, %s68
    %s85 = sphi 0, %s69
    %s95 = sphi 0, %s97
    %s98 = sphi 0, %s95
    %s99 = sphi 0, %s98
    %s115 = sphi 0, %s99
    %s119 = sphi 0, %s119
    %s121 = sphi 0, %s119
    %s122 = sphi 0, %s121
    %s136 = sphi 0, %s122
    %s140 = sphi 0, %s140
    %s142 = sphi 0, %s140
    %s143 = sphi 0, %s142
    %s157 = sphi 0, %s143
    %s165 = sphi 0, %s167
    %s168 = sphi 0, %s165
    %s169 = sphi 0, %s168
    %s185 = sphi 0, %s169
  $region4: #{my_model_forward.9} parent=0 // loop_header_branch
    %14 = sbr.rel (%p12) target = $region8
  $region5: #{my_model_forward.9} parent=0 // loop_body
    %s16 = ssub.s32 %s11, 1
    %s17 = ssub.s32 %s11, 2
    %s24 = sadd.s32 1, %s19
    %p25 = scmp.ge.s32.totalorder %s24, 28
    %s26 = scalar_select %p25, 0, %s24
    %s27 = sadd.s32 1, %s18
    %s28 = scalar_select %p25, %s27, %s18
    %p29 = scmp.ge.s32.totalorder %s28, 2
    %s30 = scalar_select %p29, 0, %s28
    %s31 = ssub.s32 %s18, %s30
    %s32 = ssub.s32 %s19, %s26
    %s33 = sor.u32 %s31, %s32
    %p34 = scmp.eq.s32.totalorder %s33, 0
    %s36 = sadd.s32 %s35, 1
    %s37 = scalar_select %p34, %s35, %s36
    %p40 = pneg %p34
    %p41 = scmp.eq.s32.totalorder %s11, 55
    %p42 = por %p40, %p41
    %p43 = scmp.ne.s32.totalorder %s35, %s38
    %p44 = scmp.eq.s32.totalorder %s11, 0
    %p45 = por %p43, %p44
    %p46 = scmp.ne.s32.totalorder %s35, %s38
    %p47 = scmp.eq.s32.totalorder %s16, 55
    %p48 = por %p46, %p47
    %p49 = scmp.ne.s32.totalorder %s38, %s39
    %p50 = scmp.eq.s32.totalorder %s16, 0
    %p51 = por %p49, %p50
    %p52 = scmp.ne.s32.totalorder %s38, %s39
    %p53 = scmp.eq.s32.totalorder %s17, 55
    %p54 = por %p52, %p53
    %p56 = scmp.ne.s32.totalorder %s39, %s55
    %p57 = scmp.eq.s32.totalorder %s17, 0
    %p58 = por %p56, %p57
    %s59 = sadd.s32 %s19, 1
    %s60 = sadd.s32 %s26, 1
    %s61 = ssub.s32 %s18, %s30
    %s62 = ssub.s32 %s59, %s60
    %s63 = sor.u32 %s61, %s62
    %p64 = scmp.eq.s32.totalorder %s63, 0
    %s66 = sadd.s32 %s65, 1
    %s67 = scalar_select %p64, %s65, %s66
    %p70 = pneg %p64
    %p71 = scmp.eq.s32.totalorder %s11, 55
    %p72 = por %p70, %p71
    %p73 = scmp.ne.s32.totalorder %s65, %s68
    %p74 = scmp.eq.s32.totalorder %s11, 0
    %p75 = por %p73, %p74
    %p76 = scmp.ne.s32.totalorder %s65, %s68
    %p77 = scmp.eq.s32.totalorder %s16, 55
    %p78 = por %p76, %p77
    %p79 = scmp.ne.s32.totalorder %s68, %s69
    %p80 = scmp.eq.s32.totalorder %s16, 0
    %p81 = por %p79, %p80
    %p82 = scmp.ne.s32.totalorder %s68, %s69
    %p83 = scmp.eq.s32.totalorder %s17, 55
    %p84 = por %p82, %p83
    %p86 = scmp.ne.s32.totalorder %s69, %s85
    %p87 = scmp.eq.s32.totalorder %s17, 0
    %p88 = por %p86, %p87
    %s89 = sadd.s32 %s19, 2
    %s90 = sadd.s32 %s26, 2
    %s91 = ssub.s32 %s18, %s30
    %s92 = ssub.s32 %s89, %s90
    %s93 = sor.u32 %s91, %s92
    %p94 = scmp.eq.s32.totalorder %s93, 0
    %s96 = sadd.s32 %s95, 1
    %s97 = scalar_select %p94, %s95, %s96
    %p100 = pneg %p94
    %p101 = scmp.eq.s32.totalorder %s11, 55
    %p102 = por %p100, %p101
    %p103 = scmp.ne.s32.totalorder %s95, %s98
    %p104 = scmp.eq.s32.totalorder %s11, 0
    %p105 = por %p103, %p104
    %p106 = scmp.ne.s32.totalorder %s95, %s98
    %p107 = scmp.eq.s32.totalorder %s16, 55
    %p108 = por %p106, %p107
    %p109 = scmp.ne.s32.totalorder %s98, %s99
    %p110 = scmp.eq.s32.totalorder %s16, 0
    %p111 = por %p109, %p110
    %p112 = scmp.ne.s32.totalorder %s98, %s99
    %p113 = scmp.eq.s32.totalorder %s17, 55
    %p114 = por %p112, %p113
    %p116 = scmp.ne.s32.totalorder %s99, %s115
    %p117 = scmp.eq.s32.totalorder %s17, 0
    %p118 = por %p116, %p117
    %s120 = sadd.s32 %s119, 1
    %p123 = scmp.eq.s32.totalorder %s11, 55
    %p124 = scmp.ne.s32.totalorder %s119, %s121
    %p125 = scmp.eq.s32.totalorder %s11, 0
    %p126 = por %p124, %p125
    %p127 = scmp.ne.s32.totalorder %s119, %s121
    %p128 = scmp.eq.s32.totalorder %s16, 55
    %p129 = por %p127, %p128
    %p130 = scmp.ne.s32.totalorder %s121, %s122
    %p131 = scmp.eq.s32.totalorder %s16, 0
    %p132 = por %p130, %p131
    %p133 = scmp.ne.s32.totalorder %s121, %s122
    %p134 = scmp.eq.s32.totalorder %s17, 55
    %p135 = por %p133, %p134
    %p137 = scmp.ne.s32.totalorder %s122, %s136
    %p138 = scmp.eq.s32.totalorder %s17, 0
    %p139 = por %p137, %p138
    %s141 = sadd.s32 %s140, 1
    %p144 = scmp.eq.s32.totalorder %s11, 55
    %p145 = scmp.ne.s32.totalorder %s140, %s142
    %p146 = scmp.eq.s32.totalorder %s11, 0
    %p147 = por %p145, %p146
    %p148 = scmp.ne.s32.totalorder %s140, %s142
    %p149 = scmp.eq.s32.totalorder %s16, 55
    %p150 = por %p148, %p149
    %p151 = scmp.ne.s32.totalorder %s142, %s143
    %p152 = scmp.eq.s32.totalorder %s16, 0
    %p153 = por %p151, %p152
    %p154 = scmp.ne.s32.totalorder %s142, %s143
    %p155 = scmp.eq.s32.totalorder %s17, 55
    %p156 = por %p154, %p155
    %p158 = scmp.ne.s32.totalorder %s143, %s157
    %p159 = scmp.eq.s32.totalorder %s17, 0
    %p160 = por %p158, %p159
    %s161 = ssub.s32 %s18, %s30
    %s162 = ssub.s32 %s19, %s26
    %s163 = sor.u32 %s161, %s162
    %p164 = scmp.eq.s32.totalorder %s163, 0
    %s166 = sadd.s32 %s165, 1
    %s167 = scalar_select %p164, %s165, %s166
    %p170 = pneg %p164
    %p171 = scmp.eq.s32.totalorder %s11, 55
    %p172 = por %p170, %p171
    %p173 = scmp.ne.s32.totalorder %s165, %s168
    %p174 = scmp.eq.s32.totalorder %s11, 0
    %p175 = por %p173, %p174
    %p176 = scmp.ne.s32.totalorder %s165, %s168
    %p177 = scmp.eq.s32.totalorder %s16, 55
    %p178 = por %p176, %p177
    %p179 = scmp.ne.s32.totalorder %s168, %s169
    %p180 = scmp.eq.s32.totalorder %s16, 0
    %p181 = por %p179, %p180
    %p182 = scmp.ne.s32.totalorder %s168, %s169
    %p183 = scmp.eq.s32.totalorder %s17, 55
    %p184 = por %p182, %p183
    %p186 = scmp.ne.s32.totalorder %s169, %s185
    %p187 = scmp.eq.s32.totalorder %s17, 0
    %p188 = por %p186, %p187
    %p189 = scmp.le.s32.totalorder 1, %s11
    %p190 = scmp.lt.s32.totalorder %s11, 57
    %p191 = pnand %p189, %p190
    %p192 = pneg %p191
    // Predicated region
    $region9: #{my_model_forward.9} parent=5 // pred_check
      _
    $region10: #{my_model_forward.9} parent=5 // pred_check_branch
      %194 = sbr.rel (%p191) target = $region12
    $region11: #{my_model_forward.9} parent=5 // pred_region
      %s195 = ssub.s32 %s11, 1
      // Predicated region
      $region13: #{my_model_forward.9} parent=11 // pred_check
        %p196 = pneg %p132
      $region14: #{my_model_forward.9} parent=11 // pred_check_branch
        %198 = sbr.rel (%p196) target = $region16
      $region15: #{my_model_forward.9} parent=11 // pred_region
        _
      $region16: #{my_model_forward.9} parent=11 // pred_fallthru
        _
      // Predicated region
      $region17: #{my_model_forward.9} parent=11 // pred_check
        %p199 = pneg %p153
      $region18: #{my_model_forward.9} parent=11 // pred_check_branch
        %201 = sbr.rel (%p199) target = $region20
      $region19: #{my_model_forward.9} parent=11 // pred_region
        _
      $region20: #{my_model_forward.9} parent=11 // pred_fallthru
        _
    $region12: #{my_model_forward.9} parent=5 // pred_fallthru
      _
    %p202 = scmp.lt.s32.totalorder %s11, 56
    // Predicated region
    $region21: #{my_model_forward.9} parent=5 // pred_check
      %p203 = pneg %p202
    $region22: #{my_model_forward.9} parent=5 // pred_check_branch
      %205 = sbr.rel (%p203) target = $region24
    $region23: #{my_model_forward.9} parent=5 // pred_region
      // Predicated region
      $region25: #{my_model_forward.9} parent=23 // pred_check
        %p206 = pneg %p45
      $region26: #{my_model_forward.9} parent=23 // pred_check_branch
        %208 = sbr.rel (%p206) target = $region28
      $region27: #{my_model_forward.9} parent=23 // pred_region
        %p209 = scmp.lt.s32.totalorder %s18, 1
        %s210 = scalar_select %p209, %s18, 1
        %p211 = scmp.lt.s32.totalorder %s19, 29
        %s212 = scalar_select %p211, %s19, 29
        %s213 = smul.addr %s212, 4
        %s214 = smul.addr %s210, 120
        %s215 = sadd.s32 %s213, %s214
        %s216 = smul.addr %s215, 8
        %s217 = scalar_lea.vmem %s0, %s216
      $region28: #{my_model_forward.9} parent=23 // pred_fallthru
        _
      // Predicated region
      $region29: #{my_model_forward.9} parent=23 // pred_check
        %p218 = pneg %p75
      $region30: #{my_model_forward.9} parent=23 // pred_check_branch
        %220 = sbr.rel (%p218) target = $region32
      $region31: #{my_model_forward.9} parent=23 // pred_region
        %s221 = sadd.s32 %s19, 1
        %p222 = scmp.lt.s32.totalorder %s18, 1
        %s223 = scalar_select %p222, %s18, 1
        %p224 = scmp.lt.s32.totalorder %s221, 29
        %s225 = scalar_select %p224, %s221, 29
        %s226 = smul.addr %s225, 4
        %s227 = smul.addr %s223, 120
        %s228 = sadd.s32 %s226, %s227
        %s229 = smul.addr %s228, 8
        %s230 = scalar_lea.vmem %s1, %s229
        %s231 = sadd.s32 %s19, 1
      $region32: #{my_model_forward.9} parent=23 // pred_fallthru
        _
      // Predicated region
      $region33: #{my_model_forward.9} parent=23 // pred_check
        %p232 = pneg %p105
      $region34: #{my_model_forward.9} parent=23 // pred_check_branch
        %234 = sbr.rel (%p232) target = $region36
      $region35: #{my_model_forward.9} parent=23 // pred_region
        %s235 = sadd.s32 %s19, 2
        %p236 = scmp.lt.s32.totalorder %s18, 1
        %s237 = scalar_select %p236, %s18, 1
        %p238 = scmp.lt.s32.totalorder %s235, 29
        %s239 = scalar_select %p238, %s235, 29
        %s240 = smul.addr %s239, 4
        %s241 = smul.addr %s237, 120
        %s242 = sadd.s32 %s240, %s241
        %s243 = smul.addr %s242, 8
        %s244 = scalar_lea.vmem %s2, %s243
        %s245 = sadd.s32 %s19, 2
      $region36: #{my_model_forward.9} parent=23 // pred_fallthru
        _
    $region24: #{my_model_forward.9} parent=5 // pred_fallthru
      _
    %p246 = scmp.le.s32.totalorder 1, %s11
    %p247 = scmp.lt.s32.totalorder %s11, 57
    %p248 = pnand %p246, %p247
    %p249 = pneg %p248
    // Predicated region
    $region37: #{my_model_forward.9} parent=5 // pred_check
      _
    $region38: #{my_model_forward.9} parent=5 // pred_check_branch
      %251 = sbr.rel (%p248) target = $region40
    $region39: #{my_model_forward.9} parent=5 // pred_region
      %s252 = ssub.s32 %s11, 1
      %p253 = scmp.lt.s32.totalorder %s20, 1
      %s254 = scalar_select %p253, %s20, 1
      %p255 = scmp.lt.s32.totalorder %s21, 29
      %s256 = scalar_select %p255, %s21, 29
      %s257 = smul.addr %s256, 4
      %s258 = smul.addr %s254, 120
      %s259 = sadd.s32 %s257, %s258
      %s260 = smul.addr %s259, 8
      %s261 = scalar_lea.vmem %s0, %s260
      %p262 = pneg %p51
      %p263 = pneg %p48
      %s264 = sadd.s32 %s21, 1
      %p265 = scmp.lt.s32.totalorder %s20, 1
      %s266 = scalar_select %p265, %s20, 1
      %p267 = scmp.lt.s32.totalorder %s264, 29
      %s268 = scalar_select %p267, %s264, 29
      %s269 = smul.addr %s268, 4
      %s270 = smul.addr %s266, 120
      %s271 = sadd.s32 %s269, %s270
      %s272 = smul.addr %s271, 8
      %s273 = scalar_lea.vmem %s1, %s272
      %p274 = pneg %p81
      %p275 = pneg %p78
      %s276 = sadd.s32 %s21, 2
      %p277 = scmp.lt.s32.totalorder %s20, 1
      %s278 = scalar_select %p277, %s20, 1
      %p279 = scmp.lt.s32.totalorder %s276, 29
      %s280 = scalar_select %p279, %s276, 29
      %s281 = smul.addr %s280, 4
      %s282 = smul.addr %s278, 120
      %s283 = sadd.s32 %s281, %s282
      %s284 = smul.addr %s283, 8
      %s285 = scalar_lea.vmem %s2, %s284
      %p286 = pneg %p111
      %p287 = pneg %p108
      %p288 = pneg %p132
      %p289 = pneg %p129
      %p290 = pneg %p153
      %p291 = pneg %p150
      %p292 = pneg %p181
      %p293 = pneg %p178
      %p294 = scmp.lt.s32.totalorder %s20, 1
      %s295 = scalar_select %p294, %s20, 1
      %p296 = scmp.lt.s32.totalorder %s21, 27
      %s297 = scalar_select %p296, %s21, 27
      %s298 = smul.addr %s297, 4
      %s299 = smul.addr %s295, 112
      %s300 = sadd.s32 %s298, %s299
      %s301 = smul.addr %s300, 4
      %s302 = scalar_lea.vmem %s5, %s301
      %p303 = scmp.lt.s32.totalorder %s20, 1
      %s304 = scalar_select %p303, %s20, 1
      %p305 = scmp.lt.s32.totalorder %s21, 29
      %s306 = scalar_select %p305, %s21, 29
      %s307 = smul.addr %s306, 4
      %s308 = smul.addr %s304, 120
      %s309 = sadd.s32 %s307, %s308
      %s310 = smul.addr %s309, 8
      %s311 = scalar_lea.vmem %s0, %s310
      %s312 = sadd.s32 %s21, 1
      %p313 = scmp.lt.s32.totalorder %s20, 1
      %s314 = scalar_select %p313, %s20, 1
      %p315 = scmp.lt.s32.totalorder %s312, 29
      %s316 = scalar_select %p315, %s312, 29
      %s317 = smul.addr %s316, 4
      %s318 = smul.addr %s314, 120
      %s319 = sadd.s32 %s317, %s318
      %s320 = smul.addr %s319, 8
      %s321 = scalar_lea.vmem %s1, %s320
      %s322 = sadd.s32 %s21, 1
      %s323 = sadd.s32 %s21, 2
      %p324 = scmp.lt.s32.totalorder %s20, 1
      %s325 = scalar_select %p324, %s20, 1
      %p326 = scmp.lt.s32.totalorder %s323, 29
      %s327 = scalar_select %p326, %s323, 29
      %s328 = smul.addr %s327, 4
      %s329 = smul.addr %s325, 120
      %s330 = sadd.s32 %s328, %s329
      %s331 = smul.addr %s330, 8
      %s332 = scalar_lea.vmem %s2, %s331
      %s333 = sadd.s32 %s21, 2
      %p334 = scmp.lt.s32.totalorder %s20, 1
      %s335 = scalar_select %p334, %s20, 1
      %p336 = scmp.lt.s32.totalorder %s21, 27
      %s337 = scalar_select %p336, %s21, 27
      %s338 = smul.addr %s337, 4
      %s339 = smul.addr %s335, 112
      %s340 = sadd.s32 %s338, %s339
      %s341 = smul.addr %s340, 4
      %s342 = scalar_lea.vmem %s5, %s341
      %v343 = vld [vmem:[%s311] sm:$0xff]
      %v344 = vld [vmem:[%s311 + $0x8] sm:$0xff]
      %v345 = vld [vmem:[%s311 + $0x10] sm:$0xff]
      %v346 = vld [vmem:[%s311 + $0x18] sm:$0xf]
      %v347 = vld [vmem:[%s3] sm:$0x1]
      %349 = vset.pattern.permute.xlu0 0
      %350 = vperm.xlu0 %349, %v343
      %v351 = vpop.permute.xlu0 %350
      %354 = vset.pattern.permute.xlu0 0
      %355 = vperm.xlu0 %354, %v344
      %v356 = vpop.permute.xlu0 %355
      %359 = vset.pattern.permute.xlu0 0
      %360 = vperm.xlu0 %359, %v345
      %v361 = vpop.permute.xlu0 %360
      %364 = vset.pattern.permute.xlu0 0
      %365 = vperm.xlu0 %364, %v346
      %v366 = vpop.permute.xlu0 %365
      %v368 = vlaneseq
      %v369 = vshrl.u32 %v368, 7
      %v370 = vsub.s32 0, %v369
      %v371 = vrot.slane %v347, %v370
      %v372 = vmul.f32 %v351, %v371
      %v373 = vmul.f32 %v356, %v371
      %v374 = vmul.f32 %v361, %v371
      %v375 = vmul.f32 %v366, %v371
      %v376 = vadd.f32 %v372, 0.0
      %v377 = vadd.f32 %v373, 0.0
      %v378 = vadd.f32 %v374, 0.0
      %v379 = vadd.f32 %v375, 0.0
      %v380 = vld [vmem:[%s311 + $0x1] sm:$0xff]
      %v381 = vld [vmem:[%s311 + $0x9] sm:$0xff]
      %v382 = vld [vmem:[%s311 + $0x11] sm:$0xff]
      %v383 = vld [vmem:[%s311 + $0x19] sm:$0xf]
      %v384 = vld [vmem:[%s3 + $0x1] sm:$0x1]
      %386 = vset.pattern.permute.xlu0 0
      %387 = vperm.xlu0 %386, %v380
      %v388 = vpop.permute.xlu0 %387
      %391 = vset.pattern.permute.xlu0 0
      %392 = vperm.xlu0 %391, %v381
      %v393 = vpop.permute.xlu0 %392
      %396 = vset.pattern.permute.xlu0 0
      %397 = vperm.xlu0 %396, %v382
      %v398 = vpop.permute.xlu0 %397
      %401 = vset.pattern.permute.xlu0 0
      %402 = vperm.xlu0 %401, %v383
      %v403 = vpop.permute.xlu0 %402
      %v405 = vlaneseq
      %v406 = vshrl.u32 %v405, 7
      %v407 = vsub.s32 0, %v406
      %v408 = vrot.slane %v384, %v407
      %v409 = vmul.f32 %v388, %v408
      %v410 = vmul.f32 %v393, %v408
      %v411 = vmul.f32 %v398, %v408
      %v412 = vmul.f32 %v403, %v408
      %v413 = vadd.f32 %v376, %v409
      %v414 = vadd.f32 %v377, %v410
      %v415 = vadd.f32 %v378, %v411
      %v416 = vadd.f32 %v379, %v412
      %v417 = vld [vmem:[%s311 + $0x2] sm:$0xff]
      %v418 = vld [vmem:[%s311 + $0xa] sm:$0xff]
      %v419 = vld [vmem:[%s311 + $0x12] sm:$0xff]
      %v420 = vld [vmem:[%s311 + $0x1a] sm:$0xf]
      %v421 = vld [vmem:[%s3 + $0x2] sm:$0x1]
      %423 = vset.pattern.permute.xlu0 0
      %424 = vperm.xlu0 %423, %v417
      %v425 = vpop.permute.xlu0 %424
      %428 = vset.pattern.permute.xlu0 0
      %429 = vperm.xlu0 %428, %v418
      %v430 = vpop.permute.xlu0 %429
      %433 = vset.pattern.permute.xlu0 0
      %434 = vperm.xlu0 %433, %v419
      %v435 = vpop.permute.xlu0 %434
      %438 = vset.pattern.permute.xlu0 0
      %439 = vperm.xlu0 %438, %v420
      %v440 = vpop.permute.xlu0 %439
      %v442 = vlaneseq
      %v443 = vshrl.u32 %v442, 7
      %v444 = vsub.s32 0, %v443
      %v445 = vrot.slane %v421, %v444
      %v446 = vmul.f32 %v425, %v445
      %v447 = vmul.f32 %v430, %v445
      %v448 = vmul.f32 %v435, %v445
      %v449 = vmul.f32 %v440, %v445
      %v450 = vadd.f32 %v413, %v446
      %v451 = vadd.f32 %v414, %v447
      %v452 = vadd.f32 %v415, %v448
      %v453 = vadd.f32 %v416, %v449
      %v454 = vld [vmem:[%s321] sm:$0xff]
      %v455 = vld [vmem:[%s321 + $0x8] sm:$0xff]
      %v456 = vld [vmem:[%s321 + $0x10] sm:$0xff]
      %v457 = vld [vmem:[%s321 + $0x18] sm:$0xf]
      %v458 = vld [vmem:[%s3 + $0x3] sm:$0x1]
      %460 = vset.pattern.permute.xlu0 0
      %461 = vperm.xlu0 %460, %v454
      %v462 = vpop.permute.xlu0 %461
      %465 = vset.pattern.permute.xlu0 0
      %466 = vperm.xlu0 %465, %v455
      %v467 = vpop.permute.xlu0 %466
      %470 = vset.pattern.permute.xlu0 0
      %471 = vperm.xlu0 %470, %v456
      %v472 = vpop.permute.xlu0 %471
      %475 = vset.pattern.permute.xlu0 0
      %476 = vperm.xlu0 %475, %v457
      %v477 = vpop.permute.xlu0 %476
      %v479 = vlaneseq
      %v480 = vshrl.u32 %v479, 7
      %v481 = vsub.s32 0, %v480
      %v482 = vrot.slane %v458, %v481
      %v483 = vmul.f32 %v462, %v482
      %v484 = vmul.f32 %v467, %v482
      %v485 = vmul.f32 %v472, %v482
      %v486 = vmul.f32 %v477, %v482
      %v487 = vadd.f32 %v450, %v483
      %v488 = vadd.f32 %v451, %v484
      %v489 = vadd.f32 %v452, %v485
      %v490 = vadd.f32 %v453, %v486
      %v491 = vld [vmem:[%s321 + $0x1] sm:$0xff]
      %v492 = vld [vmem:[%s321 + $0x9] sm:$0xff]
      %v493 = vld [vmem:[%s321 + $0x11] sm:$0xff]
      %v494 = vld [vmem:[%s321 + $0x19] sm:$0xf]
      %v495 = vld [vmem:[%s3 + $0x4] sm:$0x1]
      %497 = vset.pattern.permute.xlu0 0
      %498 = vperm.xlu0 %497, %v491
      %v499 = vpop.permute.xlu0 %498
      %502 = vset.pattern.permute.xlu0 0
      %503 = vperm.xlu0 %502, %v492
      %v504 = vpop.permute.xlu0 %503
      %507 = vset.pattern.permute.xlu0 0
      %508 = vperm.xlu0 %507, %v493
      %v509 = vpop.permute.xlu0 %508
      %512 = vset.pattern.permute.xlu0 0
      %513 = vperm.xlu0 %512, %v494
      %v514 = vpop.permute.xlu0 %513
      %v516 = vlaneseq
      %v517 = vshrl.u32 %v516, 7
      %v518 = vsub.s32 0, %v517
      %v519 = vrot.slane %v495, %v518
      %v520 = vmul.f32 %v499, %v519
      %v521 = vmul.f32 %v504, %v519
      %v522 = vmul.f32 %v509, %v519
      %v523 = vmul.f32 %v514, %v519
      %v524 = vadd.f32 %v487, %v520
      %v525 = vadd.f32 %v488, %v521
      %v526 = vadd.f32 %v489, %v522
      %v527 = vadd.f32 %v490, %v523
      %v528 = vld [vmem:[%s321 + $0x2] sm:$0xff]
      %v529 = vld [vmem:[%s321 + $0xa] sm:$0xff]
      %v530 = vld [vmem:[%s321 + $0x12] sm:$0xff]
      %v531 = vld [vmem:[%s321 + $0x1a] sm:$0xf]
      %v532 = vld [vmem:[%s3 + $0x5] sm:$0x1]
      %534 = vset.pattern.permute.xlu0 0
      %535 = vperm.xlu0 %534, %v528
      %v536 = vpop.permute.xlu0 %535
      %539 = vset.pattern.permute.xlu0 0
      %540 = vperm.xlu0 %539, %v529
      %v541 = vpop.permute.xlu0 %540
      %544 = vset.pattern.permute.xlu0 0
      %545 = vperm.xlu0 %544, %v530
      %v546 = vpop.permute.xlu0 %545
      %549 = vset.pattern.permute.xlu0 0
      %550 = vperm.xlu0 %549, %v531
      %v551 = vpop.permute.xlu0 %550
      %v553 = vlaneseq
      %v554 = vshrl.u32 %v553, 7
      %v555 = vsub.s32 0, %v554
      %v556 = vrot.slane %v532, %v555
      %v557 = vmul.f32 %v536, %v556
      %v558 = vmul.f32 %v541, %v556
      %v559 = vmul.f32 %v546, %v556
      %v560 = vmul.f32 %v551, %v556
      %v561 = vadd.f32 %v524, %v557
      %v562 = vadd.f32 %v525, %v558
      %v563 = vadd.f32 %v526, %v559
      %v564 = vadd.f32 %v527, %v560
      %v565 = vld [vmem:[%s332] sm:$0xff]
      %v566 = vld [vmem:[%s332 + $0x8] sm:$0xff]
      %v567 = vld [vmem:[%s332 + $0x10] sm:$0xff]
      %v568 = vld [vmem:[%s332 + $0x18] sm:$0xf]
      %v569 = vld [vmem:[%s3 + $0x6] sm:$0x1]
      %571 = vset.pattern.permute.xlu0 0
      %572 = vperm.xlu0 %571, %v565
      %v573 = vpop.permute.xlu0 %572
      %576 = vset.pattern.permute.xlu0 0
      %577 = vperm.xlu0 %576, %v566
      %v578 = vpop.permute.xlu0 %577
      %581 = vset.pattern.permute.xlu0 0
      %582 = vperm.xlu0 %581, %v567
      %v583 = vpop.permute.xlu0 %582
      %586 = vset.pattern.permute.xlu0 0
      %587 = vperm.xlu0 %586, %v568
      %v588 = vpop.permute.xlu0 %587
      %v590 = vlaneseq
      %v591 = vshrl.u32 %v590, 7
      %v592 = vsub.s32 0, %v591
      %v593 = vrot.slane %v569, %v592
      %v594 = vmul.f32 %v573, %v593
      %v595 = vmul.f32 %v578, %v593
      %v596 = vmul.f32 %v583, %v593
      %v597 = vmul.f32 %v588, %v593
      %v598 = vadd.f32 %v561, %v594
      %v599 = vadd.f32 %v562, %v595
      %v600 = vadd.f32 %v563, %v596
      %v601 = vadd.f32 %v564, %v597
      %v602 = vld [vmem:[%s332 + $0x1] sm:$0xff]
      %v603 = vld [vmem:[%s332 + $0x9] sm:$0xff]
      %v604 = vld [vmem:[%s332 + $0x11] sm:$0xff]
      %v605 = vld [vmem:[%s332 + $0x19] sm:$0xf]
      %v606 = vld [vmem:[%s3 + $0x7] sm:$0x1]
      %608 = vset.pattern.permute.xlu0 0
      %609 = vperm.xlu0 %608, %v602
      %v610 = vpop.permute.xlu0 %609
      %613 = vset.pattern.permute.xlu0 0
      %614 = vperm.xlu0 %613, %v603
      %v615 = vpop.permute.xlu0 %614
      %618 = vset.pattern.permute.xlu0 0
      %619 = vperm.xlu0 %618, %v604
      %v620 = vpop.permute.xlu0 %619
      %623 = vset.pattern.permute.xlu0 0
      %624 = vperm.xlu0 %623, %v605
      %v625 = vpop.permute.xlu0 %624
      %v627 = vlaneseq
      %v628 = vshrl.u32 %v627, 7
      %v629 = vsub.s32 0, %v628
      %v630 = vrot.slane %v606, %v629
      %v631 = vmul.f32 %v610, %v630
      %v632 = vmul.f32 %v615, %v630
      %v633 = vmul.f32 %v620, %v630
      %v634 = vmul.f32 %v625, %v630
      %v635 = vadd.f32 %v598, %v631
      %v636 = vadd.f32 %v599, %v632
      %v637 = vadd.f32 %v600, %v633
      %v638 = vadd.f32 %v601, %v634
      %v639 = vld [vmem:[%s332 + $0x2] sm:$0xff]
      %v640 = vld [vmem:[%s332 + $0xa] sm:$0xff]
      %v641 = vld [vmem:[%s332 + $0x12] sm:$0xff]
      %v642 = vld [vmem:[%s332 + $0x1a] sm:$0xf]
      %v643 = vld [vmem:[%s3 + $0x8] sm:$0x1]
      %645 = vset.pattern.permute.xlu0 0
      %646 = vperm.xlu0 %645, %v639
      %v647 = vpop.permute.xlu0 %646
      %650 = vset.pattern.permute.xlu0 0
      %651 = vperm.xlu0 %650, %v640
      %v652 = vpop.permute.xlu0 %651
      %655 = vset.pattern.permute.xlu0 0
      %656 = vperm.xlu0 %655, %v641
      %v657 = vpop.permute.xlu0 %656
      %660 = vset.pattern.permute.xlu0 0
      %661 = vperm.xlu0 %660, %v642
      %v662 = vpop.permute.xlu0 %661
      %v664 = vlaneseq
      %v665 = vshrl.u32 %v664, 7
      %v666 = vsub.s32 0, %v665
      %v667 = vrot.slane %v643, %v666
      %v668 = vmul.f32 %v647, %v667
      %v669 = vmul.f32 %v652, %v667
      %v670 = vmul.f32 %v657, %v667
      %v671 = vmul.f32 %v662, %v667
      %v672 = vadd.f32 %v635, %v668
      %v673 = vadd.f32 %v636, %v669
      %v674 = vadd.f32 %v637, %v670
      %v675 = vadd.f32 %v638, %v671
      %v676 = vld [vmem:[%s4] sm:$0x1]
      %v678 = vlaneseq
      %v679 = vshrl.u32 %v678, 7
      %v680 = vsub.s32 0, %v679
      %v681 = vrot.slane %v676, %v680
      %v683 = vadd.f32 %v672, %v681
      %v684 = vadd.f32 %v673, %v681
      %v685 = vadd.f32 %v674, %v681
      %v686 = vadd.f32 %v675, %v681
      %v687 = vmax.f32 %v683, 0.0
      %v688 = vmax.f32 %v684, 0.0
      %v689 = vmax.f32 %v685, 0.0
      %v690 = vmax.f32 %v686, 0.0
      %v691 = vpack.c.bf16 %v688, %v687
      %v692 = vpack.c.bf16 %v690, %v689
      %v695 = vunpack.c.l.b16 %v691
      %v696 = vunpack.c.h.b16 %v691
      %v697 = vunpack.c.l.b16 %v692
      %v698 = vunpack.c.h.b16 %v692
      %v699 = vpack.c.b16 %v695, %v695
      %v700 = vpack.c.b16 %v696, %v696
      %v701 = vpack.c.b16 %v697, %v697
      %v702 = vpack.c.b16 %v698, %v698
      %707 = vst [vmem:[%s342] sm:$0xf] %v699
      %708 = vst [vmem:[%s342 + $0x4] sm:$0xf] %v700
      %709 = vst [vmem:[%s342 + $0x8] sm:$0xf] %v701
      %710 = vst [vmem:[%s342 + $0xc] sm:$0x3] %v702
      %p711 = scmp.lt.s32.totalorder %s20, 1
      %s712 = scalar_select %p711, %s20, 1
      %p713 = scmp.lt.s32.totalorder %s21, 27
      %s714 = scalar_select %p713, %s21, 27
      %s715 = smul.addr %s714, 4
      %s716 = smul.addr %s712, 112
      %s717 = sadd.s32 %s715, %s716
      %s718 = smul.addr %s717, 4
      %s719 = scalar_lea.vmem %s5, %s718
      // Predicated region
      $region41: #{my_model_forward.9} parent=39 // pred_check
        %p720 = pneg %p178
      $region42: #{my_model_forward.9} parent=39 // pred_check_branch
        %722 = sbr.rel (%p720) target = $region44
      $region43: #{my_model_forward.9} parent=39 // pred_region
        _
      $region44: #{my_model_forward.9} parent=39 // pred_fallthru
        _
    $region40: #{my_model_forward.9} parent=5 // pred_fallthru
      _
    %p723 = scmp.le.s32.totalorder 2, %s11
    // Predicated region
    $region45: #{my_model_forward.9} parent=5 // pred_check
      %p724 = pneg %p723
    $region46: #{my_model_forward.9} parent=5 // pred_check_branch
      %726 = sbr.rel (%p724) target = $region48
    $region47: #{my_model_forward.9} parent=5 // pred_region
      %s727 = ssub.s32 %s11, 2
      // Predicated region
      $region49: #{my_model_forward.9} parent=47 // pred_check
        %p728 = pneg %p184
      $region50: #{my_model_forward.9} parent=47 // pred_check_branch
        %730 = sbr.rel (%p728) target = $region52
      $region51: #{my_model_forward.9} parent=47 // pred_region
        %p731 = scmp.lt.s32.totalorder %s22, 1
        %s732 = scalar_select %p731, %s22, 1
        %p733 = scmp.lt.s32.totalorder %s23, 27
        %s734 = scalar_select %p733, %s23, 27
        %s735 = smul.addr %s734, 4
        %s736 = smul.addr %s732, 112
        %s737 = sadd.s32 %s735, %s736
        %s738 = smul.addr %s737, 4
        %s739 = scalar_lea.vmem %s5, %s738
      $region52: #{my_model_forward.9} parent=47 // pred_fallthru
        _
    $region48: #{my_model_forward.9} parent=5 // pred_fallthru
      _
  $region6: #{my_model_forward.9} parent=0 // loop_footer
    %s15 = sadd.s32 1, %s11
  $region7: #{my_model_forward.9} parent=0 // loop_footer_branch
    %10 = sbr.rel target = $region3
  $region8: #{my_model_forward.9} parent=0 // loop_exit
    _

// kernel: my_model_forward.10
$region0: #{my_model_forward.10}
  #allocation0 [shape = 'u32[]', space=smem, size = 0x4, offset = 0x4, fixed_abs, tag = 'smem constant byte address 0x4 - core index']
  #allocation1 [shape = 'u32[144,128]{1,0:T(1,128)}', space=vmem, size = 0x12000, scoped, tag = 'internal scratch']
  %s0 = inlined_call_operand.vmem [shape: bf16[2,30,30,128], index: 0, kind: input, shape index: {}, may-alias: {0,1,2}]
  %s1 = inlined_call_operand.vmem [shape: bf16[2,30,30,128], index: 1, kind: input, shape index: {}, may-alias: {0,1,2}]
  %s2 = inlined_call_operand.vmem [shape: bf16[2,30,30,128], index: 2, kind: input, shape index: {}, may-alias: {0,1,2}]
  %s3 = inlined_call_operand.vmem [shape: bf16[1152,128], index: 3, kind: input, shape index: {}]
  %s4 = inlined_call_operand.vmem [shape: f32[1,128], index: 4, kind: input, shape index: {}]
  %s5 = inlined_call_operand.vmem [shape: bf16[2,28,28,128], index: 5, kind: output, shape index: {}]
  %s6 = sld [smem:[#allocation0]]
  $region53: #{my_model_forward.10} parent=0
    _
  %s8 = ssub.s32 1, %s6
  %s9 = scalar_select 0, %s8, %s6
  loop: start=0, step=1, limit=58
  $region2: #{my_model_forward.10} parent=0 // loop_pre_header
    _
  $region3: #{my_model_forward.10} parent=0 // loop_header
    %s11 = sphi 0, %s15
    %p12 = scmp.ge.s32.totalorder %s11, 58
    %s18 = sphi 0, %s30
    %s19 = sphi 0, %s26
    %s20 = sphi 0, %s18
    %s21 = sphi 0, %s19
    %s22 = sphi 0, %s20
    %s23 = sphi 0, %s21
    %s35 = sphi 0, %s37
    %s38 = sphi 0, %s35
    %s39 = sphi 0, %s38
    %s55 = sphi 0, %s39
    %s65 = sphi 0, %s67
    %s68 = sphi 0, %s65
    %s69 = sphi 0, %s68
    %s85 = sphi 0, %s69
    %s95 = sphi 0, %s97
    %s98 = sphi 0, %s95
    %s99 = sphi 0, %s98
    %s115 = sphi 0, %s99
    %s119 = sphi 0, %s119
    %s121 = sphi 0, %s119
    %s122 = sphi 0, %s121
    %s136 = sphi 0, %s122
    %s140 = sphi 0, %s140
    %s142 = sphi 0, %s140
    %s143 = sphi 0, %s142
    %s157 = sphi 0, %s143
    %s165 = sphi 0, %s167
    %s168 = sphi 0, %s165
    %s169 = sphi 0, %s168
    %s185 = sphi 0, %s169
  $region4: #{my_model_forward.10} parent=0 // loop_header_branch
    %14 = sbr.rel (%p12) target = $region8
  $region5: #{my_model_forward.10} parent=0 // loop_body
    %s16 = ssub.s32 %s11, 1
    %s17 = ssub.s32 %s11, 2
    %s24 = sadd.s32 1, %s19
    %p25 = scmp.ge.s32.totalorder %s24, 28
    %s26 = scalar_select %p25, 0, %s24
    %s27 = sadd.s32 1, %s18
    %s28 = scalar_select %p25, %s27, %s18
    %p29 = scmp.ge.s32.totalorder %s28, 2
    %s30 = scalar_select %p29, 0, %s28
    %s31 = ssub.s32 %s18, %s30
    %s32 = ssub.s32 %s19, %s26
    %s33 = sor.u32 %s31, %s32
    %p34 = scmp.eq.s32.totalorder %s33, 0
    %s36 = sadd.s32 %s35, 1
    %s37 = scalar_select %p34, %s35, %s36
    %p40 = pneg %p34
    %p41 = scmp.eq.s32.totalorder %s11, 55
    %p42 = por %p40, %p41
    %p43 = scmp.ne.s32.totalorder %s35, %s38
    %p44 = scmp.eq.s32.totalorder %s11, 0
    %p45 = por %p43, %p44
    %p46 = scmp.ne.s32.totalorder %s35, %s38
    %p47 = scmp.eq.s32.totalorder %s16, 55
    %p48 = por %p46, %p47
    %p49 = scmp.ne.s32.totalorder %s38, %s39
    %p50 = scmp.eq.s32.totalorder %s16, 0
    %p51 = por %p49, %p50
    %p52 = scmp.ne.s32.totalorder %s38, %s39
    %p53 = scmp.eq.s32.totalorder %s17, 55
    %p54 = por %p52, %p53
    %p56 = scmp.ne.s32.totalorder %s39, %s55
    %p57 = scmp.eq.s32.totalorder %s17, 0
    %p58 = por %p56, %p57
    %s59 = sadd.s32 %s19, 1
    %s60 = sadd.s32 %s26, 1
    %s61 = ssub.s32 %s18, %s30
    %s62 = ssub.s32 %s59, %s60
    %s63 = sor.u32 %s61, %s62
    %p64 = scmp.eq.s32.totalorder %s63, 0
    %s66 = sadd.s32 %s65, 1
    %s67 = scalar_select %p64, %s65, %s66
    %p70 = pneg %p64
    %p71 = scmp.eq.s32.totalorder %s11, 55
    %p72 = por %p70, %p71
    %p73 = scmp.ne.s32.totalorder %s65, %s68
    %p74 = scmp.eq.s32.totalorder %s11, 0
    %p75 = por %p73, %p74
    %p76 = scmp.ne.s32.totalorder %s65, %s68
    %p77 = scmp.eq.s32.totalorder %s16, 55
    %p78 = por %p76, %p77
    %p79 = scmp.ne.s32.totalorder %s68, %s69
    %p80 = scmp.eq.s32.totalorder %s16, 0
    %p81 = por %p79, %p80
    %p82 = scmp.ne.s32.totalorder %s68, %s69
    %p83 = scmp.eq.s32.totalorder %s17, 55
    %p84 = por %p82, %p83
    %p86 = scmp.ne.s32.totalorder %s69, %s85
    %p87 = scmp.eq.s32.totalorder %s17, 0
    %p88 = por %p86, %p87
    %s89 = sadd.s32 %s19, 2
    %s90 = sadd.s32 %s26, 2
    %s91 = ssub.s32 %s18, %s30
    %s92 = ssub.s32 %s89, %s90
    %s93 = sor.u32 %s91, %s92
    %p94 = scmp.eq.s32.totalorder %s93, 0
    %s96 = sadd.s32 %s95, 1
    %s97 = scalar_select %p94, %s95, %s96
    %p100 = pneg %p94
    %p101 = scmp.eq.s32.totalorder %s11, 55
    %p102 = por %p100, %p101
    %p103 = scmp.ne.s32.totalorder %s95, %s98
    %p104 = scmp.eq.s32.totalorder %s11, 0
    %p105 = por %p103, %p104
    %p106 = scmp.ne.s32.totalorder %s95, %s98
    %p107 = scmp.eq.s32.totalorder %s16, 55
    %p108 = por %p106, %p107
    %p109 = scmp.ne.s32.totalorder %s98, %s99
    %p110 = scmp.eq.s32.totalorder %s16, 0
    %p111 = por %p109, %p110
    %p112 = scmp.ne.s32.totalorder %s98, %s99
    %p113 = scmp.eq.s32.totalorder %s17, 55
    %p114 = por %p112, %p113
    %p116 = scmp.ne.s32.totalorder %s99, %s115
    %p117 = scmp.eq.s32.totalorder %s17, 0
    %p118 = por %p116, %p117
    %s120 = sadd.s32 %s119, 1
    %p123 = scmp.eq.s32.totalorder %s11, 55
    %p124 = scmp.ne.s32.totalorder %s119, %s121
    %p125 = scmp.eq.s32.totalorder %s11, 0
    %p126 = por %p124, %p125
    %p127 = scmp.ne.s32.totalorder %s119, %s121
    %p128 = scmp.eq.s32.totalorder %s16, 55
    %p129 = por %p127, %p128
    %p130 = scmp.ne.s32.totalorder %s121, %s122
    %p131 = scmp.eq.s32.totalorder %s16, 0
    %p132 = por %p130, %p131
    %p133 = scmp.ne.s32.totalorder %s121, %s122
    %p134 = scmp.eq.s32.totalorder %s17, 55
    %p135 = por %p133, %p134
    %p137 = scmp.ne.s32.totalorder %s122, %s136
    %p138 = scmp.eq.s32.totalorder %s17, 0
    %p139 = por %p137, %p138
    %s141 = sadd.s32 %s140, 1
    %p144 = scmp.eq.s32.totalorder %s11, 55
    %p145 = scmp.ne.s32.totalorder %s140, %s142
    %p146 = scmp.eq.s32.totalorder %s11, 0
    %p147 = por %p145, %p146
    %p148 = scmp.ne.s32.totalorder %s140, %s142
    %p149 = scmp.eq.s32.totalorder %s16, 55
    %p150 = por %p148, %p149
    %p151 = scmp.ne.s32.totalorder %s142, %s143
    %p152 = scmp.eq.s32.totalorder %s16, 0
    %p153 = por %p151, %p152
    %p154 = scmp.ne.s32.totalorder %s142, %s143
    %p155 = scmp.eq.s32.totalorder %s17, 55
    %p156 = por %p154, %p155
    %p158 = scmp.ne.s32.totalorder %s143, %s157
    %p159 = scmp.eq.s32.totalorder %s17, 0
    %p160 = por %p158, %p159
    %s161 = ssub.s32 %s18, %s30
    %s162 = ssub.s32 %s19, %s26
    %s163 = sor.u32 %s161, %s162
    %p164 = scmp.eq.s32.totalorder %s163, 0
    %s166 = sadd.s32 %s165, 1
    %s167 = scalar_select %p164, %s165, %s166
    %p170 = pneg %p164
    %p171 = scmp.eq.s32.totalorder %s11, 55
    %p172 = por %p170, %p171
    %p173 = scmp.ne.s32.totalorder %s165, %s168
    %p174 = scmp.eq.s32.totalorder %s11, 0
    %p175 = por %p173, %p174
    %p176 = scmp.ne.s32.totalorder %s165, %s168
    %p177 = scmp.eq.s32.totalorder %s16, 55
    %p178 = por %p176, %p177
    %p179 = scmp.ne.s32.totalorder %s168, %s169
    %p180 = scmp.eq.s32.totalorder %s16, 0
    %p181 = por %p179, %p180
    %p182 = scmp.ne.s32.totalorder %s168, %s169
    %p183 = scmp.eq.s32.totalorder %s17, 55
    %p184 = por %p182, %p183
    %p186 = scmp.ne.s32.totalorder %s169, %s185
    %p187 = scmp.eq.s32.totalorder %s17, 0
    %p188 = por %p186, %p187
    %p189 = scmp.le.s32.totalorder 1, %s11
    %p190 = scmp.lt.s32.totalorder %s11, 57
    %p191 = pnand %p189, %p190
    %p192 = pneg %p191
    // Predicated region
    $region9: #{my_model_forward.10} parent=5 // pred_check
      _
    $region10: #{my_model_forward.10} parent=5 // pred_check_branch
      %194 = sbr.rel (%p191) target = $region12
    $region11: #{my_model_forward.10} parent=5 // pred_region
      %s195 = ssub.s32 %s11, 1
      // Predicated region
      $region13: #{my_model_forward.10} parent=11 // pred_check
        %p196 = pneg %p132
      $region14: #{my_model_forward.10} parent=11 // pred_check_branch
        %198 = sbr.rel (%p196) target = $region16
      $region15: #{my_model_forward.10} parent=11 // pred_region
        _
      $region16: #{my_model_forward.10} parent=11 // pred_fallthru
        _
      // Predicated region
      $region17: #{my_model_forward.10} parent=11 // pred_check
        %p199 = pneg %p153
      $region18: #{my_model_forward.10} parent=11 // pred_check_branch
        %201 = sbr.rel (%p199) target = $region20
      $region19: #{my_model_forward.10} parent=11 // pred_region
        _
      $region20: #{my_model_forward.10} parent=11 // pred_fallthru
        _
    $region12: #{my_model_forward.10} parent=5 // pred_fallthru
      _
    %p202 = scmp.lt.s32.totalorder %s11, 56
    // Predicated region
    $region21: #{my_model_forward.10} parent=5 // pred_check
      %p203 = pneg %p202
    $region22: #{my_model_forward.10} parent=5 // pred_check_branch
      %205 = sbr.rel (%p203) target = $region24
    $region23: #{my_model_forward.10} parent=5 // pred_region
      // Predicated region
      $region25: #{my_model_forward.10} parent=23 // pred_check
        %p206 = pneg %p45
      $region26: #{my_model_forward.10} parent=23 // pred_check_branch
        %208 = sbr.rel (%p206) target = $region28
      $region27: #{my_model_forward.10} parent=23 // pred_region
        %p209 = scmp.lt.s32.totalorder %s18, 1
        %s210 = scalar_select %p209, %s18, 1
        %p211 = scmp.lt.s32.totalorder %s19, 29
        %s212 = scalar_select %p211, %s19, 29
        %s213 = smul.addr %s212, 4
        %s214 = smul.addr %s210, 120
        %s215 = sadd.s32 %s213, %s214
        %s216 = smul.addr %s215, 4
        %s217 = scalar_lea.vmem %s0, %s216
      $region28: #{my_model_forward.10} parent=23 // pred_fallthru
        _
      // Predicated region
      $region29: #{my_model_forward.10} parent=23 // pred_check
        %p218 = pneg %p75
      $region30: #{my_model_forward.10} parent=23 // pred_check_branch
        %220 = sbr.rel (%p218) target = $region32
      $region31: #{my_model_forward.10} parent=23 // pred_region
        %s221 = sadd.s32 %s19, 1
        %p222 = scmp.lt.s32.totalorder %s18, 1
        %s223 = scalar_select %p222, %s18, 1
        %p224 = scmp.lt.s32.totalorder %s221, 29
        %s225 = scalar_select %p224, %s221, 29
        %s226 = smul.addr %s225, 4
        %s227 = smul.addr %s223, 120
        %s228 = sadd.s32 %s226, %s227
        %s229 = smul.addr %s228, 4
        %s230 = scalar_lea.vmem %s1, %s229
        %s231 = sadd.s32 %s19, 1
      $region32: #{my_model_forward.10} parent=23 // pred_fallthru
        _
      // Predicated region
      $region33: #{my_model_forward.10} parent=23 // pred_check
        %p232 = pneg %p105
      $region34: #{my_model_forward.10} parent=23 // pred_check_branch
        %234 = sbr.rel (%p232) target = $region36
      $region35: #{my_model_forward.10} parent=23 // pred_region
        %s235 = sadd.s32 %s19, 2
        %p236 = scmp.lt.s32.totalorder %s18, 1
        %s237 = scalar_select %p236, %s18, 1
        %p238 = scmp.lt.s32.totalorder %s235, 29
        %s239 = scalar_select %p238, %s235, 29
        %s240 = smul.addr %s239, 4
        %s241 = smul.addr %s237, 120
        %s242 = sadd.s32 %s240, %s241
        %s243 = smul.addr %s242, 4
        %s244 = scalar_lea.vmem %s2, %s243
        %s245 = sadd.s32 %s19, 2
      $region36: #{my_model_forward.10} parent=23 // pred_fallthru
        _
    $region24: #{my_model_forward.10} parent=5 // pred_fallthru
      _
    %p246 = scmp.le.s32.totalorder 1, %s11
    %p247 = scmp.lt.s32.totalorder %s11, 57
    %p248 = pnand %p246, %p247
    %p249 = pneg %p248
    // Predicated region
    $region37: #{my_model_forward.10} parent=5 // pred_check
      _
    $region38: #{my_model_forward.10} parent=5 // pred_check_branch
      %251 = sbr.rel (%p248) target = $region40
    $region39: #{my_model_forward.10} parent=5 // pred_region
      %s252 = ssub.s32 %s11, 1
      %p253 = scmp.lt.s32.totalorder %s20, 1
      %s254 = scalar_select %p253, %s20, 1
      %p255 = scmp.lt.s32.totalorder %s21, 29
      %s256 = scalar_select %p255, %s21, 29
      %s257 = smul.addr %s256, 4
      %s258 = smul.addr %s254, 120
      %s259 = sadd.s32 %s257, %s258
      %s260 = smul.addr %s259, 4
      %s261 = scalar_lea.vmem %s0, %s260
      %p262 = pneg %p51
      %p263 = pneg %p48
      %s264 = sadd.s32 %s21, 1
      %p265 = scmp.lt.s32.totalorder %s20, 1
      %s266 = scalar_select %p265, %s20, 1
      %p267 = scmp.lt.s32.totalorder %s264, 29
      %s268 = scalar_select %p267, %s264, 29
      %s269 = smul.addr %s268, 4
      %s270 = smul.addr %s266, 120
      %s271 = sadd.s32 %s269, %s270
      %s272 = smul.addr %s271, 4
      %s273 = scalar_lea.vmem %s1, %s272
      %p274 = pneg %p81
      %p275 = pneg %p78
      %s276 = sadd.s32 %s21, 2
      %p277 = scmp.lt.s32.totalorder %s20, 1
      %s278 = scalar_select %p277, %s20, 1
      %p279 = scmp.lt.s32.totalorder %s276, 29
      %s280 = scalar_select %p279, %s276, 29
      %s281 = smul.addr %s280, 4
      %s282 = smul.addr %s278, 120
      %s283 = sadd.s32 %s281, %s282
      %s284 = smul.addr %s283, 4
      %s285 = scalar_lea.vmem %s2, %s284
      %p286 = pneg %p111
      %p287 = pneg %p108
      %p288 = pneg %p132
      %p289 = pneg %p129
      %p290 = pneg %p153
      %p291 = pneg %p150
      %p292 = pneg %p181
      %p293 = pneg %p178
      %p294 = scmp.lt.s32.totalorder %s20, 1
      %s295 = scalar_select %p294, %s20, 1
      %p296 = scmp.lt.s32.totalorder %s21, 27
      %s297 = scalar_select %p296, %s21, 27
      %s298 = smul.addr %s297, 4
      %s299 = smul.addr %s295, 112
      %s300 = sadd.s32 %s298, %s299
      %s301 = smul.addr %s300, 4
      %s302 = scalar_lea.vmem %s5, %s301
      %p303 = scmp.lt.s32.totalorder %s20, 1
      %s304 = scalar_select %p303, %s20, 1
      %p305 = scmp.lt.s32.totalorder %s21, 29
      %s306 = scalar_select %p305, %s21, 29
      %s307 = smul.addr %s306, 4
      %s308 = smul.addr %s304, 120
      %s309 = sadd.s32 %s307, %s308
      %s310 = smul.addr %s309, 4
      %s311 = scalar_lea.vmem %s0, %s310
      %s312 = sadd.s32 %s21, 1
      %p313 = scmp.lt.s32.totalorder %s20, 1
      %s314 = scalar_select %p313, %s20, 1
      %p315 = scmp.lt.s32.totalorder %s312, 29
      %s316 = scalar_select %p315, %s312, 29
      %s317 = smul.addr %s316, 4
      %s318 = smul.addr %s314, 120
      %s319 = sadd.s32 %s317, %s318
      %s320 = smul.addr %s319, 4
      %s321 = scalar_lea.vmem %s1, %s320
      %s322 = sadd.s32 %s21, 1
      %s323 = sadd.s32 %s21, 2
      %p324 = scmp.lt.s32.totalorder %s20, 1
      %s325 = scalar_select %p324, %s20, 1
      %p326 = scmp.lt.s32.totalorder %s323, 29
      %s327 = scalar_select %p326, %s323, 29
      %s328 = smul.addr %s327, 4
      %s329 = smul.addr %s325, 120
      %s330 = sadd.s32 %s328, %s329
      %s331 = smul.addr %s330, 4
      %s332 = scalar_lea.vmem %s2, %s331
      %s333 = sadd.s32 %s21, 2
      %p334 = scmp.lt.s32.totalorder %s20, 1
      %s335 = scalar_select %p334, %s20, 1
      %p336 = scmp.lt.s32.totalorder %s21, 27
      %s337 = scalar_select %p336, %s21, 27
      %s338 = smul.addr %s337, 4
      %s339 = smul.addr %s335, 112
      %s340 = sadd.s32 %s338, %s339
      %s341 = smul.addr %s340, 4
      %s342 = scalar_lea.vmem %s5, %s341
      %v344 = vld [vmem:[%s311] sm:$0xf]
      %v345 = vld [vmem:[%s311 + $0x4] sm:$0xf]
      %v346 = vld [vmem:[%s311 + $0x8] sm:$0xf]
      %v347 = vld [vmem:[%s311 + $0xc] sm:$0x3]
      %v348 = vld [vmem:[%s311 + $0xc] sm:$0x7]
      %v349 = vld [vmem:[%s311] sm:$0xe]
      %v350 = vld [vmem:[%s321] sm:$0xf]
      %v351 = vld [vmem:[%s321 + $0x4] sm:$0xf]
      %v352 = vld [vmem:[%s321 + $0x8] sm:$0xf]
      %v353 = vld [vmem:[%s321 + $0xc] sm:$0x3]
      %v354 = vld [vmem:[%s321 + $0xc] sm:$0x7]
      %v355 = vld [vmem:[%s321] sm:$0xe]
      %v356 = vld [vmem:[%s332] sm:$0xf]
      %v357 = vld [vmem:[%s332 + $0x4] sm:$0xf]
      %v358 = vld [vmem:[%s332 + $0x8] sm:$0xf]
      %v359 = vld [vmem:[%s332 + $0xc] sm:$0x3]
      %v360 = vld [vmem:[%s332 + $0xc] sm:$0x7]
      %v361 = vld [vmem:[%s332] sm:$0xe]
      %v366 = vunpack.c.l.b16 %v344
      %v367 = vunpack.c.l.b16 %v345
      %v368 = vunpack.c.l.b16 %v346
      %v369 = vunpack.c.l.b16 %v347
      %v370 = vpack.c.b16 %v367, %v366
      %v371 = vpack.c.b16 %v369, %v368
      %v375 = vunpack.c.l.b16 %v348
      %v376 = vpack.c.b16 %v375, %v368
      %vm377 = vsmask.f32 7424
      %v379 = vshrl.u32 %v370, 16
      %v381 = vshll.u32 %v370, 16
      %v383 = vrot.slane %v381, 1
      %v384 = vor.u32 %v379, %v383
      %v386 = vshll.u32 %v376, 16
      %v388 = vrot.slane %v386, 1
      %v389 = vsel %vm377, %v384, %v388
      %v390 = vshrl.u32 %v376, 16
      %v392 = vor.u32 %v390, %v388
      %v396 = vunpack.c.l.b16 %v349
      %v397 = vpack.c.b16 %v367, %v396
      %vm398 = vcmask 1046528
      %v399 = vrot.slane %v397, 1
      %v400 = vrot.slane %v376, 1
      %v401 = vsel %vm398, %v399, %v400
      %v408 = vunpack.c.l.b16 %v350
      %v409 = vunpack.c.l.b16 %v351
      %v410 = vunpack.c.l.b16 %v352
      %v411 = vunpack.c.l.b16 %v353
      %v412 = vpack.c.b16 %v409, %v408
      %v413 = vpack.c.b16 %v411, %v410
      %v417 = vunpack.c.l.b16 %v354
      %v418 = vpack.c.b16 %v417, %v410
      %v420 = vshrl.u32 %v412, 16
      %v422 = vshll.u32 %v412, 16
      %v424 = vrot.slane %v422, 1
      %v425 = vor.u32 %v420, %v424
      %v427 = vshll.u32 %v418, 16
      %v429 = vrot.slane %v427, 1
      %v430 = vsel %vm377, %v425, %v429
      %v431 = vshrl.u32 %v418, 16
      %v433 = vor.u32 %v431, %v429
      %v437 = vunpack.c.l.b16 %v355
      %v438 = vpack.c.b16 %v409, %v437
      %v439 = vrot.slane %v438, 1
      %v440 = vrot.slane %v418, 1
      %v441 = vsel %vm398, %v439, %v440
      %v448 = vunpack.c.l.b16 %v356
      %v449 = vunpack.c.l.b16 %v357
      %v450 = vunpack.c.l.b16 %v358
      %v451 = vunpack.c.l.b16 %v359
      %v452 = vpack.c.b16 %v449, %v448
      %v453 = vpack.c.b16 %v451, %v450
      %v457 = vunpack.c.l.b16 %v360
      %v458 = vpack.c.b16 %v457, %v450
      %v460 = vshrl.u32 %v452, 16
      %v462 = vshll.u32 %v452, 16
      %v464 = vrot.slane %v462, 1
      %v465 = vor.u32 %v460, %v464
      %v467 = vshll.u32 %v458, 16
      %v469 = vrot.slane %v467, 1
      %v470 = vsel %vm377, %v465, %v469
      %v471 = vshrl.u32 %v458, 16
      %v473 = vor.u32 %v471, %v469
      %v477 = vunpack.c.l.b16 %v361
      %v478 = vpack.c.b16 %v449, %v477
      %v479 = vrot.slane %v478, 1
      %v480 = vrot.slane %v458, 1
      %v481 = vsel %vm398, %v479, %v480
      %v484 = vld [vmem:[%s3] sm:$0xf]
      %v485 = vld [vmem:[%s3 + $0x4] sm:$0xf]
      %v486 = vld [vmem:[%s3 + $0x8] sm:$0xf]
      %v487 = vld [vmem:[%s3 + $0xc] sm:$0xf]
      %v488 = vld [vmem:[%s3 + $0x10] sm:$0xf]
      %v489 = vld [vmem:[%s3 + $0x14] sm:$0xf]
      %v490 = vld [vmem:[%s3 + $0x18] sm:$0xf]
      %v491 = vld [vmem:[%s3 + $0x1c] sm:$0xf]
      %v492 = vld [vmem:[%s3 + $0x20] sm:$0xf]
      %v493 = vld [vmem:[%s3 + $0x24] sm:$0xf]
      %v494 = vld [vmem:[%s3 + $0x28] sm:$0xf]
      %v495 = vld [vmem:[%s3 + $0x2c] sm:$0xf]
      %v496 = vld [vmem:[%s3 + $0x30] sm:$0xf]
      %v497 = vld [vmem:[%s3 + $0x34] sm:$0xf]
      %v498 = vld [vmem:[%s3 + $0x38] sm:$0xf]
      %v499 = vld [vmem:[%s3 + $0x3c] sm:$0xf]
      %v500 = vld [vmem:[%s3 + $0x40] sm:$0xf]
      %v501 = vld [vmem:[%s3 + $0x44] sm:$0xf]
      %v502 = vld [vmem:[%s3 + $0x48] sm:$0xf]
      %v503 = vld [vmem:[%s3 + $0x4c] sm:$0xf]
      %v504 = vld [vmem:[%s3 + $0x50] sm:$0xf]
      %v505 = vld [vmem:[%s3 + $0x54] sm:$0xf]
      %v506 = vld [vmem:[%s3 + $0x58] sm:$0xf]
      %v507 = vld [vmem:[%s3 + $0x5c] sm:$0xf]
      %v508 = vld [vmem:[%s3 + $0x60] sm:$0xf]
      %v509 = vld [vmem:[%s3 + $0x64] sm:$0xf]
      %v510 = vld [vmem:[%s3 + $0x68] sm:$0xf]
      %v511 = vld [vmem:[%s3 + $0x6c] sm:$0xf]
      %v512 = vld [vmem:[%s3 + $0x70] sm:$0xf]
      %v513 = vld [vmem:[%s3 + $0x74] sm:$0xf]
      %v514 = vld [vmem:[%s3 + $0x78] sm:$0xf]
      %v515 = vld [vmem:[%s3 + $0x7c] sm:$0xf]
      %v516 = vld [vmem:[%s3 + $0x80] sm:$0xf]
      %v517 = vld [vmem:[%s3 + $0x84] sm:$0xf]
      %v518 = vld [vmem:[%s3 + $0x88] sm:$0xf]
      %v519 = vld [vmem:[%s3 + $0x8c] sm:$0xf]
      %v520 = vld [vmem:[%s3 + $0x90] sm:$0xf]
      %v521 = vld [vmem:[%s3 + $0x94] sm:$0xf]
      %v522 = vld [vmem:[%s3 + $0x98] sm:$0xf]
      %v523 = vld [vmem:[%s3 + $0x9c] sm:$0xf]
      %v524 = vld [vmem:[%s3 + $0xa0] sm:$0xf]
      %v525 = vld [vmem:[%s3 + $0xa4] sm:$0xf]
      %v526 = vld [vmem:[%s3 + $0xa8] sm:$0xf]
      %v527 = vld [vmem:[%s3 + $0xac] sm:$0xf]
      %v528 = vld [vmem:[%s3 + $0xb0] sm:$0xf]
      %v529 = vld [vmem:[%s3 + $0xb4] sm:$0xf]
      %v530 = vld [vmem:[%s3 + $0xb8] sm:$0xf]
      %v531 = vld [vmem:[%s3 + $0xbc] sm:$0xf]
      %v532 = vld [vmem:[%s3 + $0xc0] sm:$0xf]
      %v533 = vld [vmem:[%s3 + $0xc4] sm:$0xf]
      %v534 = vld [vmem:[%s3 + $0xc8] sm:$0xf]
      %v535 = vld [vmem:[%s3 + $0xcc] sm:$0xf]
      %v536 = vld [vmem:[%s3 + $0xd0] sm:$0xf]
      %v537 = vld [vmem:[%s3 + $0xd4] sm:$0xf]
      %v538 = vld [vmem:[%s3 + $0xd8] sm:$0xf]
      %v539 = vld [vmem:[%s3 + $0xdc] sm:$0xf]
      %v540 = vld [vmem:[%s3 + $0xe0] sm:$0xf]
      %v541 = vld [vmem:[%s3 + $0xe4] sm:$0xf]
      %v542 = vld [vmem:[%s3 + $0xe8] sm:$0xf]
      %v543 = vld [vmem:[%s3 + $0xec] sm:$0xf]
      %v544 = vld [vmem:[%s3 + $0xf0] sm:$0xf]
      %v545 = vld [vmem:[%s3 + $0xf4] sm:$0xf]
      %v546 = vld [vmem:[%s3 + $0xf8] sm:$0xf]
      %v547 = vld [vmem:[%s3 + $0xfc] sm:$0xf]
      %v548 = vld [vmem:[%s3 + $0x100] sm:$0xf]
      %v549 = vld [vmem:[%s3 + $0x104] sm:$0xf]
      %v550 = vld [vmem:[%s3 + $0x108] sm:$0xf]
      %v551 = vld [vmem:[%s3 + $0x10c] sm:$0xf]
      %v552 = vld [vmem:[%s3 + $0x110] sm:$0xf]
      %v553 = vld [vmem:[%s3 + $0x114] sm:$0xf]
      %v554 = vld [vmem:[%s3 + $0x118] sm:$0xf]
      %v555 = vld [vmem:[%s3 + $0x11c] sm:$0xf]
      %v556 = vld [vmem:[%s3 + $0x120] sm:$0xf]
      %v557 = vld [vmem:[%s3 + $0x124] sm:$0xf]
      %v558 = vld [vmem:[%s3 + $0x128] sm:$0xf]
      %v559 = vld [vmem:[%s3 + $0x12c] sm:$0xf]
      %v560 = vld [vmem:[%s3 + $0x130] sm:$0xf]
      %v561 = vld [vmem:[%s3 + $0x134] sm:$0xf]
      %v562 = vld [vmem:[%s3 + $0x138] sm:$0xf]
      %v563 = vld [vmem:[%s3 + $0x13c] sm:$0xf]
      %v564 = vld [vmem:[%s3 + $0x140] sm:$0xf]
      %v565 = vld [vmem:[%s3 + $0x144] sm:$0xf]
      %v566 = vld [vmem:[%s3 + $0x148] sm:$0xf]
      %v567 = vld [vmem:[%s3 + $0x14c] sm:$0xf]
      %v568 = vld [vmem:[%s3 + $0x150] sm:$0xf]
      %v569 = vld [vmem:[%s3 + $0x154] sm:$0xf]
      %v570 = vld [vmem:[%s3 + $0x158] sm:$0xf]
      %v571 = vld [vmem:[%s3 + $0x15c] sm:$0xf]
      %v572 = vld [vmem:[%s3 + $0x160] sm:$0xf]
      %v573 = vld [vmem:[%s3 + $0x164] sm:$0xf]
      %v574 = vld [vmem:[%s3 + $0x168] sm:$0xf]
      %v575 = vld [vmem:[%s3 + $0x16c] sm:$0xf]
      %v576 = vld [vmem:[%s3 + $0x170] sm:$0xf]
      %v577 = vld [vmem:[%s3 + $0x174] sm:$0xf]
      %v578 = vld [vmem:[%s3 + $0x178] sm:$0xf]
      %v579 = vld [vmem:[%s3 + $0x17c] sm:$0xf]
      %v580 = vld [vmem:[%s3 + $0x180] sm:$0xf]
      %v581 = vld [vmem:[%s3 + $0x184] sm:$0xf]
      %v582 = vld [vmem:[%s3 + $0x188] sm:$0xf]
      %v583 = vld [vmem:[%s3 + $0x18c] sm:$0xf]
      %v584 = vld [vmem:[%s3 + $0x190] sm:$0xf]
      %v585 = vld [vmem:[%s3 + $0x194] sm:$0xf]
      %v586 = vld [vmem:[%s3 + $0x198] sm:$0xf]
      %v587 = vld [vmem:[%s3 + $0x19c] sm:$0xf]
      %v588 = vld [vmem:[%s3 + $0x1a0] sm:$0xf]
      %v589 = vld [vmem:[%s3 + $0x1a4] sm:$0xf]
      %v590 = vld [vmem:[%s3 + $0x1a8] sm:$0xf]
      %v591 = vld [vmem:[%s3 + $0x1ac] sm:$0xf]
      %v592 = vld [vmem:[%s3 + $0x1b0] sm:$0xf]
      %v593 = vld [vmem:[%s3 + $0x1b4] sm:$0xf]
      %v594 = vld [vmem:[%s3 + $0x1b8] sm:$0xf]
      %v595 = vld [vmem:[%s3 + $0x1bc] sm:$0xf]
      %v596 = vld [vmem:[%s3 + $0x1c0] sm:$0xf]
      %v597 = vld [vmem:[%s3 + $0x1c4] sm:$0xf]
      %v598 = vld [vmem:[%s3 + $0x1c8] sm:$0xf]
      %v599 = vld [vmem:[%s3 + $0x1cc] sm:$0xf]
      %v600 = vld [vmem:[%s3 + $0x1d0] sm:$0xf]
      %v601 = vld [vmem:[%s3 + $0x1d4] sm:$0xf]
      %v602 = vld [vmem:[%s3 + $0x1d8] sm:$0xf]
      %v603 = vld [vmem:[%s3 + $0x1dc] sm:$0xf]
      %v604 = vld [vmem:[%s3 + $0x1e0] sm:$0xf]
      %v605 = vld [vmem:[%s3 + $0x1e4] sm:$0xf]
      %v606 = vld [vmem:[%s3 + $0x1e8] sm:$0xf]
      %v607 = vld [vmem:[%s3 + $0x1ec] sm:$0xf]
      %v608 = vld [vmem:[%s3 + $0x1f0] sm:$0xf]
      %v609 = vld [vmem:[%s3 + $0x1f4] sm:$0xf]
      %v610 = vld [vmem:[%s3 + $0x1f8] sm:$0xf]
      %v611 = vld [vmem:[%s3 + $0x1fc] sm:$0xf]
      %v612 = vld [vmem:[%s3 + $0x200] sm:$0xf]
      %v613 = vld [vmem:[%s3 + $0x204] sm:$0xf]
      %v614 = vld [vmem:[%s3 + $0x208] sm:$0xf]
      %v615 = vld [vmem:[%s3 + $0x20c] sm:$0xf]
      %v616 = vld [vmem:[%s3 + $0x210] sm:$0xf]
      %v617 = vld [vmem:[%s3 + $0x214] sm:$0xf]
      %v618 = vld [vmem:[%s3 + $0x218] sm:$0xf]
      %v619 = vld [vmem:[%s3 + $0x21c] sm:$0xf]
      %v620 = vld [vmem:[%s3 + $0x220] sm:$0xf]
      %v621 = vld [vmem:[%s3 + $0x224] sm:$0xf]
      %v622 = vld [vmem:[%s3 + $0x228] sm:$0xf]
      %v623 = vld [vmem:[%s3 + $0x22c] sm:$0xf]
      %v624 = vld [vmem:[%s3 + $0x230] sm:$0xf]
      %v625 = vld [vmem:[%s3 + $0x234] sm:$0xf]
      %v626 = vld [vmem:[%s3 + $0x238] sm:$0xf]
      %v627 = vld [vmem:[%s3 + $0x23c] sm:$0xf]
      %v628 = vld [vmem:[%s4] sm:$0x1]
      %v630 = vlaneseq
      %v631 = vshrl.u32 %v630, 7
      %v632 = vsub.s32 0, %v631
      %v633 = vrot.slane %v628, %v632
      %v779 = vunpack.c.l.b16 %v484
      %v780 = vunpack.c.l.b16 %v485
      %v781 = vunpack.c.l.b16 %v486
      %v782 = vunpack.c.l.b16 %v487
      %v783 = vunpack.c.l.b16 %v488
      %v784 = vunpack.c.l.b16 %v489
      %v785 = vunpack.c.l.b16 %v490
      %v786 = vunpack.c.l.b16 %v491
      %v787 = vunpack.c.l.b16 %v492
      %v788 = vunpack.c.l.b16 %v493
      %v789 = vunpack.c.l.b16 %v494
      %v790 = vunpack.c.l.b16 %v495
      %v791 = vunpack.c.l.b16 %v496
      %v792 = vunpack.c.l.b16 %v497
      %v793 = vunpack.c.l.b16 %v498
      %v794 = vunpack.c.l.b16 %v499
      %v795 = vunpack.c.l.b16 %v500
      %v796 = vunpack.c.l.b16 %v501
      %v797 = vunpack.c.l.b16 %v502
      %v798 = vunpack.c.l.b16 %v503
      %v799 = vunpack.c.l.b16 %v504
      %v800 = vunpack.c.l.b16 %v505
      %v801 = vunpack.c.l.b16 %v506
      %v802 = vunpack.c.l.b16 %v507
      %v803 = vunpack.c.l.b16 %v508
      %v804 = vunpack.c.l.b16 %v509
      %v805 = vunpack.c.l.b16 %v510
      %v806 = vunpack.c.l.b16 %v511
      %v807 = vunpack.c.l.b16 %v512
      %v808 = vunpack.c.l.b16 %v513
      %v809 = vunpack.c.l.b16 %v514
      %v810 = vunpack.c.l.b16 %v515
      %v811 = vunpack.c.l.b16 %v516
      %v812 = vunpack.c.l.b16 %v517
      %v813 = vunpack.c.l.b16 %v518
      %v814 = vunpack.c.l.b16 %v519
      %v815 = vunpack.c.l.b16 %v520
      %v816 = vunpack.c.l.b16 %v521
      %v817 = vunpack.c.l.b16 %v522
      %v818 = vunpack.c.l.b16 %v523
      %v819 = vunpack.c.l.b16 %v524
      %v820 = vunpack.c.l.b16 %v525
      %v821 = vunpack.c.l.b16 %v526
      %v822 = vunpack.c.l.b16 %v527
      %v823 = vunpack.c.l.b16 %v528
      %v824 = vunpack.c.l.b16 %v529
      %v825 = vunpack.c.l.b16 %v530
      %v826 = vunpack.c.l.b16 %v531
      %v827 = vunpack.c.l.b16 %v532
      %v828 = vunpack.c.l.b16 %v533
      %v829 = vunpack.c.l.b16 %v534
      %v830 = vunpack.c.l.b16 %v535
      %v831 = vunpack.c.l.b16 %v536
      %v832 = vunpack.c.l.b16 %v537
      %v833 = vunpack.c.l.b16 %v538
      %v834 = vunpack.c.l.b16 %v539
      %v835 = vunpack.c.l.b16 %v540
      %v836 = vunpack.c.l.b16 %v541
      %v837 = vunpack.c.l.b16 %v542
      %v838 = vunpack.c.l.b16 %v543
      %v839 = vunpack.c.l.b16 %v544
      %v840 = vunpack.c.l.b16 %v545
      %v841 = vunpack.c.l.b16 %v546
      %v842 = vunpack.c.l.b16 %v547
      %v843 = vunpack.c.l.b16 %v548
      %v844 = vunpack.c.l.b16 %v549
      %v845 = vunpack.c.l.b16 %v550
      %v846 = vunpack.c.l.b16 %v551
      %v847 = vunpack.c.l.b16 %v552
      %v848 = vunpack.c.l.b16 %v553
      %v849 = vunpack.c.l.b16 %v554
      %v850 = vunpack.c.l.b16 %v555
      %v851 = vunpack.c.l.b16 %v556
      %v852 = vunpack.c.l.b16 %v557
      %v853 = vunpack.c.l.b16 %v558
      %v854 = vunpack.c.l.b16 %v559
      %v855 = vunpack.c.l.b16 %v560
      %v856 = vunpack.c.l.b16 %v561
      %v857 = vunpack.c.l.b16 %v562
      %v858 = vunpack.c.l.b16 %v563
      %v859 = vunpack.c.l.b16 %v564
      %v860 = vunpack.c.l.b16 %v565
      %v861 = vunpack.c.l.b16 %v566
      %v862 = vunpack.c.l.b16 %v567
      %v863 = vunpack.c.l.b16 %v568
      %v864 = vunpack.c.l.b16 %v569
      %v865 = vunpack.c.l.b16 %v570
      %v866 = vunpack.c.l.b16 %v571
      %v867 = vunpack.c.l.b16 %v572
      %v868 = vunpack.c.l.b16 %v573
      %v869 = vunpack.c.l.b16 %v574
      %v870 = vunpack.c.l.b16 %v575
      %v871 = vunpack.c.l.b16 %v576
      %v872 = vunpack.c.l.b16 %v577
      %v873 = vunpack.c.l.b16 %v578
      %v874 = vunpack.c.l.b16 %v579
      %v875 = vunpack.c.l.b16 %v580
      %v876 = vunpack.c.l.b16 %v581
      %v877 = vunpack.c.l.b16 %v582
      %v878 = vunpack.c.l.b16 %v583
      %v879 = vunpack.c.l.b16 %v584
      %v880 = vunpack.c.l.b16 %v585
      %v881 = vunpack.c.l.b16 %v586
      %v882 = vunpack.c.l.b16 %v587
      %v883 = vunpack.c.l.b16 %v588
      %v884 = vunpack.c.l.b16 %v589
      %v885 = vunpack.c.l.b16 %v590
      %v886 = vunpack.c.l.b16 %v591
      %v887 = vunpack.c.l.b16 %v592
      %v888 = vunpack.c.l.b16 %v593
      %v889 = vunpack.c.l.b16 %v594
      %v890 = vunpack.c.l.b16 %v595
      %v891 = vunpack.c.l.b16 %v596
      %v892 = vunpack.c.l.b16 %v597
      %v893 = vunpack.c.l.b16 %v598
      %v894 = vunpack.c.l.b16 %v599
      %v895 = vunpack.c.l.b16 %v600
      %v896 = vunpack.c.l.b16 %v601
      %v897 = vunpack.c.l.b16 %v602
      %v898 = vunpack.c.l.b16 %v603
      %v899 = vunpack.c.l.b16 %v604
      %v900 = vunpack.c.l.b16 %v605
      %v901 = vunpack.c.l.b16 %v606
      %v902 = vunpack.c.l.b16 %v607
      %v903 = vunpack.c.l.b16 %v608
      %v904 = vunpack.c.l.b16 %v609
      %v905 = vunpack.c.l.b16 %v610
      %v906 = vunpack.c.l.b16 %v611
      %v907 = vunpack.c.l.b16 %v612
      %v908 = vunpack.c.l.b16 %v613
      %v909 = vunpack.c.l.b16 %v614
      %v910 = vunpack.c.l.b16 %v615
      %v911 = vunpack.c.l.b16 %v616
      %v912 = vunpack.c.l.b16 %v617
      %v913 = vunpack.c.l.b16 %v618
      %v914 = vunpack.c.l.b16 %v619
      %v915 = vunpack.c.l.b16 %v620
      %v916 = vunpack.c.l.b16 %v621
      %v917 = vunpack.c.l.b16 %v622
      %v918 = vunpack.c.l.b16 %v623
      %v919 = vunpack.c.l.b16 %v624
      %v920 = vunpack.c.l.b16 %v625
      %v921 = vunpack.c.l.b16 %v626
      %v922 = vunpack.c.l.b16 %v627
      %v923 = vpack.c.b16 %v780, %v779
      %v924 = vpack.c.b16 %v782, %v781
      %v925 = vpack.c.b16 %v784, %v783
      %v926 = vpack.c.b16 %v786, %v785
      %v927 = vpack.c.b16 %v788, %v787
      %v928 = vpack.c.b16 %v790, %v789
      %v929 = vpack.c.b16 %v792, %v791
      %v930 = vpack.c.b16 %v794, %v793
      %v931 = vpack.c.b16 %v796, %v795
      %v932 = vpack.c.b16 %v798, %v797
      %v933 = vpack.c.b16 %v800, %v799
      %v934 = vpack.c.b16 %v802, %v801
      %v935 = vpack.c.b16 %v804, %v803
      %v936 = vpack.c.b16 %v806, %v805
      %v937 = vpack.c.b16 %v808, %v807
      %v938 = vpack.c.b16 %v810, %v809
      %v939 = vpack.c.b16 %v812, %v811
      %v940 = vpack.c.b16 %v814, %v813
      %v941 = vpack.c.b16 %v816, %v815
      %v942 = vpack.c.b16 %v818, %v817
      %v943 = vpack.c.b16 %v820, %v819
      %v944 = vpack.c.b16 %v822, %v821
      %v945 = vpack.c.b16 %v824, %v823
      %v946 = vpack.c.b16 %v826, %v825
      %v947 = vpack.c.b16 %v828, %v827
      %v948 = vpack.c.b16 %v830, %v829
      %v949 = vpack.c.b16 %v832, %v831
      %v950 = vpack.c.b16 %v834, %v833
      %v951 = vpack.c.b16 %v836, %v835
      %v952 = vpack.c.b16 %v838, %v837
      %v953 = vpack.c.b16 %v840, %v839
      %v954 = vpack.c.b16 %v842, %v841
      %v955 = vpack.c.b16 %v844, %v843
      %v956 = vpack.c.b16 %v846, %v845
      %v957 = vpack.c.b16 %v848, %v847
      %v958 = vpack.c.b16 %v850, %v849
      %v959 = vpack.c.b16 %v852, %v851
      %v960 = vpack.c.b16 %v854, %v853
      %v961 = vpack.c.b16 %v856, %v855
      %v962 = vpack.c.b16 %v858, %v857
      %v963 = vpack.c.b16 %v860, %v859
      %v964 = vpack.c.b16 %v862, %v861
      %v965 = vpack.c.b16 %v864, %v863
      %v966 = vpack.c.b16 %v866, %v865
      %v967 = vpack.c.b16 %v868, %v867
      %v968 = vpack.c.b16 %v870, %v869
      %v969 = vpack.c.b16 %v872, %v871
      %v970 = vpack.c.b16 %v874, %v873
      %v971 = vpack.c.b16 %v876, %v875
      %v972 = vpack.c.b16 %v878, %v877
      %v973 = vpack.c.b16 %v880, %v879
      %v974 = vpack.c.b16 %v882, %v881
      %v975 = vpack.c.b16 %v884, %v883
      %v976 = vpack.c.b16 %v886, %v885
      %v977 = vpack.c.b16 %v888, %v887
      %v978 = vpack.c.b16 %v890, %v889
      %v979 = vpack.c.b16 %v892, %v891
      %v980 = vpack.c.b16 %v894, %v893
      %v981 = vpack.c.b16 %v896, %v895
      %v982 = vpack.c.b16 %v898, %v897
      %v983 = vpack.c.b16 %v900, %v899
      %v984 = vpack.c.b16 %v902, %v901
      %v985 = vpack.c.b16 %v904, %v903
      %v986 = vpack.c.b16 %v906, %v905
      %v987 = vpack.c.b16 %v908, %v907
      %v988 = vpack.c.b16 %v910, %v909
      %v989 = vpack.c.b16 %v912, %v911
      %v990 = vpack.c.b16 %v914, %v913
      %v991 = vpack.c.b16 %v916, %v915
      %v992 = vpack.c.b16 %v918, %v917
      %v993 = vpack.c.b16 %v920, %v919
      %v994 = vpack.c.b16 %v922, %v921
      %1067 = vmatprep.subr.bf16.mxu0 0
      %1068 = vmatpush1.bf16.msra.mxu0 %v923
      %1069 = vmatprep.subr.bf16.mxu0 0
      %1070 = vmatpush1.bf16.msra.mxu0 %v924
      %1071 = vmatprep.subr.bf16.mxu0 0
      %1072 = vmatpush1.bf16.msra.mxu0 %v925
      %1073 = vmatprep.subr.bf16.mxu0 0
      %1074 = vmatpush1.bf16.msra.mxu0 %v926
      %1075 = vmatprep.subr.bf16.mxu0 0
      %1076 = vmatpush1.bf16.msra.mxu0 %v927
      %1077 = vmatprep.subr.bf16.mxu0 0
      %1078 = vmatpush1.bf16.msra.mxu0 %v928
      %1079 = vmatprep.subr.bf16.mxu0 0
      %1080 = vmatpush1.bf16.msra.mxu0 %v929
      %1081 = vmatprep.subr.bf16.mxu0 0
      %1082 = vmatpush1.bf16.msra.mxu0 %v930
      %1083 = vmatprep.subr.bf16.mxu0 0
      %1084 = vmatpush1.bf16.msra.mxu0 %v931
      %1085 = vmatprep.subr.bf16.mxu0 0
      %1086 = vmatpush1.bf16.msra.mxu0 %v932
      %1087 = vmatprep.subr.bf16.mxu0 0
      %1088 = vmatpush1.bf16.msra.mxu0 %v933
      %1089 = vmatprep.subr.bf16.mxu0 0
      %1090 = vmatpush1.bf16.msra.mxu0 %v934
      %1091 = vmatprep.subr.bf16.mxu0 0
      %1092 = vmatpush1.bf16.msra.mxu0 %v935
      %1093 = vmatprep.subr.bf16.mxu0 0
      %1094 = vmatpush1.bf16.msra.mxu0 %v936
      %1095 = vmatprep.subr.bf16.mxu0 0
      %1096 = vmatpush1.bf16.msra.mxu0 %v937
      %1097 = vmatprep.subr.bf16.mxu0 0
      %1098 = vmatpush1.bf16.msra.mxu0 %v938
      %1099 = vmatprep.mubr.bf16.mxu0 %v389
      %1100 = vmatmul.mubr.bf16.gmra.mrb[0].mxu0 %v370
      %v1101 = vpop.f32.mrb[0].mxu0
      %v1102 = vadd.f32 %v633, %v1101
      %v1103 = vpop.f32.mrb[0].mxu0
      %v1104 = vpop.f32.mrb[0].mxu0
      %v1105 = vadd.f32 %v633, %v1104
      %v1106 = vpop.f32.mrb[0].mxu0
      %1107 = vmatprep.mubr.bf16.mxu0 %v392
      %1108 = vmatmul.mubr.bf16.gmra.mrb[0].mxu0 %v371
      %v1109 = vpop.f32.mrb[0].mxu0
      %v1110 = vadd.f32 %v633, %v1109
      %v1111 = vpop.f32.mrb[0].mxu0
      %v1112 = vpop.f32.mrb[0].mxu0
      %v1113 = vadd.f32 %v633, %v1112
      %v1114 = vpop.f32.mrb[0].mxu0
      %1115 = vdwg.mxu0
      %1116 = vmatprep.subr.bf16.mxu0 0
      %1117 = vmatpush1.bf16.msra.mxu0 %v939
      %1118 = vmatprep.subr.bf16.mxu0 0
      %1119 = vmatpush1.bf16.msra.mxu0 %v940
      %1120 = vmatprep.subr.bf16.mxu0 0
      %1121 = vmatpush1.bf16.msra.mxu0 %v941
      %1122 = vmatprep.subr.bf16.mxu0 0
      %1123 = vmatpush1.bf16.msra.mxu0 %v942
      %1124 = vmatprep.subr.bf16.mxu0 0
      %1125 = vmatpush1.bf16.msra.mxu0 %v943
      %1126 = vmatprep.subr.bf16.mxu0 0
      %1127 = vmatpush1.bf16.msra.mxu0 %v944
      %1128 = vmatprep.subr.bf16.mxu0 0
      %1129 = vmatpush1.bf16.msra.mxu0 %v945
      %1130 = vmatprep.subr.bf16.mxu0 0
      %1131 = vmatpush1.bf16.msra.mxu0 %v946
      %1132 = vmatprep.subr.bf16.mxu0 0
      %1133 = vmatpush1.bf16.msra.mxu0 %v947
      %1134 = vmatprep.subr.bf16.mxu0 0
      %1135 = vmatpush1.bf16.msra.mxu0 %v948
      %1136 = vmatprep.subr.bf16.mxu0 0
      %1137 = vmatpush1.bf16.msra.mxu0 %v949
      %1138 = vmatprep.subr.bf16.mxu0 0
      %1139 = vmatpush1.bf16.msra.mxu0 %v950
      %1140 = vmatprep.subr.bf16.mxu0 0
      %1141 = vmatpush1.bf16.msra.mxu0 %v951
      %1142 = vmatprep.subr.bf16.mxu0 0
      %1143 = vmatpush1.bf16.msra.mxu0 %v952
      %1144 = vmatprep.subr.bf16.mxu0 0
      %1145 = vmatpush1.bf16.msra.mxu0 %v953
      %1146 = vmatprep.subr.bf16.mxu0 0
      %1147 = vmatpush1.bf16.msra.mxu0 %v954
      %1148 = vmatprep.mubr.bf16.mxu0 %v412
      %1149 = vmatmul.mubr.bf16.gmra.mrb[0].mxu0 %v401
      %v1150 = vpop.f32.mrb[0].mxu0
      %v1151 = vadd.f32 %v1102, %v1150
      %v1152 = vpop.f32.mrb[0].mxu0
      %v1153 = vpop.f32.mrb[0].mxu0
      %v1154 = vadd.f32 %v1105, %v1153
      %v1155 = vpop.f32.mrb[0].mxu0
      %1156 = vmatprep.mubr.bf16.mxu0 %v413
      %1157 = vmatmul.mubr.bf16.gmra.mrb[0].mxu0 %v400
      %v1158 = vpop.f32.mrb[0].mxu0
      %v1159 = vadd.f32 %v1110, %v1158
      %v1160 = vpop.f32.mrb[0].mxu0
      %v1161 = vpop.f32.mrb[0].mxu0
      %v1162 = vadd.f32 %v1113, %v1161
      %v1163 = vpop.f32.mrb[0].mxu0
      %1164 = vdwg.mxu0
      %1165 = vmatprep.subr.bf16.mxu0 0
      %1166 = vmatpush1.bf16.msra.mxu0 %v955
      %1167 = vmatprep.subr.bf16.mxu0 0
      %1168 = vmatpush1.bf16.msra.mxu0 %v956
      %1169 = vmatprep.subr.bf16.mxu0 0
      %1170 = vmatpush1.bf16.msra.mxu0 %v957
      %1171 = vmatprep.subr.bf16.mxu0 0
      %1172 = vmatpush1.bf16.msra.mxu0 %v958
      %1173 = vmatprep.subr.bf16.mxu0 0
      %1174 = vmatpush1.bf16.msra.mxu0 %v959
      %1175 = vmatprep.subr.bf16.mxu0 0
      %1176 = vmatpush1.bf16.msra.mxu0 %v960
      %1177 = vmatprep.subr.bf16.mxu0 0
      %1178 = vmatpush1.bf16.msra.mxu0 %v961
      %1179 = vmatprep.subr.bf16.mxu0 0
      %1180 = vmatpush1.bf16.msra.mxu0 %v962
      %1181 = vmatprep.subr.bf16.mxu0 0
      %1182 = vmatpush1.bf16.msra.mxu0 %v963
      %1183 = vmatprep.subr.bf16.mxu0 0
      %1184 = vmatpush1.bf16.msra.mxu0 %v964
      %1185 = vmatprep.subr.bf16.mxu0 0
      %1186 = vmatpush1.bf16.msra.mxu0 %v965
      %1187 = vmatprep.subr.bf16.mxu0 0
      %1188 = vmatpush1.bf16.msra.mxu0 %v966
      %1189 = vmatprep.subr.bf16.mxu0 0
      %1190 = vmatpush1.bf16.msra.mxu0 %v967
      %1191 = vmatprep.subr.bf16.mxu0 0
      %1192 = vmatpush1.bf16.msra.mxu0 %v968
      %1193 = vmatprep.subr.bf16.mxu0 0
      %1194 = vmatpush1.bf16.msra.mxu0 %v969
      %1195 = vmatprep.subr.bf16.mxu0 0
      %1196 = vmatpush1.bf16.msra.mxu0 %v970
      %1197 = vmatprep.mubr.bf16.mxu0 %v441
      %1198 = vmatmul.mubr.bf16.gmra.mrb[0].mxu0 %v430
      %v1199 = vpop.f32.mrb[0].mxu0
      %v1200 = vadd.f32 %v1151, %v1199
      %v1201 = vpop.f32.mrb[0].mxu0
      %v1202 = vpop.f32.mrb[0].mxu0
      %v1203 = vadd.f32 %v1154, %v1202
      %v1204 = vpop.f32.mrb[0].mxu0
      %1205 = vmatprep.mubr.bf16.mxu0 %v440
      %1206 = vmatmul.mubr.bf16.gmra.mrb[0].mxu0 %v433
      %v1207 = vpop.f32.mrb[0].mxu0
      %v1208 = vadd.f32 %v1159, %v1207
      %v1209 = vpop.f32.mrb[0].mxu0
      %v1210 = vpop.f32.mrb[0].mxu0
      %v1211 = vadd.f32 %v1162, %v1210
      %v1212 = vpop.f32.mrb[0].mxu0
      %1213 = vdwg.mxu0
      %1214 = vmatprep.subr.bf16.mxu0 0
      %1215 = vmatpush1.bf16.msra.mxu0 %v971
      %1216 = vmatprep.subr.bf16.mxu0 0
      %1217 = vmatpush1.bf16.msra.mxu0 %v972
      %1218 = vmatprep.subr.bf16.mxu0 0
      %1219 = vmatpush1.bf16.msra.mxu0 %v973
      %1220 = vmatprep.subr.bf16.mxu0 0
      %1221 = vmatpush1.bf16.msra.mxu0 %v974
      %1222 = vmatprep.subr.bf16.mxu0 0
      %1223 = vmatpush1.bf16.msra.mxu0 %v975
      %1224 = vmatprep.subr.bf16.mxu0 0
      %1225 = vmatpush1.bf16.msra.mxu0 %v976
      %1226 = vmatprep.subr.bf16.mxu0 0
      %1227 = vmatpush1.bf16.msra.mxu0 %v977
      %1228 = vmatprep.subr.bf16.mxu0 0
      %1229 = vmatpush1.bf16.msra.mxu0 %v978
      %1230 = vmatprep.subr.bf16.mxu0 0
      %1231 = vmatpush1.bf16.msra.mxu0 %v979
      %1232 = vmatprep.subr.bf16.mxu0 0
      %1233 = vmatpush1.bf16.msra.mxu0 %v980
      %1234 = vmatprep.subr.bf16.mxu0 0
      %1235 = vmatpush1.bf16.msra.mxu0 %v981
      %1236 = vmatprep.subr.bf16.mxu0 0
      %1237 = vmatpush1.bf16.msra.mxu0 %v982
      %1238 = vmatprep.subr.bf16.mxu0 0
      %1239 = vmatpush1.bf16.msra.mxu0 %v983
      %1240 = vmatprep.subr.bf16.mxu0 0
      %1241 = vmatpush1.bf16.msra.mxu0 %v984
      %1242 = vmatprep.subr.bf16.mxu0 0
      %1243 = vmatpush1.bf16.msra.mxu0 %v985
      %1244 = vmatprep.subr.bf16.mxu0 0
      %1245 = vmatpush1.bf16.msra.mxu0 %v986
      %1246 = vmatprep.mubr.bf16.mxu0 %v470
      %1247 = vmatmul.mubr.bf16.gmra.mrb[0].mxu0 %v452
      %v1248 = vpop.f32.mrb[0].mxu0
      %v1249 = vadd.f32 %v1200, %v1248
      %v1250 = vpop.f32.mrb[0].mxu0
      %v1251 = vpop.f32.mrb[0].mxu0
      %v1252 = vadd.f32 %v1203, %v1251
      %v1253 = vpop.f32.mrb[0].mxu0
      %1254 = vmatprep.mubr.bf16.mxu0 %v473
      %1255 = vmatmul.mubr.bf16.gmra.mrb[0].mxu0 %v453
      %v1256 = vpop.f32.mrb[0].mxu0
      %v1257 = vadd.f32 %v1208, %v1256
      %v1258 = vpop.f32.mrb[0].mxu0
      %v1259 = vpop.f32.mrb[0].mxu0
      %v1260 = vadd.f32 %v1211, %v1259
      %v1261 = vpop.f32.mrb[0].mxu0
      %1262 = vdwg.mxu0
      %1263 = vmatprep.subr.bf16.mxu0 0
      %1264 = vmatpush1.bf16.msra.mxu0 %v987
      %1265 = vmatprep.subr.bf16.mxu0 0
      %1266 = vmatpush1.bf16.msra.mxu0 %v988
      %1267 = vmatprep.subr.bf16.mxu0 0
      %1268 = vmatpush1.bf16.msra.mxu0 %v989
      %1269 = vmatprep.subr.bf16.mxu0 0
      %1270 = vmatpush1.bf16.msra.mxu0 %v990
      %1271 = vmatprep.subr.bf16.mxu0 0
      %1272 = vmatpush1.bf16.msra.mxu0 %v991
      %1273 = vmatprep.subr.bf16.mxu0 0
      %1274 = vmatpush1.bf16.msra.mxu0 %v992
      %1275 = vmatprep.subr.bf16.mxu0 0
      %1276 = vmatpush1.bf16.msra.mxu0 %v993
      %1277 = vmatprep.subr.bf16.mxu0 0
      %1278 = vmatpush1.bf16.msra.mxu0 %v994
      %1279 = vmatprep.subr.bf16.mxu0 0
      %1280 = vmatpush1.bf16.msra.mxu0 0
      %1281 = vmatprep.subr.bf16.mxu0 0
      %1282 = vmatpush1.bf16.msra.mxu0 0
      %1283 = vmatprep.subr.bf16.mxu0 0
      %1284 = vmatpush1.bf16.msra.mxu0 0
      %1285 = vmatprep.subr.bf16.mxu0 0
      %1286 = vmatpush1.bf16.msra.mxu0 0
      %1287 = vmatprep.subr.bf16.mxu0 0
      %1288 = vmatpush1.bf16.msra.mxu0 0
      %1289 = vmatprep.subr.bf16.mxu0 0
      %1290 = vmatpush1.bf16.msra.mxu0 0
      %1291 = vmatprep.subr.bf16.mxu0 0
      %1292 = vmatpush1.bf16.msra.mxu0 0
      %1293 = vmatprep.subr.bf16.mxu0 0
      %1294 = vmatpush1.bf16.msra.mxu0 0
      %1295 = vmatprep.mubr.bf16.mxu0 0
      %1296 = vmatmul.mubr.bf16.gmra.mrb[0].mxu0 %v481
      %v1297 = vpop.f32.mrb[0].mxu0
      %v1298 = vadd.f32 %v1249, %v1297
      %v1299 = vpop.f32.mrb[0].mxu0
      %v1300 = vpop.f32.mrb[0].mxu0
      %v1301 = vadd.f32 %v1252, %v1300
      %v1302 = vpop.f32.mrb[0].mxu0
      %1303 = vmatprep.mubr.bf16.mxu0 0
      %1304 = vmatmul.mubr.bf16.gmra.mrb[0].mxu0 %v480
      %v1305 = vpop.f32.mrb[0].mxu0
      %v1306 = vadd.f32 %v1257, %v1305
      %v1307 = vpop.f32.mrb[0].mxu0
      %v1308 = vpop.f32.mrb[0].mxu0
      %v1309 = vadd.f32 %v1260, %v1308
      %v1310 = vpop.f32.mrb[0].mxu0
      %1311 = vdwg.mxu0
      %v1312 = vmax.f32 %v1298, 0.0
      %v1313 = vmax.f32 %v1301, 0.0
      %v1314 = vmax.f32 %v1306, 0.0
      %v1315 = vmax.f32 %v1309, 0.0
      %v1316 = vpack.c.bf16 %v1313, %v1312
      %v1317 = vpack.c.bf16 %v1315, %v1314
      %v1320 = vunpack.c.l.b16 %v1316
      %v1321 = vunpack.c.h.b16 %v1316
      %v1322 = vunpack.c.l.b16 %v1317
      %v1323 = vunpack.c.h.b16 %v1317
      %v1324 = vpack.c.b16 %v1320, %v1320
      %v1325 = vpack.c.b16 %v1321, %v1321
      %v1326 = vpack.c.b16 %v1322, %v1322
      %v1327 = vpack.c.b16 %v1323, %v1323
      %1332 = vst [vmem:[%s342] sm:$0xf] %v1324
      %1333 = vst [vmem:[%s342 + $0x4] sm:$0xf] %v1325
      %1334 = vst [vmem:[%s342 + $0x8] sm:$0xf] %v1326
      %1335 = vst [vmem:[%s342 + $0xc] sm:$0x3] %v1327
      %p1336 = scmp.lt.s32.totalorder %s20, 1
      %s1337 = scalar_select %p1336, %s20, 1
      %p1338 = scmp.lt.s32.totalorder %s21, 27
      %s1339 = scalar_select %p1338, %s21, 27
      %s1340 = smul.addr %s1339, 4
      %s1341 = smul.addr %s1337, 112
      %s1342 = sadd.s32 %s1340, %s1341
      %s1343 = smul.addr %s1342, 4
      %s1344 = scalar_lea.vmem %s5, %s1343
      // Predicated region
      $region41: #{my_model_forward.10} parent=39 // pred_check
        %p1345 = pneg %p178
      $region42: #{my_model_forward.10} parent=39 // pred_check_branch
        %1347 = sbr.rel (%p1345) target = $region44
      $region43: #{my_model_forward.10} parent=39 // pred_region
        _
      $region44: #{my_model_forward.10} parent=39 // pred_fallthru
        _
    $region40: #{my_model_forward.10} parent=5 // pred_fallthru
      _
    %p1348 = scmp.le.s32.totalorder 2, %s11
    // Predicated region
    $region45: #{my_model_forward.10} parent=5 // pred_check
      %p1349 = pneg %p1348
    $region46: #{my_model_forward.10} parent=5 // pred_check_branch
      %1351 = sbr.rel (%p1349) target = $region48
    $region47: #{my_model_forward.10} parent=5 // pred_region
      %s1352 = ssub.s32 %s11, 2
      // Predicated region
      $region49: #{my_model_forward.10} parent=47 // pred_check
        %p1353 = pneg %p184
      $region50: #{my_model_forward.10} parent=47 // pred_check_branch
        %1355 = sbr.rel (%p1353) target = $region52
      $region51: #{my_model_forward.10} parent=47 // pred_region
        %p1356 = scmp.lt.s32.totalorder %s22, 1
        %s1357 = scalar_select %p1356, %s22, 1
        %p1358 = scmp.lt.s32.totalorder %s23, 27
        %s1359 = scalar_select %p1358, %s23, 27
        %s1360 = smul.addr %s1359, 4
        %s1361 = smul.addr %s1357, 112
        %s1362 = sadd.s32 %s1360, %s1361
        %s1363 = smul.addr %s1362, 4
        %s1364 = scalar_lea.vmem %s5, %s1363
      $region52: #{my_model_forward.10} parent=47 // pred_fallthru
        _
    $region48: #{my_model_forward.10} parent=5 // pred_fallthru
      _
  $region6: #{my_model_forward.10} parent=0 // loop_footer
    %s15 = sadd.s32 1, %s11
  $region7: #{my_model_forward.10} parent=0 // loop_footer_branch
    %10 = sbr.rel target = $region3
  $region8: #{my_model_forward.10} parent=0 // loop_exit
    _

// kernel: my_model_forward.11
$region0: #{my_model_forward.11}
  #allocation0 [shape = 'u32[]', space=smem, size = 0x4, offset = 0x4, fixed_abs, tag = 'smem constant byte address 0x4 - core index']
  #allocation1 [shape = 'u32[144,128]{1,0:T(1,128)}', space=vmem, size = 0x12000, scoped, tag = 'internal scratch']
  %s0 = inlined_call_operand.vmem [shape: bf16[28,2,14,256], index: 0, kind: input, shape index: {}]
  %s1 = inlined_call_operand.vmem [shape: bf16[28,14,128], index: 1, kind: output, shape index: {}]
  %s2 = sld [smem:[#allocation0]]
  $region14: #{my_model_forward.11} parent=0
    _
  %s4 = ssub.s32 1, %s2
  %s5 = scalar_select 0, %s4, %s2
  // Predicated region
  $region2: #{my_model_forward.11} parent=0 // pred_check
    _
  $region3: #{my_model_forward.11} parent=0 // pred_check_branch
    %7 = sbr.rel (0) target = $region5
  $region4: #{my_model_forward.11} parent=0 // pred_region
    _
  $region5: #{my_model_forward.11} parent=0 // pred_fallthru
    _
  %v8 = vld [vmem:[%s0] sm:$0xff]
  %v9 = vld [vmem:[%s0 + $0x8] sm:$0x77]
  %v10 = vld [vmem:[%s0 + $0x10] sm:$0xff]
  %v11 = vld [vmem:[%s0 + $0x18] sm:$0x77]
  %v12 = vld [vmem:[%s0 + $0x20] sm:$0xff]
  %v13 = vld [vmem:[%s0 + $0x28] sm:$0x77]
  %v14 = vld [vmem:[%s0 + $0x30] sm:$0xff]
  %v15 = vld [vmem:[%s0 + $0x38] sm:$0x77]
  %v16 = vld [vmem:[%s0 + $0x40] sm:$0xff]
  %v17 = vld [vmem:[%s0 + $0x48] sm:$0x77]
  %v18 = vld [vmem:[%s0 + $0x50] sm:$0xff]
  %v19 = vld [vmem:[%s0 + $0x58] sm:$0x77]
  %v20 = vld [vmem:[%s0 + $0x60] sm:$0xff]
  %v21 = vld [vmem:[%s0 + $0x68] sm:$0x77]
  %v22 = vld [vmem:[%s0 + $0x70] sm:$0xff]
  %v23 = vld [vmem:[%s0 + $0x78] sm:$0x77]
  %v24 = vld [vmem:[%s0 + $0x80] sm:$0xff]
  %v25 = vld [vmem:[%s0 + $0x88] sm:$0x77]
  %v26 = vld [vmem:[%s0 + $0x90] sm:$0xff]
  %v27 = vld [vmem:[%s0 + $0x98] sm:$0x77]
  %v28 = vld [vmem:[%s0 + $0xa0] sm:$0xff]
  %v29 = vld [vmem:[%s0 + $0xa8] sm:$0x77]
  %v30 = vld [vmem:[%s0 + $0xb0] sm:$0xff]
  %v31 = vld [vmem:[%s0 + $0xb8] sm:$0x77]
  %v32 = vld [vmem:[%s0 + $0xc0] sm:$0xff]
  %v33 = vld [vmem:[%s0 + $0xc8] sm:$0x77]
  %v34 = vld [vmem:[%s0 + $0xd0] sm:$0xff]
  %v35 = vld [vmem:[%s0 + $0xd8] sm:$0x77]
  %v36 = vld [vmem:[%s0 + $0xe0] sm:$0xff]
  %v37 = vld [vmem:[%s0 + $0xe8] sm:$0x77]
  %v38 = vld [vmem:[%s0 + $0xf0] sm:$0xff]
  %v39 = vld [vmem:[%s0 + $0xf8] sm:$0x77]
  %v40 = vld [vmem:[%s0 + $0x100] sm:$0xff]
  %v41 = vld [vmem:[%s0 + $0x108] sm:$0x77]
  %v42 = vld [vmem:[%s0 + $0x110] sm:$0xff]
  %v43 = vld [vmem:[%s0 + $0x118] sm:$0x77]
  %v44 = vld [vmem:[%s0 + $0x120] sm:$0xff]
  %v45 = vld [vmem:[%s0 + $0x128] sm:$0x77]
  %v46 = vld [vmem:[%s0 + $0x130] sm:$0xff]
  %v47 = vld [vmem:[%s0 + $0x138] sm:$0x77]
  %v48 = vld [vmem:[%s0 + $0x140] sm:$0xff]
  %v49 = vld [vmem:[%s0 + $0x148] sm:$0x77]
  %v50 = vld [vmem:[%s0 + $0x150] sm:$0xff]
  %v51 = vld [vmem:[%s0 + $0x158] sm:$0x77]
  %v52 = vld [vmem:[%s0 + $0x160] sm:$0xff]
  %v53 = vld [vmem:[%s0 + $0x168] sm:$0x77]
  %v54 = vld [vmem:[%s0 + $0x170] sm:$0xff]
  %v55 = vld [vmem:[%s0 + $0x178] sm:$0x77]
  %v56 = vld [vmem:[%s0 + $0x180] sm:$0xff]
  %v57 = vld [vmem:[%s0 + $0x188] sm:$0x77]
  %v58 = vld [vmem:[%s0 + $0x190] sm:$0xff]
  %v59 = vld [vmem:[%s0 + $0x198] sm:$0x77]
  %v60 = vld [vmem:[%s0 + $0x1a0] sm:$0xff]
  %v61 = vld [vmem:[%s0 + $0x1a8] sm:$0x77]
  %v62 = vld [vmem:[%s0 + $0x1b0] sm:$0xff]
  %v63 = vld [vmem:[%s0 + $0x1b8] sm:$0x77]
  %v64 = vld [vmem:[%s0 + $0x1c0] sm:$0xff]
  %v65 = vld [vmem:[%s0 + $0x1c8] sm:$0x77]
  %v66 = vld [vmem:[%s0 + $0x1d0] sm:$0xff]
  %v67 = vld [vmem:[%s0 + $0x1d8] sm:$0x77]
  %v68 = vld [vmem:[%s0 + $0x1e0] sm:$0xff]
  %v69 = vld [vmem:[%s0 + $0x1e8] sm:$0x77]
  %v70 = vld [vmem:[%s0 + $0x1f0] sm:$0xff]
  %v71 = vld [vmem:[%s0 + $0x1f8] sm:$0x77]
  %v72 = vld [vmem:[%s0 + $0x200] sm:$0xff]
  %v73 = vld [vmem:[%s0 + $0x208] sm:$0x77]
  %v74 = vld [vmem:[%s0 + $0x210] sm:$0xff]
  %v75 = vld [vmem:[%s0 + $0x218] sm:$0x77]
  %v76 = vld [vmem:[%s0 + $0x220] sm:$0xff]
  %v77 = vld [vmem:[%s0 + $0x228] sm:$0x77]
  %v78 = vld [vmem:[%s0 + $0x230] sm:$0xff]
  %v79 = vld [vmem:[%s0 + $0x238] sm:$0x77]
  %v80 = vld [vmem:[%s0 + $0x240] sm:$0xff]
  %v81 = vld [vmem:[%s0 + $0x248] sm:$0x77]
  %v82 = vld [vmem:[%s0 + $0x250] sm:$0xff]
  %v83 = vld [vmem:[%s0 + $0x258] sm:$0x77]
  %v84 = vld [vmem:[%s0 + $0x260] sm:$0xff]
  %v85 = vld [vmem:[%s0 + $0x268] sm:$0x77]
  %v86 = vld [vmem:[%s0 + $0x270] sm:$0xff]
  %v87 = vld [vmem:[%s0 + $0x278] sm:$0x77]
  %v88 = vld [vmem:[%s0 + $0x280] sm:$0xff]
  %v89 = vld [vmem:[%s0 + $0x288] sm:$0x77]
  %v90 = vld [vmem:[%s0 + $0x290] sm:$0xff]
  %v91 = vld [vmem:[%s0 + $0x298] sm:$0x77]
  %v92 = vld [vmem:[%s0 + $0x2a0] sm:$0xff]
  %v93 = vld [vmem:[%s0 + $0x2a8] sm:$0x77]
  %v94 = vld [vmem:[%s0 + $0x2b0] sm:$0xff]
  %v95 = vld [vmem:[%s0 + $0x2b8] sm:$0x77]
  %v96 = vld [vmem:[%s0 + $0x2c0] sm:$0xff]
  %v97 = vld [vmem:[%s0 + $0x2c8] sm:$0x77]
  %v98 = vld [vmem:[%s0 + $0x2d0] sm:$0xff]
  %v99 = vld [vmem:[%s0 + $0x2d8] sm:$0x77]
  %v100 = vld [vmem:[%s0 + $0x2e0] sm:$0xff]
  %v101 = vld [vmem:[%s0 + $0x2e8] sm:$0x77]
  %v102 = vld [vmem:[%s0 + $0x2f0] sm:$0xff]
  %v103 = vld [vmem:[%s0 + $0x2f8] sm:$0x77]
  %v104 = vld [vmem:[%s0 + $0x300] sm:$0xff]
  %v105 = vld [vmem:[%s0 + $0x308] sm:$0x77]
  %v106 = vld [vmem:[%s0 + $0x310] sm:$0xff]
  %v107 = vld [vmem:[%s0 + $0x318] sm:$0x77]
  %v108 = vld [vmem:[%s0 + $0x320] sm:$0xff]
  %v109 = vld [vmem:[%s0 + $0x328] sm:$0x77]
  %v110 = vld [vmem:[%s0 + $0x330] sm:$0xff]
  %v111 = vld [vmem:[%s0 + $0x338] sm:$0x77]
  %v112 = vld [vmem:[%s0 + $0x340] sm:$0xff]
  %v113 = vld [vmem:[%s0 + $0x348] sm:$0x77]
  %v114 = vld [vmem:[%s0 + $0x350] sm:$0xff]
  %v115 = vld [vmem:[%s0 + $0x358] sm:$0x77]
  %v116 = vld [vmem:[%s0 + $0x360] sm:$0xff]
  %v117 = vld [vmem:[%s0 + $0x368] sm:$0x77]
  %v118 = vld [vmem:[%s0 + $0x370] sm:$0xff]
  %v119 = vld [vmem:[%s0 + $0x378] sm:$0x77]
  %v120 = vmax.bf16 %v8, %v10
  %v121 = vmax.bf16 %v9, %v11
  %v122 = vmax.bf16 %v12, %v14
  %v123 = vmax.bf16 %v13, %v15
  %v124 = vmax.bf16 %v16, %v18
  %v125 = vmax.bf16 %v17, %v19
  %v126 = vmax.bf16 %v20, %v22
  %v127 = vmax.bf16 %v21, %v23
  %v128 = vmax.bf16 %v24, %v26
  %v129 = vmax.bf16 %v25, %v27
  %v130 = vmax.bf16 %v28, %v30
  %v131 = vmax.bf16 %v29, %v31
  %v132 = vmax.bf16 %v32, %v34
  %v133 = vmax.bf16 %v33, %v35
  %v134 = vmax.bf16 %v36, %v38
  %v135 = vmax.bf16 %v37, %v39
  %v136 = vmax.bf16 %v40, %v42
  %v137 = vmax.bf16 %v41, %v43
  %v138 = vmax.bf16 %v44, %v46
  %v139 = vmax.bf16 %v45, %v47
  %v140 = vmax.bf16 %v48, %v50
  %v141 = vmax.bf16 %v49, %v51
  %v142 = vmax.bf16 %v52, %v54
  %v143 = vmax.bf16 %v53, %v55
  %v144 = vmax.bf16 %v56, %v58
  %v145 = vmax.bf16 %v57, %v59
  %v146 = vmax.bf16 %v60, %v62
  %v147 = vmax.bf16 %v61, %v63
  %v148 = vmax.bf16 %v64, %v66
  %v149 = vmax.bf16 %v65, %v67
  %v150 = vmax.bf16 %v68, %v70
  %v151 = vmax.bf16 %v69, %v71
  %v152 = vmax.bf16 %v72, %v74
  %v153 = vmax.bf16 %v73, %v75
  %v154 = vmax.bf16 %v76, %v78
  %v155 = vmax.bf16 %v77, %v79
  %v156 = vmax.bf16 %v80, %v82
  %v157 = vmax.bf16 %v81, %v83
  %v158 = vmax.bf16 %v84, %v86
  %v159 = vmax.bf16 %v85, %v87
  %v160 = vmax.bf16 %v88, %v90
  %v161 = vmax.bf16 %v89, %v91
  %v162 = vmax.bf16 %v92, %v94
  %v163 = vmax.bf16 %v93, %v95
  %v164 = vmax.bf16 %v96, %v98
  %v165 = vmax.bf16 %v97, %v99
  %v166 = vmax.bf16 %v100, %v102
  %v167 = vmax.bf16 %v101, %v103
  %v168 = vmax.bf16 %v104, %v106
  %v169 = vmax.bf16 %v105, %v107
  %v170 = vmax.bf16 %v108, %v110
  %v171 = vmax.bf16 %v109, %v111
  %v172 = vmax.bf16 %v112, %v114
  %v173 = vmax.bf16 %v113, %v115
  %v174 = vmax.bf16 %v116, %v118
  %v175 = vmax.bf16 %v117, %v119
  %v232 = vrot.slane %v120, 4
  %v233 = vrot.slane %v121, 4
  %v234 = vrot.slane %v122, 4
  %v235 = vrot.slane %v123, 4
  %v236 = vrot.slane %v124, 4
  %v237 = vrot.slane %v125, 4
  %v238 = vrot.slane %v126, 4
  %v239 = vrot.slane %v127, 4
  %v240 = vrot.slane %v128, 4
  %v241 = vrot.slane %v129, 4
  %v242 = vrot.slane %v130, 4
  %v243 = vrot.slane %v131, 4
  %v244 = vrot.slane %v132, 4
  %v245 = vrot.slane %v133, 4
  %v246 = vrot.slane %v134, 4
  %v247 = vrot.slane %v135, 4
  %v248 = vrot.slane %v136, 4
  %v249 = vrot.slane %v137, 4
  %v250 = vrot.slane %v138, 4
  %v251 = vrot.slane %v139, 4
  %v252 = vrot.slane %v140, 4
  %v253 = vrot.slane %v141, 4
  %v254 = vrot.slane %v142, 4
  %v255 = vrot.slane %v143, 4
  %v256 = vrot.slane %v144, 4
  %v257 = vrot.slane %v145, 4
  %v258 = vrot.slane %v146, 4
  %v259 = vrot.slane %v147, 4
  %v260 = vrot.slane %v148, 4
  %v261 = vrot.slane %v149, 4
  %v262 = vrot.slane %v150, 4
  %v263 = vrot.slane %v151, 4
  %v264 = vrot.slane %v152, 4
  %v265 = vrot.slane %v153, 4
  %v266 = vrot.slane %v154, 4
  %v267 = vrot.slane %v155, 4
  %v268 = vrot.slane %v156, 4
  %v269 = vrot.slane %v157, 4
  %v270 = vrot.slane %v158, 4
  %v271 = vrot.slane %v159, 4
  %v272 = vrot.slane %v160, 4
  %v273 = vrot.slane %v161, 4
  %v274 = vrot.slane %v162, 4
  %v275 = vrot.slane %v163, 4
  %v276 = vrot.slane %v164, 4
  %v277 = vrot.slane %v165, 4
  %v278 = vrot.slane %v166, 4
  %v279 = vrot.slane %v167, 4
  %v280 = vrot.slane %v168, 4
  %v281 = vrot.slane %v169, 4
  %v282 = vrot.slane %v170, 4
  %v283 = vrot.slane %v171, 4
  %v284 = vrot.slane %v172, 4
  %v285 = vrot.slane %v173, 4
  %v286 = vrot.slane %v174, 4
  %v287 = vrot.slane %v175, 4
  %v344 = vmax.bf16 %v120, %v232
  %v345 = vmax.bf16 %v121, %v233
  %v346 = vmax.bf16 %v122, %v234
  %v347 = vmax.bf16 %v123, %v235
  %v348 = vmax.bf16 %v124, %v236
  %v349 = vmax.bf16 %v125, %v237
  %v350 = vmax.bf16 %v126, %v238
  %v351 = vmax.bf16 %v127, %v239
  %v352 = vmax.bf16 %v128, %v240
  %v353 = vmax.bf16 %v129, %v241
  %v354 = vmax.bf16 %v130, %v242
  %v355 = vmax.bf16 %v131, %v243
  %v356 = vmax.bf16 %v132, %v244
  %v357 = vmax.bf16 %v133, %v245
  %v358 = vmax.bf16 %v134, %v246
  %v359 = vmax.bf16 %v135, %v247
  %v360 = vmax.bf16 %v136, %v248
  %v361 = vmax.bf16 %v137, %v249
  %v362 = vmax.bf16 %v138, %v250
  %v363 = vmax.bf16 %v139, %v251
  %v364 = vmax.bf16 %v140, %v252
  %v365 = vmax.bf16 %v141, %v253
  %v366 = vmax.bf16 %v142, %v254
  %v367 = vmax.bf16 %v143, %v255
  %v368 = vmax.bf16 %v144, %v256
  %v369 = vmax.bf16 %v145, %v257
  %v370 = vmax.bf16 %v146, %v258
  %v371 = vmax.bf16 %v147, %v259
  %v372 = vmax.bf16 %v148, %v260
  %v373 = vmax.bf16 %v149, %v261
  %v374 = vmax.bf16 %v150, %v262
  %v375 = vmax.bf16 %v151, %v263
  %v376 = vmax.bf16 %v152, %v264
  %v377 = vmax.bf16 %v153, %v265
  %v378 = vmax.bf16 %v154, %v266
  %v379 = vmax.bf16 %v155, %v267
  %v380 = vmax.bf16 %v156, %v268
  %v381 = vmax.bf16 %v157, %v269
  %v382 = vmax.bf16 %v158, %v270
  %v383 = vmax.bf16 %v159, %v271
  %v384 = vmax.bf16 %v160, %v272
  %v385 = vmax.bf16 %v161, %v273
  %v386 = vmax.bf16 %v162, %v274
  %v387 = vmax.bf16 %v163, %v275
  %v388 = vmax.bf16 %v164, %v276
  %v389 = vmax.bf16 %v165, %v277
  %v390 = vmax.bf16 %v166, %v278
  %v391 = vmax.bf16 %v167, %v279
  %v392 = vmax.bf16 %v168, %v280
  %v393 = vmax.bf16 %v169, %v281
  %v394 = vmax.bf16 %v170, %v282
  %v395 = vmax.bf16 %v171, %v283
  %v396 = vmax.bf16 %v172, %v284
  %v397 = vmax.bf16 %v173, %v285
  %v398 = vmax.bf16 %v174, %v286
  %v399 = vmax.bf16 %v175, %v287
  %400 = vst [vmem:[%s1] sm:$0xf] %v344
  %401 = vst [vmem:[%s1 + $0x4] sm:$0x7] %v345
  %402 = vst [vmem:[%s1 + $0x8] sm:$0xf] %v346
  %403 = vst [vmem:[%s1 + $0xc] sm:$0x7] %v347
  %404 = vst [vmem:[%s1 + $0x10] sm:$0xf] %v348
  %405 = vst [vmem:[%s1 + $0x14] sm:$0x7] %v349
  %406 = vst [vmem:[%s1 + $0x18] sm:$0xf] %v350
  %407 = vst [vmem:[%s1 + $0x1c] sm:$0x7] %v351
  %408 = vst [vmem:[%s1 + $0x20] sm:$0xf] %v352
  %409 = vst [vmem:[%s1 + $0x24] sm:$0x7] %v353
  %410 = vst [vmem:[%s1 + $0x28] sm:$0xf] %v354
  %411 = vst [vmem:[%s1 + $0x2c] sm:$0x7] %v355
  %412 = vst [vmem:[%s1 + $0x30] sm:$0xf] %v356
  %413 = vst [vmem:[%s1 + $0x34] sm:$0x7] %v357
  %414 = vst [vmem:[%s1 + $0x38] sm:$0xf] %v358
  %415 = vst [vmem:[%s1 + $0x3c] sm:$0x7] %v359
  %416 = vst [vmem:[%s1 + $0x40] sm:$0xf] %v360
  %417 = vst [vmem:[%s1 + $0x44] sm:$0x7] %v361
  %418 = vst [vmem:[%s1 + $0x48] sm:$0xf] %v362
  %419 = vst [vmem:[%s1 + $0x4c] sm:$0x7] %v363
  %420 = vst [vmem:[%s1 + $0x50] sm:$0xf] %v364
  %421 = vst [vmem:[%s1 + $0x54] sm:$0x7] %v365
  %422 = vst [vmem:[%s1 + $0x58] sm:$0xf] %v366
  %423 = vst [vmem:[%s1 + $0x5c] sm:$0x7] %v367
  %424 = vst [vmem:[%s1 + $0x60] sm:$0xf] %v368
  %425 = vst [vmem:[%s1 + $0x64] sm:$0x7] %v369
  %426 = vst [vmem:[%s1 + $0x68] sm:$0xf] %v370
  %427 = vst [vmem:[%s1 + $0x6c] sm:$0x7] %v371
  %428 = vst [vmem:[%s1 + $0x70] sm:$0xf] %v372
  %429 = vst [vmem:[%s1 + $0x74] sm:$0x7] %v373
  %430 = vst [vmem:[%s1 + $0x78] sm:$0xf] %v374
  %431 = vst [vmem:[%s1 + $0x7c] sm:$0x7] %v375
  %432 = vst [vmem:[%s1 + $0x80] sm:$0xf] %v376
  %433 = vst [vmem:[%s1 + $0x84] sm:$0x7] %v377
  %434 = vst [vmem:[%s1 + $0x88] sm:$0xf] %v378
  %435 = vst [vmem:[%s1 + $0x8c] sm:$0x7] %v379
  %436 = vst [vmem:[%s1 + $0x90] sm:$0xf] %v380
  %437 = vst [vmem:[%s1 + $0x94] sm:$0x7] %v381
  %438 = vst [vmem:[%s1 + $0x98] sm:$0xf] %v382
  %439 = vst [vmem:[%s1 + $0x9c] sm:$0x7] %v383
  %440 = vst [vmem:[%s1 + $0xa0] sm:$0xf] %v384
  %441 = vst [vmem:[%s1 + $0xa4] sm:$0x7] %v385
  %442 = vst [vmem:[%s1 + $0xa8] sm:$0xf] %v386
  %443 = vst [vmem:[%s1 + $0xac] sm:$0x7] %v387
  %444 = vst [vmem:[%s1 + $0xb0] sm:$0xf] %v388
  %445 = vst [vmem:[%s1 + $0xb4] sm:$0x7] %v389
  %446 = vst [vmem:[%s1 + $0xb8] sm:$0xf] %v390
  %447 = vst [vmem:[%s1 + $0xbc] sm:$0x7] %v391
  %448 = vst [vmem:[%s1 + $0xc0] sm:$0xf] %v392
  %449 = vst [vmem:[%s1 + $0xc4] sm:$0x7] %v393
  %450 = vst [vmem:[%s1 + $0xc8] sm:$0xf] %v394
  %451 = vst [vmem:[%s1 + $0xcc] sm:$0x7] %v395
  %452 = vst [vmem:[%s1 + $0xd0] sm:$0xf] %v396
  %453 = vst [vmem:[%s1 + $0xd4] sm:$0x7] %v397
  %454 = vst [vmem:[%s1 + $0xd8] sm:$0xf] %v398
  %455 = vst [vmem:[%s1 + $0xdc] sm:$0x7] %v399
  // Predicated region
  $region6: #{my_model_forward.11} parent=0 // pred_check
    _
  $region7: #{my_model_forward.11} parent=0 // pred_check_branch
    %457 = sbr.rel (0) target = $region9
  $region8: #{my_model_forward.11} parent=0 // pred_region
    _
  $region9: #{my_model_forward.11} parent=0 // pred_fallthru
    _
  // Predicated region
  $region10: #{my_model_forward.11} parent=0 // pred_check
    _
  $region11: #{my_model_forward.11} parent=0 // pred_check_branch
    %459 = sbr.rel (0) target = $region13
  $region12: #{my_model_forward.11} parent=0 // pred_region
    _
  $region13: #{my_model_forward.11} parent=0 // pred_fallthru
    _

// kernel: my_model_forward.14
$region0: #{my_model_forward.14}
  #allocation0 [shape = 'u32[]', space=smem, size = 0x4, offset = 0x4, fixed_abs, tag = 'smem constant byte address 0x4 - core index']
  #allocation1 [shape = 'u32[144,128]{1,0:T(1,128)}', space=vmem, size = 0x12000, scoped, tag = 'internal scratch']
  %s0 = inlined_call_operand.vmem [shape: bf16[14,2,7,256], index: 0, kind: input, shape index: {}]
  %s1 = inlined_call_operand.vmem [shape: bf16[14,7,128], index: 1, kind: output, shape index: {}]
  %s2 = sld [smem:[#allocation0]]
  $region14: #{my_model_forward.14} parent=0
    _
  %s4 = ssub.s32 1, %s2
  %s5 = scalar_select 0, %s4, %s2
  // Predicated region
  $region2: #{my_model_forward.14} parent=0 // pred_check
    _
  $region3: #{my_model_forward.14} parent=0 // pred_check_branch
    %7 = sbr.rel (0) target = $region5
  $region4: #{my_model_forward.14} parent=0 // pred_region
    _
  $region5: #{my_model_forward.14} parent=0 // pred_fallthru
    _
  %v8 = vld [vmem:[%s0] sm:$0xff]
  %v9 = vld [vmem:[%s0 + $0x8] sm:$0xff]
  %v10 = vld [vmem:[%s0 + $0x10] sm:$0xff]
  %v11 = vld [vmem:[%s0 + $0x18] sm:$0xff]
  %v12 = vld [vmem:[%s0 + $0x20] sm:$0xff]
  %v13 = vld [vmem:[%s0 + $0x28] sm:$0xff]
  %v14 = vld [vmem:[%s0 + $0x30] sm:$0xff]
  %v15 = vld [vmem:[%s0 + $0x38] sm:$0xff]
  %v16 = vld [vmem:[%s0 + $0x40] sm:$0xff]
  %v17 = vld [vmem:[%s0 + $0x48] sm:$0xff]
  %v18 = vld [vmem:[%s0 + $0x50] sm:$0xff]
  %v19 = vld [vmem:[%s0 + $0x58] sm:$0xff]
  %v20 = vld [vmem:[%s0 + $0x60] sm:$0xff]
  %v21 = vld [vmem:[%s0 + $0x68] sm:$0xff]
  %v22 = vld [vmem:[%s0 + $0x70] sm:$0xff]
  %v23 = vld [vmem:[%s0 + $0x78] sm:$0xff]
  %v24 = vld [vmem:[%s0 + $0x80] sm:$0xff]
  %v25 = vld [vmem:[%s0 + $0x88] sm:$0xff]
  %v26 = vld [vmem:[%s0 + $0x90] sm:$0xff]
  %v27 = vld [vmem:[%s0 + $0x98] sm:$0xff]
  %v28 = vld [vmem:[%s0 + $0xa0] sm:$0xff]
  %v29 = vld [vmem:[%s0 + $0xa8] sm:$0xff]
  %v30 = vld [vmem:[%s0 + $0xb0] sm:$0xff]
  %v31 = vld [vmem:[%s0 + $0xb8] sm:$0xff]
  %v32 = vld [vmem:[%s0 + $0xc0] sm:$0xff]
  %v33 = vld [vmem:[%s0 + $0xc8] sm:$0xff]
  %v34 = vld [vmem:[%s0 + $0xd0] sm:$0xff]
  %v35 = vld [vmem:[%s0 + $0xd8] sm:$0xff]
  %v36 = vmax.bf16 %v8, %v9
  %v37 = vmax.bf16 %v10, %v11
  %v38 = vmax.bf16 %v12, %v13
  %v39 = vmax.bf16 %v14, %v15
  %v40 = vmax.bf16 %v16, %v17
  %v41 = vmax.bf16 %v18, %v19
  %v42 = vmax.bf16 %v20, %v21
  %v43 = vmax.bf16 %v22, %v23
  %v44 = vmax.bf16 %v24, %v25
  %v45 = vmax.bf16 %v26, %v27
  %v46 = vmax.bf16 %v28, %v29
  %v47 = vmax.bf16 %v30, %v31
  %v48 = vmax.bf16 %v32, %v33
  %v49 = vmax.bf16 %v34, %v35
  %v64 = vrot.slane %v36, 4
  %v65 = vrot.slane %v37, 4
  %v66 = vrot.slane %v38, 4
  %v67 = vrot.slane %v39, 4
  %v68 = vrot.slane %v40, 4
  %v69 = vrot.slane %v41, 4
  %v70 = vrot.slane %v42, 4
  %v71 = vrot.slane %v43, 4
  %v72 = vrot.slane %v44, 4
  %v73 = vrot.slane %v45, 4
  %v74 = vrot.slane %v46, 4
  %v75 = vrot.slane %v47, 4
  %v76 = vrot.slane %v48, 4
  %v77 = vrot.slane %v49, 4
  %v92 = vmax.bf16 %v36, %v64
  %v93 = vmax.bf16 %v37, %v65
  %v94 = vmax.bf16 %v38, %v66
  %v95 = vmax.bf16 %v39, %v67
  %v96 = vmax.bf16 %v40, %v68
  %v97 = vmax.bf16 %v41, %v69
  %v98 = vmax.bf16 %v42, %v70
  %v99 = vmax.bf16 %v43, %v71
  %v100 = vmax.bf16 %v44, %v72
  %v101 = vmax.bf16 %v45, %v73
  %v102 = vmax.bf16 %v46, %v74
  %v103 = vmax.bf16 %v47, %v75
  %v104 = vmax.bf16 %v48, %v76
  %v105 = vmax.bf16 %v49, %v77
  %vm106 = vcmask 1043456
  %vm107 = vsmask.f32 3328
  %vm108 = vmand %vm106, %vm107
  %v109 = vld [vmem:[%s1] sm:$0xf]
  %v110 = vsel %vm108, %v92, %v109
  %111 = vst [vmem:[%s1] sm:$0xf] %v110
  %v112 = vld [vmem:[%s1 + $0x4] sm:$0xf]
  %v113 = vsel %vm108, %v93, %v112
  %114 = vst [vmem:[%s1 + $0x4] sm:$0xf] %v113
  %v115 = vld [vmem:[%s1 + $0x8] sm:$0xf]
  %v116 = vsel %vm108, %v94, %v115
  %117 = vst [vmem:[%s1 + $0x8] sm:$0xf] %v116
  %v118 = vld [vmem:[%s1 + $0xc] sm:$0xf]
  %v119 = vsel %vm108, %v95, %v118
  %120 = vst [vmem:[%s1 + $0xc] sm:$0xf] %v119
  %v121 = vld [vmem:[%s1 + $0x10] sm:$0xf]
  %v122 = vsel %vm108, %v96, %v121
  %123 = vst [vmem:[%s1 + $0x10] sm:$0xf] %v122
  %v124 = vld [vmem:[%s1 + $0x14] sm:$0xf]
  %v125 = vsel %vm108, %v97, %v124
  %126 = vst [vmem:[%s1 + $0x14] sm:$0xf] %v125
  %v127 = vld [vmem:[%s1 + $0x18] sm:$0xf]
  %v128 = vsel %vm108, %v98, %v127
  %129 = vst [vmem:[%s1 + $0x18] sm:$0xf] %v128
  %v130 = vld [vmem:[%s1 + $0x1c] sm:$0xf]
  %v131 = vsel %vm108, %v99, %v130
  %132 = vst [vmem:[%s1 + $0x1c] sm:$0xf] %v131
  %v133 = vld [vmem:[%s1 + $0x20] sm:$0xf]
  %v134 = vsel %vm108, %v100, %v133
  %135 = vst [vmem:[%s1 + $0x20] sm:$0xf] %v134
  %v136 = vld [vmem:[%s1 + $0x24] sm:$0xf]
  %v137 = vsel %vm108, %v101, %v136
  %138 = vst [vmem:[%s1 + $0x24] sm:$0xf] %v137
  %v139 = vld [vmem:[%s1 + $0x28] sm:$0xf]
  %v140 = vsel %vm108, %v102, %v139
  %141 = vst [vmem:[%s1 + $0x28] sm:$0xf] %v140
  %v142 = vld [vmem:[%s1 + $0x2c] sm:$0xf]
  %v143 = vsel %vm108, %v103, %v142
  %144 = vst [vmem:[%s1 + $0x2c] sm:$0xf] %v143
  %v145 = vld [vmem:[%s1 + $0x30] sm:$0xf]
  %v146 = vsel %vm108, %v104, %v145
  %147 = vst [vmem:[%s1 + $0x30] sm:$0xf] %v146
  %v148 = vld [vmem:[%s1 + $0x34] sm:$0xf]
  %v149 = vsel %vm108, %v105, %v148
  %150 = vst [vmem:[%s1 + $0x34] sm:$0xf] %v149
  // Predicated region
  $region6: #{my_model_forward.14} parent=0 // pred_check
    _
  $region7: #{my_model_forward.14} parent=0 // pred_check_branch
    %152 = sbr.rel (0) target = $region9
  $region8: #{my_model_forward.14} parent=0 // pred_region
    _
  $region9: #{my_model_forward.14} parent=0 // pred_fallthru
    _
  // Predicated region
  $region10: #{my_model_forward.14} parent=0 // pred_check
    _
  $region11: #{my_model_forward.14} parent=0 // pred_check_branch
    %154 = sbr.rel (0) target = $region13
  $region12: #{my_model_forward.14} parent=0 // pred_region
    _
  $region13: #{my_model_forward.14} parent=0 // pred_fallthru
    _

// kernel: my_model_forward.12
$region0: #{my_model_forward.12}
  #allocation0 [shape = 'u32[]', space=smem, size = 0x4, offset = 0x4, fixed_abs, tag = 'smem constant byte address 0x4 - core index']
  #allocation1 [shape = 'u32[144,128]{1,0:T(1,128)}', space=vmem, size = 0x12000, scoped, tag = 'internal scratch']
  %s0 = inlined_call_operand.vmem [shape: bf16[2,16,16,128], index: 0, kind: input, shape index: {}, may-alias: {0,1,2}]
  %s1 = inlined_call_operand.vmem [shape: bf16[2,16,16,128], index: 1, kind: input, shape index: {}, may-alias: {0,1,2}]
  %s2 = inlined_call_operand.vmem [shape: bf16[2,16,16,128], index: 2, kind: input, shape index: {}, may-alias: {0,1,2}]
  %s3 = inlined_call_operand.vmem [shape: bf16[1152,128], index: 3, kind: input, shape index: {}]
  %s4 = inlined_call_operand.vmem [shape: f32[1,128], index: 4, kind: input, shape index: {}]
  %s5 = inlined_call_operand.vmem [shape: bf16[2,14,14,128], index: 5, kind: output, shape index: {}]
  %s6 = sld [smem:[#allocation0]]
  $region53: #{my_model_forward.12} parent=0
    _
  %s8 = ssub.s32 1, %s6
  %s9 = scalar_select 0, %s8, %s6
  loop: start=0, step=1, limit=30
  $region2: #{my_model_forward.12} parent=0 // loop_pre_header
    _
  $region3: #{my_model_forward.12} parent=0 // loop_header
    %s11 = sphi 0, %s15
    %p12 = scmp.ge.s32.totalorder %s11, 30
    %s18 = sphi 0, %s30
    %s19 = sphi 0, %s26
    %s20 = sphi 0, %s18
    %s21 = sphi 0, %s19
    %s22 = sphi 0, %s20
    %s23 = sphi 0, %s21
    %s35 = sphi 0, %s37
    %s38 = sphi 0, %s35
    %s39 = sphi 0, %s38
    %s55 = sphi 0, %s39
    %s65 = sphi 0, %s67
    %s68 = sphi 0, %s65
    %s69 = sphi 0, %s68
    %s85 = sphi 0, %s69
    %s95 = sphi 0, %s97
    %s98 = sphi 0, %s95
    %s99 = sphi 0, %s98
    %s115 = sphi 0, %s99
    %s119 = sphi 0, %s119
    %s121 = sphi 0, %s119
    %s122 = sphi 0, %s121
    %s136 = sphi 0, %s122
    %s140 = sphi 0, %s140
    %s142 = sphi 0, %s140
    %s143 = sphi 0, %s142
    %s157 = sphi 0, %s143
    %s165 = sphi 0, %s167
    %s168 = sphi 0, %s165
    %s169 = sphi 0, %s168
    %s185 = sphi 0, %s169
  $region4: #{my_model_forward.12} parent=0 // loop_header_branch
    %14 = sbr.rel (%p12) target = $region8
  $region5: #{my_model_forward.12} parent=0 // loop_body
    %s16 = ssub.s32 %s11, 1
    %s17 = ssub.s32 %s11, 2
    %s24 = sadd.s32 1, %s19
    %p25 = scmp.ge.s32.totalorder %s24, 14
    %s26 = scalar_select %p25, 0, %s24
    %s27 = sadd.s32 1, %s18
    %s28 = scalar_select %p25, %s27, %s18
    %p29 = scmp.ge.s32.totalorder %s28, 2
    %s30 = scalar_select %p29, 0, %s28
    %s31 = ssub.s32 %s18, %s30
    %s32 = ssub.s32 %s19, %s26
    %s33 = sor.u32 %s31, %s32
    %p34 = scmp.eq.s32.totalorder %s33, 0
    %s36 = sadd.s32 %s35, 1
    %s37 = scalar_select %p34, %s35, %s36
    %p40 = pneg %p34
    %p41 = scmp.eq.s32.totalorder %s11, 27
    %p42 = por %p40, %p41
    %p43 = scmp.ne.s32.totalorder %s35, %s38
    %p44 = scmp.eq.s32.totalorder %s11, 0
    %p45 = por %p43, %p44
    %p46 = scmp.ne.s32.totalorder %s35, %s38
    %p47 = scmp.eq.s32.totalorder %s16, 27
    %p48 = por %p46, %p47
    %p49 = scmp.ne.s32.totalorder %s38, %s39
    %p50 = scmp.eq.s32.totalorder %s16, 0
    %p51 = por %p49, %p50
    %p52 = scmp.ne.s32.totalorder %s38, %s39
    %p53 = scmp.eq.s32.totalorder %s17, 27
    %p54 = por %p52, %p53
    %p56 = scmp.ne.s32.totalorder %s39, %s55
    %p57 = scmp.eq.s32.totalorder %s17, 0
    %p58 = por %p56, %p57
    %s59 = sadd.s32 %s19, 1
    %s60 = sadd.s32 %s26, 1
    %s61 = ssub.s32 %s18, %s30
    %s62 = ssub.s32 %s59, %s60
    %s63 = sor.u32 %s61, %s62
    %p64 = scmp.eq.s32.totalorder %s63, 0
    %s66 = sadd.s32 %s65, 1
    %s67 = scalar_select %p64, %s65, %s66
    %p70 = pneg %p64
    %p71 = scmp.eq.s32.totalorder %s11, 27
    %p72 = por %p70, %p71
    %p73 = scmp.ne.s32.totalorder %s65, %s68
    %p74 = scmp.eq.s32.totalorder %s11, 0
    %p75 = por %p73, %p74
    %p76 = scmp.ne.s32.totalorder %s65, %s68
    %p77 = scmp.eq.s32.totalorder %s16, 27
    %p78 = por %p76, %p77
    %p79 = scmp.ne.s32.totalorder %s68, %s69
    %p80 = scmp.eq.s32.totalorder %s16, 0
    %p81 = por %p79, %p80
    %p82 = scmp.ne.s32.totalorder %s68, %s69
    %p83 = scmp.eq.s32.totalorder %s17, 27
    %p84 = por %p82, %p83
    %p86 = scmp.ne.s32.totalorder %s69, %s85
    %p87 = scmp.eq.s32.totalorder %s17, 0
    %p88 = por %p86, %p87
    %s89 = sadd.s32 %s19, 2
    %s90 = sadd.s32 %s26, 2
    %s91 = ssub.s32 %s18, %s30
    %s92 = ssub.s32 %s89, %s90
    %s93 = sor.u32 %s91, %s92
    %p94 = scmp.eq.s32.totalorder %s93, 0
    %s96 = sadd.s32 %s95, 1
    %s97 = scalar_select %p94, %s95, %s96
    %p100 = pneg %p94
    %p101 = scmp.eq.s32.totalorder %s11, 27
    %p102 = por %p100, %p101
    %p103 = scmp.ne.s32.totalorder %s95, %s98
    %p104 = scmp.eq.s32.totalorder %s11, 0
    %p105 = por %p103, %p104
    %p106 = scmp.ne.s32.totalorder %s95, %s98
    %p107 = scmp.eq.s32.totalorder %s16, 27
    %p108 = por %p106, %p107
    %p109 = scmp.ne.s32.totalorder %s98, %s99
    %p110 = scmp.eq.s32.totalorder %s16, 0
    %p111 = por %p109, %p110
    %p112 = scmp.ne.s32.totalorder %s98, %s99
    %p113 = scmp.eq.s32.totalorder %s17, 27
    %p114 = por %p112, %p113
    %p116 = scmp.ne.s32.totalorder %s99, %s115
    %p117 = scmp.eq.s32.totalorder %s17, 0
    %p118 = por %p116, %p117
    %s120 = sadd.s32 %s119, 1
    %p123 = scmp.eq.s32.totalorder %s11, 27
    %p124 = scmp.ne.s32.totalorder %s119, %s121
    %p125 = scmp.eq.s32.totalorder %s11, 0
    %p126 = por %p124, %p125
    %p127 = scmp.ne.s32.totalorder %s119, %s121
    %p128 = scmp.eq.s32.totalorder %s16, 27
    %p129 = por %p127, %p128
    %p130 = scmp.ne.s32.totalorder %s121, %s122
    %p131 = scmp.eq.s32.totalorder %s16, 0
    %p132 = por %p130, %p131
    %p133 = scmp.ne.s32.totalorder %s121, %s122
    %p134 = scmp.eq.s32.totalorder %s17, 27
    %p135 = por %p133, %p134
    %p137 = scmp.ne.s32.totalorder %s122, %s136
    %p138 = scmp.eq.s32.totalorder %s17, 0
    %p139 = por %p137, %p138
    %s141 = sadd.s32 %s140, 1
    %p144 = scmp.eq.s32.totalorder %s11, 27
    %p145 = scmp.ne.s32.totalorder %s140, %s142
    %p146 = scmp.eq.s32.totalorder %s11, 0
    %p147 = por %p145, %p146
    %p148 = scmp.ne.s32.totalorder %s140, %s142
    %p149 = scmp.eq.s32.totalorder %s16, 27
    %p150 = por %p148, %p149
    %p151 = scmp.ne.s32.totalorder %s142, %s143
    %p152 = scmp.eq.s32.totalorder %s16, 0
    %p153 = por %p151, %p152
    %p154 = scmp.ne.s32.totalorder %s142, %s143
    %p155 = scmp.eq.s32.totalorder %s17, 27
    %p156 = por %p154, %p155
    %p158 = scmp.ne.s32.totalorder %s143, %s157
    %p159 = scmp.eq.s32.totalorder %s17, 0
    %p160 = por %p158, %p159
    %s161 = ssub.s32 %s18, %s30
    %s162 = ssub.s32 %s19, %s26
    %s163 = sor.u32 %s161, %s162
    %p164 = scmp.eq.s32.totalorder %s163, 0
    %s166 = sadd.s32 %s165, 1
    %s167 = scalar_select %p164, %s165, %s166
    %p170 = pneg %p164
    %p171 = scmp.eq.s32.totalorder %s11, 27
    %p172 = por %p170, %p171
    %p173 = scmp.ne.s32.totalorder %s165, %s168
    %p174 = scmp.eq.s32.totalorder %s11, 0
    %p175 = por %p173, %p174
    %p176 = scmp.ne.s32.totalorder %s165, %s168
    %p177 = scmp.eq.s32.totalorder %s16, 27
    %p178 = por %p176, %p177
    %p179 = scmp.ne.s32.totalorder %s168, %s169
    %p180 = scmp.eq.s32.totalorder %s16, 0
    %p181 = por %p179, %p180
    %p182 = scmp.ne.s32.totalorder %s168, %s169
    %p183 = scmp.eq.s32.totalorder %s17, 27
    %p184 = por %p182, %p183
    %p186 = scmp.ne.s32.totalorder %s169, %s185
    %p187 = scmp.eq.s32.totalorder %s17, 0
    %p188 = por %p186, %p187
    %p189 = scmp.le.s32.totalorder 1, %s11
    %p190 = scmp.lt.s32.totalorder %s11, 29
    %p191 = pnand %p189, %p190
    %p192 = pneg %p191
    // Predicated region
    $region9: #{my_model_forward.12} parent=5 // pred_check
      _
    $region10: #{my_model_forward.12} parent=5 // pred_check_branch
      %194 = sbr.rel (%p191) target = $region12
    $region11: #{my_model_forward.12} parent=5 // pred_region
      %s195 = ssub.s32 %s11, 1
      // Predicated region
      $region13: #{my_model_forward.12} parent=11 // pred_check
        %p196 = pneg %p132
      $region14: #{my_model_forward.12} parent=11 // pred_check_branch
        %198 = sbr.rel (%p196) target = $region16
      $region15: #{my_model_forward.12} parent=11 // pred_region
        _
      $region16: #{my_model_forward.12} parent=11 // pred_fallthru
        _
      // Predicated region
      $region17: #{my_model_forward.12} parent=11 // pred_check
        %p199 = pneg %p153
      $region18: #{my_model_forward.12} parent=11 // pred_check_branch
        %201 = sbr.rel (%p199) target = $region20
      $region19: #{my_model_forward.12} parent=11 // pred_region
        _
      $region20: #{my_model_forward.12} parent=11 // pred_fallthru
        _
    $region12: #{my_model_forward.12} parent=5 // pred_fallthru
      _
    %p202 = scmp.lt.s32.totalorder %s11, 28
    // Predicated region
    $region21: #{my_model_forward.12} parent=5 // pred_check
      %p203 = pneg %p202
    $region22: #{my_model_forward.12} parent=5 // pred_check_branch
      %205 = sbr.rel (%p203) target = $region24
    $region23: #{my_model_forward.12} parent=5 // pred_region
      // Predicated region
      $region25: #{my_model_forward.12} parent=23 // pred_check
        %p206 = pneg %p45
      $region26: #{my_model_forward.12} parent=23 // pred_check_branch
        %208 = sbr.rel (%p206) target = $region28
      $region27: #{my_model_forward.12} parent=23 // pred_region
        %p209 = scmp.lt.s32.totalorder %s18, 1
        %s210 = scalar_select %p209, %s18, 1
        %p211 = scmp.lt.s32.totalorder %s19, 15
        %s212 = scalar_select %p211, %s19, 15
        %s213 = smul.addr %s212, 2
        %s214 = smul.addr %s210, 32
        %s215 = sadd.s32 %s213, %s214
        %s216 = smul.addr %s215, 4
        %s217 = scalar_lea.vmem %s0, %s216
      $region28: #{my_model_forward.12} parent=23 // pred_fallthru
        _
      // Predicated region
      $region29: #{my_model_forward.12} parent=23 // pred_check
        %p218 = pneg %p75
      $region30: #{my_model_forward.12} parent=23 // pred_check_branch
        %220 = sbr.rel (%p218) target = $region32
      $region31: #{my_model_forward.12} parent=23 // pred_region
        %s221 = sadd.s32 %s19, 1
        %p222 = scmp.lt.s32.totalorder %s18, 1
        %s223 = scalar_select %p222, %s18, 1
        %p224 = scmp.lt.s32.totalorder %s221, 15
        %s225 = scalar_select %p224, %s221, 15
        %s226 = smul.addr %s225, 2
        %s227 = smul.addr %s223, 32
        %s228 = sadd.s32 %s226, %s227
        %s229 = smul.addr %s228, 4
        %s230 = scalar_lea.vmem %s1, %s229
        %s231 = sadd.s32 %s19, 1
      $region32: #{my_model_forward.12} parent=23 // pred_fallthru
        _
      // Predicated region
      $region33: #{my_model_forward.12} parent=23 // pred_check
        %p232 = pneg %p105
      $region34: #{my_model_forward.12} parent=23 // pred_check_branch
        %234 = sbr.rel (%p232) target = $region36
      $region35: #{my_model_forward.12} parent=23 // pred_region
        %s235 = sadd.s32 %s19, 2
        %p236 = scmp.lt.s32.totalorder %s18, 1
        %s237 = scalar_select %p236, %s18, 1
        %p238 = scmp.lt.s32.totalorder %s235, 15
        %s239 = scalar_select %p238, %s235, 15
        %s240 = smul.addr %s239, 2
        %s241 = smul.addr %s237, 32
        %s242 = sadd.s32 %s240, %s241
        %s243 = smul.addr %s242, 4
        %s244 = scalar_lea.vmem %s2, %s243
        %s245 = sadd.s32 %s19, 2
      $region36: #{my_model_forward.12} parent=23 // pred_fallthru
        _
    $region24: #{my_model_forward.12} parent=5 // pred_fallthru
      _
    %p246 = scmp.le.s32.totalorder 1, %s11
    %p247 = scmp.lt.s32.totalorder %s11, 29
    %p248 = pnand %p246, %p247
    %p249 = pneg %p248
    // Predicated region
    $region37: #{my_model_forward.12} parent=5 // pred_check
      _
    $region38: #{my_model_forward.12} parent=5 // pred_check_branch
      %251 = sbr.rel (%p248) target = $region40
    $region39: #{my_model_forward.12} parent=5 // pred_region
      %s252 = ssub.s32 %s11, 1
      %p253 = scmp.lt.s32.totalorder %s20, 1
      %s254 = scalar_select %p253, %s20, 1
      %p255 = scmp.lt.s32.totalorder %s21, 15
      %s256 = scalar_select %p255, %s21, 15
      %s257 = smul.addr %s256, 2
      %s258 = smul.addr %s254, 32
      %s259 = sadd.s32 %s257, %s258
      %s260 = smul.addr %s259, 4
      %s261 = scalar_lea.vmem %s0, %s260
      %p262 = pneg %p51
      %p263 = pneg %p48
      %s264 = sadd.s32 %s21, 1
      %p265 = scmp.lt.s32.totalorder %s20, 1
      %s266 = scalar_select %p265, %s20, 1
      %p267 = scmp.lt.s32.totalorder %s264, 15
      %s268 = scalar_select %p267, %s264, 15
      %s269 = smul.addr %s268, 2
      %s270 = smul.addr %s266, 32
      %s271 = sadd.s32 %s269, %s270
      %s272 = smul.addr %s271, 4
      %s273 = scalar_lea.vmem %s1, %s272
      %p274 = pneg %p81
      %p275 = pneg %p78
      %s276 = sadd.s32 %s21, 2
      %p277 = scmp.lt.s32.totalorder %s20, 1
      %s278 = scalar_select %p277, %s20, 1
      %p279 = scmp.lt.s32.totalorder %s276, 15
      %s280 = scalar_select %p279, %s276, 15
      %s281 = smul.addr %s280, 2
      %s282 = smul.addr %s278, 32
      %s283 = sadd.s32 %s281, %s282
      %s284 = smul.addr %s283, 4
      %s285 = scalar_lea.vmem %s2, %s284
      %p286 = pneg %p111
      %p287 = pneg %p108
      %p288 = pneg %p132
      %p289 = pneg %p129
      %p290 = pneg %p153
      %p291 = pneg %p150
      %p292 = pneg %p181
      %p293 = pneg %p178
      %p294 = scmp.lt.s32.totalorder %s20, 1
      %s295 = scalar_select %p294, %s20, 1
      %p296 = scmp.lt.s32.totalorder %s21, 13
      %s297 = scalar_select %p296, %s21, 13
      %s298 = smul.addr %s297, 2
      %s299 = smul.addr %s295, 28
      %s300 = sadd.s32 %s298, %s299
      %s301 = smul.addr %s300, 4
      %s302 = scalar_lea.vmem %s5, %s301
      %p303 = scmp.lt.s32.totalorder %s20, 1
      %s304 = scalar_select %p303, %s20, 1
      %p305 = scmp.lt.s32.totalorder %s21, 15
      %s306 = scalar_select %p305, %s21, 15
      %s307 = smul.addr %s306, 2
      %s308 = smul.addr %s304, 32
      %s309 = sadd.s32 %s307, %s308
      %s310 = smul.addr %s309, 4
      %s311 = scalar_lea.vmem %s0, %s310
      %s312 = sadd.s32 %s21, 1
      %p313 = scmp.lt.s32.totalorder %s20, 1
      %s314 = scalar_select %p313, %s20, 1
      %p315 = scmp.lt.s32.totalorder %s312, 15
      %s316 = scalar_select %p315, %s312, 15
      %s317 = smul.addr %s316, 2
      %s318 = smul.addr %s314, 32
      %s319 = sadd.s32 %s317, %s318
      %s320 = smul.addr %s319, 4
      %s321 = scalar_lea.vmem %s1, %s320
      %s322 = sadd.s32 %s21, 1
      %s323 = sadd.s32 %s21, 2
      %p324 = scmp.lt.s32.totalorder %s20, 1
      %s325 = scalar_select %p324, %s20, 1
      %p326 = scmp.lt.s32.totalorder %s323, 15
      %s327 = scalar_select %p326, %s323, 15
      %s328 = smul.addr %s327, 2
      %s329 = smul.addr %s325, 32
      %s330 = sadd.s32 %s328, %s329
      %s331 = smul.addr %s330, 4
      %s332 = scalar_lea.vmem %s2, %s331
      %s333 = sadd.s32 %s21, 2
      %p334 = scmp.lt.s32.totalorder %s20, 1
      %s335 = scalar_select %p334, %s20, 1
      %p336 = scmp.lt.s32.totalorder %s21, 13
      %s337 = scalar_select %p336, %s21, 13
      %s338 = smul.addr %s337, 2
      %s339 = smul.addr %s335, 28
      %s340 = sadd.s32 %s338, %s339
      %s341 = smul.addr %s340, 4
      %s342 = scalar_lea.vmem %s5, %s341
      %v344 = vld [vmem:[%s311] sm:$0xf]
      %v345 = vld [vmem:[%s311 + $0x4] sm:$0x7]
      %v346 = vld [vmem:[%s311 + $0x4] sm:$0xf]
      %v347 = vld [vmem:[%s311] sm:$0xe]
      %v348 = vld [vmem:[%s321] sm:$0xf]
      %v349 = vld [vmem:[%s321 + $0x4] sm:$0x7]
      %v350 = vld [vmem:[%s321 + $0x4] sm:$0xf]
      %v351 = vld [vmem:[%s321] sm:$0xe]
      %v352 = vld [vmem:[%s332] sm:$0xf]
      %v353 = vld [vmem:[%s332 + $0x4] sm:$0x7]
      %v354 = vld [vmem:[%s332 + $0x4] sm:$0xf]
      %v355 = vld [vmem:[%s332] sm:$0xe]
      %v358 = vunpack.c.l.b16 %v344
      %v359 = vunpack.c.l.b16 %v345
      %v360 = vpack.c.b16 %v359, %v358
      %v363 = vunpack.c.l.b16 %v346
      %v364 = vpack.c.b16 %v363, %v358
      %v366 = vshrl.u32 %v364, 16
      %v368 = vshll.u32 %v364, 16
      %v370 = vrot.slane %v368, 1
      %v371 = vor.u32 %v366, %v370
      %v374 = vunpack.c.l.b16 %v347
      %v375 = vpack.c.b16 %v363, %v374
      %v376 = vrot.slane %v375, 1
      %v380 = vunpack.c.l.b16 %v348
      %v381 = vunpack.c.l.b16 %v349
      %v382 = vpack.c.b16 %v381, %v380
      %v385 = vunpack.c.l.b16 %v350
      %v386 = vpack.c.b16 %v385, %v380
      %v388 = vshrl.u32 %v386, 16
      %v390 = vshll.u32 %v386, 16
      %v392 = vrot.slane %v390, 1
      %v393 = vor.u32 %v388, %v392
      %v396 = vunpack.c.l.b16 %v351
      %v397 = vpack.c.b16 %v385, %v396
      %v398 = vrot.slane %v397, 1
      %v402 = vunpack.c.l.b16 %v352
      %v403 = vunpack.c.l.b16 %v353
      %v404 = vpack.c.b16 %v403, %v402
      %v407 = vunpack.c.l.b16 %v354
      %v408 = vpack.c.b16 %v407, %v402
      %v410 = vshrl.u32 %v408, 16
      %v412 = vshll.u32 %v408, 16
      %v414 = vrot.slane %v412, 1
      %v415 = vor.u32 %v410, %v414
      %v418 = vunpack.c.l.b16 %v355
      %v419 = vpack.c.b16 %v407, %v418
      %v420 = vrot.slane %v419, 1
      %v422 = vld [vmem:[%s3] sm:$0xf]
      %v423 = vld [vmem:[%s3 + $0x4] sm:$0xf]
      %v424 = vld [vmem:[%s3 + $0x8] sm:$0xf]
      %v425 = vld [vmem:[%s3 + $0xc] sm:$0xf]
      %v426 = vld [vmem:[%s3 + $0x10] sm:$0xf]
      %v427 = vld [vmem:[%s3 + $0x14] sm:$0xf]
      %v428 = vld [vmem:[%s3 + $0x18] sm:$0xf]
      %v429 = vld [vmem:[%s3 + $0x1c] sm:$0xf]
      %v430 = vld [vmem:[%s3 + $0x20] sm:$0xf]
      %v431 = vld [vmem:[%s3 + $0x24] sm:$0xf]
      %v432 = vld [vmem:[%s3 + $0x28] sm:$0xf]
      %v433 = vld [vmem:[%s3 + $0x2c] sm:$0xf]
      %v434 = vld [vmem:[%s3 + $0x30] sm:$0xf]
      %v435 = vld [vmem:[%s3 + $0x34] sm:$0xf]
      %v436 = vld [vmem:[%s3 + $0x38] sm:$0xf]
      %v437 = vld [vmem:[%s3 + $0x3c] sm:$0xf]
      %v438 = vld [vmem:[%s3 + $0x40] sm:$0xf]
      %v439 = vld [vmem:[%s3 + $0x44] sm:$0xf]
      %v440 = vld [vmem:[%s3 + $0x48] sm:$0xf]
      %v441 = vld [vmem:[%s3 + $0x4c] sm:$0xf]
      %v442 = vld [vmem:[%s3 + $0x50] sm:$0xf]
      %v443 = vld [vmem:[%s3 + $0x54] sm:$0xf]
      %v444 = vld [vmem:[%s3 + $0x58] sm:$0xf]
      %v445 = vld [vmem:[%s3 + $0x5c] sm:$0xf]
      %v446 = vld [vmem:[%s3 + $0x60] sm:$0xf]
      %v447 = vld [vmem:[%s3 + $0x64] sm:$0xf]
      %v448 = vld [vmem:[%s3 + $0x68] sm:$0xf]
      %v449 = vld [vmem:[%s3 + $0x6c] sm:$0xf]
      %v450 = vld [vmem:[%s3 + $0x70] sm:$0xf]
      %v451 = vld [vmem:[%s3 + $0x74] sm:$0xf]
      %v452 = vld [vmem:[%s3 + $0x78] sm:$0xf]
      %v453 = vld [vmem:[%s3 + $0x7c] sm:$0xf]
      %v454 = vld [vmem:[%s3 + $0x80] sm:$0xf]
      %v455 = vld [vmem:[%s3 + $0x84] sm:$0xf]
      %v456 = vld [vmem:[%s3 + $0x88] sm:$0xf]
      %v457 = vld [vmem:[%s3 + $0x8c] sm:$0xf]
      %v458 = vld [vmem:[%s3 + $0x90] sm:$0xf]
      %v459 = vld [vmem:[%s3 + $0x94] sm:$0xf]
      %v460 = vld [vmem:[%s3 + $0x98] sm:$0xf]
      %v461 = vld [vmem:[%s3 + $0x9c] sm:$0xf]
      %v462 = vld [vmem:[%s3 + $0xa0] sm:$0xf]
      %v463 = vld [vmem:[%s3 + $0xa4] sm:$0xf]
      %v464 = vld [vmem:[%s3 + $0xa8] sm:$0xf]
      %v465 = vld [vmem:[%s3 + $0xac] sm:$0xf]
      %v466 = vld [vmem:[%s3 + $0xb0] sm:$0xf]
      %v467 = vld [vmem:[%s3 + $0xb4] sm:$0xf]
      %v468 = vld [vmem:[%s3 + $0xb8] sm:$0xf]
      %v469 = vld [vmem:[%s3 + $0xbc] sm:$0xf]
      %v470 = vld [vmem:[%s3 + $0xc0] sm:$0xf]
      %v471 = vld [vmem:[%s3 + $0xc4] sm:$0xf]
      %v472 = vld [vmem:[%s3 + $0xc8] sm:$0xf]
      %v473 = vld [vmem:[%s3 + $0xcc] sm:$0xf]
      %v474 = vld [vmem:[%s3 + $0xd0] sm:$0xf]
      %v475 = vld [vmem:[%s3 + $0xd4] sm:$0xf]
      %v476 = vld [vmem:[%s3 + $0xd8] sm:$0xf]
      %v477 = vld [vmem:[%s3 + $0xdc] sm:$0xf]
      %v478 = vld [vmem:[%s3 + $0xe0] sm:$0xf]
      %v479 = vld [vmem:[%s3 + $0xe4] sm:$0xf]
      %v480 = vld [vmem:[%s3 + $0xe8] sm:$0xf]
      %v481 = vld [vmem:[%s3 + $0xec] sm:$0xf]
      %v482 = vld [vmem:[%s3 + $0xf0] sm:$0xf]
      %v483 = vld [vmem:[%s3 + $0xf4] sm:$0xf]
      %v484 = vld [vmem:[%s3 + $0xf8] sm:$0xf]
      %v485 = vld [vmem:[%s3 + $0xfc] sm:$0xf]
      %v486 = vld [vmem:[%s3 + $0x100] sm:$0xf]
      %v487 = vld [vmem:[%s3 + $0x104] sm:$0xf]
      %v488 = vld [vmem:[%s3 + $0x108] sm:$0xf]
      %v489 = vld [vmem:[%s3 + $0x10c] sm:$0xf]
      %v490 = vld [vmem:[%s3 + $0x110] sm:$0xf]
      %v491 = vld [vmem:[%s3 + $0x114] sm:$0xf]
      %v492 = vld [vmem:[%s3 + $0x118] sm:$0xf]
      %v493 = vld [vmem:[%s3 + $0x11c] sm:$0xf]
      %v494 = vld [vmem:[%s3 + $0x120] sm:$0xf]
      %v495 = vld [vmem:[%s3 + $0x124] sm:$0xf]
      %v496 = vld [vmem:[%s3 + $0x128] sm:$0xf]
      %v497 = vld [vmem:[%s3 + $0x12c] sm:$0xf]
      %v498 = vld [vmem:[%s3 + $0x130] sm:$0xf]
      %v499 = vld [vmem:[%s3 + $0x134] sm:$0xf]
      %v500 = vld [vmem:[%s3 + $0x138] sm:$0xf]
      %v501 = vld [vmem:[%s3 + $0x13c] sm:$0xf]
      %v502 = vld [vmem:[%s3 + $0x140] sm:$0xf]
      %v503 = vld [vmem:[%s3 + $0x144] sm:$0xf]
      %v504 = vld [vmem:[%s3 + $0x148] sm:$0xf]
      %v505 = vld [vmem:[%s3 + $0x14c] sm:$0xf]
      %v506 = vld [vmem:[%s3 + $0x150] sm:$0xf]
      %v507 = vld [vmem:[%s3 + $0x154] sm:$0xf]
      %v508 = vld [vmem:[%s3 + $0x158] sm:$0xf]
      %v509 = vld [vmem:[%s3 + $0x15c] sm:$0xf]
      %v510 = vld [vmem:[%s3 + $0x160] sm:$0xf]
      %v511 = vld [vmem:[%s3 + $0x164] sm:$0xf]
      %v512 = vld [vmem:[%s3 + $0x168] sm:$0xf]
      %v513 = vld [vmem:[%s3 + $0x16c] sm:$0xf]
      %v514 = vld [vmem:[%s3 + $0x170] sm:$0xf]
      %v515 = vld [vmem:[%s3 + $0x174] sm:$0xf]
      %v516 = vld [vmem:[%s3 + $0x178] sm:$0xf]
      %v517 = vld [vmem:[%s3 + $0x17c] sm:$0xf]
      %v518 = vld [vmem:[%s3 + $0x180] sm:$0xf]
      %v519 = vld [vmem:[%s3 + $0x184] sm:$0xf]
      %v520 = vld [vmem:[%s3 + $0x188] sm:$0xf]
      %v521 = vld [vmem:[%s3 + $0x18c] sm:$0xf]
      %v522 = vld [vmem:[%s3 + $0x190] sm:$0xf]
      %v523 = vld [vmem:[%s3 + $0x194] sm:$0xf]
      %v524 = vld [vmem:[%s3 + $0x198] sm:$0xf]
      %v525 = vld [vmem:[%s3 + $0x19c] sm:$0xf]
      %v526 = vld [vmem:[%s3 + $0x1a0] sm:$0xf]
      %v527 = vld [vmem:[%s3 + $0x1a4] sm:$0xf]
      %v528 = vld [vmem:[%s3 + $0x1a8] sm:$0xf]
      %v529 = vld [vmem:[%s3 + $0x1ac] sm:$0xf]
      %v530 = vld [vmem:[%s3 + $0x1b0] sm:$0xf]
      %v531 = vld [vmem:[%s3 + $0x1b4] sm:$0xf]
      %v532 = vld [vmem:[%s3 + $0x1b8] sm:$0xf]
      %v533 = vld [vmem:[%s3 + $0x1bc] sm:$0xf]
      %v534 = vld [vmem:[%s3 + $0x1c0] sm:$0xf]
      %v535 = vld [vmem:[%s3 + $0x1c4] sm:$0xf]
      %v536 = vld [vmem:[%s3 + $0x1c8] sm:$0xf]
      %v537 = vld [vmem:[%s3 + $0x1cc] sm:$0xf]
      %v538 = vld [vmem:[%s3 + $0x1d0] sm:$0xf]
      %v539 = vld [vmem:[%s3 + $0x1d4] sm:$0xf]
      %v540 = vld [vmem:[%s3 + $0x1d8] sm:$0xf]
      %v541 = vld [vmem:[%s3 + $0x1dc] sm:$0xf]
      %v542 = vld [vmem:[%s3 + $0x1e0] sm:$0xf]
      %v543 = vld [vmem:[%s3 + $0x1e4] sm:$0xf]
      %v544 = vld [vmem:[%s3 + $0x1e8] sm:$0xf]
      %v545 = vld [vmem:[%s3 + $0x1ec] sm:$0xf]
      %v546 = vld [vmem:[%s3 + $0x1f0] sm:$0xf]
      %v547 = vld [vmem:[%s3 + $0x1f4] sm:$0xf]
      %v548 = vld [vmem:[%s3 + $0x1f8] sm:$0xf]
      %v549 = vld [vmem:[%s3 + $0x1fc] sm:$0xf]
      %v550 = vld [vmem:[%s3 + $0x200] sm:$0xf]
      %v551 = vld [vmem:[%s3 + $0x204] sm:$0xf]
      %v552 = vld [vmem:[%s3 + $0x208] sm:$0xf]
      %v553 = vld [vmem:[%s3 + $0x20c] sm:$0xf]
      %v554 = vld [vmem:[%s3 + $0x210] sm:$0xf]
      %v555 = vld [vmem:[%s3 + $0x214] sm:$0xf]
      %v556 = vld [vmem:[%s3 + $0x218] sm:$0xf]
      %v557 = vld [vmem:[%s3 + $0x21c] sm:$0xf]
      %v558 = vld [vmem:[%s3 + $0x220] sm:$0xf]
      %v559 = vld [vmem:[%s3 + $0x224] sm:$0xf]
      %v560 = vld [vmem:[%s3 + $0x228] sm:$0xf]
      %v561 = vld [vmem:[%s3 + $0x22c] sm:$0xf]
      %v562 = vld [vmem:[%s3 + $0x230] sm:$0xf]
      %v563 = vld [vmem:[%s3 + $0x234] sm:$0xf]
      %v564 = vld [vmem:[%s3 + $0x238] sm:$0xf]
      %v565 = vld [vmem:[%s3 + $0x23c] sm:$0xf]
      %v566 = vld [vmem:[%s4] sm:$0x1]
      %v568 = vlaneseq
      %v569 = vshrl.u32 %v568, 7
      %v570 = vsub.s32 0, %v569
      %v571 = vrot.slane %v566, %v570
      %v717 = vunpack.c.l.b16 %v422
      %v718 = vunpack.c.l.b16 %v423
      %v719 = vunpack.c.l.b16 %v424
      %v720 = vunpack.c.l.b16 %v425
      %v721 = vunpack.c.l.b16 %v426
      %v722 = vunpack.c.l.b16 %v427
      %v723 = vunpack.c.l.b16 %v428
      %v724 = vunpack.c.l.b16 %v429
      %v725 = vunpack.c.l.b16 %v430
      %v726 = vunpack.c.l.b16 %v431
      %v727 = vunpack.c.l.b16 %v432
      %v728 = vunpack.c.l.b16 %v433
      %v729 = vunpack.c.l.b16 %v434
      %v730 = vunpack.c.l.b16 %v435
      %v731 = vunpack.c.l.b16 %v436
      %v732 = vunpack.c.l.b16 %v437
      %v733 = vunpack.c.l.b16 %v438
      %v734 = vunpack.c.l.b16 %v439
      %v735 = vunpack.c.l.b16 %v440
      %v736 = vunpack.c.l.b16 %v441
      %v737 = vunpack.c.l.b16 %v442
      %v738 = vunpack.c.l.b16 %v443
      %v739 = vunpack.c.l.b16 %v444
      %v740 = vunpack.c.l.b16 %v445
      %v741 = vunpack.c.l.b16 %v446
      %v742 = vunpack.c.l.b16 %v447
      %v743 = vunpack.c.l.b16 %v448
      %v744 = vunpack.c.l.b16 %v449
      %v745 = vunpack.c.l.b16 %v450
      %v746 = vunpack.c.l.b16 %v451
      %v747 = vunpack.c.l.b16 %v452
      %v748 = vunpack.c.l.b16 %v453
      %v749 = vunpack.c.l.b16 %v454
      %v750 = vunpack.c.l.b16 %v455
      %v751 = vunpack.c.l.b16 %v456
      %v752 = vunpack.c.l.b16 %v457
      %v753 = vunpack.c.l.b16 %v458
      %v754 = vunpack.c.l.b16 %v459
      %v755 = vunpack.c.l.b16 %v460
      %v756 = vunpack.c.l.b16 %v461
      %v757 = vunpack.c.l.b16 %v462
      %v758 = vunpack.c.l.b16 %v463
      %v759 = vunpack.c.l.b16 %v464
      %v760 = vunpack.c.l.b16 %v465
      %v761 = vunpack.c.l.b16 %v466
      %v762 = vunpack.c.l.b16 %v467
      %v763 = vunpack.c.l.b16 %v468
      %v764 = vunpack.c.l.b16 %v469
      %v765 = vunpack.c.l.b16 %v470
      %v766 = vunpack.c.l.b16 %v471
      %v767 = vunpack.c.l.b16 %v472
      %v768 = vunpack.c.l.b16 %v473
      %v769 = vunpack.c.l.b16 %v474
      %v770 = vunpack.c.l.b16 %v475
      %v771 = vunpack.c.l.b16 %v476
      %v772 = vunpack.c.l.b16 %v477
      %v773 = vunpack.c.l.b16 %v478
      %v774 = vunpack.c.l.b16 %v479
      %v775 = vunpack.c.l.b16 %v480
      %v776 = vunpack.c.l.b16 %v481
      %v777 = vunpack.c.l.b16 %v482
      %v778 = vunpack.c.l.b16 %v483
      %v779 = vunpack.c.l.b16 %v484
      %v780 = vunpack.c.l.b16 %v485
      %v781 = vunpack.c.l.b16 %v486
      %v782 = vunpack.c.l.b16 %v487
      %v783 = vunpack.c.l.b16 %v488
      %v784 = vunpack.c.l.b16 %v489
      %v785 = vunpack.c.l.b16 %v490
      %v786 = vunpack.c.l.b16 %v491
      %v787 = vunpack.c.l.b16 %v492
      %v788 = vunpack.c.l.b16 %v493
      %v789 = vunpack.c.l.b16 %v494
      %v790 = vunpack.c.l.b16 %v495
      %v791 = vunpack.c.l.b16 %v496
      %v792 = vunpack.c.l.b16 %v497
      %v793 = vunpack.c.l.b16 %v498
      %v794 = vunpack.c.l.b16 %v499
      %v795 = vunpack.c.l.b16 %v500
      %v796 = vunpack.c.l.b16 %v501
      %v797 = vunpack.c.l.b16 %v502
      %v798 = vunpack.c.l.b16 %v503
      %v799 = vunpack.c.l.b16 %v504
      %v800 = vunpack.c.l.b16 %v505
      %v801 = vunpack.c.l.b16 %v506
      %v802 = vunpack.c.l.b16 %v507
      %v803 = vunpack.c.l.b16 %v508
      %v804 = vunpack.c.l.b16 %v509
      %v805 = vunpack.c.l.b16 %v510
      %v806 = vunpack.c.l.b16 %v511
      %v807 = vunpack.c.l.b16 %v512
      %v808 = vunpack.c.l.b16 %v513
      %v809 = vunpack.c.l.b16 %v514
      %v810 = vunpack.c.l.b16 %v515
      %v811 = vunpack.c.l.b16 %v516
      %v812 = vunpack.c.l.b16 %v517
      %v813 = vunpack.c.l.b16 %v518
      %v814 = vunpack.c.l.b16 %v519
      %v815 = vunpack.c.l.b16 %v520
      %v816 = vunpack.c.l.b16 %v521
      %v817 = vunpack.c.l.b16 %v522
      %v818 = vunpack.c.l.b16 %v523
      %v819 = vunpack.c.l.b16 %v524
      %v820 = vunpack.c.l.b16 %v525
      %v821 = vunpack.c.l.b16 %v526
      %v822 = vunpack.c.l.b16 %v527
      %v823 = vunpack.c.l.b16 %v528
      %v824 = vunpack.c.l.b16 %v529
      %v825 = vunpack.c.l.b16 %v530
      %v826 = vunpack.c.l.b16 %v531
      %v827 = vunpack.c.l.b16 %v532
      %v828 = vunpack.c.l.b16 %v533
      %v829 = vunpack.c.l.b16 %v534
      %v830 = vunpack.c.l.b16 %v535
      %v831 = vunpack.c.l.b16 %v536
      %v832 = vunpack.c.l.b16 %v537
      %v833 = vunpack.c.l.b16 %v538
      %v834 = vunpack.c.l.b16 %v539
      %v835 = vunpack.c.l.b16 %v540
      %v836 = vunpack.c.l.b16 %v541
      %v837 = vunpack.c.l.b16 %v542
      %v838 = vunpack.c.l.b16 %v543
      %v839 = vunpack.c.l.b16 %v544
      %v840 = vunpack.c.l.b16 %v545
      %v841 = vunpack.c.l.b16 %v546
      %v842 = vunpack.c.l.b16 %v547
      %v843 = vunpack.c.l.b16 %v548
      %v844 = vunpack.c.l.b16 %v549
      %v845 = vunpack.c.l.b16 %v550
      %v846 = vunpack.c.l.b16 %v551
      %v847 = vunpack.c.l.b16 %v552
      %v848 = vunpack.c.l.b16 %v553
      %v849 = vunpack.c.l.b16 %v554
      %v850 = vunpack.c.l.b16 %v555
      %v851 = vunpack.c.l.b16 %v556
      %v852 = vunpack.c.l.b16 %v557
      %v853 = vunpack.c.l.b16 %v558
      %v854 = vunpack.c.l.b16 %v559
      %v855 = vunpack.c.l.b16 %v560
      %v856 = vunpack.c.l.b16 %v561
      %v857 = vunpack.c.l.b16 %v562
      %v858 = vunpack.c.l.b16 %v563
      %v859 = vunpack.c.l.b16 %v564
      %v860 = vunpack.c.l.b16 %v565
      %v861 = vpack.c.b16 %v718, %v717
      %v862 = vpack.c.b16 %v720, %v719
      %v863 = vpack.c.b16 %v722, %v721
      %v864 = vpack.c.b16 %v724, %v723
      %v865 = vpack.c.b16 %v726, %v725
      %v866 = vpack.c.b16 %v728, %v727
      %v867 = vpack.c.b16 %v730, %v729
      %v868 = vpack.c.b16 %v732, %v731
      %v869 = vpack.c.b16 %v734, %v733
      %v870 = vpack.c.b16 %v736, %v735
      %v871 = vpack.c.b16 %v738, %v737
      %v872 = vpack.c.b16 %v740, %v739
      %v873 = vpack.c.b16 %v742, %v741
      %v874 = vpack.c.b16 %v744, %v743
      %v875 = vpack.c.b16 %v746, %v745
      %v876 = vpack.c.b16 %v748, %v747
      %v877 = vpack.c.b16 %v750, %v749
      %v878 = vpack.c.b16 %v752, %v751
      %v879 = vpack.c.b16 %v754, %v753
      %v880 = vpack.c.b16 %v756, %v755
      %v881 = vpack.c.b16 %v758, %v757
      %v882 = vpack.c.b16 %v760, %v759
      %v883 = vpack.c.b16 %v762, %v761
      %v884 = vpack.c.b16 %v764, %v763
      %v885 = vpack.c.b16 %v766, %v765
      %v886 = vpack.c.b16 %v768, %v767
      %v887 = vpack.c.b16 %v770, %v769
      %v888 = vpack.c.b16 %v772, %v771
      %v889 = vpack.c.b16 %v774, %v773
      %v890 = vpack.c.b16 %v776, %v775
      %v891 = vpack.c.b16 %v778, %v777
      %v892 = vpack.c.b16 %v780, %v779
      %v893 = vpack.c.b16 %v782, %v781
      %v894 = vpack.c.b16 %v784, %v783
      %v895 = vpack.c.b16 %v786, %v785
      %v896 = vpack.c.b16 %v788, %v787
      %v897 = vpack.c.b16 %v790, %v789
      %v898 = vpack.c.b16 %v792, %v791
      %v899 = vpack.c.b16 %v794, %v793
      %v900 = vpack.c.b16 %v796, %v795
      %v901 = vpack.c.b16 %v798, %v797
      %v902 = vpack.c.b16 %v800, %v799
      %v903 = vpack.c.b16 %v802, %v801
      %v904 = vpack.c.b16 %v804, %v803
      %v905 = vpack.c.b16 %v806, %v805
      %v906 = vpack.c.b16 %v808, %v807
      %v907 = vpack.c.b16 %v810, %v809
      %v908 = vpack.c.b16 %v812, %v811
      %v909 = vpack.c.b16 %v814, %v813
      %v910 = vpack.c.b16 %v816, %v815
      %v911 = vpack.c.b16 %v818, %v817
      %v912 = vpack.c.b16 %v820, %v819
      %v913 = vpack.c.b16 %v822, %v821
      %v914 = vpack.c.b16 %v824, %v823
      %v915 = vpack.c.b16 %v826, %v825
      %v916 = vpack.c.b16 %v828, %v827
      %v917 = vpack.c.b16 %v830, %v829
      %v918 = vpack.c.b16 %v832, %v831
      %v919 = vpack.c.b16 %v834, %v833
      %v920 = vpack.c.b16 %v836, %v835
      %v921 = vpack.c.b16 %v838, %v837
      %v922 = vpack.c.b16 %v840, %v839
      %v923 = vpack.c.b16 %v842, %v841
      %v924 = vpack.c.b16 %v844, %v843
      %v925 = vpack.c.b16 %v846, %v845
      %v926 = vpack.c.b16 %v848, %v847
      %v927 = vpack.c.b16 %v850, %v849
      %v928 = vpack.c.b16 %v852, %v851
      %v929 = vpack.c.b16 %v854, %v853
      %v930 = vpack.c.b16 %v856, %v855
      %v931 = vpack.c.b16 %v858, %v857
      %v932 = vpack.c.b16 %v860, %v859
      %1005 = vmatprep.subr.bf16.mxu0 0
      %1006 = vmatpush1.bf16.msra.mxu0 %v861
      %1007 = vmatprep.subr.bf16.mxu0 0
      %1008 = vmatpush1.bf16.msra.mxu0 %v862
      %1009 = vmatprep.subr.bf16.mxu0 0
      %1010 = vmatpush1.bf16.msra.mxu0 %v863
      %1011 = vmatprep.subr.bf16.mxu0 0
      %1012 = vmatpush1.bf16.msra.mxu0 %v864
      %1013 = vmatprep.subr.bf16.mxu0 0
      %1014 = vmatpush1.bf16.msra.mxu0 %v865
      %1015 = vmatprep.subr.bf16.mxu0 0
      %1016 = vmatpush1.bf16.msra.mxu0 %v866
      %1017 = vmatprep.subr.bf16.mxu0 0
      %1018 = vmatpush1.bf16.msra.mxu0 %v867
      %1019 = vmatprep.subr.bf16.mxu0 0
      %1020 = vmatpush1.bf16.msra.mxu0 %v868
      %1021 = vmatprep.subr.bf16.mxu0 0
      %1022 = vmatpush1.bf16.msra.mxu0 %v869
      %1023 = vmatprep.subr.bf16.mxu0 0
      %1024 = vmatpush1.bf16.msra.mxu0 %v870
      %1025 = vmatprep.subr.bf16.mxu0 0
      %1026 = vmatpush1.bf16.msra.mxu0 %v871
      %1027 = vmatprep.subr.bf16.mxu0 0
      %1028 = vmatpush1.bf16.msra.mxu0 %v872
      %1029 = vmatprep.subr.bf16.mxu0 0
      %1030 = vmatpush1.bf16.msra.mxu0 %v873
      %1031 = vmatprep.subr.bf16.mxu0 0
      %1032 = vmatpush1.bf16.msra.mxu0 %v874
      %1033 = vmatprep.subr.bf16.mxu0 0
      %1034 = vmatpush1.bf16.msra.mxu0 %v875
      %1035 = vmatprep.subr.bf16.mxu0 0
      %1036 = vmatpush1.bf16.msra.mxu0 %v876
      %1037 = vmatprep.mubr.bf16.mxu0 %v371
      %1038 = vmatmul.mubr.bf16.gmra.mrb[0].mxu0 %v360
      %v1039 = vpop.f32.mrb[0].mxu0
      %v1040 = vadd.f32 %v571, %v1039
      %v1041 = vpop.f32.mrb[0].mxu0
      %v1042 = vpop.f32.mrb[0].mxu0
      %v1043 = vadd.f32 %v571, %v1042
      %v1044 = vpop.f32.mrb[0].mxu0
      %1045 = vdwg.mxu0
      %1046 = vmatprep.subr.bf16.mxu0 0
      %1047 = vmatpush1.bf16.msra.mxu0 %v877
      %1048 = vmatprep.subr.bf16.mxu0 0
      %1049 = vmatpush1.bf16.msra.mxu0 %v878
      %1050 = vmatprep.subr.bf16.mxu0 0
      %1051 = vmatpush1.bf16.msra.mxu0 %v879
      %1052 = vmatprep.subr.bf16.mxu0 0
      %1053 = vmatpush1.bf16.msra.mxu0 %v880
      %1054 = vmatprep.subr.bf16.mxu0 0
      %1055 = vmatpush1.bf16.msra.mxu0 %v881
      %1056 = vmatprep.subr.bf16.mxu0 0
      %1057 = vmatpush1.bf16.msra.mxu0 %v882
      %1058 = vmatprep.subr.bf16.mxu0 0
      %1059 = vmatpush1.bf16.msra.mxu0 %v883
      %1060 = vmatprep.subr.bf16.mxu0 0
      %1061 = vmatpush1.bf16.msra.mxu0 %v884
      %1062 = vmatprep.subr.bf16.mxu0 0
      %1063 = vmatpush1.bf16.msra.mxu0 %v885
      %1064 = vmatprep.subr.bf16.mxu0 0
      %1065 = vmatpush1.bf16.msra.mxu0 %v886
      %1066 = vmatprep.subr.bf16.mxu0 0
      %1067 = vmatpush1.bf16.msra.mxu0 %v887
      %1068 = vmatprep.subr.bf16.mxu0 0
      %1069 = vmatpush1.bf16.msra.mxu0 %v888
      %1070 = vmatprep.subr.bf16.mxu0 0
      %1071 = vmatpush1.bf16.msra.mxu0 %v889
      %1072 = vmatprep.subr.bf16.mxu0 0
      %1073 = vmatpush1.bf16.msra.mxu0 %v890
      %1074 = vmatprep.subr.bf16.mxu0 0
      %1075 = vmatpush1.bf16.msra.mxu0 %v891
      %1076 = vmatprep.subr.bf16.mxu0 0
      %1077 = vmatpush1.bf16.msra.mxu0 %v892
      %1078 = vmatprep.mubr.bf16.mxu0 %v382
      %1079 = vmatmul.mubr.bf16.gmra.mrb[0].mxu0 %v376
      %v1080 = vpop.f32.mrb[0].mxu0
      %v1081 = vadd.f32 %v1040, %v1080
      %v1082 = vpop.f32.mrb[0].mxu0
      %v1083 = vpop.f32.mrb[0].mxu0
      %v1084 = vadd.f32 %v1043, %v1083
      %v1085 = vpop.f32.mrb[0].mxu0
      %1086 = vdwg.mxu0
      %1087 = vmatprep.subr.bf16.mxu0 0
      %1088 = vmatpush1.bf16.msra.mxu0 %v893
      %1089 = vmatprep.subr.bf16.mxu0 0
      %1090 = vmatpush1.bf16.msra.mxu0 %v894
      %1091 = vmatprep.subr.bf16.mxu0 0
      %1092 = vmatpush1.bf16.msra.mxu0 %v895
      %1093 = vmatprep.subr.bf16.mxu0 0
      %1094 = vmatpush1.bf16.msra.mxu0 %v896
      %1095 = vmatprep.subr.bf16.mxu0 0
      %1096 = vmatpush1.bf16.msra.mxu0 %v897
      %1097 = vmatprep.subr.bf16.mxu0 0
      %1098 = vmatpush1.bf16.msra.mxu0 %v898
      %1099 = vmatprep.subr.bf16.mxu0 0
      %1100 = vmatpush1.bf16.msra.mxu0 %v899
      %1101 = vmatprep.subr.bf16.mxu0 0
      %1102 = vmatpush1.bf16.msra.mxu0 %v900
      %1103 = vmatprep.subr.bf16.mxu0 0
      %1104 = vmatpush1.bf16.msra.mxu0 %v901
      %1105 = vmatprep.subr.bf16.mxu0 0
      %1106 = vmatpush1.bf16.msra.mxu0 %v902
      %1107 = vmatprep.subr.bf16.mxu0 0
      %1108 = vmatpush1.bf16.msra.mxu0 %v903
      %1109 = vmatprep.subr.bf16.mxu0 0
      %1110 = vmatpush1.bf16.msra.mxu0 %v904
      %1111 = vmatprep.subr.bf16.mxu0 0
      %1112 = vmatpush1.bf16.msra.mxu0 %v905
      %1113 = vmatprep.subr.bf16.mxu0 0
      %1114 = vmatpush1.bf16.msra.mxu0 %v906
      %1115 = vmatprep.subr.bf16.mxu0 0
      %1116 = vmatpush1.bf16.msra.mxu0 %v907
      %1117 = vmatprep.subr.bf16.mxu0 0
      %1118 = vmatpush1.bf16.msra.mxu0 %v908
      %1119 = vmatprep.mubr.bf16.mxu0 %v398
      %1120 = vmatmul.mubr.bf16.gmra.mrb[0].mxu0 %v393
      %v1121 = vpop.f32.mrb[0].mxu0
      %v1122 = vadd.f32 %v1081, %v1121
      %v1123 = vpop.f32.mrb[0].mxu0
      %v1124 = vpop.f32.mrb[0].mxu0
      %v1125 = vadd.f32 %v1084, %v1124
      %v1126 = vpop.f32.mrb[0].mxu0
      %1127 = vdwg.mxu0
      %1128 = vmatprep.subr.bf16.mxu0 0
      %1129 = vmatpush1.bf16.msra.mxu0 %v909
      %1130 = vmatprep.subr.bf16.mxu0 0
      %1131 = vmatpush1.bf16.msra.mxu0 %v910
      %1132 = vmatprep.subr.bf16.mxu0 0
      %1133 = vmatpush1.bf16.msra.mxu0 %v911
      %1134 = vmatprep.subr.bf16.mxu0 0
      %1135 = vmatpush1.bf16.msra.mxu0 %v912
      %1136 = vmatprep.subr.bf16.mxu0 0
      %1137 = vmatpush1.bf16.msra.mxu0 %v913
      %1138 = vmatprep.subr.bf16.mxu0 0
      %1139 = vmatpush1.bf16.msra.mxu0 %v914
      %1140 = vmatprep.subr.bf16.mxu0 0
      %1141 = vmatpush1.bf16.msra.mxu0 %v915
      %1142 = vmatprep.subr.bf16.mxu0 0
      %1143 = vmatpush1.bf16.msra.mxu0 %v916
      %1144 = vmatprep.subr.bf16.mxu0 0
      %1145 = vmatpush1.bf16.msra.mxu0 %v917
      %1146 = vmatprep.subr.bf16.mxu0 0
      %1147 = vmatpush1.bf16.msra.mxu0 %v918
      %1148 = vmatprep.subr.bf16.mxu0 0
      %1149 = vmatpush1.bf16.msra.mxu0 %v919
      %1150 = vmatprep.subr.bf16.mxu0 0
      %1151 = vmatpush1.bf16.msra.mxu0 %v920
      %1152 = vmatprep.subr.bf16.mxu0 0
      %1153 = vmatpush1.bf16.msra.mxu0 %v921
      %1154 = vmatprep.subr.bf16.mxu0 0
      %1155 = vmatpush1.bf16.msra.mxu0 %v922
      %1156 = vmatprep.subr.bf16.mxu0 0
      %1157 = vmatpush1.bf16.msra.mxu0 %v923
      %1158 = vmatprep.subr.bf16.mxu0 0
      %1159 = vmatpush1.bf16.msra.mxu0 %v924
      %1160 = vmatprep.mubr.bf16.mxu0 %v415
      %1161 = vmatmul.mubr.bf16.gmra.mrb[0].mxu0 %v404
      %v1162 = vpop.f32.mrb[0].mxu0
      %v1163 = vadd.f32 %v1122, %v1162
      %v1164 = vpop.f32.mrb[0].mxu0
      %v1165 = vpop.f32.mrb[0].mxu0
      %v1166 = vadd.f32 %v1125, %v1165
      %v1167 = vpop.f32.mrb[0].mxu0
      %1168 = vdwg.mxu0
      %1169 = vmatprep.subr.bf16.mxu0 0
      %1170 = vmatpush1.bf16.msra.mxu0 %v925
      %1171 = vmatprep.subr.bf16.mxu0 0
      %1172 = vmatpush1.bf16.msra.mxu0 %v926
      %1173 = vmatprep.subr.bf16.mxu0 0
      %1174 = vmatpush1.bf16.msra.mxu0 %v927
      %1175 = vmatprep.subr.bf16.mxu0 0
      %1176 = vmatpush1.bf16.msra.mxu0 %v928
      %1177 = vmatprep.subr.bf16.mxu0 0
      %1178 = vmatpush1.bf16.msra.mxu0 %v929
      %1179 = vmatprep.subr.bf16.mxu0 0
      %1180 = vmatpush1.bf16.msra.mxu0 %v930
      %1181 = vmatprep.subr.bf16.mxu0 0
      %1182 = vmatpush1.bf16.msra.mxu0 %v931
      %1183 = vmatprep.subr.bf16.mxu0 0
      %1184 = vmatpush1.bf16.msra.mxu0 %v932
      %1185 = vmatprep.subr.bf16.mxu0 0
      %1186 = vmatpush1.bf16.msra.mxu0 0
      %1187 = vmatprep.subr.bf16.mxu0 0
      %1188 = vmatpush1.bf16.msra.mxu0 0
      %1189 = vmatprep.subr.bf16.mxu0 0
      %1190 = vmatpush1.bf16.msra.mxu0 0
      %1191 = vmatprep.subr.bf16.mxu0 0
      %1192 = vmatpush1.bf16.msra.mxu0 0
      %1193 = vmatprep.subr.bf16.mxu0 0
      %1194 = vmatpush1.bf16.msra.mxu0 0
      %1195 = vmatprep.subr.bf16.mxu0 0
      %1196 = vmatpush1.bf16.msra.mxu0 0
      %1197 = vmatprep.subr.bf16.mxu0 0
      %1198 = vmatpush1.bf16.msra.mxu0 0
      %1199 = vmatprep.subr.bf16.mxu0 0
      %1200 = vmatpush1.bf16.msra.mxu0 0
      %1201 = vmatprep.mubr.bf16.mxu0 0
      %1202 = vmatmul.mubr.bf16.gmra.mrb[0].mxu0 %v420
      %v1203 = vpop.f32.mrb[0].mxu0
      %v1204 = vadd.f32 %v1163, %v1203
      %v1205 = vpop.f32.mrb[0].mxu0
      %v1206 = vpop.f32.mrb[0].mxu0
      %v1207 = vadd.f32 %v1166, %v1206
      %v1208 = vpop.f32.mrb[0].mxu0
      %1209 = vdwg.mxu0
      %v1210 = vmax.f32 %v1204, 0.0
      %v1211 = vmax.f32 %v1207, 0.0
      %v1212 = vpack.c.bf16 %v1211, %v1210
      %v1214 = vunpack.c.l.b16 %v1212
      %v1215 = vunpack.c.h.b16 %v1212
      %v1216 = vpack.c.b16 %v1214, %v1214
      %v1217 = vpack.c.b16 %v1215, %v1215
      %1220 = vst [vmem:[%s342] sm:$0xf] %v1216
      %1221 = vst [vmem:[%s342 + $0x4] sm:$0x7] %v1217
      %p1222 = scmp.lt.s32.totalorder %s20, 1
      %s1223 = scalar_select %p1222, %s20, 1
      %p1224 = scmp.lt.s32.totalorder %s21, 13
      %s1225 = scalar_select %p1224, %s21, 13
      %s1226 = smul.addr %s1225, 2
      %s1227 = smul.addr %s1223, 28
      %s1228 = sadd.s32 %s1226, %s1227
      %s1229 = smul.addr %s1228, 4
      %s1230 = scalar_lea.vmem %s5, %s1229
      // Predicated region
      $region41: #{my_model_forward.12} parent=39 // pred_check
        %p1231 = pneg %p178
      $region42: #{my_model_forward.12} parent=39 // pred_check_branch
        %1233 = sbr.rel (%p1231) target = $region44
      $region43: #{my_model_forward.12} parent=39 // pred_region
        _
      $region44: #{my_model_forward.12} parent=39 // pred_fallthru
        _
    $region40: #{my_model_forward.12} parent=5 // pred_fallthru
      _
    %p1234 = scmp.le.s32.totalorder 2, %s11
    // Predicated region
    $region45: #{my_model_forward.12} parent=5 // pred_check
      %p1235 = pneg %p1234
    $region46: #{my_model_forward.12} parent=5 // pred_check_branch
      %1237 = sbr.rel (%p1235) target = $region48
    $region47: #{my_model_forward.12} parent=5 // pred_region
      %s1238 = ssub.s32 %s11, 2
      // Predicated region
      $region49: #{my_model_forward.12} parent=47 // pred_check
        %p1239 = pneg %p184
      $region50: #{my_model_forward.12} parent=47 // pred_check_branch
        %1241 = sbr.rel (%p1239) target = $region52
      $region51: #{my_model_forward.12} parent=47 // pred_region
        %p1242 = scmp.lt.s32.totalorder %s22, 1
        %s1243 = scalar_select %p1242, %s22, 1
        %p1244 = scmp.lt.s32.totalorder %s23, 13
        %s1245 = scalar_select %p1244, %s23, 13
        %s1246 = smul.addr %s1245, 2
        %s1247 = smul.addr %s1243, 28
        %s1248 = sadd.s32 %s1246, %s1247
        %s1249 = smul.addr %s1248, 4
        %s1250 = scalar_lea.vmem %s5, %s1249
      $region52: #{my_model_forward.12} parent=47 // pred_fallthru
        _
    $region48: #{my_model_forward.12} parent=5 // pred_fallthru
      _
  $region6: #{my_model_forward.12} parent=0 // loop_footer
    %s15 = sadd.s32 1, %s11
  $region7: #{my_model_forward.12} parent=0 // loop_footer_branch
    %10 = sbr.rel target = $region3
  $region8: #{my_model_forward.12} parent=0 // loop_exit
    _

// kernel: my_model_forward.16
$region0: #{my_model_forward.16}
  #allocation0 [shape = 'u32[]', space=smem, size = 0x4, offset = 0x4, fixed_abs, tag = 'smem constant byte address 0x4 - core index']
  #allocation1 [shape = 'u32[144,128]{1,0:T(1,128)}', space=vmem, size = 0x12000, scoped, tag = 'internal scratch']
  %s0 = inlined_call_operand.vmem [shape: bf16[6,2,3,512], index: 0, kind: input, shape index: {}]
  %s1 = inlined_call_operand.vmem [shape: bf16[6,3,256], index: 1, kind: output, shape index: {}]
  %s2 = sld [smem:[#allocation0]]
  $region14: #{my_model_forward.16} parent=0
    _
  %s4 = ssub.s32 1, %s2
  %s5 = scalar_select 0, %s4, %s2
  // Predicated region
  $region2: #{my_model_forward.16} parent=0 // pred_check
    _
  $region3: #{my_model_forward.16} parent=0 // pred_check_branch
    %7 = sbr.rel (0) target = $region5
  $region4: #{my_model_forward.16} parent=0 // pred_region
    _
  $region5: #{my_model_forward.16} parent=0 // pred_fallthru
    _
  %v8 = vld [vmem:[%s0] sm:$0xff]
  %v9 = vld [vmem:[%s0 + $0x8] sm:$0xff]
  %v10 = vld [vmem:[%s0 + $0x10] sm:$0xff]
  %v11 = vld [vmem:[%s0 + $0x18] sm:$0xff]
  %v12 = vld [vmem:[%s0 + $0x20] sm:$0xff]
  %v13 = vld [vmem:[%s0 + $0x28] sm:$0xff]
  %v14 = vld [vmem:[%s0 + $0x30] sm:$0xff]
  %v15 = vld [vmem:[%s0 + $0x38] sm:$0xff]
  %v16 = vld [vmem:[%s0 + $0x40] sm:$0xff]
  %v17 = vld [vmem:[%s0 + $0x48] sm:$0xff]
  %v18 = vld [vmem:[%s0 + $0x50] sm:$0xff]
  %v19 = vld [vmem:[%s0 + $0x58] sm:$0xff]
  %v20 = vmax.bf16 %v8, %v9
  %v21 = vmax.bf16 %v10, %v11
  %v22 = vmax.bf16 %v12, %v13
  %v23 = vmax.bf16 %v14, %v15
  %v24 = vmax.bf16 %v16, %v17
  %v25 = vmax.bf16 %v18, %v19
  %v32 = vrot.slane %v20, 4
  %v33 = vrot.slane %v21, 4
  %v34 = vrot.slane %v22, 4
  %v35 = vrot.slane %v23, 4
  %v36 = vrot.slane %v24, 4
  %v37 = vrot.slane %v25, 4
  %v44 = vmax.bf16 %v20, %v32
  %v45 = vmax.bf16 %v21, %v33
  %v46 = vmax.bf16 %v22, %v34
  %v47 = vmax.bf16 %v23, %v35
  %v48 = vmax.bf16 %v24, %v36
  %v49 = vmax.bf16 %v25, %v37
  %vm50 = vcmask 1041408
  %vm51 = vsmask.f32 1280
  %vm52 = vmand %vm50, %vm51
  %vm53 = vcmask 1043458
  %vm54 = vsmask.f32 3328
  %vm55 = vmand %vm53, %vm54
  %vm56 = vmor %vm55, %vm52
  %v57 = vld [vmem:[%s1] sm:$0xf]
  %v58 = vsel %vm56, %v44, %v57
  %59 = vst [vmem:[%s1] sm:$0xf] %v58
  %v60 = vld [vmem:[%s1 + $0x4] sm:$0xf]
  %v61 = vsel %vm56, %v45, %v60
  %62 = vst [vmem:[%s1 + $0x4] sm:$0xf] %v61
  %v63 = vld [vmem:[%s1 + $0x8] sm:$0xf]
  %v64 = vsel %vm56, %v46, %v63
  %65 = vst [vmem:[%s1 + $0x8] sm:$0xf] %v64
  %v66 = vld [vmem:[%s1 + $0xc] sm:$0xf]
  %v67 = vsel %vm56, %v47, %v66
  %68 = vst [vmem:[%s1 + $0xc] sm:$0xf] %v67
  %v69 = vld [vmem:[%s1 + $0x10] sm:$0xf]
  %v70 = vsel %vm56, %v48, %v69
  %71 = vst [vmem:[%s1 + $0x10] sm:$0xf] %v70
  %v72 = vld [vmem:[%s1 + $0x14] sm:$0xf]
  %v73 = vsel %vm56, %v49, %v72
  %74 = vst [vmem:[%s1 + $0x14] sm:$0xf] %v73
  // Predicated region
  $region6: #{my_model_forward.16} parent=0 // pred_check
    _
  $region7: #{my_model_forward.16} parent=0 // pred_check_branch
    %76 = sbr.rel (0) target = $region9
  $region8: #{my_model_forward.16} parent=0 // pred_region
    _
  $region9: #{my_model_forward.16} parent=0 // pred_fallthru
    _
  // Predicated region
  $region10: #{my_model_forward.16} parent=0 // pred_check
    _
  $region11: #{my_model_forward.16} parent=0 // pred_check_branch
    %78 = sbr.rel (0) target = $region13
  $region12: #{my_model_forward.16} parent=0 // pred_region
    _
  $region13: #{my_model_forward.16} parent=0 // pred_fallthru
    _

// kernel: my_model_forward.15
$region0: #{my_model_forward.15}
  #allocation0 [shape = 'u32[]', space=smem, size = 0x4, offset = 0x4, fixed_abs, tag = 'smem constant byte address 0x4 - core index']
  #allocation1 [shape = 'u32[144,128]{1,0:T(1,128)}', space=vmem, size = 0x12000, scoped, tag = 'internal scratch']
  %s0 = inlined_call_operand.vmem [shape: bf16[2,9,9,128], index: 0, kind: input, shape index: {}, may-alias: {0,1,2}]
  %s1 = inlined_call_operand.vmem [shape: bf16[2,9,9,128], index: 1, kind: input, shape index: {}, may-alias: {0,1,2}]
  %s2 = inlined_call_operand.vmem [shape: bf16[2,9,9,128], index: 2, kind: input, shape index: {}, may-alias: {0,1,2}]
  %s3 = inlined_call_operand.vmem [shape: bf16[1152,256], index: 3, kind: input, shape index: {}]
  %s4 = inlined_call_operand.vmem [shape: f32[1,256], index: 4, kind: input, shape index: {}]
  %s5 = inlined_call_operand.vmem [shape: bf16[2,7,7,256], index: 5, kind: output, shape index: {}]
  %s6 = sld [smem:[#allocation0]]
  $region53: #{my_model_forward.15} parent=0
    _
  %s8 = ssub.s32 1, %s6
  %s9 = scalar_select 0, %s8, %s6
  loop: start=0, step=1, limit=16
  $region2: #{my_model_forward.15} parent=0 // loop_pre_header
    _
  $region3: #{my_model_forward.15} parent=0 // loop_header
    %s11 = sphi 0, %s15
    %p12 = scmp.ge.s32.totalorder %s11, 16
    %s18 = sphi 0, %s30
    %s19 = sphi 0, %s26
    %s20 = sphi 0, %s18
    %s21 = sphi 0, %s19
    %s22 = sphi 0, %s20
    %s23 = sphi 0, %s21
    %s35 = sphi 0, %s37
    %s38 = sphi 0, %s35
    %s39 = sphi 0, %s38
    %s55 = sphi 0, %s39
    %s65 = sphi 0, %s67
    %s68 = sphi 0, %s65
    %s69 = sphi 0, %s68
    %s85 = sphi 0, %s69
    %s95 = sphi 0, %s97
    %s98 = sphi 0, %s95
    %s99 = sphi 0, %s98
    %s115 = sphi 0, %s99
    %s119 = sphi 0, %s119
    %s121 = sphi 0, %s119
    %s122 = sphi 0, %s121
    %s136 = sphi 0, %s122
    %s140 = sphi 0, %s140
    %s142 = sphi 0, %s140
    %s143 = sphi 0, %s142
    %s157 = sphi 0, %s143
    %s165 = sphi 0, %s167
    %s168 = sphi 0, %s165
    %s169 = sphi 0, %s168
    %s185 = sphi 0, %s169
  $region4: #{my_model_forward.15} parent=0 // loop_header_branch
    %14 = sbr.rel (%p12) target = $region8
  $region5: #{my_model_forward.15} parent=0 // loop_body
    %s16 = ssub.s32 %s11, 1
    %s17 = ssub.s32 %s11, 2
    %s24 = sadd.s32 1, %s19
    %p25 = scmp.ge.s32.totalorder %s24, 7
    %s26 = scalar_select %p25, 0, %s24
    %s27 = sadd.s32 1, %s18
    %s28 = scalar_select %p25, %s27, %s18
    %p29 = scmp.ge.s32.totalorder %s28, 2
    %s30 = scalar_select %p29, 0, %s28
    %s31 = ssub.s32 %s18, %s30
    %s32 = ssub.s32 %s19, %s26
    %s33 = sor.u32 %s31, %s32
    %p34 = scmp.eq.s32.totalorder %s33, 0
    %s36 = sadd.s32 %s35, 1
    %s37 = scalar_select %p34, %s35, %s36
    %p40 = pneg %p34
    %p41 = scmp.eq.s32.totalorder %s11, 13
    %p42 = por %p40, %p41
    %p43 = scmp.ne.s32.totalorder %s35, %s38
    %p44 = scmp.eq.s32.totalorder %s11, 0
    %p45 = por %p43, %p44
    %p46 = scmp.ne.s32.totalorder %s35, %s38
    %p47 = scmp.eq.s32.totalorder %s16, 13
    %p48 = por %p46, %p47
    %p49 = scmp.ne.s32.totalorder %s38, %s39
    %p50 = scmp.eq.s32.totalorder %s16, 0
    %p51 = por %p49, %p50
    %p52 = scmp.ne.s32.totalorder %s38, %s39
    %p53 = scmp.eq.s32.totalorder %s17, 13
    %p54 = por %p52, %p53
    %p56 = scmp.ne.s32.totalorder %s39, %s55
    %p57 = scmp.eq.s32.totalorder %s17, 0
    %p58 = por %p56, %p57
    %s59 = sadd.s32 %s19, 1
    %s60 = sadd.s32 %s26, 1
    %s61 = ssub.s32 %s18, %s30
    %s62 = ssub.s32 %s59, %s60
    %s63 = sor.u32 %s61, %s62
    %p64 = scmp.eq.s32.totalorder %s63, 0
    %s66 = sadd.s32 %s65, 1
    %s67 = scalar_select %p64, %s65, %s66
    %p70 = pneg %p64
    %p71 = scmp.eq.s32.totalorder %s11, 13
    %p72 = por %p70, %p71
    %p73 = scmp.ne.s32.totalorder %s65, %s68
    %p74 = scmp.eq.s32.totalorder %s11, 0
    %p75 = por %p73, %p74
    %p76 = scmp.ne.s32.totalorder %s65, %s68
    %p77 = scmp.eq.s32.totalorder %s16, 13
    %p78 = por %p76, %p77
    %p79 = scmp.ne.s32.totalorder %s68, %s69
    %p80 = scmp.eq.s32.totalorder %s16, 0
    %p81 = por %p79, %p80
    %p82 = scmp.ne.s32.totalorder %s68, %s69
    %p83 = scmp.eq.s32.totalorder %s17, 13
    %p84 = por %p82, %p83
    %p86 = scmp.ne.s32.totalorder %s69, %s85
    %p87 = scmp.eq.s32.totalorder %s17, 0
    %p88 = por %p86, %p87
    %s89 = sadd.s32 %s19, 2
    %s90 = sadd.s32 %s26, 2
    %s91 = ssub.s32 %s18, %s30
    %s92 = ssub.s32 %s89, %s90
    %s93 = sor.u32 %s91, %s92
    %p94 = scmp.eq.s32.totalorder %s93, 0
    %s96 = sadd.s32 %s95, 1
    %s97 = scalar_select %p94, %s95, %s96
    %p100 = pneg %p94
    %p101 = scmp.eq.s32.totalorder %s11, 13
    %p102 = por %p100, %p101
    %p103 = scmp.ne.s32.totalorder %s95, %s98
    %p104 = scmp.eq.s32.totalorder %s11, 0
    %p105 = por %p103, %p104
    %p106 = scmp.ne.s32.totalorder %s95, %s98
    %p107 = scmp.eq.s32.totalorder %s16, 13
    %p108 = por %p106, %p107
    %p109 = scmp.ne.s32.totalorder %s98, %s99
    %p110 = scmp.eq.s32.totalorder %s16, 0
    %p111 = por %p109, %p110
    %p112 = scmp.ne.s32.totalorder %s98, %s99
    %p113 = scmp.eq.s32.totalorder %s17, 13
    %p114 = por %p112, %p113
    %p116 = scmp.ne.s32.totalorder %s99, %s115
    %p117 = scmp.eq.s32.totalorder %s17, 0
    %p118 = por %p116, %p117
    %s120 = sadd.s32 %s119, 1
    %p123 = scmp.eq.s32.totalorder %s11, 13
    %p124 = scmp.ne.s32.totalorder %s119, %s121
    %p125 = scmp.eq.s32.totalorder %s11, 0
    %p126 = por %p124, %p125
    %p127 = scmp.ne.s32.totalorder %s119, %s121
    %p128 = scmp.eq.s32.totalorder %s16, 13
    %p129 = por %p127, %p128
    %p130 = scmp.ne.s32.totalorder %s121, %s122
    %p131 = scmp.eq.s32.totalorder %s16, 0
    %p132 = por %p130, %p131
    %p133 = scmp.ne.s32.totalorder %s121, %s122
    %p134 = scmp.eq.s32.totalorder %s17, 13
    %p135 = por %p133, %p134
    %p137 = scmp.ne.s32.totalorder %s122, %s136
    %p138 = scmp.eq.s32.totalorder %s17, 0
    %p139 = por %p137, %p138
    %s141 = sadd.s32 %s140, 1
    %p144 = scmp.eq.s32.totalorder %s11, 13
    %p145 = scmp.ne.s32.totalorder %s140, %s142
    %p146 = scmp.eq.s32.totalorder %s11, 0
    %p147 = por %p145, %p146
    %p148 = scmp.ne.s32.totalorder %s140, %s142
    %p149 = scmp.eq.s32.totalorder %s16, 13
    %p150 = por %p148, %p149
    %p151 = scmp.ne.s32.totalorder %s142, %s143
    %p152 = scmp.eq.s32.totalorder %s16, 0
    %p153 = por %p151, %p152
    %p154 = scmp.ne.s32.totalorder %s142, %s143
    %p155 = scmp.eq.s32.totalorder %s17, 13
    %p156 = por %p154, %p155
    %p158 = scmp.ne.s32.totalorder %s143, %s157
    %p159 = scmp.eq.s32.totalorder %s17, 0
    %p160 = por %p158, %p159
    %s161 = ssub.s32 %s18, %s30
    %s162 = ssub.s32 %s19, %s26
    %s163 = sor.u32 %s161, %s162
    %p164 = scmp.eq.s32.totalorder %s163, 0
    %s166 = sadd.s32 %s165, 1
    %s167 = scalar_select %p164, %s165, %s166
    %p170 = pneg %p164
    %p171 = scmp.eq.s32.totalorder %s11, 13
    %p172 = por %p170, %p171
    %p173 = scmp.ne.s32.totalorder %s165, %s168
    %p174 = scmp.eq.s32.totalorder %s11, 0
    %p175 = por %p173, %p174
    %p176 = scmp.ne.s32.totalorder %s165, %s168
    %p177 = scmp.eq.s32.totalorder %s16, 13
    %p178 = por %p176, %p177
    %p179 = scmp.ne.s32.totalorder %s168, %s169
    %p180 = scmp.eq.s32.totalorder %s16, 0
    %p181 = por %p179, %p180
    %p182 = scmp.ne.s32.totalorder %s168, %s169
    %p183 = scmp.eq.s32.totalorder %s17, 13
    %p184 = por %p182, %p183
    %p186 = scmp.ne.s32.totalorder %s169, %s185
    %p187 = scmp.eq.s32.totalorder %s17, 0
    %p188 = por %p186, %p187
    %p189 = scmp.le.s32.totalorder 1, %s11
    %p190 = scmp.lt.s32.totalorder %s11, 15
    %p191 = pnand %p189, %p190
    %p192 = pneg %p191
    // Predicated region
    $region9: #{my_model_forward.15} parent=5 // pred_check
      _
    $region10: #{my_model_forward.15} parent=5 // pred_check_branch
      %194 = sbr.rel (%p191) target = $region12
    $region11: #{my_model_forward.15} parent=5 // pred_region
      %s195 = ssub.s32 %s11, 1
      // Predicated region
      $region13: #{my_model_forward.15} parent=11 // pred_check
        %p196 = pneg %p132
      $region14: #{my_model_forward.15} parent=11 // pred_check_branch
        %198 = sbr.rel (%p196) target = $region16
      $region15: #{my_model_forward.15} parent=11 // pred_region
        _
      $region16: #{my_model_forward.15} parent=11 // pred_fallthru
        _
      // Predicated region
      $region17: #{my_model_forward.15} parent=11 // pred_check
        %p199 = pneg %p153
      $region18: #{my_model_forward.15} parent=11 // pred_check_branch
        %201 = sbr.rel (%p199) target = $region20
      $region19: #{my_model_forward.15} parent=11 // pred_region
        _
      $region20: #{my_model_forward.15} parent=11 // pred_fallthru
        _
    $region12: #{my_model_forward.15} parent=5 // pred_fallthru
      _
    %p202 = scmp.lt.s32.totalorder %s11, 14
    // Predicated region
    $region21: #{my_model_forward.15} parent=5 // pred_check
      %p203 = pneg %p202
    $region22: #{my_model_forward.15} parent=5 // pred_check_branch
      %205 = sbr.rel (%p203) target = $region24
    $region23: #{my_model_forward.15} parent=5 // pred_region
      // Predicated region
      $region25: #{my_model_forward.15} parent=23 // pred_check
        %p206 = pneg %p45
      $region26: #{my_model_forward.15} parent=23 // pred_check_branch
        %208 = sbr.rel (%p206) target = $region28
      $region27: #{my_model_forward.15} parent=23 // pred_region
        %p209 = scmp.lt.s32.totalorder %s18, 1
        %s210 = scalar_select %p209, %s18, 1
        %p211 = scmp.lt.s32.totalorder %s19, 8
        %s212 = scalar_select %p211, %s19, 8
        %s213 = smul.addr %s212, 2
        %s214 = smul.addr %s210, 18
        %s215 = sadd.s32 %s213, %s214
        %s216 = smul.addr %s215, 4
        %s217 = scalar_lea.vmem %s0, %s216
      $region28: #{my_model_forward.15} parent=23 // pred_fallthru
        _
      // Predicated region
      $region29: #{my_model_forward.15} parent=23 // pred_check
        %p218 = pneg %p75
      $region30: #{my_model_forward.15} parent=23 // pred_check_branch
        %220 = sbr.rel (%p218) target = $region32
      $region31: #{my_model_forward.15} parent=23 // pred_region
        %s221 = sadd.s32 %s19, 1
        %p222 = scmp.lt.s32.totalorder %s18, 1
        %s223 = scalar_select %p222, %s18, 1
        %p224 = scmp.lt.s32.totalorder %s221, 8
        %s225 = scalar_select %p224, %s221, 8
        %s226 = smul.addr %s225, 2
        %s227 = smul.addr %s223, 18
        %s228 = sadd.s32 %s226, %s227
        %s229 = smul.addr %s228, 4
        %s230 = scalar_lea.vmem %s1, %s229
        %s231 = sadd.s32 %s19, 1
      $region32: #{my_model_forward.15} parent=23 // pred_fallthru
        _
      // Predicated region
      $region33: #{my_model_forward.15} parent=23 // pred_check
        %p232 = pneg %p105
      $region34: #{my_model_forward.15} parent=23 // pred_check_branch
        %234 = sbr.rel (%p232) target = $region36
      $region35: #{my_model_forward.15} parent=23 // pred_region
        %s235 = sadd.s32 %s19, 2
        %p236 = scmp.lt.s32.totalorder %s18, 1
        %s237 = scalar_select %p236, %s18, 1
        %p238 = scmp.lt.s32.totalorder %s235, 8
        %s239 = scalar_select %p238, %s235, 8
        %s240 = smul.addr %s239, 2
        %s241 = smul.addr %s237, 18
        %s242 = sadd.s32 %s240, %s241
        %s243 = smul.addr %s242, 4
        %s244 = scalar_lea.vmem %s2, %s243
        %s245 = sadd.s32 %s19, 2
      $region36: #{my_model_forward.15} parent=23 // pred_fallthru
        _
    $region24: #{my_model_forward.15} parent=5 // pred_fallthru
      _
    %p246 = scmp.le.s32.totalorder 1, %s11
    %p247 = scmp.lt.s32.totalorder %s11, 15
    %p248 = pnand %p246, %p247
    %p249 = pneg %p248
    // Predicated region
    $region37: #{my_model_forward.15} parent=5 // pred_check
      _
    $region38: #{my_model_forward.15} parent=5 // pred_check_branch
      %251 = sbr.rel (%p248) target = $region40
    $region39: #{my_model_forward.15} parent=5 // pred_region
      %s252 = ssub.s32 %s11, 1
      %p253 = scmp.lt.s32.totalorder %s20, 1
      %s254 = scalar_select %p253, %s20, 1
      %p255 = scmp.lt.s32.totalorder %s21, 8
      %s256 = scalar_select %p255, %s21, 8
      %s257 = smul.addr %s256, 2
      %s258 = smul.addr %s254, 18
      %s259 = sadd.s32 %s257, %s258
      %s260 = smul.addr %s259, 4
      %s261 = scalar_lea.vmem %s0, %s260
      %p262 = pneg %p51
      %p263 = pneg %p48
      %s264 = sadd.s32 %s21, 1
      %p265 = scmp.lt.s32.totalorder %s20, 1
      %s266 = scalar_select %p265, %s20, 1
      %p267 = scmp.lt.s32.totalorder %s264, 8
      %s268 = scalar_select %p267, %s264, 8
      %s269 = smul.addr %s268, 2
      %s270 = smul.addr %s266, 18
      %s271 = sadd.s32 %s269, %s270
      %s272 = smul.addr %s271, 4
      %s273 = scalar_lea.vmem %s1, %s272
      %p274 = pneg %p81
      %p275 = pneg %p78
      %s276 = sadd.s32 %s21, 2
      %p277 = scmp.lt.s32.totalorder %s20, 1
      %s278 = scalar_select %p277, %s20, 1
      %p279 = scmp.lt.s32.totalorder %s276, 8
      %s280 = scalar_select %p279, %s276, 8
      %s281 = smul.addr %s280, 2
      %s282 = smul.addr %s278, 18
      %s283 = sadd.s32 %s281, %s282
      %s284 = smul.addr %s283, 4
      %s285 = scalar_lea.vmem %s2, %s284
      %p286 = pneg %p111
      %p287 = pneg %p108
      %p288 = pneg %p132
      %p289 = pneg %p129
      %p290 = pneg %p153
      %p291 = pneg %p150
      %p292 = pneg %p181
      %p293 = pneg %p178
      %p294 = scmp.lt.s32.totalorder %s20, 1
      %s295 = scalar_select %p294, %s20, 1
      %p296 = scmp.lt.s32.totalorder %s21, 6
      %s297 = scalar_select %p296, %s21, 6
      %s298 = smul.addr %s297, 2
      %s299 = smul.addr %s295, 14
      %s300 = sadd.s32 %s298, %s299
      %s301 = smul.addr %s300, 4
      %s302 = scalar_lea.vmem %s5, %s301
      %p303 = scmp.lt.s32.totalorder %s20, 1
      %s304 = scalar_select %p303, %s20, 1
      %p305 = scmp.lt.s32.totalorder %s21, 8
      %s306 = scalar_select %p305, %s21, 8
      %s307 = smul.addr %s306, 2
      %s308 = smul.addr %s304, 18
      %s309 = sadd.s32 %s307, %s308
      %s310 = smul.addr %s309, 4
      %s311 = scalar_lea.vmem %s0, %s310
      %s312 = sadd.s32 %s21, 1
      %p313 = scmp.lt.s32.totalorder %s20, 1
      %s314 = scalar_select %p313, %s20, 1
      %p315 = scmp.lt.s32.totalorder %s312, 8
      %s316 = scalar_select %p315, %s312, 8
      %s317 = smul.addr %s316, 2
      %s318 = smul.addr %s314, 18
      %s319 = sadd.s32 %s317, %s318
      %s320 = smul.addr %s319, 4
      %s321 = scalar_lea.vmem %s1, %s320
      %s322 = sadd.s32 %s21, 1
      %s323 = sadd.s32 %s21, 2
      %p324 = scmp.lt.s32.totalorder %s20, 1
      %s325 = scalar_select %p324, %s20, 1
      %p326 = scmp.lt.s32.totalorder %s323, 8
      %s327 = scalar_select %p326, %s323, 8
      %s328 = smul.addr %s327, 2
      %s329 = smul.addr %s325, 18
      %s330 = sadd.s32 %s328, %s329
      %s331 = smul.addr %s330, 4
      %s332 = scalar_lea.vmem %s2, %s331
      %s333 = sadd.s32 %s21, 2
      %p334 = scmp.lt.s32.totalorder %s20, 1
      %s335 = scalar_select %p334, %s20, 1
      %p336 = scmp.lt.s32.totalorder %s21, 6
      %s337 = scalar_select %p336, %s21, 6
      %s338 = smul.addr %s337, 2
      %s339 = smul.addr %s335, 14
      %s340 = sadd.s32 %s338, %s339
      %s341 = smul.addr %s340, 4
      %s342 = scalar_lea.vmem %s5, %s341
      %v344 = vld [vmem:[%s311] sm:$0xf]
      %v345 = vld [vmem:[%s311] sm:$0xe]
      %v346 = vld [vmem:[%s311 + $0x4] sm:$0x1]
      %v347 = vld [vmem:[%s321] sm:$0xf]
      %v348 = vld [vmem:[%s321] sm:$0xe]
      %v349 = vld [vmem:[%s321 + $0x4] sm:$0x1]
      %v350 = vld [vmem:[%s332] sm:$0xf]
      %v351 = vld [vmem:[%s332] sm:$0xe]
      %v352 = vld [vmem:[%s332 + $0x4] sm:$0x1]
      %v354 = vunpack.c.l.b16 %v344
      %v355 = vpack.c.b16 %v354, %v354
      %v357 = vshrl.u32 %v355, 16
      %v359 = vshll.u32 %v355, 16
      %v361 = vrot.slane %v359, 1
      %v362 = vor.u32 %v357, %v361
      %v366 = vunpack.c.l.b16 %v345
      %v367 = vunpack.c.l.b16 %v346
      %v368 = vpack.c.b16 %v367, %v366
      %v369 = vrot.slane %v368, 1
      %v372 = vunpack.c.l.b16 %v347
      %v373 = vpack.c.b16 %v372, %v372
      %v375 = vshrl.u32 %v373, 16
      %v377 = vshll.u32 %v373, 16
      %v379 = vrot.slane %v377, 1
      %v380 = vor.u32 %v375, %v379
      %v384 = vunpack.c.l.b16 %v348
      %v385 = vunpack.c.l.b16 %v349
      %v386 = vpack.c.b16 %v385, %v384
      %v387 = vrot.slane %v386, 1
      %v390 = vunpack.c.l.b16 %v350
      %v391 = vpack.c.b16 %v390, %v390
      %v393 = vshrl.u32 %v391, 16
      %v395 = vshll.u32 %v391, 16
      %v397 = vrot.slane %v395, 1
      %v398 = vor.u32 %v393, %v397
      %v402 = vunpack.c.l.b16 %v351
      %v403 = vunpack.c.l.b16 %v352
      %v404 = vpack.c.b16 %v403, %v402
      %v405 = vrot.slane %v404, 1
      %v407 = vld [vmem:[%s3] sm:$0xff]
      %v408 = vld [vmem:[%s3 + $0x8] sm:$0xff]
      %v409 = vld [vmem:[%s3 + $0x10] sm:$0xff]
      %v410 = vld [vmem:[%s3 + $0x18] sm:$0xff]
      %v411 = vld [vmem:[%s3 + $0x20] sm:$0xff]
      %v412 = vld [vmem:[%s3 + $0x28] sm:$0xff]
      %v413 = vld [vmem:[%s3 + $0x30] sm:$0xff]
      %v414 = vld [vmem:[%s3 + $0x38] sm:$0xff]
      %v415 = vld [vmem:[%s3 + $0x40] sm:$0xff]
      %v416 = vld [vmem:[%s3 + $0x48] sm:$0xff]
      %v417 = vld [vmem:[%s3 + $0x50] sm:$0xff]
      %v418 = vld [vmem:[%s3 + $0x58] sm:$0xff]
      %v419 = vld [vmem:[%s3 + $0x60] sm:$0xff]
      %v420 = vld [vmem:[%s3 + $0x68] sm:$0xff]
      %v421 = vld [vmem:[%s3 + $0x70] sm:$0xff]
      %v422 = vld [vmem:[%s3 + $0x78] sm:$0xff]
      %v423 = vld [vmem:[%s3 + $0x80] sm:$0xff]
      %v424 = vld [vmem:[%s3 + $0x88] sm:$0xff]
      %v425 = vld [vmem:[%s3 + $0x90] sm:$0xff]
      %v426 = vld [vmem:[%s3 + $0x98] sm:$0xff]
      %v427 = vld [vmem:[%s3 + $0xa0] sm:$0xff]
      %v428 = vld [vmem:[%s3 + $0xa8] sm:$0xff]
      %v429 = vld [vmem:[%s3 + $0xb0] sm:$0xff]
      %v430 = vld [vmem:[%s3 + $0xb8] sm:$0xff]
      %v431 = vld [vmem:[%s3 + $0xc0] sm:$0xff]
      %v432 = vld [vmem:[%s3 + $0xc8] sm:$0xff]
      %v433 = vld [vmem:[%s3 + $0xd0] sm:$0xff]
      %v434 = vld [vmem:[%s3 + $0xd8] sm:$0xff]
      %v435 = vld [vmem:[%s3 + $0xe0] sm:$0xff]
      %v436 = vld [vmem:[%s3 + $0xe8] sm:$0xff]
      %v437 = vld [vmem:[%s3 + $0xf0] sm:$0xff]
      %v438 = vld [vmem:[%s3 + $0xf8] sm:$0xff]
      %v439 = vld [vmem:[%s3 + $0x100] sm:$0xff]
      %v440 = vld [vmem:[%s3 + $0x108] sm:$0xff]
      %v441 = vld [vmem:[%s3 + $0x110] sm:$0xff]
      %v442 = vld [vmem:[%s3 + $0x118] sm:$0xff]
      %v443 = vld [vmem:[%s3 + $0x120] sm:$0xff]
      %v444 = vld [vmem:[%s3 + $0x128] sm:$0xff]
      %v445 = vld [vmem:[%s3 + $0x130] sm:$0xff]
      %v446 = vld [vmem:[%s3 + $0x138] sm:$0xff]
      %v447 = vld [vmem:[%s3 + $0x140] sm:$0xff]
      %v448 = vld [vmem:[%s3 + $0x148] sm:$0xff]
      %v449 = vld [vmem:[%s3 + $0x150] sm:$0xff]
      %v450 = vld [vmem:[%s3 + $0x158] sm:$0xff]
      %v451 = vld [vmem:[%s3 + $0x160] sm:$0xff]
      %v452 = vld [vmem:[%s3 + $0x168] sm:$0xff]
      %v453 = vld [vmem:[%s3 + $0x170] sm:$0xff]
      %v454 = vld [vmem:[%s3 + $0x178] sm:$0xff]
      %v455 = vld [vmem:[%s3 + $0x180] sm:$0xff]
      %v456 = vld [vmem:[%s3 + $0x188] sm:$0xff]
      %v457 = vld [vmem:[%s3 + $0x190] sm:$0xff]
      %v458 = vld [vmem:[%s3 + $0x198] sm:$0xff]
      %v459 = vld [vmem:[%s3 + $0x1a0] sm:$0xff]
      %v460 = vld [vmem:[%s3 + $0x1a8] sm:$0xff]
      %v461 = vld [vmem:[%s3 + $0x1b0] sm:$0xff]
      %v462 = vld [vmem:[%s3 + $0x1b8] sm:$0xff]
      %v463 = vld [vmem:[%s3 + $0x1c0] sm:$0xff]
      %v464 = vld [vmem:[%s3 + $0x1c8] sm:$0xff]
      %v465 = vld [vmem:[%s3 + $0x1d0] sm:$0xff]
      %v466 = vld [vmem:[%s3 + $0x1d8] sm:$0xff]
      %v467 = vld [vmem:[%s3 + $0x1e0] sm:$0xff]
      %v468 = vld [vmem:[%s3 + $0x1e8] sm:$0xff]
      %v469 = vld [vmem:[%s3 + $0x1f0] sm:$0xff]
      %v470 = vld [vmem:[%s3 + $0x1f8] sm:$0xff]
      %v471 = vld [vmem:[%s3 + $0x200] sm:$0xff]
      %v472 = vld [vmem:[%s3 + $0x208] sm:$0xff]
      %v473 = vld [vmem:[%s3 + $0x210] sm:$0xff]
      %v474 = vld [vmem:[%s3 + $0x218] sm:$0xff]
      %v475 = vld [vmem:[%s3 + $0x220] sm:$0xff]
      %v476 = vld [vmem:[%s3 + $0x228] sm:$0xff]
      %v477 = vld [vmem:[%s3 + $0x230] sm:$0xff]
      %v478 = vld [vmem:[%s3 + $0x238] sm:$0xff]
      %v479 = vld [vmem:[%s3 + $0x240] sm:$0xff]
      %v480 = vld [vmem:[%s3 + $0x248] sm:$0xff]
      %v481 = vld [vmem:[%s3 + $0x250] sm:$0xff]
      %v482 = vld [vmem:[%s3 + $0x258] sm:$0xff]
      %v483 = vld [vmem:[%s3 + $0x260] sm:$0xff]
      %v484 = vld [vmem:[%s3 + $0x268] sm:$0xff]
      %v485 = vld [vmem:[%s3 + $0x270] sm:$0xff]
      %v486 = vld [vmem:[%s3 + $0x278] sm:$0xff]
      %v487 = vld [vmem:[%s3 + $0x280] sm:$0xff]
      %v488 = vld [vmem:[%s3 + $0x288] sm:$0xff]
      %v489 = vld [vmem:[%s3 + $0x290] sm:$0xff]
      %v490 = vld [vmem:[%s3 + $0x298] sm:$0xff]
      %v491 = vld [vmem:[%s3 + $0x2a0] sm:$0xff]
      %v492 = vld [vmem:[%s3 + $0x2a8] sm:$0xff]
      %v493 = vld [vmem:[%s3 + $0x2b0] sm:$0xff]
      %v494 = vld [vmem:[%s3 + $0x2b8] sm:$0xff]
      %v495 = vld [vmem:[%s3 + $0x2c0] sm:$0xff]
      %v496 = vld [vmem:[%s3 + $0x2c8] sm:$0xff]
      %v497 = vld [vmem:[%s3 + $0x2d0] sm:$0xff]
      %v498 = vld [vmem:[%s3 + $0x2d8] sm:$0xff]
      %v499 = vld [vmem:[%s3 + $0x2e0] sm:$0xff]
      %v500 = vld [vmem:[%s3 + $0x2e8] sm:$0xff]
      %v501 = vld [vmem:[%s3 + $0x2f0] sm:$0xff]
      %v502 = vld [vmem:[%s3 + $0x2f8] sm:$0xff]
      %v503 = vld [vmem:[%s3 + $0x300] sm:$0xff]
      %v504 = vld [vmem:[%s3 + $0x308] sm:$0xff]
      %v505 = vld [vmem:[%s3 + $0x310] sm:$0xff]
      %v506 = vld [vmem:[%s3 + $0x318] sm:$0xff]
      %v507 = vld [vmem:[%s3 + $0x320] sm:$0xff]
      %v508 = vld [vmem:[%s3 + $0x328] sm:$0xff]
      %v509 = vld [vmem:[%s3 + $0x330] sm:$0xff]
      %v510 = vld [vmem:[%s3 + $0x338] sm:$0xff]
      %v511 = vld [vmem:[%s3 + $0x340] sm:$0xff]
      %v512 = vld [vmem:[%s3 + $0x348] sm:$0xff]
      %v513 = vld [vmem:[%s3 + $0x350] sm:$0xff]
      %v514 = vld [vmem:[%s3 + $0x358] sm:$0xff]
      %v515 = vld [vmem:[%s3 + $0x360] sm:$0xff]
      %v516 = vld [vmem:[%s3 + $0x368] sm:$0xff]
      %v517 = vld [vmem:[%s3 + $0x370] sm:$0xff]
      %v518 = vld [vmem:[%s3 + $0x378] sm:$0xff]
      %v519 = vld [vmem:[%s3 + $0x380] sm:$0xff]
      %v520 = vld [vmem:[%s3 + $0x388] sm:$0xff]
      %v521 = vld [vmem:[%s3 + $0x390] sm:$0xff]
      %v522 = vld [vmem:[%s3 + $0x398] sm:$0xff]
      %v523 = vld [vmem:[%s3 + $0x3a0] sm:$0xff]
      %v524 = vld [vmem:[%s3 + $0x3a8] sm:$0xff]
      %v525 = vld [vmem:[%s3 + $0x3b0] sm:$0xff]
      %v526 = vld [vmem:[%s3 + $0x3b8] sm:$0xff]
      %v527 = vld [vmem:[%s3 + $0x3c0] sm:$0xff]
      %v528 = vld [vmem:[%s3 + $0x3c8] sm:$0xff]
      %v529 = vld [vmem:[%s3 + $0x3d0] sm:$0xff]
      %v530 = vld [vmem:[%s3 + $0x3d8] sm:$0xff]
      %v531 = vld [vmem:[%s3 + $0x3e0] sm:$0xff]
      %v532 = vld [vmem:[%s3 + $0x3e8] sm:$0xff]
      %v533 = vld [vmem:[%s3 + $0x3f0] sm:$0xff]
      %v534 = vld [vmem:[%s3 + $0x3f8] sm:$0xff]
      %v535 = vld [vmem:[%s3 + $0x400] sm:$0xff]
      %v536 = vld [vmem:[%s3 + $0x408] sm:$0xff]
      %v537 = vld [vmem:[%s3 + $0x410] sm:$0xff]
      %v538 = vld [vmem:[%s3 + $0x418] sm:$0xff]
      %v539 = vld [vmem:[%s3 + $0x420] sm:$0xff]
      %v540 = vld [vmem:[%s3 + $0x428] sm:$0xff]
      %v541 = vld [vmem:[%s3 + $0x430] sm:$0xff]
      %v542 = vld [vmem:[%s3 + $0x438] sm:$0xff]
      %v543 = vld [vmem:[%s3 + $0x440] sm:$0xff]
      %v544 = vld [vmem:[%s3 + $0x448] sm:$0xff]
      %v545 = vld [vmem:[%s3 + $0x450] sm:$0xff]
      %v546 = vld [vmem:[%s3 + $0x458] sm:$0xff]
      %v547 = vld [vmem:[%s3 + $0x460] sm:$0xff]
      %v548 = vld [vmem:[%s3 + $0x468] sm:$0xff]
      %v549 = vld [vmem:[%s3 + $0x470] sm:$0xff]
      %v550 = vld [vmem:[%s3 + $0x478] sm:$0xff]
      %v551 = vld [vmem:[%s4] sm:$0x3]
      %v553 = vlaneseq
      %v554 = vshrl.u32 %v553, 7
      %v555 = vsub.s32 0, %v554
      %v556 = vrot.slane %v551, %v555
      %v557 = vlaneseq
      %v558 = vshrl.u32 %v557, 7
      %v559 = vsub.s32 1, %v558
      %v560 = vrot.slane %v551, %v559
      %v707 = vunpack.c.l.b16 %v407
      %v708 = vunpack.c.h.b16 %v407
      %v709 = vunpack.c.l.b16 %v408
      %v710 = vunpack.c.h.b16 %v408
      %v711 = vunpack.c.l.b16 %v409
      %v712 = vunpack.c.h.b16 %v409
      %v713 = vunpack.c.l.b16 %v410
      %v714 = vunpack.c.h.b16 %v410
      %v715 = vunpack.c.l.b16 %v411
      %v716 = vunpack.c.h.b16 %v411
      %v717 = vunpack.c.l.b16 %v412
      %v718 = vunpack.c.h.b16 %v412
      %v719 = vunpack.c.l.b16 %v413
      %v720 = vunpack.c.h.b16 %v413
      %v721 = vunpack.c.l.b16 %v414
      %v722 = vunpack.c.h.b16 %v414
      %v723 = vunpack.c.l.b16 %v415
      %v724 = vunpack.c.h.b16 %v415
      %v725 = vunpack.c.l.b16 %v416
      %v726 = vunpack.c.h.b16 %v416
      %v727 = vunpack.c.l.b16 %v417
      %v728 = vunpack.c.h.b16 %v417
      %v729 = vunpack.c.l.b16 %v418
      %v730 = vunpack.c.h.b16 %v418
      %v731 = vunpack.c.l.b16 %v419
      %v732 = vunpack.c.h.b16 %v419
      %v733 = vunpack.c.l.b16 %v420
      %v734 = vunpack.c.h.b16 %v420
      %v735 = vunpack.c.l.b16 %v421
      %v736 = vunpack.c.h.b16 %v421
      %v737 = vunpack.c.l.b16 %v422
      %v738 = vunpack.c.h.b16 %v422
      %v739 = vunpack.c.l.b16 %v423
      %v740 = vunpack.c.h.b16 %v423
      %v741 = vunpack.c.l.b16 %v424
      %v742 = vunpack.c.h.b16 %v424
      %v743 = vunpack.c.l.b16 %v425
      %v744 = vunpack.c.h.b16 %v425
      %v745 = vunpack.c.l.b16 %v426
      %v746 = vunpack.c.h.b16 %v426
      %v747 = vunpack.c.l.b16 %v427
      %v748 = vunpack.c.h.b16 %v427
      %v749 = vunpack.c.l.b16 %v428
      %v750 = vunpack.c.h.b16 %v428
      %v751 = vunpack.c.l.b16 %v429
      %v752 = vunpack.c.h.b16 %v429
      %v753 = vunpack.c.l.b16 %v430
      %v754 = vunpack.c.h.b16 %v430
      %v755 = vunpack.c.l.b16 %v431
      %v756 = vunpack.c.h.b16 %v431
      %v757 = vunpack.c.l.b16 %v432
      %v758 = vunpack.c.h.b16 %v432
      %v759 = vunpack.c.l.b16 %v433
      %v760 = vunpack.c.h.b16 %v433
      %v761 = vunpack.c.l.b16 %v434
      %v762 = vunpack.c.h.b16 %v434
      %v763 = vunpack.c.l.b16 %v435
      %v764 = vunpack.c.h.b16 %v435
      %v765 = vunpack.c.l.b16 %v436
      %v766 = vunpack.c.h.b16 %v436
      %v767 = vunpack.c.l.b16 %v437
      %v768 = vunpack.c.h.b16 %v437
      %v769 = vunpack.c.l.b16 %v438
      %v770 = vunpack.c.h.b16 %v438
      %v771 = vunpack.c.l.b16 %v439
      %v772 = vunpack.c.h.b16 %v439
      %v773 = vunpack.c.l.b16 %v440
      %v774 = vunpack.c.h.b16 %v440
      %v775 = vunpack.c.l.b16 %v441
      %v776 = vunpack.c.h.b16 %v441
      %v777 = vunpack.c.l.b16 %v442
      %v778 = vunpack.c.h.b16 %v442
      %v779 = vunpack.c.l.b16 %v443
      %v780 = vunpack.c.h.b16 %v443
      %v781 = vunpack.c.l.b16 %v444
      %v782 = vunpack.c.h.b16 %v444
      %v783 = vunpack.c.l.b16 %v445
      %v784 = vunpack.c.h.b16 %v445
      %v785 = vunpack.c.l.b16 %v446
      %v786 = vunpack.c.h.b16 %v446
      %v787 = vunpack.c.l.b16 %v447
      %v788 = vunpack.c.h.b16 %v447
      %v789 = vunpack.c.l.b16 %v448
      %v790 = vunpack.c.h.b16 %v448
      %v791 = vunpack.c.l.b16 %v449
      %v792 = vunpack.c.h.b16 %v449
      %v793 = vunpack.c.l.b16 %v450
      %v794 = vunpack.c.h.b16 %v450
      %v795 = vunpack.c.l.b16 %v451
      %v796 = vunpack.c.h.b16 %v451
      %v797 = vunpack.c.l.b16 %v452
      %v798 = vunpack.c.h.b16 %v452
      %v799 = vunpack.c.l.b16 %v453
      %v800 = vunpack.c.h.b16 %v453
      %v801 = vunpack.c.l.b16 %v454
      %v802 = vunpack.c.h.b16 %v454
      %v803 = vunpack.c.l.b16 %v455
      %v804 = vunpack.c.h.b16 %v455
      %v805 = vunpack.c.l.b16 %v456
      %v806 = vunpack.c.h.b16 %v456
      %v807 = vunpack.c.l.b16 %v457
      %v808 = vunpack.c.h.b16 %v457
      %v809 = vunpack.c.l.b16 %v458
      %v810 = vunpack.c.h.b16 %v458
      %v811 = vunpack.c.l.b16 %v459
      %v812 = vunpack.c.h.b16 %v459
      %v813 = vunpack.c.l.b16 %v460
      %v814 = vunpack.c.h.b16 %v460
      %v815 = vunpack.c.l.b16 %v461
      %v816 = vunpack.c.h.b16 %v461
      %v817 = vunpack.c.l.b16 %v462
      %v818 = vunpack.c.h.b16 %v462
      %v819 = vunpack.c.l.b16 %v463
      %v820 = vunpack.c.h.b16 %v463
      %v821 = vunpack.c.l.b16 %v464
      %v822 = vunpack.c.h.b16 %v464
      %v823 = vunpack.c.l.b16 %v465
      %v824 = vunpack.c.h.b16 %v465
      %v825 = vunpack.c.l.b16 %v466
      %v826 = vunpack.c.h.b16 %v466
      %v827 = vunpack.c.l.b16 %v467
      %v828 = vunpack.c.h.b16 %v467
      %v829 = vunpack.c.l.b16 %v468
      %v830 = vunpack.c.h.b16 %v468
      %v831 = vunpack.c.l.b16 %v469
      %v832 = vunpack.c.h.b16 %v469
      %v833 = vunpack.c.l.b16 %v470
      %v834 = vunpack.c.h.b16 %v470
      %v835 = vunpack.c.l.b16 %v471
      %v836 = vunpack.c.h.b16 %v471
      %v837 = vunpack.c.l.b16 %v472
      %v838 = vunpack.c.h.b16 %v472
      %v839 = vunpack.c.l.b16 %v473
      %v840 = vunpack.c.h.b16 %v473
      %v841 = vunpack.c.l.b16 %v474
      %v842 = vunpack.c.h.b16 %v474
      %v843 = vunpack.c.l.b16 %v475
      %v844 = vunpack.c.h.b16 %v475
      %v845 = vunpack.c.l.b16 %v476
      %v846 = vunpack.c.h.b16 %v476
      %v847 = vunpack.c.l.b16 %v477
      %v848 = vunpack.c.h.b16 %v477
      %v849 = vunpack.c.l.b16 %v478
      %v850 = vunpack.c.h.b16 %v478
      %v851 = vunpack.c.l.b16 %v479
      %v852 = vunpack.c.h.b16 %v479
      %v853 = vunpack.c.l.b16 %v480
      %v854 = vunpack.c.h.b16 %v480
      %v855 = vunpack.c.l.b16 %v481
      %v856 = vunpack.c.h.b16 %v481
      %v857 = vunpack.c.l.b16 %v482
      %v858 = vunpack.c.h.b16 %v482
      %v859 = vunpack.c.l.b16 %v483
      %v860 = vunpack.c.h.b16 %v483
      %v861 = vunpack.c.l.b16 %v484
      %v862 = vunpack.c.h.b16 %v484
      %v863 = vunpack.c.l.b16 %v485
      %v864 = vunpack.c.h.b16 %v485
      %v865 = vunpack.c.l.b16 %v486
      %v866 = vunpack.c.h.b16 %v486
      %v867 = vunpack.c.l.b16 %v487
      %v868 = vunpack.c.h.b16 %v487
      %v869 = vunpack.c.l.b16 %v488
      %v870 = vunpack.c.h.b16 %v488
      %v871 = vunpack.c.l.b16 %v489
      %v872 = vunpack.c.h.b16 %v489
      %v873 = vunpack.c.l.b16 %v490
      %v874 = vunpack.c.h.b16 %v490
      %v875 = vunpack.c.l.b16 %v491
      %v876 = vunpack.c.h.b16 %v491
      %v877 = vunpack.c.l.b16 %v492
      %v878 = vunpack.c.h.b16 %v492
      %v879 = vunpack.c.l.b16 %v493
      %v880 = vunpack.c.h.b16 %v493
      %v881 = vunpack.c.l.b16 %v494
      %v882 = vunpack.c.h.b16 %v494
      %v883 = vunpack.c.l.b16 %v495
      %v884 = vunpack.c.h.b16 %v495
      %v885 = vunpack.c.l.b16 %v496
      %v886 = vunpack.c.h.b16 %v496
      %v887 = vunpack.c.l.b16 %v497
      %v888 = vunpack.c.h.b16 %v497
      %v889 = vunpack.c.l.b16 %v498
      %v890 = vunpack.c.h.b16 %v498
      %v891 = vunpack.c.l.b16 %v499
      %v892 = vunpack.c.h.b16 %v499
      %v893 = vunpack.c.l.b16 %v500
      %v894 = vunpack.c.h.b16 %v500
      %v895 = vunpack.c.l.b16 %v501
      %v896 = vunpack.c.h.b16 %v501
      %v897 = vunpack.c.l.b16 %v502
      %v898 = vunpack.c.h.b16 %v502
      %v899 = vunpack.c.l.b16 %v503
      %v900 = vunpack.c.h.b16 %v503
      %v901 = vunpack.c.l.b16 %v504
      %v902 = vunpack.c.h.b16 %v504
      %v903 = vunpack.c.l.b16 %v505
      %v904 = vunpack.c.h.b16 %v505
      %v905 = vunpack.c.l.b16 %v506
      %v906 = vunpack.c.h.b16 %v506
      %v907 = vunpack.c.l.b16 %v507
      %v908 = vunpack.c.h.b16 %v507
      %v909 = vunpack.c.l.b16 %v508
      %v910 = vunpack.c.h.b16 %v508
      %v911 = vunpack.c.l.b16 %v509
      %v912 = vunpack.c.h.b16 %v509
      %v913 = vunpack.c.l.b16 %v510
      %v914 = vunpack.c.h.b16 %v510
      %v915 = vunpack.c.l.b16 %v511
      %v916 = vunpack.c.h.b16 %v511
      %v917 = vunpack.c.l.b16 %v512
      %v918 = vunpack.c.h.b16 %v512
      %v919 = vunpack.c.l.b16 %v513
      %v920 = vunpack.c.h.b16 %v513
      %v921 = vunpack.c.l.b16 %v514
      %v922 = vunpack.c.h.b16 %v514
      %v923 = vunpack.c.l.b16 %v515
      %v924 = vunpack.c.h.b16 %v515
      %v925 = vunpack.c.l.b16 %v516
      %v926 = vunpack.c.h.b16 %v516
      %v927 = vunpack.c.l.b16 %v517
      %v928 = vunpack.c.h.b16 %v517
      %v929 = vunpack.c.l.b16 %v518
      %v930 = vunpack.c.h.b16 %v518
      %v931 = vunpack.c.l.b16 %v519
      %v932 = vunpack.c.h.b16 %v519
      %v933 = vunpack.c.l.b16 %v520
      %v934 = vunpack.c.h.b16 %v520
      %v935 = vunpack.c.l.b16 %v521
      %v936 = vunpack.c.h.b16 %v521
      %v937 = vunpack.c.l.b16 %v522
      %v938 = vunpack.c.h.b16 %v522
      %v939 = vunpack.c.l.b16 %v523
      %v940 = vunpack.c.h.b16 %v523
      %v941 = vunpack.c.l.b16 %v524
      %v942 = vunpack.c.h.b16 %v524
      %v943 = vunpack.c.l.b16 %v525
      %v944 = vunpack.c.h.b16 %v525
      %v945 = vunpack.c.l.b16 %v526
      %v946 = vunpack.c.h.b16 %v526
      %v947 = vunpack.c.l.b16 %v527
      %v948 = vunpack.c.h.b16 %v527
      %v949 = vunpack.c.l.b16 %v528
      %v950 = vunpack.c.h.b16 %v528
      %v951 = vunpack.c.l.b16 %v529
      %v952 = vunpack.c.h.b16 %v529
      %v953 = vunpack.c.l.b16 %v530
      %v954 = vunpack.c.h.b16 %v530
      %v955 = vunpack.c.l.b16 %v531
      %v956 = vunpack.c.h.b16 %v531
      %v957 = vunpack.c.l.b16 %v532
      %v958 = vunpack.c.h.b16 %v532
      %v959 = vunpack.c.l.b16 %v533
      %v960 = vunpack.c.h.b16 %v533
      %v961 = vunpack.c.l.b16 %v534
      %v962 = vunpack.c.h.b16 %v534
      %v963 = vunpack.c.l.b16 %v535
      %v964 = vunpack.c.h.b16 %v535
      %v965 = vunpack.c.l.b16 %v536
      %v966 = vunpack.c.h.b16 %v536
      %v967 = vunpack.c.l.b16 %v537
      %v968 = vunpack.c.h.b16 %v537
      %v969 = vunpack.c.l.b16 %v538
      %v970 = vunpack.c.h.b16 %v538
      %v971 = vunpack.c.l.b16 %v539
      %v972 = vunpack.c.h.b16 %v539
      %v973 = vunpack.c.l.b16 %v540
      %v974 = vunpack.c.h.b16 %v540
      %v975 = vunpack.c.l.b16 %v541
      %v976 = vunpack.c.h.b16 %v541
      %v977 = vunpack.c.l.b16 %v542
      %v978 = vunpack.c.h.b16 %v542
      %v979 = vunpack.c.l.b16 %v543
      %v980 = vunpack.c.h.b16 %v543
      %v981 = vunpack.c.l.b16 %v544
      %v982 = vunpack.c.h.b16 %v544
      %v983 = vunpack.c.l.b16 %v545
      %v984 = vunpack.c.h.b16 %v545
      %v985 = vunpack.c.l.b16 %v546
      %v986 = vunpack.c.h.b16 %v546
      %v987 = vunpack.c.l.b16 %v547
      %v988 = vunpack.c.h.b16 %v547
      %v989 = vunpack.c.l.b16 %v548
      %v990 = vunpack.c.h.b16 %v548
      %v991 = vunpack.c.l.b16 %v549
      %v992 = vunpack.c.h.b16 %v549
      %v993 = vunpack.c.l.b16 %v550
      %v994 = vunpack.c.h.b16 %v550
      %v995 = vpack.c.b16 %v709, %v707
      %v996 = vpack.c.b16 %v710, %v708
      %v997 = vpack.c.b16 %v713, %v711
      %v998 = vpack.c.b16 %v714, %v712
      %v999 = vpack.c.b16 %v717, %v715
      %v1000 = vpack.c.b16 %v718, %v716
      %v1001 = vpack.c.b16 %v721, %v719
      %v1002 = vpack.c.b16 %v722, %v720
      %v1003 = vpack.c.b16 %v725, %v723
      %v1004 = vpack.c.b16 %v726, %v724
      %v1005 = vpack.c.b16 %v729, %v727
      %v1006 = vpack.c.b16 %v730, %v728
      %v1007 = vpack.c.b16 %v733, %v731
      %v1008 = vpack.c.b16 %v734, %v732
      %v1009 = vpack.c.b16 %v737, %v735
      %v1010 = vpack.c.b16 %v738, %v736
      %v1011 = vpack.c.b16 %v741, %v739
      %v1012 = vpack.c.b16 %v742, %v740
      %v1013 = vpack.c.b16 %v745, %v743
      %v1014 = vpack.c.b16 %v746, %v744
      %v1015 = vpack.c.b16 %v749, %v747
      %v1016 = vpack.c.b16 %v750, %v748
      %v1017 = vpack.c.b16 %v753, %v751
      %v1018 = vpack.c.b16 %v754, %v752
      %v1019 = vpack.c.b16 %v757, %v755
      %v1020 = vpack.c.b16 %v758, %v756
      %v1021 = vpack.c.b16 %v761, %v759
      %v1022 = vpack.c.b16 %v762, %v760
      %v1023 = vpack.c.b16 %v765, %v763
      %v1024 = vpack.c.b16 %v766, %v764
      %v1025 = vpack.c.b16 %v769, %v767
      %v1026 = vpack.c.b16 %v770, %v768
      %v1027 = vpack.c.b16 %v773, %v771
      %v1028 = vpack.c.b16 %v774, %v772
      %v1029 = vpack.c.b16 %v777, %v775
      %v1030 = vpack.c.b16 %v778, %v776
      %v1031 = vpack.c.b16 %v781, %v779
      %v1032 = vpack.c.b16 %v782, %v780
      %v1033 = vpack.c.b16 %v785, %v783
      %v1034 = vpack.c.b16 %v786, %v784
      %v1035 = vpack.c.b16 %v789, %v787
      %v1036 = vpack.c.b16 %v790, %v788
      %v1037 = vpack.c.b16 %v793, %v791
      %v1038 = vpack.c.b16 %v794, %v792
      %v1039 = vpack.c.b16 %v797, %v795
      %v1040 = vpack.c.b16 %v798, %v796
      %v1041 = vpack.c.b16 %v801, %v799
      %v1042 = vpack.c.b16 %v802, %v800
      %v1043 = vpack.c.b16 %v805, %v803
      %v1044 = vpack.c.b16 %v806, %v804
      %v1045 = vpack.c.b16 %v809, %v807
      %v1046 = vpack.c.b16 %v810, %v808
      %v1047 = vpack.c.b16 %v813, %v811
      %v1048 = vpack.c.b16 %v814, %v812
      %v1049 = vpack.c.b16 %v817, %v815
      %v1050 = vpack.c.b16 %v818, %v816
      %v1051 = vpack.c.b16 %v821, %v819
      %v1052 = vpack.c.b16 %v822, %v820
      %v1053 = vpack.c.b16 %v825, %v823
      %v1054 = vpack.c.b16 %v826, %v824
      %v1055 = vpack.c.b16 %v829, %v827
      %v1056 = vpack.c.b16 %v830, %v828
      %v1057 = vpack.c.b16 %v833, %v831
      %v1058 = vpack.c.b16 %v834, %v832
      %v1059 = vpack.c.b16 %v837, %v835
      %v1060 = vpack.c.b16 %v838, %v836
      %v1061 = vpack.c.b16 %v841, %v839
      %v1062 = vpack.c.b16 %v842, %v840
      %v1063 = vpack.c.b16 %v845, %v843
      %v1064 = vpack.c.b16 %v846, %v844
      %v1065 = vpack.c.b16 %v849, %v847
      %v1066 = vpack.c.b16 %v850, %v848
      %v1067 = vpack.c.b16 %v853, %v851
      %v1068 = vpack.c.b16 %v854, %v852
      %v1069 = vpack.c.b16 %v857, %v855
      %v1070 = vpack.c.b16 %v858, %v856
      %v1071 = vpack.c.b16 %v861, %v859
      %v1072 = vpack.c.b16 %v862, %v860
      %v1073 = vpack.c.b16 %v865, %v863
      %v1074 = vpack.c.b16 %v866, %v864
      %v1075 = vpack.c.b16 %v869, %v867
      %v1076 = vpack.c.b16 %v870, %v868
      %v1077 = vpack.c.b16 %v873, %v871
      %v1078 = vpack.c.b16 %v874, %v872
      %v1079 = vpack.c.b16 %v877, %v875
      %v1080 = vpack.c.b16 %v878, %v876
      %v1081 = vpack.c.b16 %v881, %v879
      %v1082 = vpack.c.b16 %v882, %v880
      %v1083 = vpack.c.b16 %v885, %v883
      %v1084 = vpack.c.b16 %v886, %v884
      %v1085 = vpack.c.b16 %v889, %v887
      %v1086 = vpack.c.b16 %v890, %v888
      %v1087 = vpack.c.b16 %v893, %v891
      %v1088 = vpack.c.b16 %v894, %v892
      %v1089 = vpack.c.b16 %v897, %v895
      %v1090 = vpack.c.b16 %v898, %v896
      %v1091 = vpack.c.b16 %v901, %v899
      %v1092 = vpack.c.b16 %v902, %v900
      %v1093 = vpack.c.b16 %v905, %v903
      %v1094 = vpack.c.b16 %v906, %v904
      %v1095 = vpack.c.b16 %v909, %v907
      %v1096 = vpack.c.b16 %v910, %v908
      %v1097 = vpack.c.b16 %v913, %v911
      %v1098 = vpack.c.b16 %v914, %v912
      %v1099 = vpack.c.b16 %v917, %v915
      %v1100 = vpack.c.b16 %v918, %v916
      %v1101 = vpack.c.b16 %v921, %v919
      %v1102 = vpack.c.b16 %v922, %v920
      %v1103 = vpack.c.b16 %v925, %v923
      %v1104 = vpack.c.b16 %v926, %v924
      %v1105 = vpack.c.b16 %v929, %v927
      %v1106 = vpack.c.b16 %v930, %v928
      %v1107 = vpack.c.b16 %v933, %v931
      %v1108 = vpack.c.b16 %v934, %v932
      %v1109 = vpack.c.b16 %v937, %v935
      %v1110 = vpack.c.b16 %v938, %v936
      %v1111 = vpack.c.b16 %v941, %v939
      %v1112 = vpack.c.b16 %v942, %v940
      %v1113 = vpack.c.b16 %v945, %v943
      %v1114 = vpack.c.b16 %v946, %v944
      %v1115 = vpack.c.b16 %v949, %v947
      %v1116 = vpack.c.b16 %v950, %v948
      %v1117 = vpack.c.b16 %v953, %v951
      %v1118 = vpack.c.b16 %v954, %v952
      %v1119 = vpack.c.b16 %v957, %v955
      %v1120 = vpack.c.b16 %v958, %v956
      %v1121 = vpack.c.b16 %v961, %v959
      %v1122 = vpack.c.b16 %v962, %v960
      %v1123 = vpack.c.b16 %v965, %v963
      %v1124 = vpack.c.b16 %v966, %v964
      %v1125 = vpack.c.b16 %v969, %v967
      %v1126 = vpack.c.b16 %v970, %v968
      %v1127 = vpack.c.b16 %v973, %v971
      %v1128 = vpack.c.b16 %v974, %v972
      %v1129 = vpack.c.b16 %v977, %v975
      %v1130 = vpack.c.b16 %v978, %v976
      %v1131 = vpack.c.b16 %v981, %v979
      %v1132 = vpack.c.b16 %v982, %v980
      %v1133 = vpack.c.b16 %v985, %v983
      %v1134 = vpack.c.b16 %v986, %v984
      %v1135 = vpack.c.b16 %v989, %v987
      %v1136 = vpack.c.b16 %v990, %v988
      %v1137 = vpack.c.b16 %v993, %v991
      %v1138 = vpack.c.b16 %v994, %v992
      %1283 = vmatprep.subr.bf16.mxu0 %v996
      %1284 = vmatpush1.bf16.msra.mxu0 %v995
      %1285 = vmatprep.subr.bf16.mxu0 %v998
      %1286 = vmatpush1.bf16.msra.mxu0 %v997
      %1287 = vmatprep.subr.bf16.mxu0 %v1000
      %1288 = vmatpush1.bf16.msra.mxu0 %v999
      %1289 = vmatprep.subr.bf16.mxu0 %v1002
      %1290 = vmatpush1.bf16.msra.mxu0 %v1001
      %1291 = vmatprep.subr.bf16.mxu0 %v1004
      %1292 = vmatpush1.bf16.msra.mxu0 %v1003
      %1293 = vmatprep.subr.bf16.mxu0 %v1006
      %1294 = vmatpush1.bf16.msra.mxu0 %v1005
      %1295 = vmatprep.subr.bf16.mxu0 %v1008
      %1296 = vmatpush1.bf16.msra.mxu0 %v1007
      %1297 = vmatprep.subr.bf16.mxu0 %v1010
      %1298 = vmatpush1.bf16.msra.mxu0 %v1009
      %1299 = vmatprep.subr.bf16.mxu0 %v1012
      %1300 = vmatpush1.bf16.msra.mxu0 %v1011
      %1301 = vmatprep.subr.bf16.mxu0 %v1014
      %1302 = vmatpush1.bf16.msra.mxu0 %v1013
      %1303 = vmatprep.subr.bf16.mxu0 %v1016
      %1304 = vmatpush1.bf16.msra.mxu0 %v1015
      %1305 = vmatprep.subr.bf16.mxu0 %v1018
      %1306 = vmatpush1.bf16.msra.mxu0 %v1017
      %1307 = vmatprep.subr.bf16.mxu0 %v1020
      %1308 = vmatpush1.bf16.msra.mxu0 %v1019
      %1309 = vmatprep.subr.bf16.mxu0 %v1022
      %1310 = vmatpush1.bf16.msra.mxu0 %v1021
      %1311 = vmatprep.subr.bf16.mxu0 %v1024
      %1312 = vmatpush1.bf16.msra.mxu0 %v1023
      %1313 = vmatprep.subr.bf16.mxu0 %v1026
      %1314 = vmatpush1.bf16.msra.mxu0 %v1025
      %1315 = vmatprep.mubr.bf16.mxu0 %v362
      %1316 = vmatmul.mubr.bf16.gmra.mrb[0].mxu0 %v344
      %v1317 = vpop.f32.mrb[0].mxu0
      %v1318 = vadd.f32 %v556, %v1317
      %v1319 = vpop.f32.mrb[0].mxu0
      %v1320 = vadd.f32 %v560, %v1319
      %v1321 = vpop.f32.mrb[0].mxu0
      %v1322 = vpop.f32.mrb[0].mxu0
      %1323 = vdwg.mxu0
      %1324 = vmatprep.subr.bf16.mxu0 %v1028
      %1325 = vmatpush1.bf16.msra.mxu0 %v1027
      %1326 = vmatprep.subr.bf16.mxu0 %v1030
      %1327 = vmatpush1.bf16.msra.mxu0 %v1029
      %1328 = vmatprep.subr.bf16.mxu0 %v1032
      %1329 = vmatpush1.bf16.msra.mxu0 %v1031
      %1330 = vmatprep.subr.bf16.mxu0 %v1034
      %1331 = vmatpush1.bf16.msra.mxu0 %v1033
      %1332 = vmatprep.subr.bf16.mxu0 %v1036
      %1333 = vmatpush1.bf16.msra.mxu0 %v1035
      %1334 = vmatprep.subr.bf16.mxu0 %v1038
      %1335 = vmatpush1.bf16.msra.mxu0 %v1037
      %1336 = vmatprep.subr.bf16.mxu0 %v1040
      %1337 = vmatpush1.bf16.msra.mxu0 %v1039
      %1338 = vmatprep.subr.bf16.mxu0 %v1042
      %1339 = vmatpush1.bf16.msra.mxu0 %v1041
      %1340 = vmatprep.subr.bf16.mxu0 %v1044
      %1341 = vmatpush1.bf16.msra.mxu0 %v1043
      %1342 = vmatprep.subr.bf16.mxu0 %v1046
      %1343 = vmatpush1.bf16.msra.mxu0 %v1045
      %1344 = vmatprep.subr.bf16.mxu0 %v1048
      %1345 = vmatpush1.bf16.msra.mxu0 %v1047
      %1346 = vmatprep.subr.bf16.mxu0 %v1050
      %1347 = vmatpush1.bf16.msra.mxu0 %v1049
      %1348 = vmatprep.subr.bf16.mxu0 %v1052
      %1349 = vmatpush1.bf16.msra.mxu0 %v1051
      %1350 = vmatprep.subr.bf16.mxu0 %v1054
      %1351 = vmatpush1.bf16.msra.mxu0 %v1053
      %1352 = vmatprep.subr.bf16.mxu0 %v1056
      %1353 = vmatpush1.bf16.msra.mxu0 %v1055
      %1354 = vmatprep.subr.bf16.mxu0 %v1058
      %1355 = vmatpush1.bf16.msra.mxu0 %v1057
      %1356 = vmatprep.mubr.bf16.mxu0 %v347
      %1357 = vmatmul.mubr.bf16.gmra.mrb[0].mxu0 %v369
      %v1358 = vpop.f32.mrb[0].mxu0
      %v1359 = vadd.f32 %v1318, %v1358
      %v1360 = vpop.f32.mrb[0].mxu0
      %v1361 = vadd.f32 %v1320, %v1360
      %v1362 = vpop.f32.mrb[0].mxu0
      %v1363 = vpop.f32.mrb[0].mxu0
      %1364 = vdwg.mxu0
      %1365 = vmatprep.subr.bf16.mxu0 %v1060
      %1366 = vmatpush1.bf16.msra.mxu0 %v1059
      %1367 = vmatprep.subr.bf16.mxu0 %v1062
      %1368 = vmatpush1.bf16.msra.mxu0 %v1061
      %1369 = vmatprep.subr.bf16.mxu0 %v1064
      %1370 = vmatpush1.bf16.msra.mxu0 %v1063
      %1371 = vmatprep.subr.bf16.mxu0 %v1066
      %1372 = vmatpush1.bf16.msra.mxu0 %v1065
      %1373 = vmatprep.subr.bf16.mxu0 %v1068
      %1374 = vmatpush1.bf16.msra.mxu0 %v1067
      %1375 = vmatprep.subr.bf16.mxu0 %v1070
      %1376 = vmatpush1.bf16.msra.mxu0 %v1069
      %1377 = vmatprep.subr.bf16.mxu0 %v1072
      %1378 = vmatpush1.bf16.msra.mxu0 %v1071
      %1379 = vmatprep.subr.bf16.mxu0 %v1074
      %1380 = vmatpush1.bf16.msra.mxu0 %v1073
      %1381 = vmatprep.subr.bf16.mxu0 %v1076
      %1382 = vmatpush1.bf16.msra.mxu0 %v1075
      %1383 = vmatprep.subr.bf16.mxu0 %v1078
      %1384 = vmatpush1.bf16.msra.mxu0 %v1077
      %1385 = vmatprep.subr.bf16.mxu0 %v1080
      %1386 = vmatpush1.bf16.msra.mxu0 %v1079
      %1387 = vmatprep.subr.bf16.mxu0 %v1082
      %1388 = vmatpush1.bf16.msra.mxu0 %v1081
      %1389 = vmatprep.subr.bf16.mxu0 %v1084
      %1390 = vmatpush1.bf16.msra.mxu0 %v1083
      %1391 = vmatprep.subr.bf16.mxu0 %v1086
      %1392 = vmatpush1.bf16.msra.mxu0 %v1085
      %1393 = vmatprep.subr.bf16.mxu0 %v1088
      %1394 = vmatpush1.bf16.msra.mxu0 %v1087
      %1395 = vmatprep.subr.bf16.mxu0 %v1090
      %1396 = vmatpush1.bf16.msra.mxu0 %v1089
      %1397 = vmatprep.mubr.bf16.mxu0 %v387
      %1398 = vmatmul.mubr.bf16.gmra.mrb[0].mxu0 %v380
      %v1399 = vpop.f32.mrb[0].mxu0
      %v1400 = vadd.f32 %v1359, %v1399
      %v1401 = vpop.f32.mrb[0].mxu0
      %v1402 = vadd.f32 %v1361, %v1401
      %v1403 = vpop.f32.mrb[0].mxu0
      %v1404 = vpop.f32.mrb[0].mxu0
      %1405 = vdwg.mxu0
      %1406 = vmatprep.subr.bf16.mxu0 %v1092
      %1407 = vmatpush1.bf16.msra.mxu0 %v1091
      %1408 = vmatprep.subr.bf16.mxu0 %v1094
      %1409 = vmatpush1.bf16.msra.mxu0 %v1093
      %1410 = vmatprep.subr.bf16.mxu0 %v1096
      %1411 = vmatpush1.bf16.msra.mxu0 %v1095
      %1412 = vmatprep.subr.bf16.mxu0 %v1098
      %1413 = vmatpush1.bf16.msra.mxu0 %v1097
      %1414 = vmatprep.subr.bf16.mxu0 %v1100
      %1415 = vmatpush1.bf16.msra.mxu0 %v1099
      %1416 = vmatprep.subr.bf16.mxu0 %v1102
      %1417 = vmatpush1.bf16.msra.mxu0 %v1101
      %1418 = vmatprep.subr.bf16.mxu0 %v1104
      %1419 = vmatpush1.bf16.msra.mxu0 %v1103
      %1420 = vmatprep.subr.bf16.mxu0 %v1106
      %1421 = vmatpush1.bf16.msra.mxu0 %v1105
      %1422 = vmatprep.subr.bf16.mxu0 %v1108
      %1423 = vmatpush1.bf16.msra.mxu0 %v1107
      %1424 = vmatprep.subr.bf16.mxu0 %v1110
      %1425 = vmatpush1.bf16.msra.mxu0 %v1109
      %1426 = vmatprep.subr.bf16.mxu0 %v1112
      %1427 = vmatpush1.bf16.msra.mxu0 %v1111
      %1428 = vmatprep.subr.bf16.mxu0 %v1114
      %1429 = vmatpush1.bf16.msra.mxu0 %v1113
      %1430 = vmatprep.subr.bf16.mxu0 %v1116
      %1431 = vmatpush1.bf16.msra.mxu0 %v1115
      %1432 = vmatprep.subr.bf16.mxu0 %v1118
      %1433 = vmatpush1.bf16.msra.mxu0 %v1117
      %1434 = vmatprep.subr.bf16.mxu0 %v1120
      %1435 = vmatpush1.bf16.msra.mxu0 %v1119
      %1436 = vmatprep.subr.bf16.mxu0 %v1122
      %1437 = vmatpush1.bf16.msra.mxu0 %v1121
      %1438 = vmatprep.mubr.bf16.mxu0 %v398
      %1439 = vmatmul.mubr.bf16.gmra.mrb[0].mxu0 %v350
      %v1440 = vpop.f32.mrb[0].mxu0
      %v1441 = vadd.f32 %v1400, %v1440
      %v1442 = vpop.f32.mrb[0].mxu0
      %v1443 = vadd.f32 %v1402, %v1442
      %v1444 = vpop.f32.mrb[0].mxu0
      %v1445 = vpop.f32.mrb[0].mxu0
      %1446 = vdwg.mxu0
      %1447 = vmatprep.subr.bf16.mxu0 %v1124
      %1448 = vmatpush1.bf16.msra.mxu0 %v1123
      %1449 = vmatprep.subr.bf16.mxu0 %v1126
      %1450 = vmatpush1.bf16.msra.mxu0 %v1125
      %1451 = vmatprep.subr.bf16.mxu0 %v1128
      %1452 = vmatpush1.bf16.msra.mxu0 %v1127
      %1453 = vmatprep.subr.bf16.mxu0 %v1130
      %1454 = vmatpush1.bf16.msra.mxu0 %v1129
      %1455 = vmatprep.subr.bf16.mxu0 %v1132
      %1456 = vmatpush1.bf16.msra.mxu0 %v1131
      %1457 = vmatprep.subr.bf16.mxu0 %v1134
      %1458 = vmatpush1.bf16.msra.mxu0 %v1133
      %1459 = vmatprep.subr.bf16.mxu0 %v1136
      %1460 = vmatpush1.bf16.msra.mxu0 %v1135
      %1461 = vmatprep.subr.bf16.mxu0 %v1138
      %1462 = vmatpush1.bf16.msra.mxu0 %v1137
      %1463 = vmatprep.subr.bf16.mxu0 0
      %1464 = vmatpush1.bf16.msra.mxu0 0
      %1465 = vmatprep.subr.bf16.mxu0 0
      %1466 = vmatpush1.bf16.msra.mxu0 0
      %1467 = vmatprep.subr.bf16.mxu0 0
      %1468 = vmatpush1.bf16.msra.mxu0 0
      %1469 = vmatprep.subr.bf16.mxu0 0
      %1470 = vmatpush1.bf16.msra.mxu0 0
      %1471 = vmatprep.subr.bf16.mxu0 0
      %1472 = vmatpush1.bf16.msra.mxu0 0
      %1473 = vmatprep.subr.bf16.mxu0 0
      %1474 = vmatpush1.bf16.msra.mxu0 0
      %1475 = vmatprep.subr.bf16.mxu0 0
      %1476 = vmatpush1.bf16.msra.mxu0 0
      %1477 = vmatprep.subr.bf16.mxu0 0
      %1478 = vmatpush1.bf16.msra.mxu0 0
      %1479 = vmatprep.mubr.bf16.mxu0 0
      %1480 = vmatmul.mubr.bf16.gmra.mrb[0].mxu0 %v405
      %v1481 = vpop.f32.mrb[0].mxu0
      %v1482 = vadd.f32 %v1441, %v1481
      %v1483 = vpop.f32.mrb[0].mxu0
      %v1484 = vadd.f32 %v1443, %v1483
      %v1485 = vpop.f32.mrb[0].mxu0
      %v1486 = vpop.f32.mrb[0].mxu0
      %1487 = vdwg.mxu0
      %v1488 = vmax.f32 %v1482, 0.0
      %v1489 = vmax.f32 %v1484, 0.0
      %v1490 = vpack.c.bf16 %v1488, %v1488
      %v1491 = vpack.c.bf16 %v1489, %v1489
      %v1494 = vunpack.c.l.b16 %v1490
      %v1495 = vunpack.c.l.b16 %v1491
      %v1496 = vpack.c.b16 %v1495, %v1494
      %vm1498 = vcmask 1043456
      %vm1499 = vsmask.f32 3328
      %vm1500 = vmand %vm1498, %vm1499
      %vm1501 = vcmask 1047556
      %vm1502 = vsmask.f32 7424
      %vm1503 = vmand %vm1501, %vm1502
      %vm1504 = vmor %vm1503, %vm1500
      %v1505 = vld [vmem:[%s342] sm:$0xff]
      %v1506 = vsel %vm1504, %v1496, %v1505
      %1507 = vst [vmem:[%s342] sm:$0xff] %v1506
      %p1508 = scmp.lt.s32.totalorder %s20, 1
      %s1509 = scalar_select %p1508, %s20, 1
      %p1510 = scmp.lt.s32.totalorder %s21, 6
      %s1511 = scalar_select %p1510, %s21, 6
      %s1512 = smul.addr %s1511, 2
      %s1513 = smul.addr %s1509, 14
      %s1514 = sadd.s32 %s1512, %s1513
      %s1515 = smul.addr %s1514, 4
      %s1516 = scalar_lea.vmem %s5, %s1515
      // Predicated region
      $region41: #{my_model_forward.15} parent=39 // pred_check
        %p1517 = pneg %p178
      $region42: #{my_model_forward.15} parent=39 // pred_check_branch
        %1519 = sbr.rel (%p1517) target = $region44
      $region43: #{my_model_forward.15} parent=39 // pred_region
        _
      $region44: #{my_model_forward.15} parent=39 // pred_fallthru
        _
    $region40: #{my_model_forward.15} parent=5 // pred_fallthru
      _
    %p1520 = scmp.le.s32.totalorder 2, %s11
    // Predicated region
    $region45: #{my_model_forward.15} parent=5 // pred_check
      %p1521 = pneg %p1520
    $region46: #{my_model_forward.15} parent=5 // pred_check_branch
      %1523 = sbr.rel (%p1521) target = $region48
    $region47: #{my_model_forward.15} parent=5 // pred_region
      %s1524 = ssub.s32 %s11, 2
      // Predicated region
      $region49: #{my_model_forward.15} parent=47 // pred_check
        %p1525 = pneg %p184
      $region50: #{my_model_forward.15} parent=47 // pred_check_branch
        %1527 = sbr.rel (%p1525) target = $region52
      $region51: #{my_model_forward.15} parent=47 // pred_region
        %p1528 = scmp.lt.s32.totalorder %s22, 1
        %s1529 = scalar_select %p1528, %s22, 1
        %p1530 = scmp.lt.s32.totalorder %s23, 6
        %s1531 = scalar_select %p1530, %s23, 6
        %s1532 = smul.addr %s1531, 2
        %s1533 = smul.addr %s1529, 14
        %s1534 = sadd.s32 %s1532, %s1533
        %s1535 = smul.addr %s1534, 4
        %s1536 = scalar_lea.vmem %s5, %s1535
      $region52: #{my_model_forward.15} parent=47 // pred_fallthru
        _
    $region48: #{my_model_forward.15} parent=5 // pred_fallthru
      _
  $region6: #{my_model_forward.15} parent=0 // loop_footer
    %s15 = sadd.s32 1, %s11
  $region7: #{my_model_forward.15} parent=0 // loop_footer_branch
    %10 = sbr.rel target = $region3
  $region8: #{my_model_forward.15} parent=0 // loop_exit
    _

// kernel: my_model_forward.17
$region0: #{my_model_forward.17}
  #allocation0 [shape = 'u32[]', space=smem, size = 0x4, offset = 0x4, fixed_abs, tag = 'smem constant byte address 0x4 - core index']
  #allocation1 [shape = 'u32[144,128]{1,0:T(1,128)}', space=vmem, size = 0x12000, scoped, tag = 'internal scratch']
  %s0 = inlined_call_operand.vmem [shape: bf16[2,2304], index: 0, kind: input, shape index: {}]
  %s1 = inlined_call_operand.vmem [shape: bf16[2304,256], index: 1, kind: input, shape index: {}]
  %s2 = inlined_call_operand.vmem [shape: f32[1,256], index: 2, kind: input, shape index: {}]
  %s3 = inlined_call_operand.vmem [shape: bf16[256,128], index: 3, kind: input, shape index: {}]
  %s4 = inlined_call_operand.vmem [shape: f32[1,128], index: 4, kind: input, shape index: {}]
  %s5 = inlined_call_operand.vmem [shape: bf16[128,128], index: 5, kind: input, shape index: {}]
  %s6 = inlined_call_operand.vmem [shape: f32[1,128], index: 6, kind: input, shape index: {}]
  %s7 = inlined_call_operand.hbm [shape: f32[2,128], index: 7, kind: output, shape index: {}]
  %s8 = sld [smem:[#allocation0]]
  $region38: #{my_model_forward.17} parent=0
    _
  %s10 = ssub.s32 1, %s8
  %s11 = scalar_select 0, %s10, %s8
  $region1: #{my_model_forward.17} parent=0
    #allocation2 [shape = 'u8[1024]{0}', space=vmem, size = 0x400, scoped, tag = 'output window, operand 0, single buffered']
    #allocation3 [shape = 's32[1]{0}', space=sflag, size = 0x4, scoped, tag = 'scoped memory for my_model_forward.17']
    %12 = vsyncpa [#allocation3], 0
    // Predicated region
    $region2: #{my_model_forward.17} parent=1 // pred_check
      _
    $region3: #{my_model_forward.17} parent=1 // pred_check_branch
      %14 = sbr.rel (0) target = $region5
    $region4: #{my_model_forward.17} parent=1 // pred_region
      _
    $region5: #{my_model_forward.17} parent=1 // pred_fallthru
      _
    // Predicated region
    $region6: #{my_model_forward.17} parent=1 // pred_check
      _
    $region7: #{my_model_forward.17} parent=1 // pred_check_branch
      %16 = sbr.rel (0) target = $region9
    $region8: #{my_model_forward.17} parent=1 // pred_region
      _
    $region9: #{my_model_forward.17} parent=1 // pred_fallthru
      _
    // Predicated region
    $region10: #{my_model_forward.17} parent=1 // pred_check
      _
    $region11: #{my_model_forward.17} parent=1 // pred_check_branch
      %18 = sbr.rel (0) target = $region13
    $region12: #{my_model_forward.17} parent=1 // pred_region
      _
    $region13: #{my_model_forward.17} parent=1 // pred_fallthru
      _
    // Predicated region
    $region14: #{my_model_forward.17} parent=1 // pred_check
      _
    $region15: #{my_model_forward.17} parent=1 // pred_check_branch
      %20 = sbr.rel (0) target = $region17
    $region16: #{my_model_forward.17} parent=1 // pred_region
      _
    $region17: #{my_model_forward.17} parent=1 // pred_fallthru
      _
    // Predicated region
    $region18: #{my_model_forward.17} parent=1 // pred_check
      _
    $region19: #{my_model_forward.17} parent=1 // pred_check_branch
      %22 = sbr.rel (0) target = $region21
    $region20: #{my_model_forward.17} parent=1 // pred_region
      _
    $region21: #{my_model_forward.17} parent=1 // pred_fallthru
      _
    // Predicated region
    $region22: #{my_model_forward.17} parent=1 // pred_check
      _
    $region23: #{my_model_forward.17} parent=1 // pred_check_branch
      %24 = sbr.rel (0) target = $region25
    $region24: #{my_model_forward.17} parent=1 // pred_region
      _
    $region25: #{my_model_forward.17} parent=1 // pred_fallthru
      _
    // Predicated region
    $region26: #{my_model_forward.17} parent=1 // pred_check
      _
    $region27: #{my_model_forward.17} parent=1 // pred_check_branch
      %26 = sbr.rel (0) target = $region29
    $region28: #{my_model_forward.17} parent=1 // pred_region
      _
    $region29: #{my_model_forward.17} parent=1 // pred_fallthru
      _
    %v28 = vld [vmem:[%s0] sm:$0xff]
    %v29 = vld [vmem:[%s0 + $0x8] sm:$0xff]
    %v30 = vld [vmem:[%s0 + $0x10] sm:$0x3]
    %v31 = vld [vmem:[%s1] sm:$0xff]
    %v32 = vld [vmem:[%s1 + $0x8] sm:$0xff]
    %v33 = vld [vmem:[%s1 + $0x10] sm:$0xff]
    %v34 = vld [vmem:[%s1 + $0x18] sm:$0xff]
    %v35 = vld [vmem:[%s1 + $0x20] sm:$0xff]
    %v36 = vld [vmem:[%s1 + $0x28] sm:$0xff]
    %v37 = vld [vmem:[%s1 + $0x30] sm:$0xff]
    %v38 = vld [vmem:[%s1 + $0x38] sm:$0xff]
    %v39 = vld [vmem:[%s1 + $0x40] sm:$0xff]
    %v40 = vld [vmem:[%s1 + $0x48] sm:$0xff]
    %v41 = vld [vmem:[%s1 + $0x50] sm:$0xff]
    %v42 = vld [vmem:[%s1 + $0x58] sm:$0xff]
    %v43 = vld [vmem:[%s1 + $0x60] sm:$0xff]
    %v44 = vld [vmem:[%s1 + $0x68] sm:$0xff]
    %v45 = vld [vmem:[%s1 + $0x70] sm:$0xff]
    %v46 = vld [vmem:[%s1 + $0x78] sm:$0xff]
    %v47 = vld [vmem:[%s1 + $0x80] sm:$0xff]
    %v48 = vld [vmem:[%s1 + $0x88] sm:$0xff]
    %v49 = vld [vmem:[%s1 + $0x90] sm:$0xff]
    %v50 = vld [vmem:[%s1 + $0x98] sm:$0xff]
    %v51 = vld [vmem:[%s1 + $0xa0] sm:$0xff]
    %v52 = vld [vmem:[%s1 + $0xa8] sm:$0xff]
    %v53 = vld [vmem:[%s1 + $0xb0] sm:$0xff]
    %v54 = vld [vmem:[%s1 + $0xb8] sm:$0xff]
    %v55 = vld [vmem:[%s1 + $0xc0] sm:$0xff]
    %v56 = vld [vmem:[%s1 + $0xc8] sm:$0xff]
    %v57 = vld [vmem:[%s1 + $0xd0] sm:$0xff]
    %v58 = vld [vmem:[%s1 + $0xd8] sm:$0xff]
    %v59 = vld [vmem:[%s1 + $0xe0] sm:$0xff]
    %v60 = vld [vmem:[%s1 + $0xe8] sm:$0xff]
    %v61 = vld [vmem:[%s1 + $0xf0] sm:$0xff]
    %v62 = vld [vmem:[%s1 + $0xf8] sm:$0xff]
    %v63 = vld [vmem:[%s1 + $0x100] sm:$0xff]
    %v64 = vld [vmem:[%s1 + $0x108] sm:$0xff]
    %v65 = vld [vmem:[%s1 + $0x110] sm:$0xff]
    %v66 = vld [vmem:[%s1 + $0x118] sm:$0xff]
    %v67 = vld [vmem:[%s1 + $0x120] sm:$0xff]
    %v68 = vld [vmem:[%s1 + $0x128] sm:$0xff]
    %v69 = vld [vmem:[%s1 + $0x130] sm:$0xff]
    %v70 = vld [vmem:[%s1 + $0x138] sm:$0xff]
    %v71 = vld [vmem:[%s1 + $0x140] sm:$0xff]
    %v72 = vld [vmem:[%s1 + $0x148] sm:$0xff]
    %v73 = vld [vmem:[%s1 + $0x150] sm:$0xff]
    %v74 = vld [vmem:[%s1 + $0x158] sm:$0xff]
    %v75 = vld [vmem:[%s1 + $0x160] sm:$0xff]
    %v76 = vld [vmem:[%s1 + $0x168] sm:$0xff]
    %v77 = vld [vmem:[%s1 + $0x170] sm:$0xff]
    %v78 = vld [vmem:[%s1 + $0x178] sm:$0xff]
    %v79 = vld [vmem:[%s1 + $0x180] sm:$0xff]
    %v80 = vld [vmem:[%s1 + $0x188] sm:$0xff]
    %v81 = vld [vmem:[%s1 + $0x190] sm:$0xff]
    %v82 = vld [vmem:[%s1 + $0x198] sm:$0xff]
    %v83 = vld [vmem:[%s1 + $0x1a0] sm:$0xff]
    %v84 = vld [vmem:[%s1 + $0x1a8] sm:$0xff]
    %v85 = vld [vmem:[%s1 + $0x1b0] sm:$0xff]
    %v86 = vld [vmem:[%s1 + $0x1b8] sm:$0xff]
    %v87 = vld [vmem:[%s1 + $0x1c0] sm:$0xff]
    %v88 = vld [vmem:[%s1 + $0x1c8] sm:$0xff]
    %v89 = vld [vmem:[%s1 + $0x1d0] sm:$0xff]
    %v90 = vld [vmem:[%s1 + $0x1d8] sm:$0xff]
    %v91 = vld [vmem:[%s1 + $0x1e0] sm:$0xff]
    %v92 = vld [vmem:[%s1 + $0x1e8] sm:$0xff]
    %v93 = vld [vmem:[%s1 + $0x1f0] sm:$0xff]
    %v94 = vld [vmem:[%s1 + $0x1f8] sm:$0xff]
    %v95 = vld [vmem:[%s1 + $0x200] sm:$0xff]
    %v96 = vld [vmem:[%s1 + $0x208] sm:$0xff]
    %v97 = vld [vmem:[%s1 + $0x210] sm:$0xff]
    %v98 = vld [vmem:[%s1 + $0x218] sm:$0xff]
    %v99 = vld [vmem:[%s1 + $0x220] sm:$0xff]
    %v100 = vld [vmem:[%s1 + $0x228] sm:$0xff]
    %v101 = vld [vmem:[%s1 + $0x230] sm:$0xff]
    %v102 = vld [vmem:[%s1 + $0x238] sm:$0xff]
    %v103 = vld [vmem:[%s1 + $0x240] sm:$0xff]
    %v104 = vld [vmem:[%s1 + $0x248] sm:$0xff]
    %v105 = vld [vmem:[%s1 + $0x250] sm:$0xff]
    %v106 = vld [vmem:[%s1 + $0x258] sm:$0xff]
    %v107 = vld [vmem:[%s1 + $0x260] sm:$0xff]
    %v108 = vld [vmem:[%s1 + $0x268] sm:$0xff]
    %v109 = vld [vmem:[%s1 + $0x270] sm:$0xff]
    %v110 = vld [vmem:[%s1 + $0x278] sm:$0xff]
    %v111 = vld [vmem:[%s1 + $0x280] sm:$0xff]
    %v112 = vld [vmem:[%s1 + $0x288] sm:$0xff]
    %v113 = vld [vmem:[%s1 + $0x290] sm:$0xff]
    %v114 = vld [vmem:[%s1 + $0x298] sm:$0xff]
    %v115 = vld [vmem:[%s1 + $0x2a0] sm:$0xff]
    %v116 = vld [vmem:[%s1 + $0x2a8] sm:$0xff]
    %v117 = vld [vmem:[%s1 + $0x2b0] sm:$0xff]
    %v118 = vld [vmem:[%s1 + $0x2b8] sm:$0xff]
    %v119 = vld [vmem:[%s1 + $0x2c0] sm:$0xff]
    %v120 = vld [vmem:[%s1 + $0x2c8] sm:$0xff]
    %v121 = vld [vmem:[%s1 + $0x2d0] sm:$0xff]
    %v122 = vld [vmem:[%s1 + $0x2d8] sm:$0xff]
    %v123 = vld [vmem:[%s1 + $0x2e0] sm:$0xff]
    %v124 = vld [vmem:[%s1 + $0x2e8] sm:$0xff]
    %v125 = vld [vmem:[%s1 + $0x2f0] sm:$0xff]
    %v126 = vld [vmem:[%s1 + $0x2f8] sm:$0xff]
    %v127 = vld [vmem:[%s1 + $0x300] sm:$0xff]
    %v128 = vld [vmem:[%s1 + $0x308] sm:$0xff]
    %v129 = vld [vmem:[%s1 + $0x310] sm:$0xff]
    %v130 = vld [vmem:[%s1 + $0x318] sm:$0xff]
    %v131 = vld [vmem:[%s1 + $0x320] sm:$0xff]
    %v132 = vld [vmem:[%s1 + $0x328] sm:$0xff]
    %v133 = vld [vmem:[%s1 + $0x330] sm:$0xff]
    %v134 = vld [vmem:[%s1 + $0x338] sm:$0xff]
    %v135 = vld [vmem:[%s1 + $0x340] sm:$0xff]
    %v136 = vld [vmem:[%s1 + $0x348] sm:$0xff]
    %v137 = vld [vmem:[%s1 + $0x350] sm:$0xff]
    %v138 = vld [vmem:[%s1 + $0x358] sm:$0xff]
    %v139 = vld [vmem:[%s1 + $0x360] sm:$0xff]
    %v140 = vld [vmem:[%s1 + $0x368] sm:$0xff]
    %v141 = vld [vmem:[%s1 + $0x370] sm:$0xff]
    %v142 = vld [vmem:[%s1 + $0x378] sm:$0xff]
    %v143 = vld [vmem:[%s1 + $0x380] sm:$0xff]
    %v144 = vld [vmem:[%s1 + $0x388] sm:$0xff]
    %v145 = vld [vmem:[%s1 + $0x390] sm:$0xff]
    %v146 = vld [vmem:[%s1 + $0x398] sm:$0xff]
    %v147 = vld [vmem:[%s1 + $0x3a0] sm:$0xff]
    %v148 = vld [vmem:[%s1 + $0x3a8] sm:$0xff]
    %v149 = vld [vmem:[%s1 + $0x3b0] sm:$0xff]
    %v150 = vld [vmem:[%s1 + $0x3b8] sm:$0xff]
    %v151 = vld [vmem:[%s1 + $0x3c0] sm:$0xff]
    %v152 = vld [vmem:[%s1 + $0x3c8] sm:$0xff]
    %v153 = vld [vmem:[%s1 + $0x3d0] sm:$0xff]
    %v154 = vld [vmem:[%s1 + $0x3d8] sm:$0xff]
    %v155 = vld [vmem:[%s1 + $0x3e0] sm:$0xff]
    %v156 = vld [vmem:[%s1 + $0x3e8] sm:$0xff]
    %v157 = vld [vmem:[%s1 + $0x3f0] sm:$0xff]
    %v158 = vld [vmem:[%s1 + $0x3f8] sm:$0xff]
    %v159 = vld [vmem:[%s1 + $0x400] sm:$0xff]
    %v160 = vld [vmem:[%s1 + $0x408] sm:$0xff]
    %v161 = vld [vmem:[%s1 + $0x410] sm:$0xff]
    %v162 = vld [vmem:[%s1 + $0x418] sm:$0xff]
    %v163 = vld [vmem:[%s1 + $0x420] sm:$0xff]
    %v164 = vld [vmem:[%s1 + $0x428] sm:$0xff]
    %v165 = vld [vmem:[%s1 + $0x430] sm:$0xff]
    %v166 = vld [vmem:[%s1 + $0x438] sm:$0xff]
    %v167 = vld [vmem:[%s1 + $0x440] sm:$0xff]
    %v168 = vld [vmem:[%s1 + $0x448] sm:$0xff]
    %v169 = vld [vmem:[%s1 + $0x450] sm:$0xff]
    %v170 = vld [vmem:[%s1 + $0x458] sm:$0xff]
    %v171 = vld [vmem:[%s1 + $0x460] sm:$0xff]
    %v172 = vld [vmem:[%s1 + $0x468] sm:$0xff]
    %v173 = vld [vmem:[%s1 + $0x470] sm:$0xff]
    %v174 = vld [vmem:[%s1 + $0x478] sm:$0xff]
    %v175 = vld [vmem:[%s1 + $0x480] sm:$0xff]
    %v176 = vld [vmem:[%s1 + $0x488] sm:$0xff]
    %v177 = vld [vmem:[%s1 + $0x490] sm:$0xff]
    %v178 = vld [vmem:[%s1 + $0x498] sm:$0xff]
    %v179 = vld [vmem:[%s1 + $0x4a0] sm:$0xff]
    %v180 = vld [vmem:[%s1 + $0x4a8] sm:$0xff]
    %v181 = vld [vmem:[%s1 + $0x4b0] sm:$0xff]
    %v182 = vld [vmem:[%s1 + $0x4b8] sm:$0xff]
    %v183 = vld [vmem:[%s1 + $0x4c0] sm:$0xff]
    %v184 = vld [vmem:[%s1 + $0x4c8] sm:$0xff]
    %v185 = vld [vmem:[%s1 + $0x4d0] sm:$0xff]
    %v186 = vld [vmem:[%s1 + $0x4d8] sm:$0xff]
    %v187 = vld [vmem:[%s1 + $0x4e0] sm:$0xff]
    %v188 = vld [vmem:[%s1 + $0x4e8] sm:$0xff]
    %v189 = vld [vmem:[%s1 + $0x4f0] sm:$0xff]
    %v190 = vld [vmem:[%s1 + $0x4f8] sm:$0xff]
    %v191 = vld [vmem:[%s1 + $0x500] sm:$0xff]
    %v192 = vld [vmem:[%s1 + $0x508] sm:$0xff]
    %v193 = vld [vmem:[%s1 + $0x510] sm:$0xff]
    %v194 = vld [vmem:[%s1 + $0x518] sm:$0xff]
    %v195 = vld [vmem:[%s1 + $0x520] sm:$0xff]
    %v196 = vld [vmem:[%s1 + $0x528] sm:$0xff]
    %v197 = vld [vmem:[%s1 + $0x530] sm:$0xff]
    %v198 = vld [vmem:[%s1 + $0x538] sm:$0xff]
    %v199 = vld [vmem:[%s1 + $0x540] sm:$0xff]
    %v200 = vld [vmem:[%s1 + $0x548] sm:$0xff]
    %v201 = vld [vmem:[%s1 + $0x550] sm:$0xff]
    %v202 = vld [vmem:[%s1 + $0x558] sm:$0xff]
    %v203 = vld [vmem:[%s1 + $0x560] sm:$0xff]
    %v204 = vld [vmem:[%s1 + $0x568] sm:$0xff]
    %v205 = vld [vmem:[%s1 + $0x570] sm:$0xff]
    %v206 = vld [vmem:[%s1 + $0x578] sm:$0xff]
    %v207 = vld [vmem:[%s1 + $0x580] sm:$0xff]
    %v208 = vld [vmem:[%s1 + $0x588] sm:$0xff]
    %v209 = vld [vmem:[%s1 + $0x590] sm:$0xff]
    %v210 = vld [vmem:[%s1 + $0x598] sm:$0xff]
    %v211 = vld [vmem:[%s1 + $0x5a0] sm:$0xff]
    %v212 = vld [vmem:[%s1 + $0x5a8] sm:$0xff]
    %v213 = vld [vmem:[%s1 + $0x5b0] sm:$0xff]
    %v214 = vld [vmem:[%s1 + $0x5b8] sm:$0xff]
    %v215 = vld [vmem:[%s1 + $0x5c0] sm:$0xff]
    %v216 = vld [vmem:[%s1 + $0x5c8] sm:$0xff]
    %v217 = vld [vmem:[%s1 + $0x5d0] sm:$0xff]
    %v218 = vld [vmem:[%s1 + $0x5d8] sm:$0xff]
    %v219 = vld [vmem:[%s1 + $0x5e0] sm:$0xff]
    %v220 = vld [vmem:[%s1 + $0x5e8] sm:$0xff]
    %v221 = vld [vmem:[%s1 + $0x5f0] sm:$0xff]
    %v222 = vld [vmem:[%s1 + $0x5f8] sm:$0xff]
    %v223 = vld [vmem:[%s1 + $0x600] sm:$0xff]
    %v224 = vld [vmem:[%s1 + $0x608] sm:$0xff]
    %v225 = vld [vmem:[%s1 + $0x610] sm:$0xff]
    %v226 = vld [vmem:[%s1 + $0x618] sm:$0xff]
    %v227 = vld [vmem:[%s1 + $0x620] sm:$0xff]
    %v228 = vld [vmem:[%s1 + $0x628] sm:$0xff]
    %v229 = vld [vmem:[%s1 + $0x630] sm:$0xff]
    %v230 = vld [vmem:[%s1 + $0x638] sm:$0xff]
    %v231 = vld [vmem:[%s1 + $0x640] sm:$0xff]
    %v232 = vld [vmem:[%s1 + $0x648] sm:$0xff]
    %v233 = vld [vmem:[%s1 + $0x650] sm:$0xff]
    %v234 = vld [vmem:[%s1 + $0x658] sm:$0xff]
    %v235 = vld [vmem:[%s1 + $0x660] sm:$0xff]
    %v236 = vld [vmem:[%s1 + $0x668] sm:$0xff]
    %v237 = vld [vmem:[%s1 + $0x670] sm:$0xff]
    %v238 = vld [vmem:[%s1 + $0x678] sm:$0xff]
    %v239 = vld [vmem:[%s1 + $0x680] sm:$0xff]
    %v240 = vld [vmem:[%s1 + $0x688] sm:$0xff]
    %v241 = vld [vmem:[%s1 + $0x690] sm:$0xff]
    %v242 = vld [vmem:[%s1 + $0x698] sm:$0xff]
    %v243 = vld [vmem:[%s1 + $0x6a0] sm:$0xff]
    %v244 = vld [vmem:[%s1 + $0x6a8] sm:$0xff]
    %v245 = vld [vmem:[%s1 + $0x6b0] sm:$0xff]
    %v246 = vld [vmem:[%s1 + $0x6b8] sm:$0xff]
    %v247 = vld [vmem:[%s1 + $0x6c0] sm:$0xff]
    %v248 = vld [vmem:[%s1 + $0x6c8] sm:$0xff]
    %v249 = vld [vmem:[%s1 + $0x6d0] sm:$0xff]
    %v250 = vld [vmem:[%s1 + $0x6d8] sm:$0xff]
    %v251 = vld [vmem:[%s1 + $0x6e0] sm:$0xff]
    %v252 = vld [vmem:[%s1 + $0x6e8] sm:$0xff]
    %v253 = vld [vmem:[%s1 + $0x6f0] sm:$0xff]
    %v254 = vld [vmem:[%s1 + $0x6f8] sm:$0xff]
    %v255 = vld [vmem:[%s1 + $0x700] sm:$0xff]
    %v256 = vld [vmem:[%s1 + $0x708] sm:$0xff]
    %v257 = vld [vmem:[%s1 + $0x710] sm:$0xff]
    %v258 = vld [vmem:[%s1 + $0x718] sm:$0xff]
    %v259 = vld [vmem:[%s1 + $0x720] sm:$0xff]
    %v260 = vld [vmem:[%s1 + $0x728] sm:$0xff]
    %v261 = vld [vmem:[%s1 + $0x730] sm:$0xff]
    %v262 = vld [vmem:[%s1 + $0x738] sm:$0xff]
    %v263 = vld [vmem:[%s1 + $0x740] sm:$0xff]
    %v264 = vld [vmem:[%s1 + $0x748] sm:$0xff]
    %v265 = vld [vmem:[%s1 + $0x750] sm:$0xff]
    %v266 = vld [vmem:[%s1 + $0x758] sm:$0xff]
    %v267 = vld [vmem:[%s1 + $0x760] sm:$0xff]
    %v268 = vld [vmem:[%s1 + $0x768] sm:$0xff]
    %v269 = vld [vmem:[%s1 + $0x770] sm:$0xff]
    %v270 = vld [vmem:[%s1 + $0x778] sm:$0xff]
    %v271 = vld [vmem:[%s1 + $0x780] sm:$0xff]
    %v272 = vld [vmem:[%s1 + $0x788] sm:$0xff]
    %v273 = vld [vmem:[%s1 + $0x790] sm:$0xff]
    %v274 = vld [vmem:[%s1 + $0x798] sm:$0xff]
    %v275 = vld [vmem:[%s1 + $0x7a0] sm:$0xff]
    %v276 = vld [vmem:[%s1 + $0x7a8] sm:$0xff]
    %v277 = vld [vmem:[%s1 + $0x7b0] sm:$0xff]
    %v278 = vld [vmem:[%s1 + $0x7b8] sm:$0xff]
    %v279 = vld [vmem:[%s1 + $0x7c0] sm:$0xff]
    %v280 = vld [vmem:[%s1 + $0x7c8] sm:$0xff]
    %v281 = vld [vmem:[%s1 + $0x7d0] sm:$0xff]
    %v282 = vld [vmem:[%s1 + $0x7d8] sm:$0xff]
    %v283 = vld [vmem:[%s1 + $0x7e0] sm:$0xff]
    %v284 = vld [vmem:[%s1 + $0x7e8] sm:$0xff]
    %v285 = vld [vmem:[%s1 + $0x7f0] sm:$0xff]
    %v286 = vld [vmem:[%s1 + $0x7f8] sm:$0xff]
    %v287 = vld [vmem:[%s1 + $0x800] sm:$0xff]
    %v288 = vld [vmem:[%s1 + $0x808] sm:$0xff]
    %v289 = vld [vmem:[%s1 + $0x810] sm:$0xff]
    %v290 = vld [vmem:[%s1 + $0x818] sm:$0xff]
    %v291 = vld [vmem:[%s1 + $0x820] sm:$0xff]
    %v292 = vld [vmem:[%s1 + $0x828] sm:$0xff]
    %v293 = vld [vmem:[%s1 + $0x830] sm:$0xff]
    %v294 = vld [vmem:[%s1 + $0x838] sm:$0xff]
    %v295 = vld [vmem:[%s1 + $0x840] sm:$0xff]
    %v296 = vld [vmem:[%s1 + $0x848] sm:$0xff]
    %v297 = vld [vmem:[%s1 + $0x850] sm:$0xff]
    %v298 = vld [vmem:[%s1 + $0x858] sm:$0xff]
    %v299 = vld [vmem:[%s1 + $0x860] sm:$0xff]
    %v300 = vld [vmem:[%s1 + $0x868] sm:$0xff]
    %v301 = vld [vmem:[%s1 + $0x870] sm:$0xff]
    %v302 = vld [vmem:[%s1 + $0x878] sm:$0xff]
    %v303 = vld [vmem:[%s1 + $0x880] sm:$0xff]
    %v304 = vld [vmem:[%s1 + $0x888] sm:$0xff]
    %v305 = vld [vmem:[%s1 + $0x890] sm:$0xff]
    %v306 = vld [vmem:[%s1 + $0x898] sm:$0xff]
    %v307 = vld [vmem:[%s1 + $0x8a0] sm:$0xff]
    %v308 = vld [vmem:[%s1 + $0x8a8] sm:$0xff]
    %v309 = vld [vmem:[%s1 + $0x8b0] sm:$0xff]
    %v310 = vld [vmem:[%s1 + $0x8b8] sm:$0xff]
    %v311 = vld [vmem:[%s1 + $0x8c0] sm:$0xff]
    %v312 = vld [vmem:[%s1 + $0x8c8] sm:$0xff]
    %v313 = vld [vmem:[%s1 + $0x8d0] sm:$0xff]
    %v314 = vld [vmem:[%s1 + $0x8d8] sm:$0xff]
    %v315 = vld [vmem:[%s1 + $0x8e0] sm:$0xff]
    %v316 = vld [vmem:[%s1 + $0x8e8] sm:$0xff]
    %v317 = vld [vmem:[%s1 + $0x8f0] sm:$0xff]
    %v318 = vld [vmem:[%s1 + $0x8f8] sm:$0xff]
    %v319 = vld [vmem:[%s2] sm:$0x3]
    %v321 = vlaneseq
    %v322 = vshrl.u32 %v321, 7
    %v323 = vsub.s32 0, %v322
    %v324 = vrot.slane %v319, %v323
    %v325 = vlaneseq
    %v326 = vshrl.u32 %v325, 7
    %v327 = vsub.s32 1, %v326
    %v328 = vrot.slane %v319, %v327
    %v334 = vcombine.high %v28, %v28
    %v336 = vunpack.c.l.s4 1966171168
    %v337 = vunpack.c.0.s8 %v336
    %v338 = vlaneseq
    %v339 = vshrl.u32 %v338, 7
    %v340 = vsub.s32 %v337, %v339
    %v341 = vrot.slane %v28, %v340
    %v343 = vunpack.c.l.s4 1966171168
    %v344 = vunpack.c.0.s8 %v343
    %v345 = vlaneseq
    %v346 = vshrl.u32 %v345, 7
    %v347 = vsub.s32 %v344, %v346
    %v348 = vrot.slane %v334, %v347
    %v349 = vcombine.high %v341, %v341
    %v350 = vcombine.high %v348, %v348
    %v352 = vunpack.c.l.s4 1966171168
    %v353 = vunpack.c.0.s8 %v352
    %v354 = vlaneseq
    %v355 = vshrl.u32 %v354, 7
    %v356 = vsub.s32 %v353, %v355
    %v357 = vrot.slane %v341, %v356
    %v359 = vunpack.c.l.s4 1966171168
    %v360 = vunpack.c.0.s8 %v359
    %v361 = vlaneseq
    %v362 = vshrl.u32 %v361, 7
    %v363 = vsub.s32 %v360, %v362
    %v364 = vrot.slane %v348, %v363
    %v366 = vunpack.c.l.s4 1966171168
    %v367 = vunpack.c.0.s8 %v366
    %v368 = vlaneseq
    %v369 = vshrl.u32 %v368, 7
    %v370 = vsub.s32 %v367, %v369
    %v371 = vrot.slane %v349, %v370
    %v373 = vunpack.c.l.s4 1966171168
    %v374 = vunpack.c.0.s8 %v373
    %v375 = vlaneseq
    %v376 = vshrl.u32 %v375, 7
    %v377 = vsub.s32 %v374, %v376
    %v378 = vrot.slane %v350, %v377
    %v379 = vcombine.high %v357, %v357
    %v380 = vcombine.high %v364, %v364
    %v381 = vcombine.high %v371, %v371
    %v382 = vcombine.high %v378, %v378
    %v383 = vcombine.high %v29, %v29
    %v385 = vunpack.c.l.s4 1966171168
    %v386 = vunpack.c.0.s8 %v385
    %v387 = vlaneseq
    %v388 = vshrl.u32 %v387, 7
    %v389 = vsub.s32 %v386, %v388
    %v390 = vrot.slane %v29, %v389
    %v392 = vunpack.c.l.s4 1966171168
    %v393 = vunpack.c.0.s8 %v392
    %v394 = vlaneseq
    %v395 = vshrl.u32 %v394, 7
    %v396 = vsub.s32 %v393, %v395
    %v397 = vrot.slane %v383, %v396
    %v398 = vcombine.high %v390, %v390
    %v399 = vcombine.high %v397, %v397
    %v401 = vunpack.c.l.s4 1966171168
    %v402 = vunpack.c.0.s8 %v401
    %v403 = vlaneseq
    %v404 = vshrl.u32 %v403, 7
    %v405 = vsub.s32 %v402, %v404
    %v406 = vrot.slane %v390, %v405
    %v408 = vunpack.c.l.s4 1966171168
    %v409 = vunpack.c.0.s8 %v408
    %v410 = vlaneseq
    %v411 = vshrl.u32 %v410, 7
    %v412 = vsub.s32 %v409, %v411
    %v413 = vrot.slane %v397, %v412
    %v415 = vunpack.c.l.s4 1966171168
    %v416 = vunpack.c.0.s8 %v415
    %v417 = vlaneseq
    %v418 = vshrl.u32 %v417, 7
    %v419 = vsub.s32 %v416, %v418
    %v420 = vrot.slane %v398, %v419
    %v422 = vunpack.c.l.s4 1966171168
    %v423 = vunpack.c.0.s8 %v422
    %v424 = vlaneseq
    %v425 = vshrl.u32 %v424, 7
    %v426 = vsub.s32 %v423, %v425
    %v427 = vrot.slane %v399, %v426
    %v428 = vcombine.high %v406, %v406
    %v429 = vcombine.high %v413, %v413
    %v430 = vcombine.high %v420, %v420
    %v431 = vcombine.high %v427, %v427
    %v433 = vunpack.c.l.s4 1966171168
    %v434 = vunpack.c.0.s8 %v433
    %v435 = vlaneseq
    %v436 = vshrl.u32 %v435, 7
    %v437 = vsub.s32 %v434, %v436
    %v438 = vrot.slane %v30, %v437
    %v439 = vcombine.high %v438, %v438
    %v441 = vunpack.c.l.s4 1966171168
    %v442 = vunpack.c.0.s8 %v441
    %v443 = vlaneseq
    %v444 = vshrl.u32 %v443, 7
    %v445 = vsub.s32 %v442, %v444
    %v446 = vrot.slane %v438, %v445
    %v448 = vunpack.c.l.s4 1966171168
    %v449 = vunpack.c.0.s8 %v448
    %v450 = vlaneseq
    %v451 = vshrl.u32 %v450, 7
    %v452 = vsub.s32 %v449, %v451
    %v453 = vrot.slane %v439, %v452
    %v760 = vunpack.c.l.b16 %v31
    %v761 = vunpack.c.h.b16 %v31
    %v762 = vunpack.c.l.b16 %v32
    %v763 = vunpack.c.h.b16 %v32
    %v764 = vunpack.c.l.b16 %v33
    %v765 = vunpack.c.h.b16 %v33
    %v766 = vunpack.c.l.b16 %v34
    %v767 = vunpack.c.h.b16 %v34
    %v768 = vunpack.c.l.b16 %v35
    %v769 = vunpack.c.h.b16 %v35
    %v770 = vunpack.c.l.b16 %v36
    %v771 = vunpack.c.h.b16 %v36
    %v772 = vunpack.c.l.b16 %v37
    %v773 = vunpack.c.h.b16 %v37
    %v774 = vunpack.c.l.b16 %v38
    %v775 = vunpack.c.h.b16 %v38
    %v776 = vunpack.c.l.b16 %v39
    %v777 = vunpack.c.h.b16 %v39
    %v778 = vunpack.c.l.b16 %v40
    %v779 = vunpack.c.h.b16 %v40
    %v780 = vunpack.c.l.b16 %v41
    %v781 = vunpack.c.h.b16 %v41
    %v782 = vunpack.c.l.b16 %v42
    %v783 = vunpack.c.h.b16 %v42
    %v784 = vunpack.c.l.b16 %v43
    %v785 = vunpack.c.h.b16 %v43
    %v786 = vunpack.c.l.b16 %v44
    %v787 = vunpack.c.h.b16 %v44
    %v788 = vunpack.c.l.b16 %v45
    %v789 = vunpack.c.h.b16 %v45
    %v790 = vunpack.c.l.b16 %v46
    %v791 = vunpack.c.h.b16 %v46
    %v792 = vunpack.c.l.b16 %v47
    %v793 = vunpack.c.h.b16 %v47
    %v794 = vunpack.c.l.b16 %v48
    %v795 = vunpack.c.h.b16 %v48
    %v796 = vunpack.c.l.b16 %v49
    %v797 = vunpack.c.h.b16 %v49
    %v798 = vunpack.c.l.b16 %v50
    %v799 = vunpack.c.h.b16 %v50
    %v800 = vunpack.c.l.b16 %v51
    %v801 = vunpack.c.h.b16 %v51
    %v802 = vunpack.c.l.b16 %v52
    %v803 = vunpack.c.h.b16 %v52
    %v804 = vunpack.c.l.b16 %v53
    %v805 = vunpack.c.h.b16 %v53
    %v806 = vunpack.c.l.b16 %v54
    %v807 = vunpack.c.h.b16 %v54
    %v808 = vunpack.c.l.b16 %v55
    %v809 = vunpack.c.h.b16 %v55
    %v810 = vunpack.c.l.b16 %v56
    %v811 = vunpack.c.h.b16 %v56
    %v812 = vunpack.c.l.b16 %v57
    %v813 = vunpack.c.h.b16 %v57
    %v814 = vunpack.c.l.b16 %v58
    %v815 = vunpack.c.h.b16 %v58
    %v816 = vunpack.c.l.b16 %v59
    %v817 = vunpack.c.h.b16 %v59
    %v818 = vunpack.c.l.b16 %v60
    %v819 = vunpack.c.h.b16 %v60
    %v820 = vunpack.c.l.b16 %v61
    %v821 = vunpack.c.h.b16 %v61
    %v822 = vunpack.c.l.b16 %v62
    %v823 = vunpack.c.h.b16 %v62
    %v824 = vunpack.c.l.b16 %v63
    %v825 = vunpack.c.h.b16 %v63
    %v826 = vunpack.c.l.b16 %v64
    %v827 = vunpack.c.h.b16 %v64
    %v828 = vunpack.c.l.b16 %v65
    %v829 = vunpack.c.h.b16 %v65
    %v830 = vunpack.c.l.b16 %v66
    %v831 = vunpack.c.h.b16 %v66
    %v832 = vunpack.c.l.b16 %v67
    %v833 = vunpack.c.h.b16 %v67
    %v834 = vunpack.c.l.b16 %v68
    %v835 = vunpack.c.h.b16 %v68
    %v836 = vunpack.c.l.b16 %v69
    %v837 = vunpack.c.h.b16 %v69
    %v838 = vunpack.c.l.b16 %v70
    %v839 = vunpack.c.h.b16 %v70
    %v840 = vunpack.c.l.b16 %v71
    %v841 = vunpack.c.h.b16 %v71
    %v842 = vunpack.c.l.b16 %v72
    %v843 = vunpack.c.h.b16 %v72
    %v844 = vunpack.c.l.b16 %v73
    %v845 = vunpack.c.h.b16 %v73
    %v846 = vunpack.c.l.b16 %v74
    %v847 = vunpack.c.h.b16 %v74
    %v848 = vunpack.c.l.b16 %v75
    %v849 = vunpack.c.h.b16 %v75
    %v850 = vunpack.c.l.b16 %v76
    %v851 = vunpack.c.h.b16 %v76
    %v852 = vunpack.c.l.b16 %v77
    %v853 = vunpack.c.h.b16 %v77
    %v854 = vunpack.c.l.b16 %v78
    %v855 = vunpack.c.h.b16 %v78
    %v856 = vunpack.c.l.b16 %v79
    %v857 = vunpack.c.h.b16 %v79
    %v858 = vunpack.c.l.b16 %v80
    %v859 = vunpack.c.h.b16 %v80
    %v860 = vunpack.c.l.b16 %v81
    %v861 = vunpack.c.h.b16 %v81
    %v862 = vunpack.c.l.b16 %v82
    %v863 = vunpack.c.h.b16 %v82
    %v864 = vunpack.c.l.b16 %v83
    %v865 = vunpack.c.h.b16 %v83
    %v866 = vunpack.c.l.b16 %v84
    %v867 = vunpack.c.h.b16 %v84
    %v868 = vunpack.c.l.b16 %v85
    %v869 = vunpack.c.h.b16 %v85
    %v870 = vunpack.c.l.b16 %v86
    %v871 = vunpack.c.h.b16 %v86
    %v872 = vunpack.c.l.b16 %v87
    %v873 = vunpack.c.h.b16 %v87
    %v874 = vunpack.c.l.b16 %v88
    %v875 = vunpack.c.h.b16 %v88
    %v876 = vunpack.c.l.b16 %v89
    %v877 = vunpack.c.h.b16 %v89
    %v878 = vunpack.c.l.b16 %v90
    %v879 = vunpack.c.h.b16 %v90
    %v880 = vunpack.c.l.b16 %v91
    %v881 = vunpack.c.h.b16 %v91
    %v882 = vunpack.c.l.b16 %v92
    %v883 = vunpack.c.h.b16 %v92
    %v884 = vunpack.c.l.b16 %v93
    %v885 = vunpack.c.h.b16 %v93
    %v886 = vunpack.c.l.b16 %v94
    %v887 = vunpack.c.h.b16 %v94
    %v888 = vunpack.c.l.b16 %v95
    %v889 = vunpack.c.h.b16 %v95
    %v890 = vunpack.c.l.b16 %v96
    %v891 = vunpack.c.h.b16 %v96
    %v892 = vunpack.c.l.b16 %v97
    %v893 = vunpack.c.h.b16 %v97
    %v894 = vunpack.c.l.b16 %v98
    %v895 = vunpack.c.h.b16 %v98
    %v896 = vunpack.c.l.b16 %v99
    %v897 = vunpack.c.h.b16 %v99
    %v898 = vunpack.c.l.b16 %v100
    %v899 = vunpack.c.h.b16 %v100
    %v900 = vunpack.c.l.b16 %v101
    %v901 = vunpack.c.h.b16 %v101
    %v902 = vunpack.c.l.b16 %v102
    %v903 = vunpack.c.h.b16 %v102
    %v904 = vunpack.c.l.b16 %v103
    %v905 = vunpack.c.h.b16 %v103
    %v906 = vunpack.c.l.b16 %v104
    %v907 = vunpack.c.h.b16 %v104
    %v908 = vunpack.c.l.b16 %v105
    %v909 = vunpack.c.h.b16 %v105
    %v910 = vunpack.c.l.b16 %v106
    %v911 = vunpack.c.h.b16 %v106
    %v912 = vunpack.c.l.b16 %v107
    %v913 = vunpack.c.h.b16 %v107
    %v914 = vunpack.c.l.b16 %v108
    %v915 = vunpack.c.h.b16 %v108
    %v916 = vunpack.c.l.b16 %v109
    %v917 = vunpack.c.h.b16 %v109
    %v918 = vunpack.c.l.b16 %v110
    %v919 = vunpack.c.h.b16 %v110
    %v920 = vunpack.c.l.b16 %v111
    %v921 = vunpack.c.h.b16 %v111
    %v922 = vunpack.c.l.b16 %v112
    %v923 = vunpack.c.h.b16 %v112
    %v924 = vunpack.c.l.b16 %v113
    %v925 = vunpack.c.h.b16 %v113
    %v926 = vunpack.c.l.b16 %v114
    %v927 = vunpack.c.h.b16 %v114
    %v928 = vunpack.c.l.b16 %v115
    %v929 = vunpack.c.h.b16 %v115
    %v930 = vunpack.c.l.b16 %v116
    %v931 = vunpack.c.h.b16 %v116
    %v932 = vunpack.c.l.b16 %v117
    %v933 = vunpack.c.h.b16 %v117
    %v934 = vunpack.c.l.b16 %v118
    %v935 = vunpack.c.h.b16 %v118
    %v936 = vunpack.c.l.b16 %v119
    %v937 = vunpack.c.h.b16 %v119
    %v938 = vunpack.c.l.b16 %v120
    %v939 = vunpack.c.h.b16 %v120
    %v940 = vunpack.c.l.b16 %v121
    %v941 = vunpack.c.h.b16 %v121
    %v942 = vunpack.c.l.b16 %v122
    %v943 = vunpack.c.h.b16 %v122
    %v944 = vunpack.c.l.b16 %v123
    %v945 = vunpack.c.h.b16 %v123
    %v946 = vunpack.c.l.b16 %v124
    %v947 = vunpack.c.h.b16 %v124
    %v948 = vunpack.c.l.b16 %v125
    %v949 = vunpack.c.h.b16 %v125
    %v950 = vunpack.c.l.b16 %v126
    %v951 = vunpack.c.h.b16 %v126
    %v952 = vunpack.c.l.b16 %v127
    %v953 = vunpack.c.h.b16 %v127
    %v954 = vunpack.c.l.b16 %v128
    %v955 = vunpack.c.h.b16 %v128
    %v956 = vunpack.c.l.b16 %v129
    %v957 = vunpack.c.h.b16 %v129
    %v958 = vunpack.c.l.b16 %v130
    %v959 = vunpack.c.h.b16 %v130
    %v960 = vunpack.c.l.b16 %v131
    %v961 = vunpack.c.h.b16 %v131
    %v962 = vunpack.c.l.b16 %v132
    %v963 = vunpack.c.h.b16 %v132
    %v964 = vunpack.c.l.b16 %v133
    %v965 = vunpack.c.h.b16 %v133
    %v966 = vunpack.c.l.b16 %v134
    %v967 = vunpack.c.h.b16 %v134
    %v968 = vunpack.c.l.b16 %v135
    %v969 = vunpack.c.h.b16 %v135
    %v970 = vunpack.c.l.b16 %v136
    %v971 = vunpack.c.h.b16 %v136
    %v972 = vunpack.c.l.b16 %v137
    %v973 = vunpack.c.h.b16 %v137
    %v974 = vunpack.c.l.b16 %v138
    %v975 = vunpack.c.h.b16 %v138
    %v976 = vunpack.c.l.b16 %v139
    %v977 = vunpack.c.h.b16 %v139
    %v978 = vunpack.c.l.b16 %v140
    %v979 = vunpack.c.h.b16 %v140
    %v980 = vunpack.c.l.b16 %v141
    %v981 = vunpack.c.h.b16 %v141
    %v982 = vunpack.c.l.b16 %v142
    %v983 = vunpack.c.h.b16 %v142
    %v984 = vunpack.c.l.b16 %v143
    %v985 = vunpack.c.h.b16 %v143
    %v986 = vunpack.c.l.b16 %v144
    %v987 = vunpack.c.h.b16 %v144
    %v988 = vunpack.c.l.b16 %v145
    %v989 = vunpack.c.h.b16 %v145
    %v990 = vunpack.c.l.b16 %v146
    %v991 = vunpack.c.h.b16 %v146
    %v992 = vunpack.c.l.b16 %v147
    %v993 = vunpack.c.h.b16 %v147
    %v994 = vunpack.c.l.b16 %v148
    %v995 = vunpack.c.h.b16 %v148
    %v996 = vunpack.c.l.b16 %v149
    %v997 = vunpack.c.h.b16 %v149
    %v998 = vunpack.c.l.b16 %v150
    %v999 = vunpack.c.h.b16 %v150
    %v1000 = vunpack.c.l.b16 %v151
    %v1001 = vunpack.c.h.b16 %v151
    %v1002 = vunpack.c.l.b16 %v152
    %v1003 = vunpack.c.h.b16 %v152
    %v1004 = vunpack.c.l.b16 %v153
    %v1005 = vunpack.c.h.b16 %v153
    %v1006 = vunpack.c.l.b16 %v154
    %v1007 = vunpack.c.h.b16 %v154
    %v1008 = vunpack.c.l.b16 %v155
    %v1009 = vunpack.c.h.b16 %v155
    %v1010 = vunpack.c.l.b16 %v156
    %v1011 = vunpack.c.h.b16 %v156
    %v1012 = vunpack.c.l.b16 %v157
    %v1013 = vunpack.c.h.b16 %v157
    %v1014 = vunpack.c.l.b16 %v158
    %v1015 = vunpack.c.h.b16 %v158
    %v1016 = vunpack.c.l.b16 %v159
    %v1017 = vunpack.c.h.b16 %v159
    %v1018 = vunpack.c.l.b16 %v160
    %v1019 = vunpack.c.h.b16 %v160
    %v1020 = vunpack.c.l.b16 %v161
    %v1021 = vunpack.c.h.b16 %v161
    %v1022 = vunpack.c.l.b16 %v162
    %v1023 = vunpack.c.h.b16 %v162
    %v1024 = vunpack.c.l.b16 %v163
    %v1025 = vunpack.c.h.b16 %v163
    %v1026 = vunpack.c.l.b16 %v164
    %v1027 = vunpack.c.h.b16 %v164
    %v1028 = vunpack.c.l.b16 %v165
    %v1029 = vunpack.c.h.b16 %v165
    %v1030 = vunpack.c.l.b16 %v166
    %v1031 = vunpack.c.h.b16 %v166
    %v1032 = vunpack.c.l.b16 %v167
    %v1033 = vunpack.c.h.b16 %v167
    %v1034 = vunpack.c.l.b16 %v168
    %v1035 = vunpack.c.h.b16 %v168
    %v1036 = vunpack.c.l.b16 %v169
    %v1037 = vunpack.c.h.b16 %v169
    %v1038 = vunpack.c.l.b16 %v170
    %v1039 = vunpack.c.h.b16 %v170
    %v1040 = vunpack.c.l.b16 %v171
    %v1041 = vunpack.c.h.b16 %v171
    %v1042 = vunpack.c.l.b16 %v172
    %v1043 = vunpack.c.h.b16 %v172
    %v1044 = vunpack.c.l.b16 %v173
    %v1045 = vunpack.c.h.b16 %v173
    %v1046 = vunpack.c.l.b16 %v174
    %v1047 = vunpack.c.h.b16 %v174
    %v1048 = vunpack.c.l.b16 %v175
    %v1049 = vunpack.c.h.b16 %v175
    %v1050 = vunpack.c.l.b16 %v176
    %v1051 = vunpack.c.h.b16 %v176
    %v1052 = vunpack.c.l.b16 %v177
    %v1053 = vunpack.c.h.b16 %v177
    %v1054 = vunpack.c.l.b16 %v178
    %v1055 = vunpack.c.h.b16 %v178
    %v1056 = vunpack.c.l.b16 %v179
    %v1057 = vunpack.c.h.b16 %v179
    %v1058 = vunpack.c.l.b16 %v180
    %v1059 = vunpack.c.h.b16 %v180
    %v1060 = vunpack.c.l.b16 %v181
    %v1061 = vunpack.c.h.b16 %v181
    %v1062 = vunpack.c.l.b16 %v182
    %v1063 = vunpack.c.h.b16 %v182
    %v1064 = vunpack.c.l.b16 %v183
    %v1065 = vunpack.c.h.b16 %v183
    %v1066 = vunpack.c.l.b16 %v184
    %v1067 = vunpack.c.h.b16 %v184
    %v1068 = vunpack.c.l.b16 %v185
    %v1069 = vunpack.c.h.b16 %v185
    %v1070 = vunpack.c.l.b16 %v186
    %v1071 = vunpack.c.h.b16 %v186
    %v1072 = vunpack.c.l.b16 %v187
    %v1073 = vunpack.c.h.b16 %v187
    %v1074 = vunpack.c.l.b16 %v188
    %v1075 = vunpack.c.h.b16 %v188
    %v1076 = vunpack.c.l.b16 %v189
    %v1077 = vunpack.c.h.b16 %v189
    %v1078 = vunpack.c.l.b16 %v190
    %v1079 = vunpack.c.h.b16 %v190
    %v1080 = vunpack.c.l.b16 %v191
    %v1081 = vunpack.c.h.b16 %v191
    %v1082 = vunpack.c.l.b16 %v192
    %v1083 = vunpack.c.h.b16 %v192
    %v1084 = vunpack.c.l.b16 %v193
    %v1085 = vunpack.c.h.b16 %v193
    %v1086 = vunpack.c.l.b16 %v194
    %v1087 = vunpack.c.h.b16 %v194
    %v1088 = vunpack.c.l.b16 %v195
    %v1089 = vunpack.c.h.b16 %v195
    %v1090 = vunpack.c.l.b16 %v196
    %v1091 = vunpack.c.h.b16 %v196
    %v1092 = vunpack.c.l.b16 %v197
    %v1093 = vunpack.c.h.b16 %v197
    %v1094 = vunpack.c.l.b16 %v198
    %v1095 = vunpack.c.h.b16 %v198
    %v1096 = vunpack.c.l.b16 %v199
    %v1097 = vunpack.c.h.b16 %v199
    %v1098 = vunpack.c.l.b16 %v200
    %v1099 = vunpack.c.h.b16 %v200
    %v1100 = vunpack.c.l.b16 %v201
    %v1101 = vunpack.c.h.b16 %v201
    %v1102 = vunpack.c.l.b16 %v202
    %v1103 = vunpack.c.h.b16 %v202
    %v1104 = vunpack.c.l.b16 %v203
    %v1105 = vunpack.c.h.b16 %v203
    %v1106 = vunpack.c.l.b16 %v204
    %v1107 = vunpack.c.h.b16 %v204
    %v1108 = vunpack.c.l.b16 %v205
    %v1109 = vunpack.c.h.b16 %v205
    %v1110 = vunpack.c.l.b16 %v206
    %v1111 = vunpack.c.h.b16 %v206
    %v1112 = vunpack.c.l.b16 %v207
    %v1113 = vunpack.c.h.b16 %v207
    %v1114 = vunpack.c.l.b16 %v208
    %v1115 = vunpack.c.h.b16 %v208
    %v1116 = vunpack.c.l.b16 %v209
    %v1117 = vunpack.c.h.b16 %v209
    %v1118 = vunpack.c.l.b16 %v210
    %v1119 = vunpack.c.h.b16 %v210
    %v1120 = vunpack.c.l.b16 %v211
    %v1121 = vunpack.c.h.b16 %v211
    %v1122 = vunpack.c.l.b16 %v212
    %v1123 = vunpack.c.h.b16 %v212
    %v1124 = vunpack.c.l.b16 %v213
    %v1125 = vunpack.c.h.b16 %v213
    %v1126 = vunpack.c.l.b16 %v214
    %v1127 = vunpack.c.h.b16 %v214
    %v1128 = vunpack.c.l.b16 %v215
    %v1129 = vunpack.c.h.b16 %v215
    %v1130 = vunpack.c.l.b16 %v216
    %v1131 = vunpack.c.h.b16 %v216
    %v1132 = vunpack.c.l.b16 %v217
    %v1133 = vunpack.c.h.b16 %v217
    %v1134 = vunpack.c.l.b16 %v218
    %v1135 = vunpack.c.h.b16 %v218
    %v1136 = vunpack.c.l.b16 %v219
    %v1137 = vunpack.c.h.b16 %v219
    %v1138 = vunpack.c.l.b16 %v220
    %v1139 = vunpack.c.h.b16 %v220
    %v1140 = vunpack.c.l.b16 %v221
    %v1141 = vunpack.c.h.b16 %v221
    %v1142 = vunpack.c.l.b16 %v222
    %v1143 = vunpack.c.h.b16 %v222
    %v1144 = vunpack.c.l.b16 %v223
    %v1145 = vunpack.c.h.b16 %v223
    %v1146 = vunpack.c.l.b16 %v224
    %v1147 = vunpack.c.h.b16 %v224
    %v1148 = vunpack.c.l.b16 %v225
    %v1149 = vunpack.c.h.b16 %v225
    %v1150 = vunpack.c.l.b16 %v226
    %v1151 = vunpack.c.h.b16 %v226
    %v1152 = vunpack.c.l.b16 %v227
    %v1153 = vunpack.c.h.b16 %v227
    %v1154 = vunpack.c.l.b16 %v228
    %v1155 = vunpack.c.h.b16 %v228
    %v1156 = vunpack.c.l.b16 %v229
    %v1157 = vunpack.c.h.b16 %v229
    %v1158 = vunpack.c.l.b16 %v230
    %v1159 = vunpack.c.h.b16 %v230
    %v1160 = vunpack.c.l.b16 %v231
    %v1161 = vunpack.c.h.b16 %v231
    %v1162 = vunpack.c.l.b16 %v232
    %v1163 = vunpack.c.h.b16 %v232
    %v1164 = vunpack.c.l.b16 %v233
    %v1165 = vunpack.c.h.b16 %v233
    %v1166 = vunpack.c.l.b16 %v234
    %v1167 = vunpack.c.h.b16 %v234
    %v1168 = vunpack.c.l.b16 %v235
    %v1169 = vunpack.c.h.b16 %v235
    %v1170 = vunpack.c.l.b16 %v236
    %v1171 = vunpack.c.h.b16 %v236
    %v1172 = vunpack.c.l.b16 %v237
    %v1173 = vunpack.c.h.b16 %v237
    %v1174 = vunpack.c.l.b16 %v238
    %v1175 = vunpack.c.h.b16 %v238
    %v1176 = vunpack.c.l.b16 %v239
    %v1177 = vunpack.c.h.b16 %v239
    %v1178 = vunpack.c.l.b16 %v240
    %v1179 = vunpack.c.h.b16 %v240
    %v1180 = vunpack.c.l.b16 %v241
    %v1181 = vunpack.c.h.b16 %v241
    %v1182 = vunpack.c.l.b16 %v242
    %v1183 = vunpack.c.h.b16 %v242
    %v1184 = vunpack.c.l.b16 %v243
    %v1185 = vunpack.c.h.b16 %v243
    %v1186 = vunpack.c.l.b16 %v244
    %v1187 = vunpack.c.h.b16 %v244
    %v1188 = vunpack.c.l.b16 %v245
    %v1189 = vunpack.c.h.b16 %v245
    %v1190 = vunpack.c.l.b16 %v246
    %v1191 = vunpack.c.h.b16 %v246
    %v1192 = vunpack.c.l.b16 %v247
    %v1193 = vunpack.c.h.b16 %v247
    %v1194 = vunpack.c.l.b16 %v248
    %v1195 = vunpack.c.h.b16 %v248
    %v1196 = vunpack.c.l.b16 %v249
    %v1197 = vunpack.c.h.b16 %v249
    %v1198 = vunpack.c.l.b16 %v250
    %v1199 = vunpack.c.h.b16 %v250
    %v1200 = vunpack.c.l.b16 %v251
    %v1201 = vunpack.c.h.b16 %v251
    %v1202 = vunpack.c.l.b16 %v252
    %v1203 = vunpack.c.h.b16 %v252
    %v1204 = vunpack.c.l.b16 %v253
    %v1205 = vunpack.c.h.b16 %v253
    %v1206 = vunpack.c.l.b16 %v254
    %v1207 = vunpack.c.h.b16 %v254
    %v1208 = vunpack.c.l.b16 %v255
    %v1209 = vunpack.c.h.b16 %v255
    %v1210 = vunpack.c.l.b16 %v256
    %v1211 = vunpack.c.h.b16 %v256
    %v1212 = vunpack.c.l.b16 %v257
    %v1213 = vunpack.c.h.b16 %v257
    %v1214 = vunpack.c.l.b16 %v258
    %v1215 = vunpack.c.h.b16 %v258
    %v1216 = vunpack.c.l.b16 %v259
    %v1217 = vunpack.c.h.b16 %v259
    %v1218 = vunpack.c.l.b16 %v260
    %v1219 = vunpack.c.h.b16 %v260
    %v1220 = vunpack.c.l.b16 %v261
    %v1221 = vunpack.c.h.b16 %v261
    %v1222 = vunpack.c.l.b16 %v262
    %v1223 = vunpack.c.h.b16 %v262
    %v1224 = vunpack.c.l.b16 %v263
    %v1225 = vunpack.c.h.b16 %v263
    %v1226 = vunpack.c.l.b16 %v264
    %v1227 = vunpack.c.h.b16 %v264
    %v1228 = vunpack.c.l.b16 %v265
    %v1229 = vunpack.c.h.b16 %v265
    %v1230 = vunpack.c.l.b16 %v266
    %v1231 = vunpack.c.h.b16 %v266
    %v1232 = vunpack.c.l.b16 %v267
    %v1233 = vunpack.c.h.b16 %v267
    %v1234 = vunpack.c.l.b16 %v268
    %v1235 = vunpack.c.h.b16 %v268
    %v1236 = vunpack.c.l.b16 %v269
    %v1237 = vunpack.c.h.b16 %v269
    %v1238 = vunpack.c.l.b16 %v270
    %v1239 = vunpack.c.h.b16 %v270
    %v1240 = vunpack.c.l.b16 %v271
    %v1241 = vunpack.c.h.b16 %v271
    %v1242 = vunpack.c.l.b16 %v272
    %v1243 = vunpack.c.h.b16 %v272
    %v1244 = vunpack.c.l.b16 %v273
    %v1245 = vunpack.c.h.b16 %v273
    %v1246 = vunpack.c.l.b16 %v274
    %v1247 = vunpack.c.h.b16 %v274
    %v1248 = vunpack.c.l.b16 %v275
    %v1249 = vunpack.c.h.b16 %v275
    %v1250 = vunpack.c.l.b16 %v276
    %v1251 = vunpack.c.h.b16 %v276
    %v1252 = vunpack.c.l.b16 %v277
    %v1253 = vunpack.c.h.b16 %v277
    %v1254 = vunpack.c.l.b16 %v278
    %v1255 = vunpack.c.h.b16 %v278
    %v1256 = vunpack.c.l.b16 %v279
    %v1257 = vunpack.c.h.b16 %v279
    %v1258 = vunpack.c.l.b16 %v280
    %v1259 = vunpack.c.h.b16 %v280
    %v1260 = vunpack.c.l.b16 %v281
    %v1261 = vunpack.c.h.b16 %v281
    %v1262 = vunpack.c.l.b16 %v282
    %v1263 = vunpack.c.h.b16 %v282
    %v1264 = vunpack.c.l.b16 %v283
    %v1265 = vunpack.c.h.b16 %v283
    %v1266 = vunpack.c.l.b16 %v284
    %v1267 = vunpack.c.h.b16 %v284
    %v1268 = vunpack.c.l.b16 %v285
    %v1269 = vunpack.c.h.b16 %v285
    %v1270 = vunpack.c.l.b16 %v286
    %v1271 = vunpack.c.h.b16 %v286
    %v1272 = vunpack.c.l.b16 %v287
    %v1273 = vunpack.c.h.b16 %v287
    %v1274 = vunpack.c.l.b16 %v288
    %v1275 = vunpack.c.h.b16 %v288
    %v1276 = vunpack.c.l.b16 %v289
    %v1277 = vunpack.c.h.b16 %v289
    %v1278 = vunpack.c.l.b16 %v290
    %v1279 = vunpack.c.h.b16 %v290
    %v1280 = vunpack.c.l.b16 %v291
    %v1281 = vunpack.c.h.b16 %v291
    %v1282 = vunpack.c.l.b16 %v292
    %v1283 = vunpack.c.h.b16 %v292
    %v1284 = vunpack.c.l.b16 %v293
    %v1285 = vunpack.c.h.b16 %v293
    %v1286 = vunpack.c.l.b16 %v294
    %v1287 = vunpack.c.h.b16 %v294
    %v1288 = vunpack.c.l.b16 %v295
    %v1289 = vunpack.c.h.b16 %v295
    %v1290 = vunpack.c.l.b16 %v296
    %v1291 = vunpack.c.h.b16 %v296
    %v1292 = vunpack.c.l.b16 %v297
    %v1293 = vunpack.c.h.b16 %v297
    %v1294 = vunpack.c.l.b16 %v298
    %v1295 = vunpack.c.h.b16 %v298
    %v1296 = vunpack.c.l.b16 %v299
    %v1297 = vunpack.c.h.b16 %v299
    %v1298 = vunpack.c.l.b16 %v300
    %v1299 = vunpack.c.h.b16 %v300
    %v1300 = vunpack.c.l.b16 %v301
    %v1301 = vunpack.c.h.b16 %v301
    %v1302 = vunpack.c.l.b16 %v302
    %v1303 = vunpack.c.h.b16 %v302
    %v1304 = vunpack.c.l.b16 %v303
    %v1305 = vunpack.c.h.b16 %v303
    %v1306 = vunpack.c.l.b16 %v304
    %v1307 = vunpack.c.h.b16 %v304
    %v1308 = vunpack.c.l.b16 %v305
    %v1309 = vunpack.c.h.b16 %v305
    %v1310 = vunpack.c.l.b16 %v306
    %v1311 = vunpack.c.h.b16 %v306
    %v1312 = vunpack.c.l.b16 %v307
    %v1313 = vunpack.c.h.b16 %v307
    %v1314 = vunpack.c.l.b16 %v308
    %v1315 = vunpack.c.h.b16 %v308
    %v1316 = vunpack.c.l.b16 %v309
    %v1317 = vunpack.c.h.b16 %v309
    %v1318 = vunpack.c.l.b16 %v310
    %v1319 = vunpack.c.h.b16 %v310
    %v1320 = vunpack.c.l.b16 %v311
    %v1321 = vunpack.c.h.b16 %v311
    %v1322 = vunpack.c.l.b16 %v312
    %v1323 = vunpack.c.h.b16 %v312
    %v1324 = vunpack.c.l.b16 %v313
    %v1325 = vunpack.c.h.b16 %v313
    %v1326 = vunpack.c.l.b16 %v314
    %v1327 = vunpack.c.h.b16 %v314
    %v1328 = vunpack.c.l.b16 %v315
    %v1329 = vunpack.c.h.b16 %v315
    %v1330 = vunpack.c.l.b16 %v316
    %v1331 = vunpack.c.h.b16 %v316
    %v1332 = vunpack.c.l.b16 %v317
    %v1333 = vunpack.c.h.b16 %v317
    %v1334 = vunpack.c.l.b16 %v318
    %v1335 = vunpack.c.h.b16 %v318
    %v1336 = vpack.c.b16 %v762, %v760
    %v1337 = vpack.c.b16 %v763, %v761
    %v1338 = vpack.c.b16 %v766, %v764
    %v1339 = vpack.c.b16 %v767, %v765
    %v1340 = vpack.c.b16 %v770, %v768
    %v1341 = vpack.c.b16 %v771, %v769
    %v1342 = vpack.c.b16 %v774, %v772
    %v1343 = vpack.c.b16 %v775, %v773
    %v1344 = vpack.c.b16 %v778, %v776
    %v1345 = vpack.c.b16 %v779, %v777
    %v1346 = vpack.c.b16 %v782, %v780
    %v1347 = vpack.c.b16 %v783, %v781
    %v1348 = vpack.c.b16 %v786, %v784
    %v1349 = vpack.c.b16 %v787, %v785
    %v1350 = vpack.c.b16 %v790, %v788
    %v1351 = vpack.c.b16 %v791, %v789
    %v1352 = vpack.c.b16 %v794, %v792
    %v1353 = vpack.c.b16 %v795, %v793
    %v1354 = vpack.c.b16 %v798, %v796
    %v1355 = vpack.c.b16 %v799, %v797
    %v1356 = vpack.c.b16 %v802, %v800
    %v1357 = vpack.c.b16 %v803, %v801
    %v1358 = vpack.c.b16 %v806, %v804
    %v1359 = vpack.c.b16 %v807, %v805
    %v1360 = vpack.c.b16 %v810, %v808
    %v1361 = vpack.c.b16 %v811, %v809
    %v1362 = vpack.c.b16 %v814, %v812
    %v1363 = vpack.c.b16 %v815, %v813
    %v1364 = vpack.c.b16 %v818, %v816
    %v1365 = vpack.c.b16 %v819, %v817
    %v1366 = vpack.c.b16 %v822, %v820
    %v1367 = vpack.c.b16 %v823, %v821
    %v1368 = vpack.c.b16 %v826, %v824
    %v1369 = vpack.c.b16 %v827, %v825
    %v1370 = vpack.c.b16 %v830, %v828
    %v1371 = vpack.c.b16 %v831, %v829
    %v1372 = vpack.c.b16 %v834, %v832
    %v1373 = vpack.c.b16 %v835, %v833
    %v1374 = vpack.c.b16 %v838, %v836
    %v1375 = vpack.c.b16 %v839, %v837
    %v1376 = vpack.c.b16 %v842, %v840
    %v1377 = vpack.c.b16 %v843, %v841
    %v1378 = vpack.c.b16 %v846, %v844
    %v1379 = vpack.c.b16 %v847, %v845
    %v1380 = vpack.c.b16 %v850, %v848
    %v1381 = vpack.c.b16 %v851, %v849
    %v1382 = vpack.c.b16 %v854, %v852
    %v1383 = vpack.c.b16 %v855, %v853
    %v1384 = vpack.c.b16 %v858, %v856
    %v1385 = vpack.c.b16 %v859, %v857
    %v1386 = vpack.c.b16 %v862, %v860
    %v1387 = vpack.c.b16 %v863, %v861
    %v1388 = vpack.c.b16 %v866, %v864
    %v1389 = vpack.c.b16 %v867, %v865
    %v1390 = vpack.c.b16 %v870, %v868
    %v1391 = vpack.c.b16 %v871, %v869
    %v1392 = vpack.c.b16 %v874, %v872
    %v1393 = vpack.c.b16 %v875, %v873
    %v1394 = vpack.c.b16 %v878, %v876
    %v1395 = vpack.c.b16 %v879, %v877
    %v1396 = vpack.c.b16 %v882, %v880
    %v1397 = vpack.c.b16 %v883, %v881
    %v1398 = vpack.c.b16 %v886, %v884
    %v1399 = vpack.c.b16 %v887, %v885
    %v1400 = vpack.c.b16 %v890, %v888
    %v1401 = vpack.c.b16 %v891, %v889
    %v1402 = vpack.c.b16 %v894, %v892
    %v1403 = vpack.c.b16 %v895, %v893
    %v1404 = vpack.c.b16 %v898, %v896
    %v1405 = vpack.c.b16 %v899, %v897
    %v1406 = vpack.c.b16 %v902, %v900
    %v1407 = vpack.c.b16 %v903, %v901
    %v1408 = vpack.c.b16 %v906, %v904
    %v1409 = vpack.c.b16 %v907, %v905
    %v1410 = vpack.c.b16 %v910, %v908
    %v1411 = vpack.c.b16 %v911, %v909
    %v1412 = vpack.c.b16 %v914, %v912
    %v1413 = vpack.c.b16 %v915, %v913
    %v1414 = vpack.c.b16 %v918, %v916
    %v1415 = vpack.c.b16 %v919, %v917
    %v1416 = vpack.c.b16 %v922, %v920
    %v1417 = vpack.c.b16 %v923, %v921
    %v1418 = vpack.c.b16 %v926, %v924
    %v1419 = vpack.c.b16 %v927, %v925
    %v1420 = vpack.c.b16 %v930, %v928
    %v1421 = vpack.c.b16 %v931, %v929
    %v1422 = vpack.c.b16 %v934, %v932
    %v1423 = vpack.c.b16 %v935, %v933
    %v1424 = vpack.c.b16 %v938, %v936
    %v1425 = vpack.c.b16 %v939, %v937
    %v1426 = vpack.c.b16 %v942, %v940
    %v1427 = vpack.c.b16 %v943, %v941
    %v1428 = vpack.c.b16 %v946, %v944
    %v1429 = vpack.c.b16 %v947, %v945
    %v1430 = vpack.c.b16 %v950, %v948
    %v1431 = vpack.c.b16 %v951, %v949
    %v1432 = vpack.c.b16 %v954, %v952
    %v1433 = vpack.c.b16 %v955, %v953
    %v1434 = vpack.c.b16 %v958, %v956
    %v1435 = vpack.c.b16 %v959, %v957
    %v1436 = vpack.c.b16 %v962, %v960
    %v1437 = vpack.c.b16 %v963, %v961
    %v1438 = vpack.c.b16 %v966, %v964
    %v1439 = vpack.c.b16 %v967, %v965
    %v1440 = vpack.c.b16 %v970, %v968
    %v1441 = vpack.c.b16 %v971, %v969
    %v1442 = vpack.c.b16 %v974, %v972
    %v1443 = vpack.c.b16 %v975, %v973
    %v1444 = vpack.c.b16 %v978, %v976
    %v1445 = vpack.c.b16 %v979, %v977
    %v1446 = vpack.c.b16 %v982, %v980
    %v1447 = vpack.c.b16 %v983, %v981
    %v1448 = vpack.c.b16 %v986, %v984
    %v1449 = vpack.c.b16 %v987, %v985
    %v1450 = vpack.c.b16 %v990, %v988
    %v1451 = vpack.c.b16 %v991, %v989
    %v1452 = vpack.c.b16 %v994, %v992
    %v1453 = vpack.c.b16 %v995, %v993
    %v1454 = vpack.c.b16 %v998, %v996
    %v1455 = vpack.c.b16 %v999, %v997
    %v1456 = vpack.c.b16 %v1002, %v1000
    %v1457 = vpack.c.b16 %v1003, %v1001
    %v1458 = vpack.c.b16 %v1006, %v1004
    %v1459 = vpack.c.b16 %v1007, %v1005
    %v1460 = vpack.c.b16 %v1010, %v1008
    %v1461 = vpack.c.b16 %v1011, %v1009
    %v1462 = vpack.c.b16 %v1014, %v1012
    %v1463 = vpack.c.b16 %v1015, %v1013
    %v1464 = vpack.c.b16 %v1018, %v1016
    %v1465 = vpack.c.b16 %v1019, %v1017
    %v1466 = vpack.c.b16 %v1022, %v1020
    %v1467 = vpack.c.b16 %v1023, %v1021
    %v1468 = vpack.c.b16 %v1026, %v1024
    %v1469 = vpack.c.b16 %v1027, %v1025
    %v1470 = vpack.c.b16 %v1030, %v1028
    %v1471 = vpack.c.b16 %v1031, %v1029
    %v1472 = vpack.c.b16 %v1034, %v1032
    %v1473 = vpack.c.b16 %v1035, %v1033
    %v1474 = vpack.c.b16 %v1038, %v1036
    %v1475 = vpack.c.b16 %v1039, %v1037
    %v1476 = vpack.c.b16 %v1042, %v1040
    %v1477 = vpack.c.b16 %v1043, %v1041
    %v1478 = vpack.c.b16 %v1046, %v1044
    %v1479 = vpack.c.b16 %v1047, %v1045
    %v1480 = vpack.c.b16 %v1050, %v1048
    %v1481 = vpack.c.b16 %v1051, %v1049
    %v1482 = vpack.c.b16 %v1054, %v1052
    %v1483 = vpack.c.b16 %v1055, %v1053
    %v1484 = vpack.c.b16 %v1058, %v1056
    %v1485 = vpack.c.b16 %v1059, %v1057
    %v1486 = vpack.c.b16 %v1062, %v1060
    %v1487 = vpack.c.b16 %v1063, %v1061
    %v1488 = vpack.c.b16 %v1066, %v1064
    %v1489 = vpack.c.b16 %v1067, %v1065
    %v1490 = vpack.c.b16 %v1070, %v1068
    %v1491 = vpack.c.b16 %v1071, %v1069
    %v1492 = vpack.c.b16 %v1074, %v1072
    %v1493 = vpack.c.b16 %v1075, %v1073
    %v1494 = vpack.c.b16 %v1078, %v1076
    %v1495 = vpack.c.b16 %v1079, %v1077
    %v1496 = vpack.c.b16 %v1082, %v1080
    %v1497 = vpack.c.b16 %v1083, %v1081
    %v1498 = vpack.c.b16 %v1086, %v1084
    %v1499 = vpack.c.b16 %v1087, %v1085
    %v1500 = vpack.c.b16 %v1090, %v1088
    %v1501 = vpack.c.b16 %v1091, %v1089
    %v1502 = vpack.c.b16 %v1094, %v1092
    %v1503 = vpack.c.b16 %v1095, %v1093
    %v1504 = vpack.c.b16 %v1098, %v1096
    %v1505 = vpack.c.b16 %v1099, %v1097
    %v1506 = vpack.c.b16 %v1102, %v1100
    %v1507 = vpack.c.b16 %v1103, %v1101
    %v1508 = vpack.c.b16 %v1106, %v1104
    %v1509 = vpack.c.b16 %v1107, %v1105
    %v1510 = vpack.c.b16 %v1110, %v1108
    %v1511 = vpack.c.b16 %v1111, %v1109
    %v1512 = vpack.c.b16 %v1114, %v1112
    %v1513 = vpack.c.b16 %v1115, %v1113
    %v1514 = vpack.c.b16 %v1118, %v1116
    %v1515 = vpack.c.b16 %v1119, %v1117
    %v1516 = vpack.c.b16 %v1122, %v1120
    %v1517 = vpack.c.b16 %v1123, %v1121
    %v1518 = vpack.c.b16 %v1126, %v1124
    %v1519 = vpack.c.b16 %v1127, %v1125
    %v1520 = vpack.c.b16 %v1130, %v1128
    %v1521 = vpack.c.b16 %v1131, %v1129
    %v1522 = vpack.c.b16 %v1134, %v1132
    %v1523 = vpack.c.b16 %v1135, %v1133
    %v1524 = vpack.c.b16 %v1138, %v1136
    %v1525 = vpack.c.b16 %v1139, %v1137
    %v1526 = vpack.c.b16 %v1142, %v1140
    %v1527 = vpack.c.b16 %v1143, %v1141
    %v1528 = vpack.c.b16 %v1146, %v1144
    %v1529 = vpack.c.b16 %v1147, %v1145
    %v1530 = vpack.c.b16 %v1150, %v1148
    %v1531 = vpack.c.b16 %v1151, %v1149
    %v1532 = vpack.c.b16 %v1154, %v1152
    %v1533 = vpack.c.b16 %v1155, %v1153
    %v1534 = vpack.c.b16 %v1158, %v1156
    %v1535 = vpack.c.b16 %v1159, %v1157
    %v1536 = vpack.c.b16 %v1162, %v1160
    %v1537 = vpack.c.b16 %v1163, %v1161
    %v1538 = vpack.c.b16 %v1166, %v1164
    %v1539 = vpack.c.b16 %v1167, %v1165
    %v1540 = vpack.c.b16 %v1170, %v1168
    %v1541 = vpack.c.b16 %v1171, %v1169
    %v1542 = vpack.c.b16 %v1174, %v1172
    %v1543 = vpack.c.b16 %v1175, %v1173
    %v1544 = vpack.c.b16 %v1178, %v1176
    %v1545 = vpack.c.b16 %v1179, %v1177
    %v1546 = vpack.c.b16 %v1182, %v1180
    %v1547 = vpack.c.b16 %v1183, %v1181
    %v1548 = vpack.c.b16 %v1186, %v1184
    %v1549 = vpack.c.b16 %v1187, %v1185
    %v1550 = vpack.c.b16 %v1190, %v1188
    %v1551 = vpack.c.b16 %v1191, %v1189
    %v1552 = vpack.c.b16 %v1194, %v1192
    %v1553 = vpack.c.b16 %v1195, %v1193
    %v1554 = vpack.c.b16 %v1198, %v1196
    %v1555 = vpack.c.b16 %v1199, %v1197
    %v1556 = vpack.c.b16 %v1202, %v1200
    %v1557 = vpack.c.b16 %v1203, %v1201
    %v1558 = vpack.c.b16 %v1206, %v1204
    %v1559 = vpack.c.b16 %v1207, %v1205
    %v1560 = vpack.c.b16 %v1210, %v1208
    %v1561 = vpack.c.b16 %v1211, %v1209
    %v1562 = vpack.c.b16 %v1214, %v1212
    %v1563 = vpack.c.b16 %v1215, %v1213
    %v1564 = vpack.c.b16 %v1218, %v1216
    %v1565 = vpack.c.b16 %v1219, %v1217
    %v1566 = vpack.c.b16 %v1222, %v1220
    %v1567 = vpack.c.b16 %v1223, %v1221
    %v1568 = vpack.c.b16 %v1226, %v1224
    %v1569 = vpack.c.b16 %v1227, %v1225
    %v1570 = vpack.c.b16 %v1230, %v1228
    %v1571 = vpack.c.b16 %v1231, %v1229
    %v1572 = vpack.c.b16 %v1234, %v1232
    %v1573 = vpack.c.b16 %v1235, %v1233
    %v1574 = vpack.c.b16 %v1238, %v1236
    %v1575 = vpack.c.b16 %v1239, %v1237
    %v1576 = vpack.c.b16 %v1242, %v1240
    %v1577 = vpack.c.b16 %v1243, %v1241
    %v1578 = vpack.c.b16 %v1246, %v1244
    %v1579 = vpack.c.b16 %v1247, %v1245
    %v1580 = vpack.c.b16 %v1250, %v1248
    %v1581 = vpack.c.b16 %v1251, %v1249
    %v1582 = vpack.c.b16 %v1254, %v1252
    %v1583 = vpack.c.b16 %v1255, %v1253
    %v1584 = vpack.c.b16 %v1258, %v1256
    %v1585 = vpack.c.b16 %v1259, %v1257
    %v1586 = vpack.c.b16 %v1262, %v1260
    %v1587 = vpack.c.b16 %v1263, %v1261
    %v1588 = vpack.c.b16 %v1266, %v1264
    %v1589 = vpack.c.b16 %v1267, %v1265
    %v1590 = vpack.c.b16 %v1270, %v1268
    %v1591 = vpack.c.b16 %v1271, %v1269
    %v1592 = vpack.c.b16 %v1274, %v1272
    %v1593 = vpack.c.b16 %v1275, %v1273
    %v1594 = vpack.c.b16 %v1278, %v1276
    %v1595 = vpack.c.b16 %v1279, %v1277
    %v1596 = vpack.c.b16 %v1282, %v1280
    %v1597 = vpack.c.b16 %v1283, %v1281
    %v1598 = vpack.c.b16 %v1286, %v1284
    %v1599 = vpack.c.b16 %v1287, %v1285
    %v1600 = vpack.c.b16 %v1290, %v1288
    %v1601 = vpack.c.b16 %v1291, %v1289
    %v1602 = vpack.c.b16 %v1294, %v1292
    %v1603 = vpack.c.b16 %v1295, %v1293
    %v1604 = vpack.c.b16 %v1298, %v1296
    %v1605 = vpack.c.b16 %v1299, %v1297
    %v1606 = vpack.c.b16 %v1302, %v1300
    %v1607 = vpack.c.b16 %v1303, %v1301
    %v1608 = vpack.c.b16 %v1306, %v1304
    %v1609 = vpack.c.b16 %v1307, %v1305
    %v1610 = vpack.c.b16 %v1310, %v1308
    %v1611 = vpack.c.b16 %v1311, %v1309
    %v1612 = vpack.c.b16 %v1314, %v1312
    %v1613 = vpack.c.b16 %v1315, %v1313
    %v1614 = vpack.c.b16 %v1318, %v1316
    %v1615 = vpack.c.b16 %v1319, %v1317
    %v1616 = vpack.c.b16 %v1322, %v1320
    %v1617 = vpack.c.b16 %v1323, %v1321
    %v1618 = vpack.c.b16 %v1326, %v1324
    %v1619 = vpack.c.b16 %v1327, %v1325
    %v1620 = vpack.c.b16 %v1330, %v1328
    %v1621 = vpack.c.b16 %v1331, %v1329
    %v1622 = vpack.c.b16 %v1334, %v1332
    %v1623 = vpack.c.b16 %v1335, %v1333
    %1912 = vmatprep.subr.bf16.mxu0 %v1337
    %1913 = vmatpush1.bf16.msra.mxu0 %v1336
    %1914 = vmatprep.subr.bf16.mxu0 %v1339
    %1915 = vmatpush1.bf16.msra.mxu0 %v1338
    %1916 = vmatprep.subr.bf16.mxu0 %v1341
    %1917 = vmatpush1.bf16.msra.mxu0 %v1340
    %1918 = vmatprep.subr.bf16.mxu0 %v1343
    %1919 = vmatpush1.bf16.msra.mxu0 %v1342
    %1920 = vmatprep.subr.bf16.mxu0 %v1345
    %1921 = vmatpush1.bf16.msra.mxu0 %v1344
    %1922 = vmatprep.subr.bf16.mxu0 %v1347
    %1923 = vmatpush1.bf16.msra.mxu0 %v1346
    %1924 = vmatprep.subr.bf16.mxu0 %v1349
    %1925 = vmatpush1.bf16.msra.mxu0 %v1348
    %1926 = vmatprep.subr.bf16.mxu0 %v1351
    %1927 = vmatpush1.bf16.msra.mxu0 %v1350
    %1928 = vmatprep.subr.bf16.mxu0 %v1353
    %1929 = vmatpush1.bf16.msra.mxu0 %v1352
    %1930 = vmatprep.subr.bf16.mxu0 %v1355
    %1931 = vmatpush1.bf16.msra.mxu0 %v1354
    %1932 = vmatprep.subr.bf16.mxu0 %v1357
    %1933 = vmatpush1.bf16.msra.mxu0 %v1356
    %1934 = vmatprep.subr.bf16.mxu0 %v1359
    %1935 = vmatpush1.bf16.msra.mxu0 %v1358
    %1936 = vmatprep.subr.bf16.mxu0 %v1361
    %1937 = vmatpush1.bf16.msra.mxu0 %v1360
    %1938 = vmatprep.subr.bf16.mxu0 %v1363
    %1939 = vmatpush1.bf16.msra.mxu0 %v1362
    %1940 = vmatprep.subr.bf16.mxu0 %v1365
    %1941 = vmatpush1.bf16.msra.mxu0 %v1364
    %1942 = vmatprep.subr.bf16.mxu0 %v1367
    %1943 = vmatpush1.bf16.msra.mxu0 %v1366
    %1944 = vmatprep.mubr.bf16.mxu0 %v371
    %1945 = vmatmul.mubr.bf16.gmra.mrb[0].mxu0 %v357
    %v1946 = vpop.f32.mrb[0].mxu0
    %v1947 = vadd.f32 %v324, %v1946
    %v1948 = vpop.f32.mrb[0].mxu0
    %v1949 = vadd.f32 %v328, %v1948
    %v1950 = vpop.f32.mrb[0].mxu0
    %v1951 = vpop.f32.mrb[0].mxu0
    %1952 = vdwg.mxu0
    %1953 = vmatprep.subr.bf16.mxu0 %v1369
    %1954 = vmatpush1.bf16.msra.mxu0 %v1368
    %1955 = vmatprep.subr.bf16.mxu0 %v1371
    %1956 = vmatpush1.bf16.msra.mxu0 %v1370
    %1957 = vmatprep.subr.bf16.mxu0 %v1373
    %1958 = vmatpush1.bf16.msra.mxu0 %v1372
    %1959 = vmatprep.subr.bf16.mxu0 %v1375
    %1960 = vmatpush1.bf16.msra.mxu0 %v1374
    %1961 = vmatprep.subr.bf16.mxu0 %v1377
    %1962 = vmatpush1.bf16.msra.mxu0 %v1376
    %1963 = vmatprep.subr.bf16.mxu0 %v1379
    %1964 = vmatpush1.bf16.msra.mxu0 %v1378
    %1965 = vmatprep.subr.bf16.mxu0 %v1381
    %1966 = vmatpush1.bf16.msra.mxu0 %v1380
    %1967 = vmatprep.subr.bf16.mxu0 %v1383
    %1968 = vmatpush1.bf16.msra.mxu0 %v1382
    %1969 = vmatprep.subr.bf16.mxu0 %v1385
    %1970 = vmatpush1.bf16.msra.mxu0 %v1384
    %1971 = vmatprep.subr.bf16.mxu0 %v1387
    %1972 = vmatpush1.bf16.msra.mxu0 %v1386
    %1973 = vmatprep.subr.bf16.mxu0 %v1389
    %1974 = vmatpush1.bf16.msra.mxu0 %v1388
    %1975 = vmatprep.subr.bf16.mxu0 %v1391
    %1976 = vmatpush1.bf16.msra.mxu0 %v1390
    %1977 = vmatprep.subr.bf16.mxu0 %v1393
    %1978 = vmatpush1.bf16.msra.mxu0 %v1392
    %1979 = vmatprep.subr.bf16.mxu0 %v1395
    %1980 = vmatpush1.bf16.msra.mxu0 %v1394
    %1981 = vmatprep.subr.bf16.mxu0 %v1397
    %1982 = vmatpush1.bf16.msra.mxu0 %v1396
    %1983 = vmatprep.subr.bf16.mxu0 %v1399
    %1984 = vmatpush1.bf16.msra.mxu0 %v1398
    %1985 = vmatprep.mubr.bf16.mxu0 %v381
    %1986 = vmatmul.mubr.bf16.gmra.mrb[0].mxu0 %v379
    %v1987 = vpop.f32.mrb[0].mxu0
    %v1988 = vadd.f32 %v1947, %v1987
    %v1989 = vpop.f32.mrb[0].mxu0
    %v1990 = vadd.f32 %v1949, %v1989
    %v1991 = vpop.f32.mrb[0].mxu0
    %v1992 = vpop.f32.mrb[0].mxu0
    %1993 = vdwg.mxu0
    %1994 = vmatprep.subr.bf16.mxu0 %v1401
    %1995 = vmatpush1.bf16.msra.mxu0 %v1400
    %1996 = vmatprep.subr.bf16.mxu0 %v1403
    %1997 = vmatpush1.bf16.msra.mxu0 %v1402
    %1998 = vmatprep.subr.bf16.mxu0 %v1405
    %1999 = vmatpush1.bf16.msra.mxu0 %v1404
    %2000 = vmatprep.subr.bf16.mxu0 %v1407
    %2001 = vmatpush1.bf16.msra.mxu0 %v1406
    %2002 = vmatprep.subr.bf16.mxu0 %v1409
    %2003 = vmatpush1.bf16.msra.mxu0 %v1408
    %2004 = vmatprep.subr.bf16.mxu0 %v1411
    %2005 = vmatpush1.bf16.msra.mxu0 %v1410
    %2006 = vmatprep.subr.bf16.mxu0 %v1413
    %2007 = vmatpush1.bf16.msra.mxu0 %v1412
    %2008 = vmatprep.subr.bf16.mxu0 %v1415
    %2009 = vmatpush1.bf16.msra.mxu0 %v1414
    %2010 = vmatprep.subr.bf16.mxu0 %v1417
    %2011 = vmatpush1.bf16.msra.mxu0 %v1416
    %2012 = vmatprep.subr.bf16.mxu0 %v1419
    %2013 = vmatpush1.bf16.msra.mxu0 %v1418
    %2014 = vmatprep.subr.bf16.mxu0 %v1421
    %2015 = vmatpush1.bf16.msra.mxu0 %v1420
    %2016 = vmatprep.subr.bf16.mxu0 %v1423
    %2017 = vmatpush1.bf16.msra.mxu0 %v1422
    %2018 = vmatprep.subr.bf16.mxu0 %v1425
    %2019 = vmatpush1.bf16.msra.mxu0 %v1424
    %2020 = vmatprep.subr.bf16.mxu0 %v1427
    %2021 = vmatpush1.bf16.msra.mxu0 %v1426
    %2022 = vmatprep.subr.bf16.mxu0 %v1429
    %2023 = vmatpush1.bf16.msra.mxu0 %v1428
    %2024 = vmatprep.subr.bf16.mxu0 %v1431
    %2025 = vmatpush1.bf16.msra.mxu0 %v1430
    %2026 = vmatprep.mubr.bf16.mxu0 %v378
    %2027 = vmatmul.mubr.bf16.gmra.mrb[0].mxu0 %v364
    %v2028 = vpop.f32.mrb[0].mxu0
    %v2029 = vadd.f32 %v1988, %v2028
    %v2030 = vpop.f32.mrb[0].mxu0
    %v2031 = vadd.f32 %v1990, %v2030
    %v2032 = vpop.f32.mrb[0].mxu0
    %v2033 = vpop.f32.mrb[0].mxu0
    %2034 = vdwg.mxu0
    %2035 = vmatprep.subr.bf16.mxu0 %v1433
    %2036 = vmatpush1.bf16.msra.mxu0 %v1432
    %2037 = vmatprep.subr.bf16.mxu0 %v1435
    %2038 = vmatpush1.bf16.msra.mxu0 %v1434
    %2039 = vmatprep.subr.bf16.mxu0 %v1437
    %2040 = vmatpush1.bf16.msra.mxu0 %v1436
    %2041 = vmatprep.subr.bf16.mxu0 %v1439
    %2042 = vmatpush1.bf16.msra.mxu0 %v1438
    %2043 = vmatprep.subr.bf16.mxu0 %v1441
    %2044 = vmatpush1.bf16.msra.mxu0 %v1440
    %2045 = vmatprep.subr.bf16.mxu0 %v1443
    %2046 = vmatpush1.bf16.msra.mxu0 %v1442
    %2047 = vmatprep.subr.bf16.mxu0 %v1445
    %2048 = vmatpush1.bf16.msra.mxu0 %v1444
    %2049 = vmatprep.subr.bf16.mxu0 %v1447
    %2050 = vmatpush1.bf16.msra.mxu0 %v1446
    %2051 = vmatprep.subr.bf16.mxu0 %v1449
    %2052 = vmatpush1.bf16.msra.mxu0 %v1448
    %2053 = vmatprep.subr.bf16.mxu0 %v1451
    %2054 = vmatpush1.bf16.msra.mxu0 %v1450
    %2055 = vmatprep.subr.bf16.mxu0 %v1453
    %2056 = vmatpush1.bf16.msra.mxu0 %v1452
    %2057 = vmatprep.subr.bf16.mxu0 %v1455
    %2058 = vmatpush1.bf16.msra.mxu0 %v1454
    %2059 = vmatprep.subr.bf16.mxu0 %v1457
    %2060 = vmatpush1.bf16.msra.mxu0 %v1456
    %2061 = vmatprep.subr.bf16.mxu0 %v1459
    %2062 = vmatpush1.bf16.msra.mxu0 %v1458
    %2063 = vmatprep.subr.bf16.mxu0 %v1461
    %2064 = vmatpush1.bf16.msra.mxu0 %v1460
    %2065 = vmatprep.subr.bf16.mxu0 %v1463
    %2066 = vmatpush1.bf16.msra.mxu0 %v1462
    %2067 = vmatprep.mubr.bf16.mxu0 %v382
    %2068 = vmatmul.mubr.bf16.gmra.mrb[0].mxu0 %v380
    %v2069 = vpop.f32.mrb[0].mxu0
    %v2070 = vadd.f32 %v2029, %v2069
    %v2071 = vpop.f32.mrb[0].mxu0
    %v2072 = vadd.f32 %v2031, %v2071
    %v2073 = vpop.f32.mrb[0].mxu0
    %v2074 = vpop.f32.mrb[0].mxu0
    %2075 = vdwg.mxu0
    %2076 = vmatprep.subr.bf16.mxu0 %v1465
    %2077 = vmatpush1.bf16.msra.mxu0 %v1464
    %2078 = vmatprep.subr.bf16.mxu0 %v1467
    %2079 = vmatpush1.bf16.msra.mxu0 %v1466
    %2080 = vmatprep.subr.bf16.mxu0 %v1469
    %2081 = vmatpush1.bf16.msra.mxu0 %v1468
    %2082 = vmatprep.subr.bf16.mxu0 %v1471
    %2083 = vmatpush1.bf16.msra.mxu0 %v1470
    %2084 = vmatprep.subr.bf16.mxu0 %v1473
    %2085 = vmatpush1.bf16.msra.mxu0 %v1472
    %2086 = vmatprep.subr.bf16.mxu0 %v1475
    %2087 = vmatpush1.bf16.msra.mxu0 %v1474
    %2088 = vmatprep.subr.bf16.mxu0 %v1477
    %2089 = vmatpush1.bf16.msra.mxu0 %v1476
    %2090 = vmatprep.subr.bf16.mxu0 %v1479
    %2091 = vmatpush1.bf16.msra.mxu0 %v1478
    %2092 = vmatprep.subr.bf16.mxu0 %v1481
    %2093 = vmatpush1.bf16.msra.mxu0 %v1480
    %2094 = vmatprep.subr.bf16.mxu0 %v1483
    %2095 = vmatpush1.bf16.msra.mxu0 %v1482
    %2096 = vmatprep.subr.bf16.mxu0 %v1485
    %2097 = vmatpush1.bf16.msra.mxu0 %v1484
    %2098 = vmatprep.subr.bf16.mxu0 %v1487
    %2099 = vmatpush1.bf16.msra.mxu0 %v1486
    %2100 = vmatprep.subr.bf16.mxu0 %v1489
    %2101 = vmatpush1.bf16.msra.mxu0 %v1488
    %2102 = vmatprep.subr.bf16.mxu0 %v1491
    %2103 = vmatpush1.bf16.msra.mxu0 %v1490
    %2104 = vmatprep.subr.bf16.mxu0 %v1493
    %2105 = vmatpush1.bf16.msra.mxu0 %v1492
    %2106 = vmatprep.subr.bf16.mxu0 %v1495
    %2107 = vmatpush1.bf16.msra.mxu0 %v1494
    %2108 = vmatprep.mubr.bf16.mxu0 %v420
    %2109 = vmatmul.mubr.bf16.gmra.mrb[0].mxu0 %v406
    %v2110 = vpop.f32.mrb[0].mxu0
    %v2111 = vadd.f32 %v2070, %v2110
    %v2112 = vpop.f32.mrb[0].mxu0
    %v2113 = vadd.f32 %v2072, %v2112
    %v2114 = vpop.f32.mrb[0].mxu0
    %v2115 = vpop.f32.mrb[0].mxu0
    %2116 = vdwg.mxu0
    %2117 = vmatprep.subr.bf16.mxu0 %v1497
    %2118 = vmatpush1.bf16.msra.mxu0 %v1496
    %2119 = vmatprep.subr.bf16.mxu0 %v1499
    %2120 = vmatpush1.bf16.msra.mxu0 %v1498
    %2121 = vmatprep.subr.bf16.mxu0 %v1501
    %2122 = vmatpush1.bf16.msra.mxu0 %v1500
    %2123 = vmatprep.subr.bf16.mxu0 %v1503
    %2124 = vmatpush1.bf16.msra.mxu0 %v1502
    %2125 = vmatprep.subr.bf16.mxu0 %v1505
    %2126 = vmatpush1.bf16.msra.mxu0 %v1504
    %2127 = vmatprep.subr.bf16.mxu0 %v1507
    %2128 = vmatpush1.bf16.msra.mxu0 %v1506
    %2129 = vmatprep.subr.bf16.mxu0 %v1509
    %2130 = vmatpush1.bf16.msra.mxu0 %v1508
    %2131 = vmatprep.subr.bf16.mxu0 %v1511
    %2132 = vmatpush1.bf16.msra.mxu0 %v1510
    %2133 = vmatprep.subr.bf16.mxu0 %v1513
    %2134 = vmatpush1.bf16.msra.mxu0 %v1512
    %2135 = vmatprep.subr.bf16.mxu0 %v1515
    %2136 = vmatpush1.bf16.msra.mxu0 %v1514
    %2137 = vmatprep.subr.bf16.mxu0 %v1517
    %2138 = vmatpush1.bf16.msra.mxu0 %v1516
    %2139 = vmatprep.subr.bf16.mxu0 %v1519
    %2140 = vmatpush1.bf16.msra.mxu0 %v1518
    %2141 = vmatprep.subr.bf16.mxu0 %v1521
    %2142 = vmatpush1.bf16.msra.mxu0 %v1520
    %2143 = vmatprep.subr.bf16.mxu0 %v1523
    %2144 = vmatpush1.bf16.msra.mxu0 %v1522
    %2145 = vmatprep.subr.bf16.mxu0 %v1525
    %2146 = vmatpush1.bf16.msra.mxu0 %v1524
    %2147 = vmatprep.subr.bf16.mxu0 %v1527
    %2148 = vmatpush1.bf16.msra.mxu0 %v1526
    %2149 = vmatprep.mubr.bf16.mxu0 %v430
    %2150 = vmatmul.mubr.bf16.gmra.mrb[0].mxu0 %v428
    %v2151 = vpop.f32.mrb[0].mxu0
    %v2152 = vadd.f32 %v2111, %v2151
    %v2153 = vpop.f32.mrb[0].mxu0
    %v2154 = vadd.f32 %v2113, %v2153
    %v2155 = vpop.f32.mrb[0].mxu0
    %v2156 = vpop.f32.mrb[0].mxu0
    %2157 = vdwg.mxu0
    %2158 = vmatprep.subr.bf16.mxu0 %v1529
    %2159 = vmatpush1.bf16.msra.mxu0 %v1528
    %2160 = vmatprep.subr.bf16.mxu0 %v1531
    %2161 = vmatpush1.bf16.msra.mxu0 %v1530
    %2162 = vmatprep.subr.bf16.mxu0 %v1533
    %2163 = vmatpush1.bf16.msra.mxu0 %v1532
    %2164 = vmatprep.subr.bf16.mxu0 %v1535
    %2165 = vmatpush1.bf16.msra.mxu0 %v1534
    %2166 = vmatprep.subr.bf16.mxu0 %v1537
    %2167 = vmatpush1.bf16.msra.mxu0 %v1536
    %2168 = vmatprep.subr.bf16.mxu0 %v1539
    %2169 = vmatpush1.bf16.msra.mxu0 %v1538
    %2170 = vmatprep.subr.bf16.mxu0 %v1541
    %2171 = vmatpush1.bf16.msra.mxu0 %v1540
    %2172 = vmatprep.subr.bf16.mxu0 %v1543
    %2173 = vmatpush1.bf16.msra.mxu0 %v1542
    %2174 = vmatprep.subr.bf16.mxu0 %v1545
    %2175 = vmatpush1.bf16.msra.mxu0 %v1544
    %2176 = vmatprep.subr.bf16.mxu0 %v1547
    %2177 = vmatpush1.bf16.msra.mxu0 %v1546
    %2178 = vmatprep.subr.bf16.mxu0 %v1549
    %2179 = vmatpush1.bf16.msra.mxu0 %v1548
    %2180 = vmatprep.subr.bf16.mxu0 %v1551
    %2181 = vmatpush1.bf16.msra.mxu0 %v1550
    %2182 = vmatprep.subr.bf16.mxu0 %v1553
    %2183 = vmatpush1.bf16.msra.mxu0 %v1552
    %2184 = vmatprep.subr.bf16.mxu0 %v1555
    %2185 = vmatpush1.bf16.msra.mxu0 %v1554
    %2186 = vmatprep.subr.bf16.mxu0 %v1557
    %2187 = vmatpush1.bf16.msra.mxu0 %v1556
    %2188 = vmatprep.subr.bf16.mxu0 %v1559
    %2189 = vmatpush1.bf16.msra.mxu0 %v1558
    %2190 = vmatprep.mubr.bf16.mxu0 %v427
    %2191 = vmatmul.mubr.bf16.gmra.mrb[0].mxu0 %v413
    %v2192 = vpop.f32.mrb[0].mxu0
    %v2193 = vadd.f32 %v2152, %v2192
    %v2194 = vpop.f32.mrb[0].mxu0
    %v2195 = vadd.f32 %v2154, %v2194
    %v2196 = vpop.f32.mrb[0].mxu0
    %v2197 = vpop.f32.mrb[0].mxu0
    %2198 = vdwg.mxu0
    %2199 = vmatprep.subr.bf16.mxu0 %v1561
    %2200 = vmatpush1.bf16.msra.mxu0 %v1560
    %2201 = vmatprep.subr.bf16.mxu0 %v1563
    %2202 = vmatpush1.bf16.msra.mxu0 %v1562
    %2203 = vmatprep.subr.bf16.mxu0 %v1565
    %2204 = vmatpush1.bf16.msra.mxu0 %v1564
    %2205 = vmatprep.subr.bf16.mxu0 %v1567
    %2206 = vmatpush1.bf16.msra.mxu0 %v1566
    %2207 = vmatprep.subr.bf16.mxu0 %v1569
    %2208 = vmatpush1.bf16.msra.mxu0 %v1568
    %2209 = vmatprep.subr.bf16.mxu0 %v1571
    %2210 = vmatpush1.bf16.msra.mxu0 %v1570
    %2211 = vmatprep.subr.bf16.mxu0 %v1573
    %2212 = vmatpush1.bf16.msra.mxu0 %v1572
    %2213 = vmatprep.subr.bf16.mxu0 %v1575
    %2214 = vmatpush1.bf16.msra.mxu0 %v1574
    %2215 = vmatprep.subr.bf16.mxu0 %v1577
    %2216 = vmatpush1.bf16.msra.mxu0 %v1576
    %2217 = vmatprep.subr.bf16.mxu0 %v1579
    %2218 = vmatpush1.bf16.msra.mxu0 %v1578
    %2219 = vmatprep.subr.bf16.mxu0 %v1581
    %2220 = vmatpush1.bf16.msra.mxu0 %v1580
    %2221 = vmatprep.subr.bf16.mxu0 %v1583
    %2222 = vmatpush1.bf16.msra.mxu0 %v1582
    %2223 = vmatprep.subr.bf16.mxu0 %v1585
    %2224 = vmatpush1.bf16.msra.mxu0 %v1584
    %2225 = vmatprep.subr.bf16.mxu0 %v1587
    %2226 = vmatpush1.bf16.msra.mxu0 %v1586
    %2227 = vmatprep.subr.bf16.mxu0 %v1589
    %2228 = vmatpush1.bf16.msra.mxu0 %v1588
    %2229 = vmatprep.subr.bf16.mxu0 %v1591
    %2230 = vmatpush1.bf16.msra.mxu0 %v1590
    %2231 = vmatprep.mubr.bf16.mxu0 %v431
    %2232 = vmatmul.mubr.bf16.gmra.mrb[0].mxu0 %v429
    %v2233 = vpop.f32.mrb[0].mxu0
    %v2234 = vadd.f32 %v2193, %v2233
    %v2235 = vpop.f32.mrb[0].mxu0
    %v2236 = vadd.f32 %v2195, %v2235
    %v2237 = vpop.f32.mrb[0].mxu0
    %v2238 = vpop.f32.mrb[0].mxu0
    %2239 = vdwg.mxu0
    %2240 = vmatprep.subr.bf16.mxu0 %v1593
    %2241 = vmatpush1.bf16.msra.mxu0 %v1592
    %2242 = vmatprep.subr.bf16.mxu0 %v1595
    %2243 = vmatpush1.bf16.msra.mxu0 %v1594
    %2244 = vmatprep.subr.bf16.mxu0 %v1597
    %2245 = vmatpush1.bf16.msra.mxu0 %v1596
    %2246 = vmatprep.subr.bf16.mxu0 %v1599
    %2247 = vmatpush1.bf16.msra.mxu0 %v1598
    %2248 = vmatprep.subr.bf16.mxu0 %v1601
    %2249 = vmatpush1.bf16.msra.mxu0 %v1600
    %2250 = vmatprep.subr.bf16.mxu0 %v1603
    %2251 = vmatpush1.bf16.msra.mxu0 %v1602
    %2252 = vmatprep.subr.bf16.mxu0 %v1605
    %2253 = vmatpush1.bf16.msra.mxu0 %v1604
    %2254 = vmatprep.subr.bf16.mxu0 %v1607
    %2255 = vmatpush1.bf16.msra.mxu0 %v1606
    %2256 = vmatprep.subr.bf16.mxu0 %v1609
    %2257 = vmatpush1.bf16.msra.mxu0 %v1608
    %2258 = vmatprep.subr.bf16.mxu0 %v1611
    %2259 = vmatpush1.bf16.msra.mxu0 %v1610
    %2260 = vmatprep.subr.bf16.mxu0 %v1613
    %2261 = vmatpush1.bf16.msra.mxu0 %v1612
    %2262 = vmatprep.subr.bf16.mxu0 %v1615
    %2263 = vmatpush1.bf16.msra.mxu0 %v1614
    %2264 = vmatprep.subr.bf16.mxu0 %v1617
    %2265 = vmatpush1.bf16.msra.mxu0 %v1616
    %2266 = vmatprep.subr.bf16.mxu0 %v1619
    %2267 = vmatpush1.bf16.msra.mxu0 %v1618
    %2268 = vmatprep.subr.bf16.mxu0 %v1621
    %2269 = vmatpush1.bf16.msra.mxu0 %v1620
    %2270 = vmatprep.subr.bf16.mxu0 %v1623
    %2271 = vmatpush1.bf16.msra.mxu0 %v1622
    %2272 = vmatprep.mubr.bf16.mxu0 %v453
    %2273 = vmatmul.mubr.bf16.gmra.mrb[0].mxu0 %v446
    %v2274 = vpop.f32.mrb[0].mxu0
    %v2275 = vadd.f32 %v2234, %v2274
    %v2276 = vpop.f32.mrb[0].mxu0
    %v2277 = vadd.f32 %v2236, %v2276
    %v2278 = vpop.f32.mrb[0].mxu0
    %v2279 = vpop.f32.mrb[0].mxu0
    %2280 = vdwg.mxu0
    %v2281 = vmax.f32 %v2275, 0.0
    %v2282 = vmax.f32 %v2277, 0.0
    %v2283 = vpack.c.bf16 %v2281, %v2281
    %v2284 = vpack.c.bf16 %v2282, %v2282
    %v2285 = vld [vmem:[%s3] sm:$0xf]
    %v2286 = vld [vmem:[%s3 + $0x4] sm:$0xf]
    %v2287 = vld [vmem:[%s3 + $0x8] sm:$0xf]
    %v2288 = vld [vmem:[%s3 + $0xc] sm:$0xf]
    %v2289 = vld [vmem:[%s3 + $0x10] sm:$0xf]
    %v2290 = vld [vmem:[%s3 + $0x14] sm:$0xf]
    %v2291 = vld [vmem:[%s3 + $0x18] sm:$0xf]
    %v2292 = vld [vmem:[%s3 + $0x1c] sm:$0xf]
    %v2293 = vld [vmem:[%s3 + $0x20] sm:$0xf]
    %v2294 = vld [vmem:[%s3 + $0x24] sm:$0xf]
    %v2295 = vld [vmem:[%s3 + $0x28] sm:$0xf]
    %v2296 = vld [vmem:[%s3 + $0x2c] sm:$0xf]
    %v2297 = vld [vmem:[%s3 + $0x30] sm:$0xf]
    %v2298 = vld [vmem:[%s3 + $0x34] sm:$0xf]
    %v2299 = vld [vmem:[%s3 + $0x38] sm:$0xf]
    %v2300 = vld [vmem:[%s3 + $0x3c] sm:$0xf]
    %v2301 = vld [vmem:[%s3 + $0x40] sm:$0xf]
    %v2302 = vld [vmem:[%s3 + $0x44] sm:$0xf]
    %v2303 = vld [vmem:[%s3 + $0x48] sm:$0xf]
    %v2304 = vld [vmem:[%s3 + $0x4c] sm:$0xf]
    %v2305 = vld [vmem:[%s3 + $0x50] sm:$0xf]
    %v2306 = vld [vmem:[%s3 + $0x54] sm:$0xf]
    %v2307 = vld [vmem:[%s3 + $0x58] sm:$0xf]
    %v2308 = vld [vmem:[%s3 + $0x5c] sm:$0xf]
    %v2309 = vld [vmem:[%s3 + $0x60] sm:$0xf]
    %v2310 = vld [vmem:[%s3 + $0x64] sm:$0xf]
    %v2311 = vld [vmem:[%s3 + $0x68] sm:$0xf]
    %v2312 = vld [vmem:[%s3 + $0x6c] sm:$0xf]
    %v2313 = vld [vmem:[%s3 + $0x70] sm:$0xf]
    %v2314 = vld [vmem:[%s3 + $0x74] sm:$0xf]
    %v2315 = vld [vmem:[%s3 + $0x78] sm:$0xf]
    %v2316 = vld [vmem:[%s3 + $0x7c] sm:$0xf]
    %v2317 = vld [vmem:[%s4] sm:$0x1]
    %v2319 = vlaneseq
    %v2320 = vshrl.u32 %v2319, 7
    %v2321 = vsub.s32 0, %v2320
    %v2322 = vrot.slane %v2317, %v2321
    %v2356 = vunpack.c.l.b16 %v2285
    %v2357 = vunpack.c.l.b16 %v2286
    %v2358 = vunpack.c.l.b16 %v2287
    %v2359 = vunpack.c.l.b16 %v2288
    %v2360 = vunpack.c.l.b16 %v2289
    %v2361 = vunpack.c.l.b16 %v2290
    %v2362 = vunpack.c.l.b16 %v2291
    %v2363 = vunpack.c.l.b16 %v2292
    %v2364 = vunpack.c.l.b16 %v2293
    %v2365 = vunpack.c.l.b16 %v2294
    %v2366 = vunpack.c.l.b16 %v2295
    %v2367 = vunpack.c.l.b16 %v2296
    %v2368 = vunpack.c.l.b16 %v2297
    %v2369 = vunpack.c.l.b16 %v2298
    %v2370 = vunpack.c.l.b16 %v2299
    %v2371 = vunpack.c.l.b16 %v2300
    %v2372 = vunpack.c.l.b16 %v2301
    %v2373 = vunpack.c.l.b16 %v2302
    %v2374 = vunpack.c.l.b16 %v2303
    %v2375 = vunpack.c.l.b16 %v2304
    %v2376 = vunpack.c.l.b16 %v2305
    %v2377 = vunpack.c.l.b16 %v2306
    %v2378 = vunpack.c.l.b16 %v2307
    %v2379 = vunpack.c.l.b16 %v2308
    %v2380 = vunpack.c.l.b16 %v2309
    %v2381 = vunpack.c.l.b16 %v2310
    %v2382 = vunpack.c.l.b16 %v2311
    %v2383 = vunpack.c.l.b16 %v2312
    %v2384 = vunpack.c.l.b16 %v2313
    %v2385 = vunpack.c.l.b16 %v2314
    %v2386 = vunpack.c.l.b16 %v2315
    %v2387 = vunpack.c.l.b16 %v2316
    %v2388 = vpack.c.b16 %v2357, %v2356
    %v2389 = vpack.c.b16 %v2359, %v2358
    %v2390 = vpack.c.b16 %v2361, %v2360
    %v2391 = vpack.c.b16 %v2363, %v2362
    %v2392 = vpack.c.b16 %v2365, %v2364
    %v2393 = vpack.c.b16 %v2367, %v2366
    %v2394 = vpack.c.b16 %v2369, %v2368
    %v2395 = vpack.c.b16 %v2371, %v2370
    %v2396 = vpack.c.b16 %v2373, %v2372
    %v2397 = vpack.c.b16 %v2375, %v2374
    %v2398 = vpack.c.b16 %v2377, %v2376
    %v2399 = vpack.c.b16 %v2379, %v2378
    %v2400 = vpack.c.b16 %v2381, %v2380
    %v2401 = vpack.c.b16 %v2383, %v2382
    %v2402 = vpack.c.b16 %v2385, %v2384
    %v2403 = vpack.c.b16 %v2387, %v2386
    %2420 = vmatprep.subr.bf16.mxu0 0
    %2421 = vmatpush1.bf16.msra.mxu0 %v2388
    %2422 = vmatprep.subr.bf16.mxu0 0
    %2423 = vmatpush1.bf16.msra.mxu0 %v2389
    %2424 = vmatprep.subr.bf16.mxu0 0
    %2425 = vmatpush1.bf16.msra.mxu0 %v2390
    %2426 = vmatprep.subr.bf16.mxu0 0
    %2427 = vmatpush1.bf16.msra.mxu0 %v2391
    %2428 = vmatprep.subr.bf16.mxu0 0
    %2429 = vmatpush1.bf16.msra.mxu0 %v2392
    %2430 = vmatprep.subr.bf16.mxu0 0
    %2431 = vmatpush1.bf16.msra.mxu0 %v2393
    %2432 = vmatprep.subr.bf16.mxu0 0
    %2433 = vmatpush1.bf16.msra.mxu0 %v2394
    %2434 = vmatprep.subr.bf16.mxu0 0
    %2435 = vmatpush1.bf16.msra.mxu0 %v2395
    %2436 = vmatprep.subr.bf16.mxu0 0
    %2437 = vmatpush1.bf16.msra.mxu0 %v2396
    %2438 = vmatprep.subr.bf16.mxu0 0
    %2439 = vmatpush1.bf16.msra.mxu0 %v2397
    %2440 = vmatprep.subr.bf16.mxu0 0
    %2441 = vmatpush1.bf16.msra.mxu0 %v2398
    %2442 = vmatprep.subr.bf16.mxu0 0
    %2443 = vmatpush1.bf16.msra.mxu0 %v2399
    %2444 = vmatprep.subr.bf16.mxu0 0
    %2445 = vmatpush1.bf16.msra.mxu0 %v2400
    %2446 = vmatprep.subr.bf16.mxu0 0
    %2447 = vmatpush1.bf16.msra.mxu0 %v2401
    %2448 = vmatprep.subr.bf16.mxu0 0
    %2449 = vmatpush1.bf16.msra.mxu0 %v2402
    %2450 = vmatprep.subr.bf16.mxu0 0
    %2451 = vmatpush1.bf16.msra.mxu0 %v2403
    %2452 = vmatprep.mubr.bf16.mxu0 %v2284
    %2453 = vmatmul.mubr.bf16.gmra.mrb[0].mxu0 %v2283
    %v2454 = vpop.f32.mrb[0].mxu0
    %v2455 = vadd.f32 %v2322, %v2454
    %v2456 = vpop.f32.mrb[0].mxu0
    %v2457 = vpop.f32.mrb[0].mxu0
    %v2458 = vpop.f32.mrb[0].mxu0
    %2459 = vdwg.mxu0
    %v2460 = vmax.f32 %v2455, 0.0
    %v2461 = vpack.c.bf16 %v2460, %v2460
    %v2462 = vld [vmem:[%s5] sm:$0xf]
    %v2463 = vld [vmem:[%s5 + $0x4] sm:$0xf]
    %v2464 = vld [vmem:[%s5 + $0x8] sm:$0xf]
    %v2465 = vld [vmem:[%s5 + $0xc] sm:$0xf]
    %v2466 = vld [vmem:[%s5 + $0x10] sm:$0xf]
    %v2467 = vld [vmem:[%s5 + $0x14] sm:$0xf]
    %v2468 = vld [vmem:[%s5 + $0x18] sm:$0xf]
    %v2469 = vld [vmem:[%s5 + $0x1c] sm:$0xf]
    %v2470 = vld [vmem:[%s5 + $0x20] sm:$0xf]
    %v2471 = vld [vmem:[%s5 + $0x24] sm:$0xf]
    %v2472 = vld [vmem:[%s5 + $0x28] sm:$0xf]
    %v2473 = vld [vmem:[%s5 + $0x2c] sm:$0xf]
    %v2474 = vld [vmem:[%s5 + $0x30] sm:$0xf]
    %v2475 = vld [vmem:[%s5 + $0x34] sm:$0xf]
    %v2476 = vld [vmem:[%s5 + $0x38] sm:$0xf]
    %v2477 = vld [vmem:[%s5 + $0x3c] sm:$0xf]
    %v2478 = vld [vmem:[%s6] sm:$0x1]
    %v2480 = vlaneseq
    %v2481 = vshrl.u32 %v2480, 7
    %v2482 = vsub.s32 0, %v2481
    %v2483 = vrot.slane %v2478, %v2482
    %v2501 = vunpack.c.l.b16 %v2462
    %v2502 = vunpack.c.l.b16 %v2463
    %v2503 = vunpack.c.l.b16 %v2464
    %v2504 = vunpack.c.l.b16 %v2465
    %v2505 = vunpack.c.l.b16 %v2466
    %v2506 = vunpack.c.l.b16 %v2467
    %v2507 = vunpack.c.l.b16 %v2468
    %v2508 = vunpack.c.l.b16 %v2469
    %v2509 = vunpack.c.l.b16 %v2470
    %v2510 = vunpack.c.l.b16 %v2471
    %v2511 = vunpack.c.l.b16 %v2472
    %v2512 = vunpack.c.l.b16 %v2473
    %v2513 = vunpack.c.l.b16 %v2474
    %v2514 = vunpack.c.l.b16 %v2475
    %v2515 = vunpack.c.l.b16 %v2476
    %v2516 = vunpack.c.l.b16 %v2477
    %v2517 = vpack.c.b16 %v2502, %v2501
    %v2518 = vpack.c.b16 %v2504, %v2503
    %v2519 = vpack.c.b16 %v2506, %v2505
    %v2520 = vpack.c.b16 %v2508, %v2507
    %v2521 = vpack.c.b16 %v2510, %v2509
    %v2522 = vpack.c.b16 %v2512, %v2511
    %v2523 = vpack.c.b16 %v2514, %v2513
    %v2524 = vpack.c.b16 %v2516, %v2515
    %2533 = vmatprep.subr.bf16.mxu0 0
    %2534 = vmatpush1.bf16.msra.mxu0 %v2517
    %2535 = vmatprep.subr.bf16.mxu0 0
    %2536 = vmatpush1.bf16.msra.mxu0 %v2518
    %2537 = vmatprep.subr.bf16.mxu0 0
    %2538 = vmatpush1.bf16.msra.mxu0 %v2519
    %2539 = vmatprep.subr.bf16.mxu0 0
    %2540 = vmatpush1.bf16.msra.mxu0 %v2520
    %2541 = vmatprep.subr.bf16.mxu0 0
    %2542 = vmatpush1.bf16.msra.mxu0 %v2521
    %2543 = vmatprep.subr.bf16.mxu0 0
    %2544 = vmatpush1.bf16.msra.mxu0 %v2522
    %2545 = vmatprep.subr.bf16.mxu0 0
    %2546 = vmatpush1.bf16.msra.mxu0 %v2523
    %2547 = vmatprep.subr.bf16.mxu0 0
    %2548 = vmatpush1.bf16.msra.mxu0 %v2524
    %2549 = vmatprep.subr.bf16.mxu0 0
    %2550 = vmatpush1.bf16.msra.mxu0 0
    %2551 = vmatprep.subr.bf16.mxu0 0
    %2552 = vmatpush1.bf16.msra.mxu0 0
    %2553 = vmatprep.subr.bf16.mxu0 0
    %2554 = vmatpush1.bf16.msra.mxu0 0
    %2555 = vmatprep.subr.bf16.mxu0 0
    %2556 = vmatpush1.bf16.msra.mxu0 0
    %2557 = vmatprep.subr.bf16.mxu0 0
    %2558 = vmatpush1.bf16.msra.mxu0 0
    %2559 = vmatprep.subr.bf16.mxu0 0
    %2560 = vmatpush1.bf16.msra.mxu0 0
    %2561 = vmatprep.subr.bf16.mxu0 0
    %2562 = vmatpush1.bf16.msra.mxu0 0
    %2563 = vmatprep.subr.bf16.mxu0 0
    %2564 = vmatpush1.bf16.msra.mxu0 0
    %2565 = vmatprep.mubr.bf16.mxu0 0
    %2566 = vmatmul.mubr.bf16.gmra.mrb[0].mxu0 %v2461
    %v2567 = vpop.f32.mrb[0].mxu0
    %v2568 = vadd.f32 %v2483, %v2567
    %v2569 = vpop.f32.mrb[0].mxu0
    %v2570 = vpop.f32.mrb[0].mxu0
    %v2571 = vpop.f32.mrb[0].mxu0
    %2572 = vdwg.mxu0
    %2573 = vst [vmem:[#allocation2] sm:$0x3] %v2568
    // Predicated region
    $region30: #{my_model_forward.17} parent=1 // pred_check
      _
    $region31: #{my_model_forward.17} parent=1 // pred_check_branch
      %2575 = sbr.rel (0) target = $region33
    $region32: #{my_model_forward.17} parent=1 // pred_region
      %s2577 = ssub.s32 32, 32
      %2578 = vsyncadd [#allocation3], %s2577
      %s2580 = sshll.u32 [#allocation2], 4
      %s2581 = int_to_ptr.vmem [resolvable:$true] %s2580
      %2583 = dma.vmem_to_hbm [thread:$0]  %s2581, 32, %s7, [#allocation3]
    $region33: #{my_model_forward.17} parent=1 // pred_fallthru
      _
    // Predicated region
    $region34: #{my_model_forward.17} parent=1 // pred_check
      _
    $region35: #{my_model_forward.17} parent=1 // pred_check_branch
      %2585 = sbr.rel (0) target = $region37
    $region36: #{my_model_forward.17} parent=1 // pred_region
      %2586 = dma.done [#allocation3], 32
    $region37: #{my_model_forward.17} parent=1 // pred_fallthru
      _
    %2587 = vsyncpa [#allocation3], 1

</llo_original>
